<compile_context>
chip_gen: v5e
topology: v5e:2x2
jax: 0.10.0
libtpu: 0.0.40
codegen_flags: <defaults>
</compile_context>

<pallas_src>
import functools

import jax
import jax.numpy as jnp
from jax.experimental import pallas as pl
from jax.experimental.pallas import tpu as pltpu


# ----------------------------------------------------------------------------
# Fixed geometry (16x16 single-channel inputs, MNIST-like test size).
# ----------------------------------------------------------------------------
H = W = 16
H1, W1 = H // 2, W // 2          # after pool1: 8 x 8
H2, W2 = H // 4, W // 4          # after pool2: 4 x 4
HW1 = H1 * W1                    # 64 pixels after pool1
WP = 16                          # padded raster width (multiple of 8, > W1)
LEAD = 24                        # zero rows before the first image frame (>17)
FR = (H1 + 1) * WP               # raster rows per image frame (incl. bottom pad)
NVAL = 16                        # (dh1,dw1,dh2,dw2) decoder values per pooled px


# ----------------------------------------------------------------------------
# Fused kernel: one grid step == TB images, everything stays in VMEM.
# ----------------------------------------------------------------------------
def _dae_kernel(cols_ref, w1_ref, b1_ref, w2_ref, b2_ref, w3_ref, b3_ref,
                w4_ref, b4_ref, out_ref, p1pad_ref, a2_ref, p2_ref, *, tb):
    f32 = jnp.float32
    npix = tb * HW1                      # pool1 pixels per grid step
    n_rows = (tb - 1) * FR + 128         # conv2 raster rows computed per step
    n_pool = (tb - 1) * FR + 104         # rows of the pooling pair-max window
    nbuf = p1pad_ref.shape[0]

    # ---- conv1 (3x3, 1->32) + ReLU: one MXU matmul over pre-gathered taps.
    # Rows are ordered (pool tap, image, h, w), so maxpool1 is an elementwise
    # max over four contiguous, 8-aligned row blocks.
    c = cols_ref[0]                                               # (4*npix, 9)
    a1 = jnp.dot(c, w1_ref[...], preferred_element_type=f32)
    a1 = jnp.maximum(a1 + b1_ref[...], 0.0)
    p1 = jnp.maximum(jnp.maximum(a1[0:npix], a1[npix:2 * npix]),
                     jnp.maximum(a1[2 * npix:3 * npix], a1[3 * npix:4 * npix]))

    # ---- scatter pool1 into a zero-padded raster (width WP=16): every store
    # start below is a multiple of 8, so all stores are sublane-aligned, and
    # only the pad cells are zeroed (interior rows are fully rewritten).
    zrow8 = jnp.zeros((WP - W1, 32), f32)
    p1pad_ref[pl.ds(0, LEAD), :] = jnp.zeros((LEAD, 32), f32)
    p1pad_ref[pl.ds(nbuf - 8, 8), :] = jnp.zeros((8, 32), f32)
    for b in range(tb):
        fb = LEAD + b * FR
        for h in range(H1):
            r0 = b * HW1 + h * W1
            p1pad_ref[pl.ds(fb + h * WP, W1), :] = p1[r0:r0 + W1]
            p1pad_ref[pl.ds(fb + h * WP + W1, WP - W1), :] = zrow8
        p1pad_ref[pl.ds(fb + H1 * WP, WP), :] = jnp.zeros((WP, 32), f32)

    # ---- conv2 (3x3, 32->64) + ReLU: 9 shifted-window matmuls accumulated in
    # f32.  Valid output for image b, pixel (h, w) lands at row b*FR + h*WP + w.
    acc = None
    for ky in range(3):
        for kx in range(3):
            start = LEAD + (ky - 1) * WP + (kx - 1)
            t = jnp.dot(p1pad_ref[pl.ds(start, n_rows), :], w2_ref[ky * 3 + kx],
                        preferred_element_type=f32)
            acc = t if acc is None else acc + t
    a2_ref[...] = jnp.maximum(acc + b2_ref[...], 0.0)

    # ---- maxpool2, vectorized: one pair-max over the whole raster (4 shifted
    # full-window loads + 3 maxes), then 8-aligned band slices.  Pooled pixel
    # (b, i, j) sits at even column 2*j of band (b, i).
    pm = jnp.maximum(
        jnp.maximum(a2_ref[pl.ds(0, n_pool), :], a2_ref[pl.ds(1, n_pool), :]),
        jnp.maximum(a2_ref[pl.ds(WP, n_pool), :],
                    a2_ref[pl.ds(WP + 1, n_pool), :]))
    for b in range(tb):
        for i in range(H2):
            s = b * FR + 2 * i * WP
            p2_ref[pl.ds((b * H2 + i) * W1, W1), :] = pm[s:s + W1]

    # ---- decoder: both ConvTranspose2d(k=2, s=2) layers are pointwise
    # matmuls over the pooled rows.  Odd raster columns ride along (keeps all
    # stores >= 8 rows dense) and are dropped by the wrapper.
    pooled = p2_ref[...]                                          # (tb*32, 64)
    d1 = jnp.maximum(jnp.dot(pooled, w3_ref[...],
                             preferred_element_type=f32) + b3_ref[...], 0.0)
    logit = jnp.dot(d1, w4_ref[...], preferred_element_type=f32) + b4_ref[...]
    out_ref[...] = (1.0 / (1.0 + jnp.exp(-logit))).astype(out_ref.dtype)


# ----------------------------------------------------------------------------
# Wrapper-side prep (kernel-boundary tensors only; all tiny).
# ----------------------------------------------------------------------------
def _conv1_taps(x_nchw):
    """(N,1,H,W) -> (N, 4, H1*W1, 9) conv1 taps; axis 1 is the 2x2 pool tap."""
    n = x_nchw.shape[0]
    xpad = jnp.pad(x_nchw[:, 0], ((0, 0), (1, 1), (1, 1)))         # (N,H+2,W+2)
    taps = [xpad[:, ky:ky + H, kx:kx + W] for ky in range(3) for kx in range(3)]
    cols = jnp.stack(taps, axis=-1)                                # (N,H,W,9)
    cols = cols.reshape(n, H1, 2, W1, 2, 9)                        # n,i,dy,j,dx,t
    cols = jnp.transpose(cols, (0, 2, 4, 1, 3, 5))                 # n,dy,dx,i,j,t
    return cols.reshape(n, 4, HW1, 9)


def _prep_params(p):
    w1 = jnp.transpose(p["w1"], (2, 3, 1, 0)).reshape(9, 32)       # (tap, co)
    b1 = p["b1"].reshape(1, 32)
    w2 = jnp.transpose(p["w2"], (2, 3, 1, 0)).reshape(9, 32, 64)   # (tap, ci, co)
    b2 = p["b2"].reshape(1, 64)
    # deconv1: columns ordered (dh1, dw1, co) -> 128 lanes
    w3 = jnp.transpose(p["w3"], (0, 2, 3, 1)).reshape(64, 4 * 32)
    b3 = jnp.tile(p["b3"], 4).reshape(1, 128)
    # deconv2: block-diagonal so it consumes deconv1's (dh1,dw1,co) columns
    w4m = jnp.transpose(p["w4"], (0, 2, 3, 1)).reshape(32, 4)      # (ci, dh2*2+dw2)
    w4 = jnp.kron(jnp.eye(4, dtype=w4m.dtype), w4m)                # (128, 16)
    b4 = jnp.tile(p["b4"], 16).reshape(1, 16)
    return w1, b1, w2, b2, w3, b3, w4, b4


def _pick_tb(n):
    """Images per grid step: keep >= 2 grid steps so both v7x TCs get work."""
    tb = max(1, min(8, n // 2))
    while n % tb:
        tb -= 1
    return tb


def forward(x_nchw, params, tb=None):
    """Full DenoisingAutoencoder forward.  x:(N,1,16,16) -> (N,1,16,16)."""
    n, c, hh, ww = x_nchw.shape
    assert c == 1 and hh == H and ww == W
    tb = _pick_tb(n) if tb is None else tb
    assert n % tb == 0
    nb = n // tb
    nbuf = tb * FR + LEAD + 8
    n_rows = (tb - 1) * FR + 128
    rows_per_img = H2 * W1                     # 32 decoder rows per image

    cols = _conv1_taps(x_nchw)                                     # (N,4,64,9)
    # Group TB images per block with the pool tap outermost inside the block,
    # so maxpool1 reduces to 3 maxes of aligned contiguous row blocks.
    cols_g = (cols.reshape(nb, tb, 4, HW1, 9)
                  .transpose(0, 2, 1, 3, 4)
                  .reshape(nb, 4 * tb * HW1, 9))
    w1, b1, w2, b2, w3, b3, w4, b4 = _prep_params(params)

    kernel = functools.partial(_dae_kernel, tb=tb)
    out = pl.pallas_call(
        kernel,
        out_shape=jax.ShapeDtypeStruct((n * rows_per_img, NVAL), jnp.float32),
        grid=(nb,),
        in_specs=[
            pl.BlockSpec((1, 4 * tb * HW1, 9), lambda b: (b, 0, 0)),
            pl.BlockSpec((9, 32), lambda b: (0, 0)),
            pl.BlockSpec((1, 32), lambda b: (0, 0)),
            pl.BlockSpec((9, 32, 64), lambda b: (0, 0, 0)),
            pl.BlockSpec((1, 64), lambda b: (0, 0)),
            pl.BlockSpec((64, 128), lambda b: (0, 0)),
            pl.BlockSpec((1, 128), lambda b: (0, 0)),
            pl.BlockSpec((128, 16), lambda b: (0, 0)),
            pl.BlockSpec((1, 16), lambda b: (0, 0)),
        ],
        out_specs=pl.BlockSpec((tb * rows_per_img, NVAL), lambda b: (b, 0)),
        scratch_shapes=[
            pltpu.VMEM((nbuf, 32), jnp.float32),                 # pool1 raster
            pltpu.VMEM((n_rows, 64), jnp.float32),               # conv2 raster
            pltpu.VMEM((tb * rows_per_img, 64), jnp.float32),    # pooled bands
        ],
        compiler_params=pltpu.CompilerParams(
            dimension_semantics=("parallel",)),
    )(cols_g, w1, b1, w2, b2, w3, b3, w4, b4)

    # Drop the odd raster columns that rode through the decoder, then undo the
    # (2x deconv1) x (2x deconv2) pixel shuffle on the tiny output.
    o = out.reshape(n, H2, 2 * W2, NVAL)[:, :, 0::2, :]            # (N,4,4,16)
    o = o.reshape(n, H2, W2, 2, 2, 2, 2)                           # i,j,dh1,dw1,dh2,dw2
    o = jnp.transpose(o, (0, 1, 3, 5, 2, 4, 6)).reshape(n, H, W)
    return o[:, None, :, :]


# ----------------------------------------------------------------------------
# Deterministic parameter init (PyTorch-like uniform(-1/sqrt(fan_in), +))
# ----------------------------------------------------------------------------
def init_params(key):
    ks = jax.random.split(key, 8)

    def u(k, shape, fan_in):
        bound = 1.0 / (fan_in ** 0.5)
        return jax.random.uniform(k, shape, jnp.float32, -bound, bound)

    return {
        "w1": u(ks[0], (32, 1, 3, 3), 1 * 9),      # Conv2d(1, 32, 3, p=1)
        "b1": u(ks[1], (32,), 1 * 9),
        "w2": u(ks[2], (64, 32, 3, 3), 32 * 9),    # Conv2d(32, 64, 3, p=1)
        "b2": u(ks[3], (64,), 32 * 9),
        "w3": u(ks[4], (64, 32, 2, 2), 32 * 4),    # ConvTranspose2d(64, 32, 2, s=2)
        "b3": u(ks[5], (32,), 32 * 4),
        "w4": u(ks[6], (32, 1, 2, 2), 1 * 4),      # ConvTranspose2d(32, 1, 2, s=2)
        "b4": u(ks[7], (1,), 1 * 4),
    }


# ----------------------------------------------------------------------------
# Pure-JAX reference (correctness check only)
# ----------------------------------------------------------------------------
def _ref_deconv2x2(x, w_iohw, b):
    w = jnp.transpose(w_iohw[:, :, ::-1, ::-1], (1, 0, 2, 3))   # OIHW, flipped
    y = jax.lax.conv_general_dilated(
        x, w, window_strides=(1, 1), padding=((1, 1), (1, 1)),
        lhs_dilation=(2, 2), dimension_numbers=("NCHW", "OIHW", "NCHW"))
    return y + b[None, :, None, None]


def ref_forward(x, p):
    dn = ("NCHW", "OIHW", "NCHW")
    y = jax.lax.conv_general_dilated(x, p["w1"], (1, 1), ((1, 1), (1, 1)),
                                     dimension_numbers=dn)
    y = jax.nn.relu(y + p["b1"][None, :, None, None])
    y = jax.lax.reduce_window(y, -jnp.inf, jax.lax.max, (1, 1, 2, 2),
                              (1, 1, 2, 2), "VALID")
    y = jax.lax.conv_general_dilated(y, p["w2"], (1, 1), ((1, 1), (1, 1)),
                                     dimension_numbers=dn)
    y = jax.nn.relu(y + p["b2"][None, :, None, None])
    y = jax.lax.reduce_window(y, -jnp.inf, jax.lax.max, (1, 1, 2, 2),
                              (1, 1, 2, 2), "VALID")
    y = jax.nn.relu(_ref_deconv2x2(y, p["w3"], p["b3"]))
    y = jax.nn.sigmoid(_ref_deconv2x2(y, p["w4"], p["b4"]))
    return y


# ----------------------------------------------------------------------------
if __name__ == "__main__":
    key = jax.random.PRNGKey(0)
    pkey, xkey = jax.random.split(key)
    params = init_params(pkey)

    # Small MNIST-like input: batch=8, channels=1, spatial=16x16 (NCHW).
    # -> 4 images per grid step, 2 grid steps (keeps both v7x cores busy).
    x = jax.random.uniform(xkey, (8, 1, 16, 16), jnp.float32)

    out = jax.jit(lambda inp: forward(inp, params))(x)
    out = jax.block_until_ready(out)
    assert out.shape == (8, 1, 16, 16), out.shape

    ref = jax.block_until_ready(ref_forward(x, params))
    max_err = float(jnp.max(jnp.abs(out - ref)))
    assert max_err < 2e-4, f"mismatch vs reference, max_err={max_err}"

    print("KERNEL_OK")
</pallas_src>

<mosaic_0001>
module attributes {stable_mosaic.version = 11 : i64} {
  func.func @_dae_kernel(%arg0: i32, %arg1: memref<1x1024x9xf32, #tpu.memory_space<vmem>>, %arg2: memref<9x32xf32, #tpu.memory_space<vmem>>, %arg3: memref<1x32xf32, #tpu.memory_space<vmem>>, %arg4: memref<9x32x64xf32, #tpu.memory_space<vmem>>, %arg5: memref<1x64xf32, #tpu.memory_space<vmem>>, %arg6: memref<64x128xf32, #tpu.memory_space<vmem>>, %arg7: memref<1x128xf32, #tpu.memory_space<vmem>>, %arg8: memref<128x16xf32, #tpu.memory_space<vmem>>, %arg9: memref<1x16xf32, #tpu.memory_space<vmem>>, %arg10: memref<128x16xf32, #tpu.memory_space<vmem>>, %arg11: memref<608x32xf32, #tpu.memory_space<vmem>>, %arg12: memref<560x64xf32, #tpu.memory_space<vmem>>, %arg13: memref<128x64xf32, #tpu.memory_space<vmem>>) attributes {dimension_semantics = [#tpu.dimension_semantics<parallel>], iteration_bounds = array<i64: 2>, scalar_prefetch = 0 : i64, scratch_operands = 3 : i64, tpu.core_type = #tpu.core_type<tc>, window_params = [{transform_indices = @transform_0, window_bounds = array<i64: 1, 1024, 9>}, {pipeline_mode = #tpu.pipeline_mode<synchronous>, transform_indices = @transform_1, window_bounds = array<i64: 9, 32>}, {pipeline_mode = #tpu.pipeline_mode<synchronous>, transform_indices = @transform_2, window_bounds = array<i64: 1, 32>}, {pipeline_mode = #tpu.pipeline_mode<synchronous>, transform_indices = @transform_3, window_bounds = array<i64: 9, 32, 64>}, {pipeline_mode = #tpu.pipeline_mode<synchronous>, transform_indices = @transform_4, window_bounds = array<i64: 1, 64>}, {pipeline_mode = #tpu.pipeline_mode<synchronous>, transform_indices = @transform_5, window_bounds = array<i64: 64, 128>}, {pipeline_mode = #tpu.pipeline_mode<synchronous>, transform_indices = @transform_6, window_bounds = array<i64: 1, 128>}, {pipeline_mode = #tpu.pipeline_mode<synchronous>, transform_indices = @transform_7, window_bounds = array<i64: 128, 16>}, {pipeline_mode = #tpu.pipeline_mode<synchronous>, transform_indices = @transform_8, window_bounds = array<i64: 1, 16>}, {transform_indices = @transform_9, window_bounds = array<i64: 128, 16>}]} {
    %c0 = arith.constant 0 : index
    %c0_0 = arith.constant 0 : index
    %c0_1 = arith.constant 0 : index
    %0 = vector.load %arg1[%c0, %c0_0, %c0_1] : memref<1x1024x9xf32, #tpu.memory_space<vmem>>, vector<1x1024x9xf32>
    %1 = vector.shape_cast %0 : vector<1x1024x9xf32> to vector<1024x9xf32>
    %c0_2 = arith.constant 0 : index
    %c0_3 = arith.constant 0 : index
    %2 = vector.load %arg2[%c0_2, %c0_3] : memref<9x32xf32, #tpu.memory_space<vmem>>, vector<9x32xf32>
    %cst = arith.constant dense<0.000000e+00> : vector<1024x32xf32>
    %3 = tpu.matmul %1, %2, %cst {dimension_numbers = #tpu.dot_dimension_numbers<[1], [0], [0], [1], [0, 0, 1, 1], [], []>} : vector<1024x9xf32>, vector<9x32xf32>, vector<1024x32xf32> -> vector<1024x32xf32>
    %c0_4 = arith.constant 0 : index
    %c0_5 = arith.constant 0 : index
    %4 = vector.load %arg3[%c0_4, %c0_5] : memref<1x32xf32, #tpu.memory_space<vmem>>, vector<1x32xf32>
    %5 = vector.broadcast %4 : vector<1x32xf32> to vector<1024x32xf32>
    %6 = arith.addf %3, %5 : vector<1024x32xf32>
    %cst_6 = arith.constant 0.000000e+00 : f32
    %7 = vector.broadcast %cst_6 : f32 to vector<1024x32xf32>
    %8 = arith.maximumf %6, %7 : vector<1024x32xf32>
    %9 = vector.extract_strided_slice %8 {offsets = [0, 0], sizes = [256, 32], strides = [1, 1]} : vector<1024x32xf32> to vector<256x32xf32>
    %10 = vector.extract_strided_slice %8 {offsets = [256, 0], sizes = [256, 32], strides = [1, 1]} : vector<1024x32xf32> to vector<256x32xf32>
    %11 = arith.maximumf %9, %10 : vector<256x32xf32>
    %12 = vector.extract_strided_slice %8 {offsets = [512, 0], sizes = [256, 32], strides = [1, 1]} : vector<1024x32xf32> to vector<256x32xf32>
    %13 = vector.extract_strided_slice %8 {offsets = [768, 0], sizes = [256, 32], strides = [1, 1]} : vector<1024x32xf32> to vector<256x32xf32>
    %14 = arith.maximumf %12, %13 : vector<256x32xf32>
    %15 = arith.maximumf %11, %14 : vector<256x32xf32>
    %cst_7 = arith.constant 0.000000e+00 : f32
    %16 = vector.broadcast %cst_7 : f32 to vector<8x32xf32>
    %cst_8 = arith.constant 0.000000e+00 : f32
    %17 = vector.broadcast %cst_8 : f32 to vector<24x32xf32>
    %c0_9 = arith.constant 0 : index
    %c0_10 = arith.constant 0 : index
    %18 = vector.load %arg11[%c0_9, %c0_10] : memref<608x32xf32, #tpu.memory_space<vmem>>, vector<24x32xf32>
    tpu.vector_store %arg11[%c0_9, %c0_10], %17 {strides = array<i32>} : memref<608x32xf32, #tpu.memory_space<vmem>>, vector<24x32xf32>,
    %cst_11 = arith.constant 0.000000e+00 : f32
    %19 = vector.broadcast %cst_11 : f32 to vector<8x32xf32>
    %c600 = arith.constant 600 : index
    %c0_12 = arith.constant 0 : index
    %20 = vector.load %arg11[%c600, %c0_12] : memref<608x32xf32, #tpu.memory_space<vmem>>, vector<8x32xf32>
    tpu.vector_store %arg11[%c600, %c0_12], %19 {strides = array<i32>} : memref<608x32xf32, #tpu.memory_space<vmem>>, vector<8x32xf32>,
    %21 = vector.extract_strided_slice %15 {offsets = [0, 0], sizes = [8, 32], strides = [1, 1]} : vector<256x32xf32> to vector<8x32xf32>
    %c24 = arith.constant 24 : index
    %c0_13 = arith.constant 0 : index
    %22 = vector.load %arg11[%c24, %c0_13] : memref<608x32xf32, #tpu.memory_space<vmem>>, vector<8x32xf32>
    tpu.vector_store %arg11[%c24, %c0_13], %21 {strides = array<i32>} : memref<608x32xf32, #tpu.memory_space<vmem>>, vector<8x32xf32>,
    %c32 = arith.constant 32 : index
    %c0_14 = arith.constant 0 : index
    %23 = vector.load %arg11[%c32, %c0_14] : memref<608x32xf32, #tpu.memory_space<vmem>>, vector<8x32xf32>
    tpu.vector_store %arg11[%c32, %c0_14], %16 {strides = array<i32>} : memref<608x32xf32, #tpu.memory_space<vmem>>, vector<8x32xf32>,
    %24 = vector.extract_strided_slice %15 {offsets = [8, 0], sizes = [8, 32], strides = [1, 1]} : vector<256x32xf32> to vector<8x32xf32>
    %c40 = arith.constant 40 : index
    %c0_15 = arith.constant 0 : index
    %25 = vector.load %arg11[%c40, %c0_15] : memref<608x32xf32, #tpu.memory_space<vmem>>, vector<8x32xf32>
    tpu.vector_store %arg11[%c40, %c0_15], %24 {strides = array<i32>} : memref<608x32xf32, #tpu.memory_space<vmem>>, vector<8x32xf32>,
    %c48 = arith.constant 48 : index
    %c0_16 = arith.constant 0 : index
    %26 = vector.load %arg11[%c48, %c0_16] : memref<608x32xf32, #tpu.memory_space<vmem>>, vector<8x32xf32>
    tpu.vector_store %arg11[%c48, %c0_16], %16 {strides = array<i32>} : memref<608x32xf32, #tpu.memory_space<vmem>>, vector<8x32xf32>,
    %27 = vector.extract_strided_slice %15 {offsets = [16, 0], sizes = [8, 32], strides = [1, 1]} : vector<256x32xf32> to vector<8x32xf32>
    %c56 = arith.constant 56 : index
    %c0_17 = arith.constant 0 : index
    %28 = vector.load %arg11[%c56, %c0_17] : memref<608x32xf32, #tpu.memory_space<vmem>>, vector<8x32xf32>
    tpu.vector_store %arg11[%c56, %c0_17], %27 {strides = array<i32>} : memref<608x32xf32, #tpu.memory_space<vmem>>, vector<8x32xf32>,
    %c64 = arith.constant 64 : index
    %c0_18 = arith.constant 0 : index
    %29 = vector.load %arg11[%c64, %c0_18] : memref<608x32xf32, #tpu.memory_space<vmem>>, vector<8x32xf32>
    tpu.vector_store %arg11[%c64, %c0_18], %16 {strides = array<i32>} : memref<608x32xf32, #tpu.memory_space<vmem>>, vector<8x32xf32>,
    %30 = vector.extract_strided_slice %15 {offsets = [24, 0], sizes = [8, 32], strides = [1, 1]} : vector<256x32xf32> to vector<8x32xf32>
    %c72 = arith.constant 72 : index
    %c0_19 = arith.constant 0 : index
    %31 = vector.load %arg11[%c72, %c0_19] : memref<608x32xf32, #tpu.memory_space<vmem>>, vector<8x32xf32>
    tpu.vector_store %arg11[%c72, %c0_19], %30 {strides = array<i32>} : memref<608x32xf32, #tpu.memory_space<vmem>>, vector<8x32xf32>,
    %c80 = arith.constant 80 : index
    %c0_20 = arith.constant 0 : index
    %32 = vector.load %arg11[%c80, %c0_20] : memref<608x32xf32, #tpu.memory_space<vmem>>, vector<8x32xf32>
    tpu.vector_store %arg11[%c80, %c0_20], %16 {strides = array<i32>} : memref<608x32xf32, #tpu.memory_space<vmem>>, vector<8x32xf32>,
    %33 = vector.extract_strided_slice %15 {offsets = [32, 0], sizes = [8, 32], strides = [1, 1]} : vector<256x32xf32> to vector<8x32xf32>
    %c88 = arith.constant 88 : index
    %c0_21 = arith.constant 0 : index
    %34 = vector.load %arg11[%c88, %c0_21] : memref<608x32xf32, #tpu.memory_space<vmem>>, vector<8x32xf32>
    tpu.vector_store %arg11[%c88, %c0_21], %33 {strides = array<i32>} : memref<608x32xf32, #tpu.memory_space<vmem>>, vector<8x32xf32>,
    %c96 = arith.constant 96 : index
    %c0_22 = arith.constant 0 : index
    %35 = vector.load %arg11[%c96, %c0_22] : memref<608x32xf32, #tpu.memory_space<vmem>>, vector<8x32xf32>
    tpu.vector_store %arg11[%c96, %c0_22], %16 {strides = array<i32>} : memref<608x32xf32, #tpu.memory_space<vmem>>, vector<8x32xf32>,
    %36 = vector.extract_strided_slice %15 {offsets = [40, 0], sizes = [8, 32], strides = [1, 1]} : vector<256x32xf32> to vector<8x32xf32>
    %c104 = arith.constant 104 : index
    %c0_23 = arith.constant 0 : index
    %37 = vector.load %arg11[%c104, %c0_23] : memref<608x32xf32, #tpu.memory_space<vmem>>, vector<8x32xf32>
    tpu.vector_store %arg11[%c104, %c0_23], %36 {strides = array<i32>} : memref<608x32xf32, #tpu.memory_space<vmem>>, vector<8x32xf32>,
    %c112 = arith.constant 112 : index
    %c0_24 = arith.constant 0 : index
    %38 = vector.load %arg11[%c112, %c0_24] : memref<608x32xf32, #tpu.memory_space<vmem>>, vector<8x32xf32>
    tpu.vector_store %arg11[%c112, %c0_24], %16 {strides = array<i32>} : memref<608x32xf32, #tpu.memory_space<vmem>>, vector<8x32xf32>,
    %39 = vector.extract_strided_slice %15 {offsets = [48, 0], sizes = [8, 32], strides = [1, 1]} : vector<256x32xf32> to vector<8x32xf32>
    %c120 = arith.constant 120 : index
    %c0_25 = arith.constant 0 : index
    %40 = vector.load %arg11[%c120, %c0_25] : memref<608x32xf32, #tpu.memory_space<vmem>>, vector<8x32xf32>
    tpu.vector_store %arg11[%c120, %c0_25], %39 {strides = array<i32>} : memref<608x32xf32, #tpu.memory_space<vmem>>, vector<8x32xf32>,
    %c128 = arith.constant 128 : index
    %c0_26 = arith.constant 0 : index
    %41 = vector.load %arg11[%c128, %c0_26] : memref<608x32xf32, #tpu.memory_space<vmem>>, vector<8x32xf32>
    tpu.vector_store %arg11[%c128, %c0_26], %16 {strides = array<i32>} : memref<608x32xf32, #tpu.memory_space<vmem>>, vector<8x32xf32>,
    %42 = vector.extract_strided_slice %15 {offsets = [56, 0], sizes = [8, 32], strides = [1, 1]} : vector<256x32xf32> to vector<8x32xf32>
    %c136 = arith.constant 136 : index
    %c0_27 = arith.constant 0 : index
    %43 = vector.load %arg11[%c136, %c0_27] : memref<608x32xf32, #tpu.memory_space<vmem>>, vector<8x32xf32>
    tpu.vector_store %arg11[%c136, %c0_27], %42 {strides = array<i32>} : memref<608x32xf32, #tpu.memory_space<vmem>>, vector<8x32xf32>,
    %c144 = arith.constant 144 : index
    %c0_28 = arith.constant 0 : index
    %44 = vector.load %arg11[%c144, %c0_28] : memref<608x32xf32, #tpu.memory_space<vmem>>, vector<8x32xf32>
    tpu.vector_store %arg11[%c144, %c0_28], %16 {strides = array<i32>} : memref<608x32xf32, #tpu.memory_space<vmem>>, vector<8x32xf32>,
    %cst_29 = arith.constant 0.000000e+00 : f32
    %45 = vector.broadcast %cst_29 : f32 to vector<16x32xf32>
    %c152 = arith.constant 152 : index
    %c0_30 = arith.constant 0 : index
    %46 = vector.load %arg11[%c152, %c0_30] : memref<608x32xf32, #tpu.memory_space<vmem>>, vector<16x32xf32>
    tpu.vector_store %arg11[%c152, %c0_30], %45 {strides = array<i32>} : memref<608x32xf32, #tpu.memory_space<vmem>>, vector<16x32xf32>,
    %47 = vector.extract_strided_slice %15 {offsets = [64, 0], sizes = [8, 32], strides = [1, 1]} : vector<256x32xf32> to vector<8x32xf32>
    %c168 = arith.constant 168 : index
    %c0_31 = arith.constant 0 : index
    %48 = vector.load %arg11[%c168, %c0_31] : memref<608x32xf32, #tpu.memory_space<vmem>>, vector<8x32xf32>
    tpu.vector_store %arg11[%c168, %c0_31], %47 {strides = array<i32>} : memref<608x32xf32, #tpu.memory_space<vmem>>, vector<8x32xf32>,
    %c176 = arith.constant 176 : index
    %c0_32 = arith.constant 0 : index
    %49 = vector.load %arg11[%c176, %c0_32] : memref<608x32xf32, #tpu.memory_space<vmem>>, vector<8x32xf32>
    tpu.vector_store %arg11[%c176, %c0_32], %16 {strides = array<i32>} : memref<608x32xf32, #tpu.memory_space<vmem>>, vector<8x32xf32>,
    %50 = vector.extract_strided_slice %15 {offsets = [72, 0], sizes = [8, 32], strides = [1, 1]} : vector<256x32xf32> to vector<8x32xf32>
    %c184 = arith.constant 184 : index
    %c0_33 = arith.constant 0 : index
    %51 = vector.load %arg11[%c184, %c0_33] : memref<608x32xf32, #tpu.memory_space<vmem>>, vector<8x32xf32>
    tpu.vector_store %arg11[%c184, %c0_33], %50 {strides = array<i32>} : memref<608x32xf32, #tpu.memory_space<vmem>>, vector<8x32xf32>,
    %c192 = arith.constant 192 : index
    %c0_34 = arith.constant 0 : index
    %52 = vector.load %arg11[%c192, %c0_34] : memref<608x32xf32, #tpu.memory_space<vmem>>, vector<8x32xf32>
    tpu.vector_store %arg11[%c192, %c0_34], %16 {strides = array<i32>} : memref<608x32xf32, #tpu.memory_space<vmem>>, vector<8x32xf32>,
    %53 = vector.extract_strided_slice %15 {offsets = [80, 0], sizes = [8, 32], strides = [1, 1]} : vector<256x32xf32> to vector<8x32xf32>
    %c200 = arith.constant 200 : index
    %c0_35 = arith.constant 0 : index
    %54 = vector.load %arg11[%c200, %c0_35] : memref<608x32xf32, #tpu.memory_space<vmem>>, vector<8x32xf32>
    tpu.vector_store %arg11[%c200, %c0_35], %53 {strides = array<i32>} : memref<608x32xf32, #tpu.memory_space<vmem>>, vector<8x32xf32>,
    %c208 = arith.constant 208 : index
    %c0_36 = arith.constant 0 : index
    %55 = vector.load %arg11[%c208, %c0_36] : memref<608x32xf32, #tpu.memory_space<vmem>>, vector<8x32xf32>
    tpu.vector_store %arg11[%c208, %c0_36], %16 {strides = array<i32>} : memref<608x32xf32, #tpu.memory_space<vmem>>, vector<8x32xf32>,
    %56 = vector.extract_strided_slice %15 {offsets = [88, 0], sizes = [8, 32], strides = [1, 1]} : vector<256x32xf32> to vector<8x32xf32>
    %c216 = arith.constant 216 : index
    %c0_37 = arith.constant 0 : index
    %57 = vector.load %arg11[%c216, %c0_37] : memref<608x32xf32, #tpu.memory_space<vmem>>, vector<8x32xf32>
    tpu.vector_store %arg11[%c216, %c0_37], %56 {strides = array<i32>} : memref<608x32xf32, #tpu.memory_space<vmem>>, vector<8x32xf32>,
    %c224 = arith.constant 224 : index
    %c0_38 = arith.constant 0 : index
    %58 = vector.load %arg11[%c224, %c0_38] : memref<608x32xf32, #tpu.memory_space<vmem>>, vector<8x32xf32>
    tpu.vector_store %arg11[%c224, %c0_38], %16 {strides = array<i32>} : memref<608x32xf32, #tpu.memory_space<vmem>>, vector<8x32xf32>,
    %59 = vector.extract_strided_slice %15 {offsets = [96, 0], sizes = [8, 32], strides = [1, 1]} : vector<256x32xf32> to vector<8x32xf32>
    %c232 = arith.constant 232 : index
    %c0_39 = arith.constant 0 : index
    %60 = vector.load %arg11[%c232, %c0_39] : memref<608x32xf32, #tpu.memory_space<vmem>>, vector<8x32xf32>
    tpu.vector_store %arg11[%c232, %c0_39], %59 {strides = array<i32>} : memref<608x32xf32, #tpu.memory_space<vmem>>, vector<8x32xf32>,
    %c240 = arith.constant 240 : index
    %c0_40 = arith.constant 0 : index
    %61 = vector.load %arg11[%c240, %c0_40] : memref<608x32xf32, #tpu.memory_space<vmem>>, vector<8x32xf32>
    tpu.vector_store %arg11[%c240, %c0_40], %16 {strides = array<i32>} : memref<608x32xf32, #tpu.memory_space<vmem>>, vector<8x32xf32>,
    %62 = vector.extract_strided_slice %15 {offsets = [104, 0], sizes = [8, 32], strides = [1, 1]} : vector<256x32xf32> to vector<8x32xf32>
    %c248 = arith.constant 248 : index
    %c0_41 = arith.constant 0 : index
    %63 = vector.load %arg11[%c248, %c0_41] : memref<608x32xf32, #tpu.memory_space<vmem>>, vector<8x32xf32>
    tpu.vector_store %arg11[%c248, %c0_41], %62 {strides = array<i32>} : memref<608x32xf32, #tpu.memory_space<vmem>>, vector<8x32xf32>,
    %c256 = arith.constant 256 : index
    %c0_42 = arith.constant 0 : index
    %64 = vector.load %arg11[%c256, %c0_42] : memref<608x32xf32, #tpu.memory_space<vmem>>, vector<8x32xf32>
    tpu.vector_store %arg11[%c256, %c0_42], %16 {strides = array<i32>} : memref<608x32xf32, #tpu.memory_space<vmem>>, vector<8x32xf32>,
    %65 = vector.extract_strided_slice %15 {offsets = [112, 0], sizes = [8, 32], strides = [1, 1]} : vector<256x32xf32> to vector<8x32xf32>
    %c264 = arith.constant 264 : index
    %c0_43 = arith.constant 0 : index
    %66 = vector.load %arg11[%c264, %c0_43] : memref<608x32xf32, #tpu.memory_space<vmem>>, vector<8x32xf32>
    tpu.vector_store %arg11[%c264, %c0_43], %65 {strides = array<i32>} : memref<608x32xf32, #tpu.memory_space<vmem>>, vector<8x32xf32>,
    %c272 = arith.constant 272 : index
    %c0_44 = arith.constant 0 : index
    %67 = vector.load %arg11[%c272, %c0_44] : memref<608x32xf32, #tpu.memory_space<vmem>>, vector<8x32xf32>
    tpu.vector_store %arg11[%c272, %c0_44], %16 {strides = array<i32>} : memref<608x32xf32, #tpu.memory_space<vmem>>, vector<8x32xf32>,
    %68 = vector.extract_strided_slice %15 {offsets = [120, 0], sizes = [8, 32], strides = [1, 1]} : vector<256x32xf32> to vector<8x32xf32>
    %c280 = arith.constant 280 : index
    %c0_45 = arith.constant 0 : index
    %69 = vector.load %arg11[%c280, %c0_45] : memref<608x32xf32, #tpu.memory_space<vmem>>, vector<8x32xf32>
    tpu.vector_store %arg11[%c280, %c0_45], %68 {strides = array<i32>} : memref<608x32xf32, #tpu.memory_space<vmem>>, vector<8x32xf32>,
    %c288 = arith.constant 288 : index
    %c0_46 = arith.constant 0 : index
    %70 = vector.load %arg11[%c288, %c0_46] : memref<608x32xf32, #tpu.memory_space<vmem>>, vector<8x32xf32>
    tpu.vector_store %arg11[%c288, %c0_46], %16 {strides = array<i32>} : memref<608x32xf32, #tpu.memory_space<vmem>>, vector<8x32xf32>,
    %cst_47 = arith.constant 0.000000e+00 : f32
    %71 = vector.broadcast %cst_47 : f32 to vector<16x32xf32>
    %c296 = arith.constant 296 : index
    %c0_48 = arith.constant 0 : index
    %72 = vector.load %arg11[%c296, %c0_48] : memref<608x32xf32, #tpu.memory_space<vmem>>, vector<16x32xf32>
    tpu.vector_store %arg11[%c296, %c0_48], %71 {strides = array<i32>} : memref<608x32xf32, #tpu.memory_space<vmem>>, vector<16x32xf32>,
    %73 = vector.extract_strided_slice %15 {offsets = [128, 0], sizes = [8, 32], strides = [1, 1]} : vector<256x32xf32> to vector<8x32xf32>
    %c312 = arith.constant 312 : index
    %c0_49 = arith.constant 0 : index
    %74 = vector.load %arg11[%c312, %c0_49] : memref<608x32xf32, #tpu.memory_space<vmem>>, vector<8x32xf32>
    tpu.vector_store %arg11[%c312, %c0_49], %73 {strides = array<i32>} : memref<608x32xf32, #tpu.memory_space<vmem>>, vector<8x32xf32>,
    %c320 = arith.constant 320 : index
    %c0_50 = arith.constant 0 : index
    %75 = vector.load %arg11[%c320, %c0_50] : memref<608x32xf32, #tpu.memory_space<vmem>>, vector<8x32xf32>
    tpu.vector_store %arg11[%c320, %c0_50], %16 {strides = array<i32>} : memref<608x32xf32, #tpu.memory_space<vmem>>, vector<8x32xf32>,
    %76 = vector.extract_strided_slice %15 {offsets = [136, 0], sizes = [8, 32], strides = [1, 1]} : vector<256x32xf32> to vector<8x32xf32>
    %c328 = arith.constant 328 : index
    %c0_51 = arith.constant 0 : index
    %77 = vector.load %arg11[%c328, %c0_51] : memref<608x32xf32, #tpu.memory_space<vmem>>, vector<8x32xf32>
    tpu.vector_store %arg11[%c328, %c0_51], %76 {strides = array<i32>} : memref<608x32xf32, #tpu.memory_space<vmem>>, vector<8x32xf32>,
    %c336 = arith.constant 336 : index
    %c0_52 = arith.constant 0 : index
    %78 = vector.load %arg11[%c336, %c0_52] : memref<608x32xf32, #tpu.memory_space<vmem>>, vector<8x32xf32>
    tpu.vector_store %arg11[%c336, %c0_52], %16 {strides = array<i32>} : memref<608x32xf32, #tpu.memory_space<vmem>>, vector<8x32xf32>,
    %79 = vector.extract_strided_slice %15 {offsets = [144, 0], sizes = [8, 32], strides = [1, 1]} : vector<256x32xf32> to vector<8x32xf32>
    %c344 = arith.constant 344 : index
    %c0_53 = arith.constant 0 : index
    %80 = vector.load %arg11[%c344, %c0_53] : memref<608x32xf32, #tpu.memory_space<vmem>>, vector<8x32xf32>
    tpu.vector_store %arg11[%c344, %c0_53], %79 {strides = array<i32>} : memref<608x32xf32, #tpu.memory_space<vmem>>, vector<8x32xf32>,
    %c352 = arith.constant 352 : index
    %c0_54 = arith.constant 0 : index
    %81 = vector.load %arg11[%c352, %c0_54] : memref<608x32xf32, #tpu.memory_space<vmem>>, vector<8x32xf32>
    tpu.vector_store %arg11[%c352, %c0_54], %16 {strides = array<i32>} : memref<608x32xf32, #tpu.memory_space<vmem>>, vector<8x32xf32>,
    %82 = vector.extract_strided_slice %15 {offsets = [152, 0], sizes = [8, 32], strides = [1, 1]} : vector<256x32xf32> to vector<8x32xf32>
    %c360 = arith.constant 360 : index
    %c0_55 = arith.constant 0 : index
    %83 = vector.load %arg11[%c360, %c0_55] : memref<608x32xf32, #tpu.memory_space<vmem>>, vector<8x32xf32>
    tpu.vector_store %arg11[%c360, %c0_55], %82 {strides = array<i32>} : memref<608x32xf32, #tpu.memory_space<vmem>>, vector<8x32xf32>,
    %c368 = arith.constant 368 : index
    %c0_56 = arith.constant 0 : index
    %84 = vector.load %arg11[%c368, %c0_56] : memref<608x32xf32, #tpu.memory_space<vmem>>, vector<8x32xf32>
    tpu.vector_store %arg11[%c368, %c0_56], %16 {strides = array<i32>} : memref<608x32xf32, #tpu.memory_space<vmem>>, vector<8x32xf32>,
    %85 = vector.extract_strided_slice %15 {offsets = [160, 0], sizes = [8, 32], strides = [1, 1]} : vector<256x32xf32> to vector<8x32xf32>
    %c376 = arith.constant 376 : index
    %c0_57 = arith.constant 0 : index
    %86 = vector.load %arg11[%c376, %c0_57] : memref<608x32xf32, #tpu.memory_space<vmem>>, vector<8x32xf32>
    tpu.vector_store %arg11[%c376, %c0_57], %85 {strides = array<i32>} : memref<608x32xf32, #tpu.memory_space<vmem>>, vector<8x32xf32>,
    %c384 = arith.constant 384 : index
    %c0_58 = arith.constant 0 : index
    %87 = vector.load %arg11[%c384, %c0_58] : memref<608x32xf32, #tpu.memory_space<vmem>>, vector<8x32xf32>
    tpu.vector_store %arg11[%c384, %c0_58], %16 {strides = array<i32>} : memref<608x32xf32, #tpu.memory_space<vmem>>, vector<8x32xf32>,
    %88 = vector.extract_strided_slice %15 {offsets = [168, 0], sizes = [8, 32], strides = [1, 1]} : vector<256x32xf32> to vector<8x32xf32>
    %c392 = arith.constant 392 : index
    %c0_59 = arith.constant 0 : index
    %89 = vector.load %arg11[%c392, %c0_59] : memref<608x32xf32, #tpu.memory_space<vmem>>, vector<8x32xf32>
    tpu.vector_store %arg11[%c392, %c0_59], %88 {strides = array<i32>} : memref<608x32xf32, #tpu.memory_space<vmem>>, vector<8x32xf32>,
    %c400 = arith.constant 400 : index
    %c0_60 = arith.constant 0 : index
    %90 = vector.load %arg11[%c400, %c0_60] : memref<608x32xf32, #tpu.memory_space<vmem>>, vector<8x32xf32>
    tpu.vector_store %arg11[%c400, %c0_60], %16 {strides = array<i32>} : memref<608x32xf32, #tpu.memory_space<vmem>>, vector<8x32xf32>,
    %91 = vector.extract_strided_slice %15 {offsets = [176, 0], sizes = [8, 32], strides = [1, 1]} : vector<256x32xf32> to vector<8x32xf32>
    %c408 = arith.constant 408 : index
    %c0_61 = arith.constant 0 : index
    %92 = vector.load %arg11[%c408, %c0_61] : memref<608x32xf32, #tpu.memory_space<vmem>>, vector<8x32xf32>
    tpu.vector_store %arg11[%c408, %c0_61], %91 {strides = array<i32>} : memref<608x32xf32, #tpu.memory_space<vmem>>, vector<8x32xf32>,
    %c416 = arith.constant 416 : index
    %c0_62 = arith.constant 0 : index
    %93 = vector.load %arg11[%c416, %c0_62] : memref<608x32xf32, #tpu.memory_space<vmem>>, vector<8x32xf32>
    tpu.vector_store %arg11[%c416, %c0_62], %16 {strides = array<i32>} : memref<608x32xf32, #tpu.memory_space<vmem>>, vector<8x32xf32>,
    %94 = vector.extract_strided_slice %15 {offsets = [184, 0], sizes = [8, 32], strides = [1, 1]} : vector<256x32xf32> to vector<8x32xf32>
    %c424 = arith.constant 424 : index
    %c0_63 = arith.constant 0 : index
    %95 = vector.load %arg11[%c424, %c0_63] : memref<608x32xf32, #tpu.memory_space<vmem>>, vector<8x32xf32>
    tpu.vector_store %arg11[%c424, %c0_63], %94 {strides = array<i32>} : memref<608x32xf32, #tpu.memory_space<vmem>>, vector<8x32xf32>,
    %c432 = arith.constant 432 : index
    %c0_64 = arith.constant 0 : index
    %96 = vector.load %arg11[%c432, %c0_64] : memref<608x32xf32, #tpu.memory_space<vmem>>, vector<8x32xf32>
    tpu.vector_store %arg11[%c432, %c0_64], %16 {strides = array<i32>} : memref<608x32xf32, #tpu.memory_space<vmem>>, vector<8x32xf32>,
    %cst_65 = arith.constant 0.000000e+00 : f32
    %97 = vector.broadcast %cst_65 : f32 to vector<16x32xf32>
    %c440 = arith.constant 440 : index
    %c0_66 = arith.constant 0 : index
    %98 = vector.load %arg11[%c440, %c0_66] : memref<608x32xf32, #tpu.memory_space<vmem>>, vector<16x32xf32>
    tpu.vector_store %arg11[%c440, %c0_66], %97 {strides = array<i32>} : memref<608x32xf32, #tpu.memory_space<vmem>>, vector<16x32xf32>,
    %99 = vector.extract_strided_slice %15 {offsets = [192, 0], sizes = [8, 32], strides = [1, 1]} : vector<256x32xf32> to vector<8x32xf32>
    %c456 = arith.constant 456 : index
    %c0_67 = arith.constant 0 : index
    %100 = vector.load %arg11[%c456, %c0_67] : memref<608x32xf32, #tpu.memory_space<vmem>>, vector<8x32xf32>
    tpu.vector_store %arg11[%c456, %c0_67], %99 {strides = array<i32>} : memref<608x32xf32, #tpu.memory_space<vmem>>, vector<8x32xf32>,
    %c464 = arith.constant 464 : index
    %c0_68 = arith.constant 0 : index
    %101 = vector.load %arg11[%c464, %c0_68] : memref<608x32xf32, #tpu.memory_space<vmem>>, vector<8x32xf32>
    tpu.vector_store %arg11[%c464, %c0_68], %16 {strides = array<i32>} : memref<608x32xf32, #tpu.memory_space<vmem>>, vector<8x32xf32>,
    %102 = vector.extract_strided_slice %15 {offsets = [200, 0], sizes = [8, 32], strides = [1, 1]} : vector<256x32xf32> to vector<8x32xf32>
    %c472 = arith.constant 472 : index
    %c0_69 = arith.constant 0 : index
    %103 = vector.load %arg11[%c472, %c0_69] : memref<608x32xf32, #tpu.memory_space<vmem>>, vector<8x32xf32>
    tpu.vector_store %arg11[%c472, %c0_69], %102 {strides = array<i32>} : memref<608x32xf32, #tpu.memory_space<vmem>>, vector<8x32xf32>,
    %c480 = arith.constant 480 : index
    %c0_70 = arith.constant 0 : index
    %104 = vector.load %arg11[%c480, %c0_70] : memref<608x32xf32, #tpu.memory_space<vmem>>, vector<8x32xf32>
    tpu.vector_store %arg11[%c480, %c0_70], %16 {strides = array<i32>} : memref<608x32xf32, #tpu.memory_space<vmem>>, vector<8x32xf32>,
    %105 = vector.extract_strided_slice %15 {offsets = [208, 0], sizes = [8, 32], strides = [1, 1]} : vector<256x32xf32> to vector<8x32xf32>
    %c488 = arith.constant 488 : index
    %c0_71 = arith.constant 0 : index
    %106 = vector.load %arg11[%c488, %c0_71] : memref<608x32xf32, #tpu.memory_space<vmem>>, vector<8x32xf32>
    tpu.vector_store %arg11[%c488, %c0_71], %105 {strides = array<i32>} : memref<608x32xf32, #tpu.memory_space<vmem>>, vector<8x32xf32>,
    %c496 = arith.constant 496 : index
    %c0_72 = arith.constant 0 : index
    %107 = vector.load %arg11[%c496, %c0_72] : memref<608x32xf32, #tpu.memory_space<vmem>>, vector<8x32xf32>
    tpu.vector_store %arg11[%c496, %c0_72], %16 {strides = array<i32>} : memref<608x32xf32, #tpu.memory_space<vmem>>, vector<8x32xf32>,
    %108 = vector.extract_strided_slice %15 {offsets = [216, 0], sizes = [8, 32], strides = [1, 1]} : vector<256x32xf32> to vector<8x32xf32>
    %c504 = arith.constant 504 : index
    %c0_73 = arith.constant 0 : index
    %109 = vector.load %arg11[%c504, %c0_73] : memref<608x32xf32, #tpu.memory_space<vmem>>, vector<8x32xf32>
    tpu.vector_store %arg11[%c504, %c0_73], %108 {strides = array<i32>} : memref<608x32xf32, #tpu.memory_space<vmem>>, vector<8x32xf32>,
    %c512 = arith.constant 512 : index
    %c0_74 = arith.constant 0 : index
    %110 = vector.load %arg11[%c512, %c0_74] : memref<608x32xf32, #tpu.memory_space<vmem>>, vector<8x32xf32>
    tpu.vector_store %arg11[%c512, %c0_74], %16 {strides = array<i32>} : memref<608x32xf32, #tpu.memory_space<vmem>>, vector<8x32xf32>,
    %111 = vector.extract_strided_slice %15 {offsets = [224, 0], sizes = [8, 32], strides = [1, 1]} : vector<256x32xf32> to vector<8x32xf32>
    %c520 = arith.constant 520 : index
    %c0_75 = arith.constant 0 : index
    %112 = vector.load %arg11[%c520, %c0_75] : memref<608x32xf32, #tpu.memory_space<vmem>>, vector<8x32xf32>
    tpu.vector_store %arg11[%c520, %c0_75], %111 {strides = array<i32>} : memref<608x32xf32, #tpu.memory_space<vmem>>, vector<8x32xf32>,
    %c528 = arith.constant 528 : index
    %c0_76 = arith.constant 0 : index
    %113 = vector.load %arg11[%c528, %c0_76] : memref<608x32xf32, #tpu.memory_space<vmem>>, vector<8x32xf32>
    tpu.vector_store %arg11[%c528, %c0_76], %16 {strides = array<i32>} : memref<608x32xf32, #tpu.memory_space<vmem>>, vector<8x32xf32>,
    %114 = vector.extract_strided_slice %15 {offsets = [232, 0], sizes = [8, 32], strides = [1, 1]} : vector<256x32xf32> to vector<8x32xf32>
    %c536 = arith.constant 536 : index
    %c0_77 = arith.constant 0 : index
    %115 = vector.load %arg11[%c536, %c0_77] : memref<608x32xf32, #tpu.memory_space<vmem>>, vector<8x32xf32>
    tpu.vector_store %arg11[%c536, %c0_77], %114 {strides = array<i32>} : memref<608x32xf32, #tpu.memory_space<vmem>>, vector<8x32xf32>,
    %c544 = arith.constant 544 : index
    %c0_78 = arith.constant 0 : index
    %116 = vector.load %arg11[%c544, %c0_78] : memref<608x32xf32, #tpu.memory_space<vmem>>, vector<8x32xf32>
    tpu.vector_store %arg11[%c544, %c0_78], %16 {strides = array<i32>} : memref<608x32xf32, #tpu.memory_space<vmem>>, vector<8x32xf32>,
    %117 = vector.extract_strided_slice %15 {offsets = [240, 0], sizes = [8, 32], strides = [1, 1]} : vector<256x32xf32> to vector<8x32xf32>
    %c552 = arith.constant 552 : index
    %c0_79 = arith.constant 0 : index
    %118 = vector.load %arg11[%c552, %c0_79] : memref<608x32xf32, #tpu.memory_space<vmem>>, vector<8x32xf32>
    tpu.vector_store %arg11[%c552, %c0_79], %117 {strides = array<i32>} : memref<608x32xf32, #tpu.memory_space<vmem>>, vector<8x32xf32>,
    %c560 = arith.constant 560 : index
    %c0_80 = arith.constant 0 : index
    %119 = vector.load %arg11[%c560, %c0_80] : memref<608x32xf32, #tpu.memory_space<vmem>>, vector<8x32xf32>
    tpu.vector_store %arg11[%c560, %c0_80], %16 {strides = array<i32>} : memref<608x32xf32, #tpu.memory_space<vmem>>, vector<8x32xf32>,
    %120 = vector.extract_strided_slice %15 {offsets = [248, 0], sizes = [8, 32], strides = [1, 1]} : vector<256x32xf32> to vector<8x32xf32>
    %c568 = arith.constant 568 : index
    %c0_81 = arith.constant 0 : index
    %121 = vector.load %arg11[%c568, %c0_81] : memref<608x32xf32, #tpu.memory_space<vmem>>, vector<8x32xf32>
    tpu.vector_store %arg11[%c568, %c0_81], %120 {strides = array<i32>} : memref<608x32xf32, #tpu.memory_space<vmem>>, vector<8x32xf32>,
    %c576 = arith.constant 576 : index
    %c0_82 = arith.constant 0 : index
    %122 = vector.load %arg11[%c576, %c0_82] : memref<608x32xf32, #tpu.memory_space<vmem>>, vector<8x32xf32>
    tpu.vector_store %arg11[%c576, %c0_82], %16 {strides = array<i32>} : memref<608x32xf32, #tpu.memory_space<vmem>>, vector<8x32xf32>,
    %cst_83 = arith.constant 0.000000e+00 : f32
    %123 = vector.broadcast %cst_83 : f32 to vector<16x32xf32>
    %c584 = arith.constant 584 : index
    %c0_84 = arith.constant 0 : index
    %124 = vector.load %arg11[%c584, %c0_84] : memref<608x32xf32, #tpu.memory_space<vmem>>, vector<16x32xf32>
    tpu.vector_store %arg11[%c584, %c0_84], %123 {strides = array<i32>} : memref<608x32xf32, #tpu.memory_space<vmem>>, vector<16x32xf32>,
    %c7 = arith.constant 7 : index
    %c0_85 = arith.constant 0 : index
    %125 = vector.load %arg11[%c7, %c0_85] : memref<608x32xf32, #tpu.memory_space<vmem>>, vector<560x32xf32>
    %c0_86 = arith.constant 0 : index
    %c0_87 = arith.constant 0 : index
    %c0_88 = arith.constant 0 : index
    %126 = vector.load %arg4[%c0_86, %c0_87, %c0_88] : memref<9x32x64xf32, #tpu.memory_space<vmem>>, vector<1x32x64xf32>
    %127 = vector.shape_cast %126 : vector<1x32x64xf32> to vector<32x64xf32>
    %cst_89 = arith.constant dense<0.000000e+00> : vector<560x64xf32>
    %128 = tpu.matmul %125, %127, %cst_89 {dimension_numbers = #tpu.dot_dimension_numbers<[1], [0], [0], [1], [0, 0, 1, 1], [], []>} : vector<560x32xf32>, vector<32x64xf32>, vector<560x64xf32> -> vector<560x64xf32>
    %c8 = arith.constant 8 : index
    %c0_90 = arith.constant 0 : index
    %129 = vector.load %arg11[%c8, %c0_90] : memref<608x32xf32, #tpu.memory_space<vmem>>, vector<560x32xf32>
    %c1 = arith.constant 1 : index
    %c0_91 = arith.constant 0 : index
    %c0_92 = arith.constant 0 : index
    %130 = vector.load %arg4[%c1, %c0_91, %c0_92] : memref<9x32x64xf32, #tpu.memory_space<vmem>>, vector<1x32x64xf32>
    %131 = vector.shape_cast %130 : vector<1x32x64xf32> to vector<32x64xf32>
    %cst_93 = arith.constant dense<0.000000e+00> : vector<560x64xf32>
    %132 = tpu.matmul %129, %131, %cst_93 {dimension_numbers = #tpu.dot_dimension_numbers<[1], [0], [0], [1], [0, 0, 1, 1], [], []>} : vector<560x32xf32>, vector<32x64xf32>, vector<560x64xf32> -> vector<560x64xf32>
    %133 = arith.addf %128, %132 : vector<560x64xf32>
    %c9 = arith.constant 9 : index
    %c0_94 = arith.constant 0 : index
    %134 = vector.load %arg11[%c9, %c0_94] : memref<608x32xf32, #tpu.memory_space<vmem>>, vector<560x32xf32>
    %c2 = arith.constant 2 : index
    %c0_95 = arith.constant 0 : index
    %c0_96 = arith.constant 0 : index
    %135 = vector.load %arg4[%c2, %c0_95, %c0_96] : memref<9x32x64xf32, #tpu.memory_space<vmem>>, vector<1x32x64xf32>
    %136 = vector.shape_cast %135 : vector<1x32x64xf32> to vector<32x64xf32>
    %cst_97 = arith.constant dense<0.000000e+00> : vector<560x64xf32>
    %137 = tpu.matmul %134, %136, %cst_97 {dimension_numbers = #tpu.dot_dimension_numbers<[1], [0], [0], [1], [0, 0, 1, 1], [], []>} : vector<560x32xf32>, vector<32x64xf32>, vector<560x64xf32> -> vector<560x64xf32>
    %138 = arith.addf %133, %137 : vector<560x64xf32>
    %c23 = arith.constant 23 : index
    %c0_98 = arith.constant 0 : index
    %139 = vector.load %arg11[%c23, %c0_98] : memref<608x32xf32, #tpu.memory_space<vmem>>, vector<560x32xf32>
    %c3 = arith.constant 3 : index
    %c0_99 = arith.constant 0 : index
    %c0_100 = arith.constant 0 : index
    %140 = vector.load %arg4[%c3, %c0_99, %c0_100] : memref<9x32x64xf32, #tpu.memory_space<vmem>>, vector<1x32x64xf32>
    %141 = vector.shape_cast %140 : vector<1x32x64xf32> to vector<32x64xf32>
    %cst_101 = arith.constant dense<0.000000e+00> : vector<560x64xf32>
    %142 = tpu.matmul %139, %141, %cst_101 {dimension_numbers = #tpu.dot_dimension_numbers<[1], [0], [0], [1], [0, 0, 1, 1], [], []>} : vector<560x32xf32>, vector<32x64xf32>, vector<560x64xf32> -> vector<560x64xf32>
    %143 = arith.addf %138, %142 : vector<560x64xf32>
    %c24_102 = arith.constant 24 : index
    %c0_103 = arith.constant 0 : index
    %144 = vector.load %arg11[%c24_102, %c0_103] : memref<608x32xf32, #tpu.memory_space<vmem>>, vector<560x32xf32>
    %c4 = arith.constant 4 : index
    %c0_104 = arith.constant 0 : index
    %c0_105 = arith.constant 0 : index
    %145 = vector.load %arg4[%c4, %c0_104, %c0_105] : memref<9x32x64xf32, #tpu.memory_space<vmem>>, vector<1x32x64xf32>
    %146 = vector.shape_cast %145 : vector<1x32x64xf32> to vector<32x64xf32>
    %cst_106 = arith.constant dense<0.000000e+00> : vector<560x64xf32>
    %147 = tpu.matmul %144, %146, %cst_106 {dimension_numbers = #tpu.dot_dimension_numbers<[1], [0], [0], [1], [0, 0, 1, 1], [], []>} : vector<560x32xf32>, vector<32x64xf32>, vector<560x64xf32> -> vector<560x64xf32>
    %148 = arith.addf %143, %147 : vector<560x64xf32>
    %c25 = arith.constant 25 : index
    %c0_107 = arith.constant 0 : index
    %149 = vector.load %arg11[%c25, %c0_107] : memref<608x32xf32, #tpu.memory_space<vmem>>, vector<560x32xf32>
    %c5 = arith.constant 5 : index
    %c0_108 = arith.constant 0 : index
    %c0_109 = arith.constant 0 : index
    %150 = vector.load %arg4[%c5, %c0_108, %c0_109] : memref<9x32x64xf32, #tpu.memory_space<vmem>>, vector<1x32x64xf32>
    %151 = vector.shape_cast %150 : vector<1x32x64xf32> to vector<32x64xf32>
    %cst_110 = arith.constant dense<0.000000e+00> : vector<560x64xf32>
    %152 = tpu.matmul %149, %151, %cst_110 {dimension_numbers = #tpu.dot_dimension_numbers<[1], [0], [0], [1], [0, 0, 1, 1], [], []>} : vector<560x32xf32>, vector<32x64xf32>, vector<560x64xf32> -> vector<560x64xf32>
    %153 = arith.addf %148, %152 : vector<560x64xf32>
    %c39 = arith.constant 39 : index
    %c0_111 = arith.constant 0 : index
    %154 = vector.load %arg11[%c39, %c0_111] : memref<608x32xf32, #tpu.memory_space<vmem>>, vector<560x32xf32>
    %c6 = arith.constant 6 : index
    %c0_112 = arith.constant 0 : index
    %c0_113 = arith.constant 0 : index
    %155 = vector.load %arg4[%c6, %c0_112, %c0_113] : memref<9x32x64xf32, #tpu.memory_space<vmem>>, vector<1x32x64xf32>
    %156 = vector.shape_cast %155 : vector<1x32x64xf32> to vector<32x64xf32>
    %cst_114 = arith.constant dense<0.000000e+00> : vector<560x64xf32>
    %157 = tpu.matmul %154, %156, %cst_114 {dimension_numbers = #tpu.dot_dimension_numbers<[1], [0], [0], [1], [0, 0, 1, 1], [], []>} : vector<560x32xf32>, vector<32x64xf32>, vector<560x64xf32> -> vector<560x64xf32>
    %158 = arith.addf %153, %157 : vector<560x64xf32>
    %c40_115 = arith.constant 40 : index
    %c0_116 = arith.constant 0 : index
    %159 = vector.load %arg11[%c40_115, %c0_116] : memref<608x32xf32, #tpu.memory_space<vmem>>, vector<560x32xf32>
    %c7_117 = arith.constant 7 : index
    %c0_118 = arith.constant 0 : index
    %c0_119 = arith.constant 0 : index
    %160 = vector.load %arg4[%c7_117, %c0_118, %c0_119] : memref<9x32x64xf32, #tpu.memory_space<vmem>>, vector<1x32x64xf32>
    %161 = vector.shape_cast %160 : vector<1x32x64xf32> to vector<32x64xf32>
    %cst_120 = arith.constant dense<0.000000e+00> : vector<560x64xf32>
    %162 = tpu.matmul %159, %161, %cst_120 {dimension_numbers = #tpu.dot_dimension_numbers<[1], [0], [0], [1], [0, 0, 1, 1], [], []>} : vector<560x32xf32>, vector<32x64xf32>, vector<560x64xf32> -> vector<560x64xf32>
    %163 = arith.addf %158, %162 : vector<560x64xf32>
    %c41 = arith.constant 41 : index
    %c0_121 = arith.constant 0 : index
    %164 = vector.load %arg11[%c41, %c0_121] : memref<608x32xf32, #tpu.memory_space<vmem>>, vector<560x32xf32>
    %c8_122 = arith.constant 8 : index
    %c0_123 = arith.constant 0 : index
    %c0_124 = arith.constant 0 : index
    %165 = vector.load %arg4[%c8_122, %c0_123, %c0_124] : memref<9x32x64xf32, #tpu.memory_space<vmem>>, vector<1x32x64xf32>
    %166 = vector.shape_cast %165 : vector<1x32x64xf32> to vector<32x64xf32>
    %cst_125 = arith.constant dense<0.000000e+00> : vector<560x64xf32>
    %167 = tpu.matmul %164, %166, %cst_125 {dimension_numbers = #tpu.dot_dimension_numbers<[1], [0], [0], [1], [0, 0, 1, 1], [], []>} : vector<560x32xf32>, vector<32x64xf32>, vector<560x64xf32> -> vector<560x64xf32>
    %168 = arith.addf %163, %167 : vector<560x64xf32>
    %c0_126 = arith.constant 0 : index
    %c0_127 = arith.constant 0 : index
    %169 = vector.load %arg5[%c0_126, %c0_127] : memref<1x64xf32, #tpu.memory_space<vmem>>, vector<1x64xf32>
    %170 = vector.broadcast %169 : vector<1x64xf32> to vector<560x64xf32>
    %171 = arith.addf %168, %170 : vector<560x64xf32>
    %cst_128 = arith.constant 0.000000e+00 : f32
    %172 = vector.broadcast %cst_128 : f32 to vector<560x64xf32>
    %173 = arith.maximumf %171, %172 : vector<560x64xf32>
    %c0_129 = arith.constant 0 : index
    %c0_130 = arith.constant 0 : index
    %174 = vector.load %arg12[%c0_129, %c0_130] : memref<560x64xf32, #tpu.memory_space<vmem>>, vector<560x64xf32>
    tpu.vector_store %arg12[%c0_129, %c0_130], %173 {strides = array<i32>} : memref<560x64xf32, #tpu.memory_space<vmem>>, vector<560x64xf32>,
    %c0_131 = arith.constant 0 : index
    %c0_132 = arith.constant 0 : index
    %175 = vector.load %arg12[%c0_131, %c0_132] : memref<560x64xf32, #tpu.memory_space<vmem>>, vector<536x64xf32>
    %c1_133 = arith.constant 1 : index
    %c0_134 = arith.constant 0 : index
    %176 = vector.load %arg12[%c1_133, %c0_134] : memref<560x64xf32, #tpu.memory_space<vmem>>, vector<536x64xf32>
    %177 = arith.maximumf %175, %176 : vector<536x64xf32>
    %c16 = arith.constant 16 : index
    %c0_135 = arith.constant 0 : index
    %178 = vector.load %arg12[%c16, %c0_135] : memref<560x64xf32, #tpu.memory_space<vmem>>, vector<536x64xf32>
    %c17 = arith.constant 17 : index
    %c0_136 = arith.constant 0 : index
    %179 = vector.load %arg12[%c17, %c0_136] : memref<560x64xf32, #tpu.memory_space<vmem>>, vector<536x64xf32>
    %180 = arith.maximumf %178, %179 : vector<536x64xf32>
    %181 = arith.maximumf %177, %180 : vector<536x64xf32>
    %182 = vector.extract_strided_slice %181 {offsets = [0, 0], sizes = [8, 64], strides = [1, 1]} : vector<536x64xf32> to vector<8x64xf32>
    %c0_137 = arith.constant 0 : index
    %c0_138 = arith.constant 0 : index
    %183 = vector.load %arg13[%c0_137, %c0_138] : memref<128x64xf32, #tpu.memory_space<vmem>>, vector<8x64xf32>
    tpu.vector_store %arg13[%c0_137, %c0_138], %182 {strides = array<i32>} : memref<128x64xf32, #tpu.memory_space<vmem>>, vector<8x64xf32>,
    %184 = vector.extract_strided_slice %181 {offsets = [32, 0], sizes = [8, 64], strides = [1, 1]} : vector<536x64xf32> to vector<8x64xf32>
    %c8_139 = arith.constant 8 : index
    %c0_140 = arith.constant 0 : index
    %185 = vector.load %arg13[%c8_139, %c0_140] : memref<128x64xf32, #tpu.memory_space<vmem>>, vector<8x64xf32>
    tpu.vector_store %arg13[%c8_139, %c0_140], %184 {strides = array<i32>} : memref<128x64xf32, #tpu.memory_space<vmem>>, vector<8x64xf32>,
    %186 = vector.extract_strided_slice %181 {offsets = [64, 0], sizes = [8, 64], strides = [1, 1]} : vector<536x64xf32> to vector<8x64xf32>
    %c16_141 = arith.constant 16 : index
    %c0_142 = arith.constant 0 : index
    %187 = vector.load %arg13[%c16_141, %c0_142] : memref<128x64xf32, #tpu.memory_space<vmem>>, vector<8x64xf32>
    tpu.vector_store %arg13[%c16_141, %c0_142], %186 {strides = array<i32>} : memref<128x64xf32, #tpu.memory_space<vmem>>, vector<8x64xf32>,
    %188 = vector.extract_strided_slice %181 {offsets = [96, 0], sizes = [8, 64], strides = [1, 1]} : vector<536x64xf32> to vector<8x64xf32>
    %c24_143 = arith.constant 24 : index
    %c0_144 = arith.constant 0 : index
    %189 = vector.load %arg13[%c24_143, %c0_144] : memref<128x64xf32, #tpu.memory_space<vmem>>, vector<8x64xf32>
    tpu.vector_store %arg13[%c24_143, %c0_144], %188 {strides = array<i32>} : memref<128x64xf32, #tpu.memory_space<vmem>>, vector<8x64xf32>,
    %190 = vector.extract_strided_slice %181 {offsets = [144, 0], sizes = [8, 64], strides = [1, 1]} : vector<536x64xf32> to vector<8x64xf32>
    %c32_145 = arith.constant 32 : index
    %c0_146 = arith.constant 0 : index
    %191 = vector.load %arg13[%c32_145, %c0_146] : memref<128x64xf32, #tpu.memory_space<vmem>>, vector<8x64xf32>
    tpu.vector_store %arg13[%c32_145, %c0_146], %190 {strides = array<i32>} : memref<128x64xf32, #tpu.memory_space<vmem>>, vector<8x64xf32>,
    %192 = vector.extract_strided_slice %181 {offsets = [176, 0], sizes = [8, 64], strides = [1, 1]} : vector<536x64xf32> to vector<8x64xf32>
    %c40_147 = arith.constant 40 : index
    %c0_148 = arith.constant 0 : index
    %193 = vector.load %arg13[%c40_147, %c0_148] : memref<128x64xf32, #tpu.memory_space<vmem>>, vector<8x64xf32>
    tpu.vector_store %arg13[%c40_147, %c0_148], %192 {strides = array<i32>} : memref<128x64xf32, #tpu.memory_space<vmem>>, vector<8x64xf32>,
    %194 = vector.extract_strided_slice %181 {offsets = [208, 0], sizes = [8, 64], strides = [1, 1]} : vector<536x64xf32> to vector<8x64xf32>
    %c48_149 = arith.constant 48 : index
    %c0_150 = arith.constant 0 : index
    %195 = vector.load %arg13[%c48_149, %c0_150] : memref<128x64xf32, #tpu.memory_space<vmem>>, vector<8x64xf32>
    tpu.vector_store %arg13[%c48_149, %c0_150], %194 {strides = array<i32>} : memref<128x64xf32, #tpu.memory_space<vmem>>, vector<8x64xf32>,
    %196 = vector.extract_strided_slice %181 {offsets = [240, 0], sizes = [8, 64], strides = [1, 1]} : vector<536x64xf32> to vector<8x64xf32>
    %c56_151 = arith.constant 56 : index
    %c0_152 = arith.constant 0 : index
    %197 = vector.load %arg13[%c56_151, %c0_152] : memref<128x64xf32, #tpu.memory_space<vmem>>, vector<8x64xf32>
    tpu.vector_store %arg13[%c56_151, %c0_152], %196 {strides = array<i32>} : memref<128x64xf32, #tpu.memory_space<vmem>>, vector<8x64xf32>,
    %198 = vector.extract_strided_slice %181 {offsets = [288, 0], sizes = [8, 64], strides = [1, 1]} : vector<536x64xf32> to vector<8x64xf32>
    %c64_153 = arith.constant 64 : index
    %c0_154 = arith.constant 0 : index
    %199 = vector.load %arg13[%c64_153, %c0_154] : memref<128x64xf32, #tpu.memory_space<vmem>>, vector<8x64xf32>
    tpu.vector_store %arg13[%c64_153, %c0_154], %198 {strides = array<i32>} : memref<128x64xf32, #tpu.memory_space<vmem>>, vector<8x64xf32>,
    %200 = vector.extract_strided_slice %181 {offsets = [320, 0], sizes = [8, 64], strides = [1, 1]} : vector<536x64xf32> to vector<8x64xf32>
    %c72_155 = arith.constant 72 : index
    %c0_156 = arith.constant 0 : index
    %201 = vector.load %arg13[%c72_155, %c0_156] : memref<128x64xf32, #tpu.memory_space<vmem>>, vector<8x64xf32>
    tpu.vector_store %arg13[%c72_155, %c0_156], %200 {strides = array<i32>} : memref<128x64xf32, #tpu.memory_space<vmem>>, vector<8x64xf32>,
    %202 = vector.extract_strided_slice %181 {offsets = [352, 0], sizes = [8, 64], strides = [1, 1]} : vector<536x64xf32> to vector<8x64xf32>
    %c80_157 = arith.constant 80 : index
    %c0_158 = arith.constant 0 : index
    %203 = vector.load %arg13[%c80_157, %c0_158] : memref<128x64xf32, #tpu.memory_space<vmem>>, vector<8x64xf32>
    tpu.vector_store %arg13[%c80_157, %c0_158], %202 {strides = array<i32>} : memref<128x64xf32, #tpu.memory_space<vmem>>, vector<8x64xf32>,
    %204 = vector.extract_strided_slice %181 {offsets = [384, 0], sizes = [8, 64], strides = [1, 1]} : vector<536x64xf32> to vector<8x64xf32>
    %c88_159 = arith.constant 88 : index
    %c0_160 = arith.constant 0 : index
    %205 = vector.load %arg13[%c88_159, %c0_160] : memref<128x64xf32, #tpu.memory_space<vmem>>, vector<8x64xf32>
    tpu.vector_store %arg13[%c88_159, %c0_160], %204 {strides = array<i32>} : memref<128x64xf32, #tpu.memory_space<vmem>>, vector<8x64xf32>,
    %206 = vector.extract_strided_slice %181 {offsets = [432, 0], sizes = [8, 64], strides = [1, 1]} : vector<536x64xf32> to vector<8x64xf32>
    %c96_161 = arith.constant 96 : index
    %c0_162 = arith.constant 0 : index
    %207 = vector.load %arg13[%c96_161, %c0_162] : memref<128x64xf32, #tpu.memory_space<vmem>>, vector<8x64xf32>
    tpu.vector_store %arg13[%c96_161, %c0_162], %206 {strides = array<i32>} : memref<128x64xf32, #tpu.memory_space<vmem>>, vector<8x64xf32>,
    %208 = vector.extract_strided_slice %181 {offsets = [464, 0], sizes = [8, 64], strides = [1, 1]} : vector<536x64xf32> to vector<8x64xf32>
    %c104_163 = arith.constant 104 : index
    %c0_164 = arith.constant 0 : index
    %209 = vector.load %arg13[%c104_163, %c0_164] : memref<128x64xf32, #tpu.memory_space<vmem>>, vector<8x64xf32>
    tpu.vector_store %arg13[%c104_163, %c0_164], %208 {strides = array<i32>} : memref<128x64xf32, #tpu.memory_space<vmem>>, vector<8x64xf32>,
    %210 = vector.extract_strided_slice %181 {offsets = [496, 0], sizes = [8, 64], strides = [1, 1]} : vector<536x64xf32> to vector<8x64xf32>
    %c112_165 = arith.constant 112 : index
    %c0_166 = arith.constant 0 : index
    %211 = vector.load %arg13[%c112_165, %c0_166] : memref<128x64xf32, #tpu.memory_space<vmem>>, vector<8x64xf32>
    tpu.vector_store %arg13[%c112_165, %c0_166], %210 {strides = array<i32>} : memref<128x64xf32, #tpu.memory_space<vmem>>, vector<8x64xf32>,
    %212 = vector.extract_strided_slice %181 {offsets = [528, 0], sizes = [8, 64], strides = [1, 1]} : vector<536x64xf32> to vector<8x64xf32>
    %c120_167 = arith.constant 120 : index
    %c0_168 = arith.constant 0 : index
    %213 = vector.load %arg13[%c120_167, %c0_168] : memref<128x64xf32, #tpu.memory_space<vmem>>, vector<8x64xf32>
    tpu.vector_store %arg13[%c120_167, %c0_168], %212 {strides = array<i32>} : memref<128x64xf32, #tpu.memory_space<vmem>>, vector<8x64xf32>,
    %c0_169 = arith.constant 0 : index
    %c0_170 = arith.constant 0 : index
    %214 = vector.load %arg13[%c0_169, %c0_170] : memref<128x64xf32, #tpu.memory_space<vmem>>, vector<128x64xf32>
    %c0_171 = arith.constant 0 : index
    %c0_172 = arith.constant 0 : index
    %215 = vector.load %arg6[%c0_171, %c0_172] : memref<64x128xf32, #tpu.memory_space<vmem>>, vector<64x128xf32>
    %cst_173 = arith.constant dense<0.000000e+00> : vector<128x128xf32>
    %216 = tpu.matmul %214, %215, %cst_173 {dimension_numbers = #tpu.dot_dimension_numbers<[1], [0], [0], [1], [0, 0, 1, 1], [], []>} : vector<128x64xf32>, vector<64x128xf32>, vector<128x128xf32> -> vector<128x128xf32>
    %c0_174 = arith.constant 0 : index
    %c0_175 = arith.constant 0 : index
    %217 = vector.load %arg7[%c0_174, %c0_175] : memref<1x128xf32, #tpu.memory_space<vmem>>, vector<1x128xf32>
    %218 = vector.broadcast %217 : vector<1x128xf32> to vector<128x128xf32>
    %219 = arith.addf %216, %218 : vector<128x128xf32>
    %cst_176 = arith.constant 0.000000e+00 : f32
    %220 = vector.broadcast %cst_176 : f32 to vector<128x128xf32>
    %221 = arith.maximumf %219, %220 : vector<128x128xf32>
    %c0_177 = arith.constant 0 : index
    %c0_178 = arith.constant 0 : index
    %222 = vector.load %arg8[%c0_177, %c0_178] : memref<128x16xf32, #tpu.memory_space<vmem>>, vector<128x16xf32>
    %cst_179 = arith.constant dense<0.000000e+00> : vector<128x16xf32>
    %223 = tpu.matmul %221, %222, %cst_179 {dimension_numbers = #tpu.dot_dimension_numbers<[1], [0], [0], [1], [0, 0, 1, 1], [], []>} : vector<128x128xf32>, vector<128x16xf32>, vector<128x16xf32> -> vector<128x16xf32>
    %c0_180 = arith.constant 0 : index
    %c0_181 = arith.constant 0 : index
    %224 = vector.load %arg9[%c0_180, %c0_181] : memref<1x16xf32, #tpu.memory_space<vmem>>, vector<1x16xf32>
    %225 = vector.broadcast %224 : vector<1x16xf32> to vector<128x16xf32>
    %226 = arith.addf %223, %225 : vector<128x16xf32>
    %cst_182 = arith.constant 0.000000e+00 : f32
    %227 = vector.broadcast %cst_182 : f32 to vector<128x16xf32>
    %228 = arith.subf %227, %226 : vector<128x16xf32>
    %229 = math.exp %228 : vector<128x16xf32>
    %cst_183 = arith.constant 1.000000e+00 : f32
    %230 = vector.broadcast %cst_183 : f32 to vector<128x16xf32>
    %231 = arith.addf %230, %229 : vector<128x16xf32>
    %cst_184 = arith.constant 1.000000e+00 : f32
    %232 = vector.broadcast %cst_184 : f32 to vector<128x16xf32>
    %233 = arith.divf %232, %231 : vector<128x16xf32>
    %c0_185 = arith.constant 0 : index
    %c0_186 = arith.constant 0 : index
    %234 = vector.load %arg10[%c0_185, %c0_186] : memref<128x16xf32, #tpu.memory_space<vmem>>, vector<128x16xf32>
    tpu.vector_store %arg10[%c0_185, %c0_186], %233 {strides = array<i32>} : memref<128x16xf32, #tpu.memory_space<vmem>>, vector<128x16xf32>,
    return
  }
  func.func @transform_0(%arg0: i32) -> (i32, i32, i32) {
    %c0_i32 = arith.constant 0 : i32
    %c0_i32_0 = arith.constant 0 : i32
    %c0_i32_1 = arith.constant 0 : i32
    return %arg0, %c0_i32, %c0_i32_0 : i32, i32, i32
  }
  func.func @transform_1(%arg0: i32) -> (i32, i32) {
    %c0_i32 = arith.constant 0 : i32
    %c0_i32_0 = arith.constant 0 : i32
    %c0_i32_1 = arith.constant 0 : i32
    return %c0_i32, %c0_i32_0 : i32, i32
  }
  func.func @transform_2(%arg0: i32) -> (i32, i32) {
    %c0_i32 = arith.constant 0 : i32
    %c0_i32_0 = arith.constant 0 : i32
    %c0_i32_1 = arith.constant 0 : i32
    return %c0_i32, %c0_i32_0 : i32, i32
  }
  func.func @transform_3(%arg0: i32) -> (i32, i32, i32) {
    %c0_i32 = arith.constant 0 : i32
    %c0_i32_0 = arith.constant 0 : i32
    %c0_i32_1 = arith.constant 0 : i32
    %c0_i32_2 = arith.constant 0 : i32
    return %c0_i32, %c0_i32_0, %c0_i32_1 : i32, i32, i32
  }
  func.func @transform_4(%arg0: i32) -> (i32, i32) {
    %c0_i32 = arith.constant 0 : i32
    %c0_i32_0 = arith.constant 0 : i32
    %c0_i32_1 = arith.constant 0 : i32
    return %c0_i32, %c0_i32_0 : i32, i32
  }
  func.func @transform_5(%arg0: i32) -> (i32, i32) {
    %c0_i32 = arith.constant 0 : i32
    %c0_i32_0 = arith.constant 0 : i32
    %c0_i32_1 = arith.constant 0 : i32
    return %c0_i32, %c0_i32_0 : i32, i32
  }
  func.func @transform_6(%arg0: i32) -> (i32, i32) {
    %c0_i32 = arith.constant 0 : i32
    %c0_i32_0 = arith.constant 0 : i32
    %c0_i32_1 = arith.constant 0 : i32
    return %c0_i32, %c0_i32_0 : i32, i32
  }
  func.func @transform_7(%arg0: i32) -> (i32, i32) {
    %c0_i32 = arith.constant 0 : i32
    %c0_i32_0 = arith.constant 0 : i32
    %c0_i32_1 = arith.constant 0 : i32
    return %c0_i32, %c0_i32_0 : i32, i32
  }
  func.func @transform_8(%arg0: i32) -> (i32, i32) {
    %c0_i32 = arith.constant 0 : i32
    %c0_i32_0 = arith.constant 0 : i32
    %c0_i32_1 = arith.constant 0 : i32
    return %c0_i32, %c0_i32_0 : i32, i32
  }
  func.func @transform_9(%arg0: i32) -> (i32, i32) {
    %c0_i32 = arith.constant 0 : i32
    %c0_i32_0 = arith.constant 0 : i32
    return %arg0, %c0_i32 : i32, i32
  }
}

</mosaic_0001>

<llo_original>
// kernel: tile.6
$region0: #{tile.6}
  #allocation0 [shape = 's32[1]{0}', space=sflag, size = 0x4, scoped, tag = 'scoped memory for tile.6']
  %s0 = inlined_call_operand.vmem [shape: f32[32], index: 0, kind: input, shape index: {}]
  %s1 = inlined_call_operand.vmem [shape: f32[4,32], index: 1, kind: output, shape index: {}]
  // Predicated region
  $region2: #{tile.6} parent=0 // pred_check
    _
  $region3: #{tile.6} parent=0 // pred_check_branch
    %3 = sbr.rel (0) target = $region5
  $region4: #{tile.6} parent=0 // pred_region
    _
  $region5: #{tile.6} parent=0 // pred_fallthru
    _
  %v4 = vld [vmem:[%s0] ss:$0 sm:$0xff]
  %5 = vst [vmem:[%s1] sm:$0xf] %v4

// kernel: tile.7
$region0: #{tile.7}
  %s0 = inlined_call_operand.vmem [shape: f32[4,32], index: 0, kind: input, shape index: {}]
  %s1 = inlined_call_operand.vmem [shape: f32[1,128], index: 1, kind: output, shape index: {}]
  $region1: #{tile.7} parent=0
    #allocation0 [shape = 'u8[4096]{0}', space=vmem, size = 0x1000, scoped, tag = 'scoped mem for output reshape']
    #allocation1 [shape = 'u8[4096]{0}', space=vmem, size = 0x1000, scoped, tag = 'scoped mem for input reshape']
    %s3 = ssub.s32 16, 1
    %v4 = vld [vmem:[%s0] sm:%s3]
    %5 = vst [vmem:[#allocation1] sm:%s3] %v4
    %v6 = vld [vmem:[#allocation1] sm:$0x1]
    %vm7 = vcmask 261120
    %8 = vst.msk [vmem:[#allocation0] sm:$0x1] %vm7, %v6
    %s9 = scalar_lea.vmem [#allocation1], 3
    %v10 = vld [vmem:[%s9] sm:$0x1]
    %11 = vrot.lane.b32.xlu0 %v10, 96
    %v12 = vpop.permute.xlu0 %11
    %vm13 = vcmask 1048320
    %14 = vst.msk [vmem:[#allocation0] sm:$0x1] %vm13, %v12
    %s15 = scalar_lea.vmem [#allocation1], 2
    %v16 = vld [vmem:[%s15] sm:$0x1]
    %17 = vrot.lane.b32.xlu0 %v16, 64
    %v18 = vpop.permute.xlu0 %17
    %vm19 = vcmask 785920
    %20 = vst.msk [vmem:[#allocation0] sm:$0x1] %vm19, %v18
    %s21 = scalar_lea.vmem [#allocation1], 1
    %v22 = vld [vmem:[%s21] sm:$0x1]
    %23 = vrot.lane.b32.xlu0 %v22, 32
    %v24 = vpop.permute.xlu0 %23
    %vm25 = vcmask 523520
    %26 = vst.msk [vmem:[#allocation0] sm:$0x1] %vm25, %v24
    %s28 = ssub.s32 2, 1
    %v29 = vld [vmem:[#allocation0] sm:%s28]
    %s31 = ssub.s32 2, 1
    %32 = vst [vmem:[%s1] sm:%s31] %v29

// kernel: _lambda_.1
$region0: #{_lambda_.1}
  #allocation0 [shape = 'u32[]', space=smem, size = 0x4, offset = 0x4, fixed_abs, tag = 'smem constant byte address 0x4 - core index']
  #allocation1 [shape = 'u32[72,128]{1,0:T(1,128)}', space=vmem, size = 0x9000, scoped, tag = 'internal scratch']
  #allocation2 [shape = 'f32[608,32]{1,0:T(8,128)}', space=vmem, size = 0x4c000, scoped, tag = 'scratch operand']
  #allocation3 [shape = 'f32[560,64]{1,0:T(8,128)}', space=vmem, size = 0x46000, scoped, tag = 'scratch operand']
  #allocation4 [shape = 'f32[128,64]{1,0:T(8,128)}', space=vmem, size = 0x10000, scoped, tag = 'scratch operand']
  %s0 = inlined_call_operand.vmem [shape: f32[2,1024,9], index: 0, kind: input, shape index: {}]
  %s1 = inlined_call_operand.vmem [shape: f32[9,32], index: 1, kind: input, shape index: {}]
  %s2 = inlined_call_operand.vmem [shape: f32[1,32], index: 2, kind: input, shape index: {}]
  %s3 = inlined_call_operand.vmem [shape: f32[9,32,64], index: 3, kind: input, shape index: {}]
  %s4 = inlined_call_operand.vmem [shape: f32[1,64], index: 4, kind: input, shape index: {}]
  %s5 = inlined_call_operand.vmem [shape: f32[64,128], index: 5, kind: input, shape index: {}]
  %s6 = inlined_call_operand.vmem [shape: f32[1,128], index: 6, kind: input, shape index: {}]
  %s7 = inlined_call_operand.vmem [shape: f32[128,16], index: 7, kind: input, shape index: {}]
  %s8 = inlined_call_operand.vmem [shape: f32[1,16], index: 8, kind: input, shape index: {}]
  %s9 = inlined_call_operand.vmem [shape: f32[256,16], index: 9, kind: output, shape index: {}]
  %s10 = sld [smem:[#allocation0]]
  $region69: #{_lambda_.1} parent=0
    _
  %s12 = ssub.s32 1, %s10
  %s13 = scalar_select 0, %s12, %s10
  loop: start=0, step=1, limit=4
  $region2: #{_lambda_.1} parent=0 // loop_pre_header
    _
  $region3: #{_lambda_.1} parent=0 // loop_header
    %s15 = sphi 0, %s19
    %p16 = scmp.ge.s32.totalorder %s15, 4
    %s25 = sphi 0, %s27
    %s28 = sphi 0, %s25
    %s29 = sphi 0, %s28
    %s45 = sphi 0, %s29
    %s49 = sphi 0, %s49
    %s51 = sphi 0, %s49
    %s52 = sphi 0, %s51
    %s66 = sphi 0, %s52
    %s70 = sphi 0, %s70
    %s72 = sphi 0, %s70
    %s73 = sphi 0, %s72
    %s87 = sphi 0, %s73
    %s91 = sphi 0, %s91
    %s93 = sphi 0, %s91
    %s94 = sphi 0, %s93
    %s108 = sphi 0, %s94
    %s112 = sphi 0, %s112
    %s114 = sphi 0, %s112
    %s115 = sphi 0, %s114
    %s129 = sphi 0, %s115
    %s133 = sphi 0, %s133
    %s135 = sphi 0, %s133
    %s136 = sphi 0, %s135
    %s150 = sphi 0, %s136
    %s154 = sphi 0, %s154
    %s156 = sphi 0, %s154
    %s157 = sphi 0, %s156
    %s171 = sphi 0, %s157
    %s175 = sphi 0, %s175
    %s177 = sphi 0, %s175
    %s178 = sphi 0, %s177
    %s192 = sphi 0, %s178
    %s196 = sphi 0, %s196
    %s198 = sphi 0, %s196
    %s199 = sphi 0, %s198
    %s213 = sphi 0, %s199
    %s219 = sphi 0, %s221
    %s222 = sphi 0, %s219
    %s223 = sphi 0, %s222
    %s239 = sphi 0, %s223
  $region4: #{_lambda_.1} parent=0 // loop_header_branch
    %18 = sbr.rel (%p16) target = $region8
  $region5: #{_lambda_.1} parent=0 // loop_body
    %s20 = ssub.s32 %s15, 1
    %s21 = ssub.s32 %s15, 2
    %s22 = sadd.s32 %s15, 1
    %s23 = ssub.s32 %s15, %s22
    %p24 = scmp.eq.s32.totalorder %s23, 0
    %s26 = sadd.s32 %s25, 1
    %s27 = scalar_select %p24, %s25, %s26
    %p30 = pneg %p24
    %p31 = scmp.eq.s32.totalorder %s15, 1
    %p32 = por %p30, %p31
    %p33 = scmp.ne.s32.totalorder %s25, %s28
    %p34 = scmp.eq.s32.totalorder %s15, 0
    %p35 = por %p33, %p34
    %p36 = scmp.ne.s32.totalorder %s25, %s28
    %p37 = scmp.eq.s32.totalorder %s20, 1
    %p38 = por %p36, %p37
    %p39 = scmp.ne.s32.totalorder %s28, %s29
    %p40 = scmp.eq.s32.totalorder %s20, 0
    %p41 = por %p39, %p40
    %p42 = scmp.ne.s32.totalorder %s28, %s29
    %p43 = scmp.eq.s32.totalorder %s21, 1
    %p44 = por %p42, %p43
    %p46 = scmp.ne.s32.totalorder %s29, %s45
    %p47 = scmp.eq.s32.totalorder %s21, 0
    %p48 = por %p46, %p47
    %s50 = sadd.s32 %s49, 1
    %p53 = scmp.eq.s32.totalorder %s15, 1
    %p54 = scmp.ne.s32.totalorder %s49, %s51
    %p55 = scmp.eq.s32.totalorder %s15, 0
    %p56 = por %p54, %p55
    %p57 = scmp.ne.s32.totalorder %s49, %s51
    %p58 = scmp.eq.s32.totalorder %s20, 1
    %p59 = por %p57, %p58
    %p60 = scmp.ne.s32.totalorder %s51, %s52
    %p61 = scmp.eq.s32.totalorder %s20, 0
    %p62 = por %p60, %p61
    %p63 = scmp.ne.s32.totalorder %s51, %s52
    %p64 = scmp.eq.s32.totalorder %s21, 1
    %p65 = por %p63, %p64
    %p67 = scmp.ne.s32.totalorder %s52, %s66
    %p68 = scmp.eq.s32.totalorder %s21, 0
    %p69 = por %p67, %p68
    %s71 = sadd.s32 %s70, 1
    %p74 = scmp.eq.s32.totalorder %s15, 1
    %p75 = scmp.ne.s32.totalorder %s70, %s72
    %p76 = scmp.eq.s32.totalorder %s15, 0
    %p77 = por %p75, %p76
    %p78 = scmp.ne.s32.totalorder %s70, %s72
    %p79 = scmp.eq.s32.totalorder %s20, 1
    %p80 = por %p78, %p79
    %p81 = scmp.ne.s32.totalorder %s72, %s73
    %p82 = scmp.eq.s32.totalorder %s20, 0
    %p83 = por %p81, %p82
    %p84 = scmp.ne.s32.totalorder %s72, %s73
    %p85 = scmp.eq.s32.totalorder %s21, 1
    %p86 = por %p84, %p85
    %p88 = scmp.ne.s32.totalorder %s73, %s87
    %p89 = scmp.eq.s32.totalorder %s21, 0
    %p90 = por %p88, %p89
    %s92 = sadd.s32 %s91, 1
    %p95 = scmp.eq.s32.totalorder %s15, 1
    %p96 = scmp.ne.s32.totalorder %s91, %s93
    %p97 = scmp.eq.s32.totalorder %s15, 0
    %p98 = por %p96, %p97
    %p99 = scmp.ne.s32.totalorder %s91, %s93
    %p100 = scmp.eq.s32.totalorder %s20, 1
    %p101 = por %p99, %p100
    %p102 = scmp.ne.s32.totalorder %s93, %s94
    %p103 = scmp.eq.s32.totalorder %s20, 0
    %p104 = por %p102, %p103
    %p105 = scmp.ne.s32.totalorder %s93, %s94
    %p106 = scmp.eq.s32.totalorder %s21, 1
    %p107 = por %p105, %p106
    %p109 = scmp.ne.s32.totalorder %s94, %s108
    %p110 = scmp.eq.s32.totalorder %s21, 0
    %p111 = por %p109, %p110
    %s113 = sadd.s32 %s112, 1
    %p116 = scmp.eq.s32.totalorder %s15, 1
    %p117 = scmp.ne.s32.totalorder %s112, %s114
    %p118 = scmp.eq.s32.totalorder %s15, 0
    %p119 = por %p117, %p118
    %p120 = scmp.ne.s32.totalorder %s112, %s114
    %p121 = scmp.eq.s32.totalorder %s20, 1
    %p122 = por %p120, %p121
    %p123 = scmp.ne.s32.totalorder %s114, %s115
    %p124 = scmp.eq.s32.totalorder %s20, 0
    %p125 = por %p123, %p124
    %p126 = scmp.ne.s32.totalorder %s114, %s115
    %p127 = scmp.eq.s32.totalorder %s21, 1
    %p128 = por %p126, %p127
    %p130 = scmp.ne.s32.totalorder %s115, %s129
    %p131 = scmp.eq.s32.totalorder %s21, 0
    %p132 = por %p130, %p131
    %s134 = sadd.s32 %s133, 1
    %p137 = scmp.eq.s32.totalorder %s15, 1
    %p138 = scmp.ne.s32.totalorder %s133, %s135
    %p139 = scmp.eq.s32.totalorder %s15, 0
    %p140 = por %p138, %p139
    %p141 = scmp.ne.s32.totalorder %s133, %s135
    %p142 = scmp.eq.s32.totalorder %s20, 1
    %p143 = por %p141, %p142
    %p144 = scmp.ne.s32.totalorder %s135, %s136
    %p145 = scmp.eq.s32.totalorder %s20, 0
    %p146 = por %p144, %p145
    %p147 = scmp.ne.s32.totalorder %s135, %s136
    %p148 = scmp.eq.s32.totalorder %s21, 1
    %p149 = por %p147, %p148
    %p151 = scmp.ne.s32.totalorder %s136, %s150
    %p152 = scmp.eq.s32.totalorder %s21, 0
    %p153 = por %p151, %p152
    %s155 = sadd.s32 %s154, 1
    %p158 = scmp.eq.s32.totalorder %s15, 1
    %p159 = scmp.ne.s32.totalorder %s154, %s156
    %p160 = scmp.eq.s32.totalorder %s15, 0
    %p161 = por %p159, %p160
    %p162 = scmp.ne.s32.totalorder %s154, %s156
    %p163 = scmp.eq.s32.totalorder %s20, 1
    %p164 = por %p162, %p163
    %p165 = scmp.ne.s32.totalorder %s156, %s157
    %p166 = scmp.eq.s32.totalorder %s20, 0
    %p167 = por %p165, %p166
    %p168 = scmp.ne.s32.totalorder %s156, %s157
    %p169 = scmp.eq.s32.totalorder %s21, 1
    %p170 = por %p168, %p169
    %p172 = scmp.ne.s32.totalorder %s157, %s171
    %p173 = scmp.eq.s32.totalorder %s21, 0
    %p174 = por %p172, %p173
    %s176 = sadd.s32 %s175, 1
    %p179 = scmp.eq.s32.totalorder %s15, 1
    %p180 = scmp.ne.s32.totalorder %s175, %s177
    %p181 = scmp.eq.s32.totalorder %s15, 0
    %p182 = por %p180, %p181
    %p183 = scmp.ne.s32.totalorder %s175, %s177
    %p184 = scmp.eq.s32.totalorder %s20, 1
    %p185 = por %p183, %p184
    %p186 = scmp.ne.s32.totalorder %s177, %s178
    %p187 = scmp.eq.s32.totalorder %s20, 0
    %p188 = por %p186, %p187
    %p189 = scmp.ne.s32.totalorder %s177, %s178
    %p190 = scmp.eq.s32.totalorder %s21, 1
    %p191 = por %p189, %p190
    %p193 = scmp.ne.s32.totalorder %s178, %s192
    %p194 = scmp.eq.s32.totalorder %s21, 0
    %p195 = por %p193, %p194
    %s197 = sadd.s32 %s196, 1
    %p200 = scmp.eq.s32.totalorder %s15, 1
    %p201 = scmp.ne.s32.totalorder %s196, %s198
    %p202 = scmp.eq.s32.totalorder %s15, 0
    %p203 = por %p201, %p202
    %p204 = scmp.ne.s32.totalorder %s196, %s198
    %p205 = scmp.eq.s32.totalorder %s20, 1
    %p206 = por %p204, %p205
    %p207 = scmp.ne.s32.totalorder %s198, %s199
    %p208 = scmp.eq.s32.totalorder %s20, 0
    %p209 = por %p207, %p208
    %p210 = scmp.ne.s32.totalorder %s198, %s199
    %p211 = scmp.eq.s32.totalorder %s21, 1
    %p212 = por %p210, %p211
    %p214 = scmp.ne.s32.totalorder %s199, %s213
    %p215 = scmp.eq.s32.totalorder %s21, 0
    %p216 = por %p214, %p215
    %s217 = ssub.s32 %s15, %s22
    %p218 = scmp.eq.s32.totalorder %s217, 0
    %s220 = sadd.s32 %s219, 1
    %s221 = scalar_select %p218, %s219, %s220
    %p224 = pneg %p218
    %p225 = scmp.eq.s32.totalorder %s15, 1
    %p226 = por %p224, %p225
    %p227 = scmp.ne.s32.totalorder %s219, %s222
    %p228 = scmp.eq.s32.totalorder %s15, 0
    %p229 = por %p227, %p228
    %p230 = scmp.ne.s32.totalorder %s219, %s222
    %p231 = scmp.eq.s32.totalorder %s20, 1
    %p232 = por %p230, %p231
    %p233 = scmp.ne.s32.totalorder %s222, %s223
    %p234 = scmp.eq.s32.totalorder %s20, 0
    %p235 = por %p233, %p234
    %p236 = scmp.ne.s32.totalorder %s222, %s223
    %p237 = scmp.eq.s32.totalorder %s21, 1
    %p238 = por %p236, %p237
    %p240 = scmp.ne.s32.totalorder %s223, %s239
    %p241 = scmp.eq.s32.totalorder %s21, 0
    %p242 = por %p240, %p241
    %p243 = scmp.le.s32.totalorder 1, %s15
    %p244 = scmp.lt.s32.totalorder %s15, 3
    %p245 = pnand %p243, %p244
    %p246 = pneg %p245
    // Predicated region
    $region9: #{_lambda_.1} parent=5 // pred_check
      _
    $region10: #{_lambda_.1} parent=5 // pred_check_branch
      %248 = sbr.rel (%p245) target = $region12
    $region11: #{_lambda_.1} parent=5 // pred_region
      %s249 = ssub.s32 %s15, 1
      // Predicated region
      $region13: #{_lambda_.1} parent=11 // pred_check
        %p250 = pneg %p62
      $region14: #{_lambda_.1} parent=11 // pred_check_branch
        %252 = sbr.rel (%p250) target = $region16
      $region15: #{_lambda_.1} parent=11 // pred_region
        _
      $region16: #{_lambda_.1} parent=11 // pred_fallthru
        _
      // Predicated region
      $region17: #{_lambda_.1} parent=11 // pred_check
        %p253 = pneg %p83
      $region18: #{_lambda_.1} parent=11 // pred_check_branch
        %255 = sbr.rel (%p253) target = $region20
      $region19: #{_lambda_.1} parent=11 // pred_region
        _
      $region20: #{_lambda_.1} parent=11 // pred_fallthru
        _
      // Predicated region
      $region21: #{_lambda_.1} parent=11 // pred_check
        %p256 = pneg %p104
      $region22: #{_lambda_.1} parent=11 // pred_check_branch
        %258 = sbr.rel (%p256) target = $region24
      $region23: #{_lambda_.1} parent=11 // pred_region
        _
      $region24: #{_lambda_.1} parent=11 // pred_fallthru
        _
      // Predicated region
      $region25: #{_lambda_.1} parent=11 // pred_check
        %p259 = pneg %p125
      $region26: #{_lambda_.1} parent=11 // pred_check_branch
        %261 = sbr.rel (%p259) target = $region28
      $region27: #{_lambda_.1} parent=11 // pred_region
        _
      $region28: #{_lambda_.1} parent=11 // pred_fallthru
        _
      // Predicated region
      $region29: #{_lambda_.1} parent=11 // pred_check
        %p262 = pneg %p146
      $region30: #{_lambda_.1} parent=11 // pred_check_branch
        %264 = sbr.rel (%p262) target = $region32
      $region31: #{_lambda_.1} parent=11 // pred_region
        _
      $region32: #{_lambda_.1} parent=11 // pred_fallthru
        _
      // Predicated region
      $region33: #{_lambda_.1} parent=11 // pred_check
        %p265 = pneg %p167
      $region34: #{_lambda_.1} parent=11 // pred_check_branch
        %267 = sbr.rel (%p265) target = $region36
      $region35: #{_lambda_.1} parent=11 // pred_region
        _
      $region36: #{_lambda_.1} parent=11 // pred_fallthru
        _
      // Predicated region
      $region37: #{_lambda_.1} parent=11 // pred_check
        %p268 = pneg %p188
      $region38: #{_lambda_.1} parent=11 // pred_check_branch
        %270 = sbr.rel (%p268) target = $region40
      $region39: #{_lambda_.1} parent=11 // pred_region
        _
      $region40: #{_lambda_.1} parent=11 // pred_fallthru
        _
      // Predicated region
      $region41: #{_lambda_.1} parent=11 // pred_check
        %p271 = pneg %p209
      $region42: #{_lambda_.1} parent=11 // pred_check_branch
        %273 = sbr.rel (%p271) target = $region44
      $region43: #{_lambda_.1} parent=11 // pred_region
        _
      $region44: #{_lambda_.1} parent=11 // pred_fallthru
        _
    $region12: #{_lambda_.1} parent=5 // pred_fallthru
      _
    %p274 = scmp.lt.s32.totalorder %s15, 2
    // Predicated region
    $region45: #{_lambda_.1} parent=5 // pred_check
      %p275 = pneg %p274
    $region46: #{_lambda_.1} parent=5 // pred_check_branch
      %277 = sbr.rel (%p275) target = $region48
    $region47: #{_lambda_.1} parent=5 // pred_region
      // Predicated region
      $region49: #{_lambda_.1} parent=47 // pred_check
        %p278 = pneg %p35
      $region50: #{_lambda_.1} parent=47 // pred_check_branch
        %280 = sbr.rel (%p278) target = $region52
      $region51: #{_lambda_.1} parent=47 // pred_region
        %p281 = scmp.lt.s32.totalorder %s15, 1
        %s282 = scalar_select %p281, %s15, 1
        %s283 = smul.addr %s282, 128
        %s284 = smul.addr %s283, 8
        %s285 = scalar_lea.vmem %s0, %s284
      $region52: #{_lambda_.1} parent=47 // pred_fallthru
        _
    $region48: #{_lambda_.1} parent=5 // pred_fallthru
      _
    %p286 = scmp.le.s32.totalorder 1, %s15
    %p287 = scmp.lt.s32.totalorder %s15, 3
    %p288 = pnand %p286, %p287
    %p289 = pneg %p288
    // Predicated region
    $region53: #{_lambda_.1} parent=5 // pred_check
      _
    $region54: #{_lambda_.1} parent=5 // pred_check_branch
      %291 = sbr.rel (%p288) target = $region56
    $region55: #{_lambda_.1} parent=5 // pred_region
      %s292 = ssub.s32 %s15, 1
      %p293 = scmp.lt.s32.totalorder %s20, 1
      %s294 = scalar_select %p293, %s20, 1
      %s295 = smul.addr %s294, 128
      %s296 = smul.addr %s295, 8
      %s297 = scalar_lea.vmem %s0, %s296
      %p298 = pneg %p41
      %p299 = pneg %p38
      %p300 = pneg %p62
      %p301 = pneg %p59
      %p302 = pneg %p83
      %p303 = pneg %p80
      %p304 = pneg %p104
      %p305 = pneg %p101
      %p306 = pneg %p125
      %p307 = pneg %p122
      %p308 = pneg %p146
      %p309 = pneg %p143
      %p310 = pneg %p167
      %p311 = pneg %p164
      %p312 = pneg %p188
      %p313 = pneg %p185
      %p314 = pneg %p209
      %p315 = pneg %p206
      %p316 = pneg %p235
      %p317 = pneg %p232
      %s318 = smul.u32 16, %s20
      %p319 = scmp.lt.s32.totalorder %s318, 31
      %s320 = scalar_select %p319, %s318, 31
      %s321 = smul.addr %s320, 8
      %s322 = scalar_lea.vmem %s9, %s321
      %p323 = scmp.lt.s32.totalorder %s20, 1
      %s324 = scalar_select %p323, %s20, 1
      %s325 = smul.addr %s324, 128
      %s326 = smul.addr %s325, 8
      %s327 = scalar_lea.vmem %s0, %s326
      %s328 = smul.u32 16, %s20
      %p329 = scmp.lt.s32.totalorder %s328, 31
      %s330 = scalar_select %p329, %s328, 31
      %s331 = smul.addr %s330, 8
      %s332 = scalar_lea.vmem %s9, %s331
      %s333 = smul.u32 16, %s20
      %v334 = vld [vmem:[%s327] sm:$0xff]
      %v335 = vld [vmem:[%s327 + $0x8] sm:$0xff]
      %v336 = vld [vmem:[%s327 + $0x10] sm:$0xff]
      %v337 = vld [vmem:[%s327 + $0x18] sm:$0xff]
      %v338 = vld [vmem:[%s327 + $0x20] sm:$0xff]
      %v339 = vld [vmem:[%s327 + $0x28] sm:$0xff]
      %v340 = vld [vmem:[%s327 + $0x30] sm:$0xff]
      %v341 = vld [vmem:[%s327 + $0x38] sm:$0xff]
      %v342 = vld [vmem:[%s327 + $0x40] sm:$0xff]
      %v343 = vld [vmem:[%s327 + $0x48] sm:$0xff]
      %v344 = vld [vmem:[%s327 + $0x50] sm:$0xff]
      %v345 = vld [vmem:[%s327 + $0x58] sm:$0xff]
      %v346 = vld [vmem:[%s327 + $0x60] sm:$0xff]
      %v347 = vld [vmem:[%s327 + $0x68] sm:$0xff]
      %v348 = vld [vmem:[%s327 + $0x70] sm:$0xff]
      %v349 = vld [vmem:[%s327 + $0x78] sm:$0xff]
      %v350 = vld [vmem:[%s327 + $0x80] sm:$0xff]
      %v351 = vld [vmem:[%s327 + $0x88] sm:$0xff]
      %v352 = vld [vmem:[%s327 + $0x90] sm:$0xff]
      %v353 = vld [vmem:[%s327 + $0x98] sm:$0xff]
      %v354 = vld [vmem:[%s327 + $0xa0] sm:$0xff]
      %v355 = vld [vmem:[%s327 + $0xa8] sm:$0xff]
      %v356 = vld [vmem:[%s327 + $0xb0] sm:$0xff]
      %v357 = vld [vmem:[%s327 + $0xb8] sm:$0xff]
      %v358 = vld [vmem:[%s327 + $0xc0] sm:$0xff]
      %v359 = vld [vmem:[%s327 + $0xc8] sm:$0xff]
      %v360 = vld [vmem:[%s327 + $0xd0] sm:$0xff]
      %v361 = vld [vmem:[%s327 + $0xd8] sm:$0xff]
      %v362 = vld [vmem:[%s327 + $0xe0] sm:$0xff]
      %v363 = vld [vmem:[%s327 + $0xe8] sm:$0xff]
      %v364 = vld [vmem:[%s327 + $0xf0] sm:$0xff]
      %v365 = vld [vmem:[%s327 + $0xf8] sm:$0xff]
      %v366 = vld [vmem:[%s327 + $0x100] sm:$0xff]
      %v367 = vld [vmem:[%s327 + $0x108] sm:$0xff]
      %v368 = vld [vmem:[%s327 + $0x110] sm:$0xff]
      %v369 = vld [vmem:[%s327 + $0x118] sm:$0xff]
      %v370 = vld [vmem:[%s327 + $0x120] sm:$0xff]
      %v371 = vld [vmem:[%s327 + $0x128] sm:$0xff]
      %v372 = vld [vmem:[%s327 + $0x130] sm:$0xff]
      %v373 = vld [vmem:[%s327 + $0x138] sm:$0xff]
      %v374 = vld [vmem:[%s327 + $0x140] sm:$0xff]
      %v375 = vld [vmem:[%s327 + $0x148] sm:$0xff]
      %v376 = vld [vmem:[%s327 + $0x150] sm:$0xff]
      %v377 = vld [vmem:[%s327 + $0x158] sm:$0xff]
      %v378 = vld [vmem:[%s327 + $0x160] sm:$0xff]
      %v379 = vld [vmem:[%s327 + $0x168] sm:$0xff]
      %v380 = vld [vmem:[%s327 + $0x170] sm:$0xff]
      %v381 = vld [vmem:[%s327 + $0x178] sm:$0xff]
      %v382 = vld [vmem:[%s327 + $0x180] sm:$0xff]
      %v383 = vld [vmem:[%s327 + $0x188] sm:$0xff]
      %v384 = vld [vmem:[%s327 + $0x190] sm:$0xff]
      %v385 = vld [vmem:[%s327 + $0x198] sm:$0xff]
      %v386 = vld [vmem:[%s327 + $0x1a0] sm:$0xff]
      %v387 = vld [vmem:[%s327 + $0x1a8] sm:$0xff]
      %v388 = vld [vmem:[%s327 + $0x1b0] sm:$0xff]
      %v389 = vld [vmem:[%s327 + $0x1b8] sm:$0xff]
      %v390 = vld [vmem:[%s327 + $0x1c0] sm:$0xff]
      %v391 = vld [vmem:[%s327 + $0x1c8] sm:$0xff]
      %v392 = vld [vmem:[%s327 + $0x1d0] sm:$0xff]
      %v393 = vld [vmem:[%s327 + $0x1d8] sm:$0xff]
      %v394 = vld [vmem:[%s327 + $0x1e0] sm:$0xff]
      %v395 = vld [vmem:[%s327 + $0x1e8] sm:$0xff]
      %v396 = vld [vmem:[%s327 + $0x1f0] sm:$0xff]
      %v397 = vld [vmem:[%s327 + $0x1f8] sm:$0xff]
      %v398 = vld [vmem:[%s327 + $0x200] sm:$0xff]
      %v399 = vld [vmem:[%s327 + $0x208] sm:$0xff]
      %v400 = vld [vmem:[%s327 + $0x210] sm:$0xff]
      %v401 = vld [vmem:[%s327 + $0x218] sm:$0xff]
      %v402 = vld [vmem:[%s327 + $0x220] sm:$0xff]
      %v403 = vld [vmem:[%s327 + $0x228] sm:$0xff]
      %v404 = vld [vmem:[%s327 + $0x230] sm:$0xff]
      %v405 = vld [vmem:[%s327 + $0x238] sm:$0xff]
      %v406 = vld [vmem:[%s327 + $0x240] sm:$0xff]
      %v407 = vld [vmem:[%s327 + $0x248] sm:$0xff]
      %v408 = vld [vmem:[%s327 + $0x250] sm:$0xff]
      %v409 = vld [vmem:[%s327 + $0x258] sm:$0xff]
      %v410 = vld [vmem:[%s327 + $0x260] sm:$0xff]
      %v411 = vld [vmem:[%s327 + $0x268] sm:$0xff]
      %v412 = vld [vmem:[%s327 + $0x270] sm:$0xff]
      %v413 = vld [vmem:[%s327 + $0x278] sm:$0xff]
      %v414 = vld [vmem:[%s327 + $0x280] sm:$0xff]
      %v415 = vld [vmem:[%s327 + $0x288] sm:$0xff]
      %v416 = vld [vmem:[%s327 + $0x290] sm:$0xff]
      %v417 = vld [vmem:[%s327 + $0x298] sm:$0xff]
      %v418 = vld [vmem:[%s327 + $0x2a0] sm:$0xff]
      %v419 = vld [vmem:[%s327 + $0x2a8] sm:$0xff]
      %v420 = vld [vmem:[%s327 + $0x2b0] sm:$0xff]
      %v421 = vld [vmem:[%s327 + $0x2b8] sm:$0xff]
      %v422 = vld [vmem:[%s327 + $0x2c0] sm:$0xff]
      %v423 = vld [vmem:[%s327 + $0x2c8] sm:$0xff]
      %v424 = vld [vmem:[%s327 + $0x2d0] sm:$0xff]
      %v425 = vld [vmem:[%s327 + $0x2d8] sm:$0xff]
      %v426 = vld [vmem:[%s327 + $0x2e0] sm:$0xff]
      %v427 = vld [vmem:[%s327 + $0x2e8] sm:$0xff]
      %v428 = vld [vmem:[%s327 + $0x2f0] sm:$0xff]
      %v429 = vld [vmem:[%s327 + $0x2f8] sm:$0xff]
      %v430 = vld [vmem:[%s327 + $0x300] sm:$0xff]
      %v431 = vld [vmem:[%s327 + $0x308] sm:$0xff]
      %v432 = vld [vmem:[%s327 + $0x310] sm:$0xff]
      %v433 = vld [vmem:[%s327 + $0x318] sm:$0xff]
      %v434 = vld [vmem:[%s327 + $0x320] sm:$0xff]
      %v435 = vld [vmem:[%s327 + $0x328] sm:$0xff]
      %v436 = vld [vmem:[%s327 + $0x330] sm:$0xff]
      %v437 = vld [vmem:[%s327 + $0x338] sm:$0xff]
      %v438 = vld [vmem:[%s327 + $0x340] sm:$0xff]
      %v439 = vld [vmem:[%s327 + $0x348] sm:$0xff]
      %v440 = vld [vmem:[%s327 + $0x350] sm:$0xff]
      %v441 = vld [vmem:[%s327 + $0x358] sm:$0xff]
      %v442 = vld [vmem:[%s327 + $0x360] sm:$0xff]
      %v443 = vld [vmem:[%s327 + $0x368] sm:$0xff]
      %v444 = vld [vmem:[%s327 + $0x370] sm:$0xff]
      %v445 = vld [vmem:[%s327 + $0x378] sm:$0xff]
      %v446 = vld [vmem:[%s327 + $0x380] sm:$0xff]
      %v447 = vld [vmem:[%s327 + $0x388] sm:$0xff]
      %v448 = vld [vmem:[%s327 + $0x390] sm:$0xff]
      %v449 = vld [vmem:[%s327 + $0x398] sm:$0xff]
      %v450 = vld [vmem:[%s327 + $0x3a0] sm:$0xff]
      %v451 = vld [vmem:[%s327 + $0x3a8] sm:$0xff]
      %v452 = vld [vmem:[%s327 + $0x3b0] sm:$0xff]
      %v453 = vld [vmem:[%s327 + $0x3b8] sm:$0xff]
      %v454 = vld [vmem:[%s327 + $0x3c0] sm:$0xff]
      %v455 = vld [vmem:[%s327 + $0x3c8] sm:$0xff]
      %v456 = vld [vmem:[%s327 + $0x3d0] sm:$0xff]
      %v457 = vld [vmem:[%s327 + $0x3d8] sm:$0xff]
      %v458 = vld [vmem:[%s327 + $0x3e0] sm:$0xff]
      %v459 = vld [vmem:[%s327 + $0x3e8] sm:$0xff]
      %v460 = vld [vmem:[%s327 + $0x3f0] sm:$0xff]
      %v461 = vld [vmem:[%s327 + $0x3f8] sm:$0xff]
      %v462 = vld [vmem:[%s1] sm:$0xff]
      %v463 = vld [vmem:[%s1 + $0x8] sm:$0x1]
      %v464 = vld [vmem:[%s2] sm:$0x1]
      %v466 = vperm.slane %v464, 0
      %vm468 = vcmask 72704
      %v470 = vsel %vm468, %v334, 0
      %v473 = vsel %vm468, %v335, 0
      %v476 = vsel %vm468, %v336, 0
      %v479 = vsel %vm468, %v337, 0
      %v482 = vsel %vm468, %v338, 0
      %v485 = vsel %vm468, %v339, 0
      %v488 = vsel %vm468, %v340, 0
      %v491 = vsel %vm468, %v341, 0
      %v494 = vsel %vm468, %v342, 0
      %v497 = vsel %vm468, %v343, 0
      %v500 = vsel %vm468, %v344, 0
      %v503 = vsel %vm468, %v345, 0
      %v506 = vsel %vm468, %v346, 0
      %v509 = vsel %vm468, %v347, 0
      %v512 = vsel %vm468, %v348, 0
      %v515 = vsel %vm468, %v349, 0
      %v518 = vsel %vm468, %v350, 0
      %v521 = vsel %vm468, %v351, 0
      %v524 = vsel %vm468, %v352, 0
      %v527 = vsel %vm468, %v353, 0
      %v530 = vsel %vm468, %v354, 0
      %v533 = vsel %vm468, %v355, 0
      %v536 = vsel %vm468, %v356, 0
      %v539 = vsel %vm468, %v357, 0
      %v542 = vsel %vm468, %v358, 0
      %v545 = vsel %vm468, %v359, 0
      %v548 = vsel %vm468, %v360, 0
      %v551 = vsel %vm468, %v361, 0
      %v554 = vsel %vm468, %v362, 0
      %v557 = vsel %vm468, %v363, 0
      %v560 = vsel %vm468, %v364, 0
      %v563 = vsel %vm468, %v365, 0
      %v566 = vsel %vm468, %v366, 0
      %v569 = vsel %vm468, %v367, 0
      %v572 = vsel %vm468, %v368, 0
      %v575 = vsel %vm468, %v369, 0
      %v578 = vsel %vm468, %v370, 0
      %v581 = vsel %vm468, %v371, 0
      %v584 = vsel %vm468, %v372, 0
      %v587 = vsel %vm468, %v373, 0
      %v590 = vsel %vm468, %v374, 0
      %v593 = vsel %vm468, %v375, 0
      %v596 = vsel %vm468, %v376, 0
      %v599 = vsel %vm468, %v377, 0
      %v602 = vsel %vm468, %v378, 0
      %v605 = vsel %vm468, %v379, 0
      %v608 = vsel %vm468, %v380, 0
      %v611 = vsel %vm468, %v381, 0
      %v614 = vsel %vm468, %v382, 0
      %v617 = vsel %vm468, %v383, 0
      %v620 = vsel %vm468, %v384, 0
      %v623 = vsel %vm468, %v385, 0
      %v626 = vsel %vm468, %v386, 0
      %v629 = vsel %vm468, %v387, 0
      %v632 = vsel %vm468, %v388, 0
      %v635 = vsel %vm468, %v389, 0
      %v638 = vsel %vm468, %v390, 0
      %v641 = vsel %vm468, %v391, 0
      %v644 = vsel %vm468, %v392, 0
      %v647 = vsel %vm468, %v393, 0
      %v650 = vsel %vm468, %v394, 0
      %v653 = vsel %vm468, %v395, 0
      %v656 = vsel %vm468, %v396, 0
      %v659 = vsel %vm468, %v397, 0
      %v662 = vsel %vm468, %v398, 0
      %v665 = vsel %vm468, %v399, 0
      %v668 = vsel %vm468, %v400, 0
      %v671 = vsel %vm468, %v401, 0
      %v674 = vsel %vm468, %v402, 0
      %v677 = vsel %vm468, %v403, 0
      %v680 = vsel %vm468, %v404, 0
      %v683 = vsel %vm468, %v405, 0
      %v686 = vsel %vm468, %v406, 0
      %v689 = vsel %vm468, %v407, 0
      %v692 = vsel %vm468, %v408, 0
      %v695 = vsel %vm468, %v409, 0
      %v698 = vsel %vm468, %v410, 0
      %v701 = vsel %vm468, %v411, 0
      %v704 = vsel %vm468, %v412, 0
      %v707 = vsel %vm468, %v413, 0
      %v710 = vsel %vm468, %v414, 0
      %v713 = vsel %vm468, %v415, 0
      %v716 = vsel %vm468, %v416, 0
      %v719 = vsel %vm468, %v417, 0
      %v722 = vsel %vm468, %v418, 0
      %v725 = vsel %vm468, %v419, 0
      %v728 = vsel %vm468, %v420, 0
      %v731 = vsel %vm468, %v421, 0
      %v734 = vsel %vm468, %v422, 0
      %v737 = vsel %vm468, %v423, 0
      %v740 = vsel %vm468, %v424, 0
      %v743 = vsel %vm468, %v425, 0
      %v746 = vsel %vm468, %v426, 0
      %v749 = vsel %vm468, %v427, 0
      %v752 = vsel %vm468, %v428, 0
      %v755 = vsel %vm468, %v429, 0
      %v758 = vsel %vm468, %v430, 0
      %v761 = vsel %vm468, %v431, 0
      %v764 = vsel %vm468, %v432, 0
      %v767 = vsel %vm468, %v433, 0
      %v770 = vsel %vm468, %v434, 0
      %v773 = vsel %vm468, %v435, 0
      %v776 = vsel %vm468, %v436, 0
      %v779 = vsel %vm468, %v437, 0
      %v782 = vsel %vm468, %v438, 0
      %v785 = vsel %vm468, %v439, 0
      %v788 = vsel %vm468, %v440, 0
      %v791 = vsel %vm468, %v441, 0
      %v794 = vsel %vm468, %v442, 0
      %v797 = vsel %vm468, %v443, 0
      %v800 = vsel %vm468, %v444, 0
      %v803 = vsel %vm468, %v445, 0
      %v806 = vsel %vm468, %v446, 0
      %v809 = vsel %vm468, %v447, 0
      %v812 = vsel %vm468, %v448, 0
      %v815 = vsel %vm468, %v449, 0
      %v818 = vsel %vm468, %v450, 0
      %v821 = vsel %vm468, %v451, 0
      %v824 = vsel %vm468, %v452, 0
      %v827 = vsel %vm468, %v453, 0
      %v830 = vsel %vm468, %v454, 0
      %v833 = vsel %vm468, %v455, 0
      %v836 = vsel %vm468, %v456, 0
      %v839 = vsel %vm468, %v457, 0
      %v842 = vsel %vm468, %v458, 0
      %v845 = vsel %vm468, %v459, 0
      %v848 = vsel %vm468, %v460, 0
      %v851 = vsel %vm468, %v461, 0
      %vm853 = vcmask 1040384
      %v855 = vsel %vm853, %v463, 0
      %857 = vmatpush.msra.mxu0 0.0
      %858 = vmatpush.msra.mxu0 0.0
      %859 = vmatpush.msra.mxu0 0.0
      %860 = vmatpush.msra.mxu0 0.0
      %861 = vmatpush.msra.mxu0 0.0
      %862 = vmatpush.msra.mxu0 0.0
      %863 = vmatpush.msra.mxu0 0.0
      %864 = vmatpush.msra.mxu0 0.0
      %865 = vmatpush.msra.mxu0 0.0
      %866 = vmatpush.msra.mxu0 0.0
      %867 = vmatpush.msra.mxu0 0.0
      %868 = vmatpush.msra.mxu0 0.0
      %869 = vmatpush.msra.mxu0 0.0
      %870 = vmatpush.msra.mxu0 0.0
      %871 = vmatpush.msra.mxu0 %v855
      %872 = vmatpush.msra.mxu0 %v462
      %873 = vmatmul.f32.gmra.mxu0 %v470
      %v874 = vpop.f32.mrf.mxu0
      %v875 = vadd.f32 %v466, %v874
      %876 = vmatmul.f32.gmra.mxu0 %v473
      %v877 = vpop.f32.mrf.mxu0
      %v878 = vadd.f32 %v466, %v877
      %879 = vmatmul.f32.gmra.mxu0 %v476
      %v880 = vpop.f32.mrf.mxu0
      %v881 = vadd.f32 %v466, %v880
      %882 = vmatmul.f32.gmra.mxu0 %v479
      %v883 = vpop.f32.mrf.mxu0
      %v884 = vadd.f32 %v466, %v883
      %885 = vmatmul.f32.gmra.mxu0 %v482
      %v886 = vpop.f32.mrf.mxu0
      %v887 = vadd.f32 %v466, %v886
      %888 = vmatmul.f32.gmra.mxu0 %v485
      %v889 = vpop.f32.mrf.mxu0
      %v890 = vadd.f32 %v466, %v889
      %891 = vmatmul.f32.gmra.mxu0 %v488
      %v892 = vpop.f32.mrf.mxu0
      %v893 = vadd.f32 %v466, %v892
      %894 = vmatmul.f32.gmra.mxu0 %v491
      %v895 = vpop.f32.mrf.mxu0
      %v896 = vadd.f32 %v466, %v895
      %897 = vmatmul.f32.gmra.mxu0 %v494
      %v898 = vpop.f32.mrf.mxu0
      %v899 = vadd.f32 %v466, %v898
      %900 = vmatmul.f32.gmra.mxu0 %v497
      %v901 = vpop.f32.mrf.mxu0
      %v902 = vadd.f32 %v466, %v901
      %903 = vmatmul.f32.gmra.mxu0 %v500
      %v904 = vpop.f32.mrf.mxu0
      %v905 = vadd.f32 %v466, %v904
      %906 = vmatmul.f32.gmra.mxu0 %v503
      %v907 = vpop.f32.mrf.mxu0
      %v908 = vadd.f32 %v466, %v907
      %909 = vmatmul.f32.gmra.mxu0 %v506
      %v910 = vpop.f32.mrf.mxu0
      %v911 = vadd.f32 %v466, %v910
      %912 = vmatmul.f32.gmra.mxu0 %v509
      %v913 = vpop.f32.mrf.mxu0
      %v914 = vadd.f32 %v466, %v913
      %915 = vmatmul.f32.gmra.mxu0 %v512
      %v916 = vpop.f32.mrf.mxu0
      %v917 = vadd.f32 %v466, %v916
      %918 = vmatmul.f32.gmra.mxu0 %v515
      %v919 = vpop.f32.mrf.mxu0
      %v920 = vadd.f32 %v466, %v919
      %921 = vmatmul.f32.gmra.mxu0 %v518
      %v922 = vpop.f32.mrf.mxu0
      %v923 = vadd.f32 %v466, %v922
      %924 = vmatmul.f32.gmra.mxu0 %v521
      %v925 = vpop.f32.mrf.mxu0
      %v926 = vadd.f32 %v466, %v925
      %927 = vmatmul.f32.gmra.mxu0 %v524
      %v928 = vpop.f32.mrf.mxu0
      %v929 = vadd.f32 %v466, %v928
      %930 = vmatmul.f32.gmra.mxu0 %v527
      %v931 = vpop.f32.mrf.mxu0
      %v932 = vadd.f32 %v466, %v931
      %933 = vmatmul.f32.gmra.mxu0 %v530
      %v934 = vpop.f32.mrf.mxu0
      %v935 = vadd.f32 %v466, %v934
      %936 = vmatmul.f32.gmra.mxu0 %v533
      %v937 = vpop.f32.mrf.mxu0
      %v938 = vadd.f32 %v466, %v937
      %939 = vmatmul.f32.gmra.mxu0 %v536
      %v940 = vpop.f32.mrf.mxu0
      %v941 = vadd.f32 %v466, %v940
      %942 = vmatmul.f32.gmra.mxu0 %v539
      %v943 = vpop.f32.mrf.mxu0
      %v944 = vadd.f32 %v466, %v943
      %945 = vmatmul.f32.gmra.mxu0 %v542
      %v946 = vpop.f32.mrf.mxu0
      %v947 = vadd.f32 %v466, %v946
      %948 = vmatmul.f32.gmra.mxu0 %v545
      %v949 = vpop.f32.mrf.mxu0
      %v950 = vadd.f32 %v466, %v949
      %951 = vmatmul.f32.gmra.mxu0 %v548
      %v952 = vpop.f32.mrf.mxu0
      %v953 = vadd.f32 %v466, %v952
      %954 = vmatmul.f32.gmra.mxu0 %v551
      %v955 = vpop.f32.mrf.mxu0
      %v956 = vadd.f32 %v466, %v955
      %957 = vmatmul.f32.gmra.mxu0 %v554
      %v958 = vpop.f32.mrf.mxu0
      %v959 = vadd.f32 %v466, %v958
      %960 = vmatmul.f32.gmra.mxu0 %v557
      %v961 = vpop.f32.mrf.mxu0
      %v962 = vadd.f32 %v466, %v961
      %963 = vmatmul.f32.gmra.mxu0 %v560
      %v964 = vpop.f32.mrf.mxu0
      %v965 = vadd.f32 %v466, %v964
      %966 = vmatmul.f32.gmra.mxu0 %v563
      %v967 = vpop.f32.mrf.mxu0
      %v968 = vadd.f32 %v466, %v967
      %969 = vmatmul.f32.gmra.mxu0 %v566
      %v970 = vpop.f32.mrf.mxu0
      %v971 = vadd.f32 %v466, %v970
      %972 = vmatmul.f32.gmra.mxu0 %v569
      %v973 = vpop.f32.mrf.mxu0
      %v974 = vadd.f32 %v466, %v973
      %975 = vmatmul.f32.gmra.mxu0 %v572
      %v976 = vpop.f32.mrf.mxu0
      %v977 = vadd.f32 %v466, %v976
      %978 = vmatmul.f32.gmra.mxu0 %v575
      %v979 = vpop.f32.mrf.mxu0
      %v980 = vadd.f32 %v466, %v979
      %981 = vmatmul.f32.gmra.mxu0 %v578
      %v982 = vpop.f32.mrf.mxu0
      %v983 = vadd.f32 %v466, %v982
      %984 = vmatmul.f32.gmra.mxu0 %v581
      %v985 = vpop.f32.mrf.mxu0
      %v986 = vadd.f32 %v466, %v985
      %987 = vmatmul.f32.gmra.mxu0 %v584
      %v988 = vpop.f32.mrf.mxu0
      %v989 = vadd.f32 %v466, %v988
      %990 = vmatmul.f32.gmra.mxu0 %v587
      %v991 = vpop.f32.mrf.mxu0
      %v992 = vadd.f32 %v466, %v991
      %993 = vmatmul.f32.gmra.mxu0 %v590
      %v994 = vpop.f32.mrf.mxu0
      %v995 = vadd.f32 %v466, %v994
      %996 = vmatmul.f32.gmra.mxu0 %v593
      %v997 = vpop.f32.mrf.mxu0
      %v998 = vadd.f32 %v466, %v997
      %999 = vmatmul.f32.gmra.mxu0 %v596
      %v1000 = vpop.f32.mrf.mxu0
      %v1001 = vadd.f32 %v466, %v1000
      %1002 = vmatmul.f32.gmra.mxu0 %v599
      %v1003 = vpop.f32.mrf.mxu0
      %v1004 = vadd.f32 %v466, %v1003
      %1005 = vmatmul.f32.gmra.mxu0 %v602
      %v1006 = vpop.f32.mrf.mxu0
      %v1007 = vadd.f32 %v466, %v1006
      %1008 = vmatmul.f32.gmra.mxu0 %v605
      %v1009 = vpop.f32.mrf.mxu0
      %v1010 = vadd.f32 %v466, %v1009
      %1011 = vmatmul.f32.gmra.mxu0 %v608
      %v1012 = vpop.f32.mrf.mxu0
      %v1013 = vadd.f32 %v466, %v1012
      %1014 = vmatmul.f32.gmra.mxu0 %v611
      %v1015 = vpop.f32.mrf.mxu0
      %v1016 = vadd.f32 %v466, %v1015
      %1017 = vmatmul.f32.gmra.mxu0 %v614
      %v1018 = vpop.f32.mrf.mxu0
      %v1019 = vadd.f32 %v466, %v1018
      %1020 = vmatmul.f32.gmra.mxu0 %v617
      %v1021 = vpop.f32.mrf.mxu0
      %v1022 = vadd.f32 %v466, %v1021
      %1023 = vmatmul.f32.gmra.mxu0 %v620
      %v1024 = vpop.f32.mrf.mxu0
      %v1025 = vadd.f32 %v466, %v1024
      %1026 = vmatmul.f32.gmra.mxu0 %v623
      %v1027 = vpop.f32.mrf.mxu0
      %v1028 = vadd.f32 %v466, %v1027
      %1029 = vmatmul.f32.gmra.mxu0 %v626
      %v1030 = vpop.f32.mrf.mxu0
      %v1031 = vadd.f32 %v466, %v1030
      %1032 = vmatmul.f32.gmra.mxu0 %v629
      %v1033 = vpop.f32.mrf.mxu0
      %v1034 = vadd.f32 %v466, %v1033
      %1035 = vmatmul.f32.gmra.mxu0 %v632
      %v1036 = vpop.f32.mrf.mxu0
      %v1037 = vadd.f32 %v466, %v1036
      %1038 = vmatmul.f32.gmra.mxu0 %v635
      %v1039 = vpop.f32.mrf.mxu0
      %v1040 = vadd.f32 %v466, %v1039
      %1041 = vmatmul.f32.gmra.mxu0 %v638
      %v1042 = vpop.f32.mrf.mxu0
      %v1043 = vadd.f32 %v466, %v1042
      %1044 = vmatmul.f32.gmra.mxu0 %v641
      %v1045 = vpop.f32.mrf.mxu0
      %v1046 = vadd.f32 %v466, %v1045
      %1047 = vmatmul.f32.gmra.mxu0 %v644
      %v1048 = vpop.f32.mrf.mxu0
      %v1049 = vadd.f32 %v466, %v1048
      %1050 = vmatmul.f32.gmra.mxu0 %v647
      %v1051 = vpop.f32.mrf.mxu0
      %v1052 = vadd.f32 %v466, %v1051
      %1053 = vmatmul.f32.gmra.mxu0 %v650
      %v1054 = vpop.f32.mrf.mxu0
      %v1055 = vadd.f32 %v466, %v1054
      %1056 = vmatmul.f32.gmra.mxu0 %v653
      %v1057 = vpop.f32.mrf.mxu0
      %v1058 = vadd.f32 %v466, %v1057
      %1059 = vmatmul.f32.gmra.mxu0 %v656
      %v1060 = vpop.f32.mrf.mxu0
      %v1061 = vadd.f32 %v466, %v1060
      %1062 = vmatmul.f32.gmra.mxu0 %v659
      %v1063 = vpop.f32.mrf.mxu0
      %v1064 = vadd.f32 %v466, %v1063
      %1065 = vmatmul.f32.gmra.mxu0 %v662
      %v1066 = vpop.f32.mrf.mxu0
      %v1067 = vadd.f32 %v466, %v1066
      %1068 = vmatmul.f32.gmra.mxu0 %v665
      %v1069 = vpop.f32.mrf.mxu0
      %v1070 = vadd.f32 %v466, %v1069
      %1071 = vmatmul.f32.gmra.mxu0 %v668
      %v1072 = vpop.f32.mrf.mxu0
      %v1073 = vadd.f32 %v466, %v1072
      %1074 = vmatmul.f32.gmra.mxu0 %v671
      %v1075 = vpop.f32.mrf.mxu0
      %v1076 = vadd.f32 %v466, %v1075
      %1077 = vmatmul.f32.gmra.mxu0 %v674
      %v1078 = vpop.f32.mrf.mxu0
      %v1079 = vadd.f32 %v466, %v1078
      %1080 = vmatmul.f32.gmra.mxu0 %v677
      %v1081 = vpop.f32.mrf.mxu0
      %v1082 = vadd.f32 %v466, %v1081
      %1083 = vmatmul.f32.gmra.mxu0 %v680
      %v1084 = vpop.f32.mrf.mxu0
      %v1085 = vadd.f32 %v466, %v1084
      %1086 = vmatmul.f32.gmra.mxu0 %v683
      %v1087 = vpop.f32.mrf.mxu0
      %v1088 = vadd.f32 %v466, %v1087
      %1089 = vmatmul.f32.gmra.mxu0 %v686
      %v1090 = vpop.f32.mrf.mxu0
      %v1091 = vadd.f32 %v466, %v1090
      %1092 = vmatmul.f32.gmra.mxu0 %v689
      %v1093 = vpop.f32.mrf.mxu0
      %v1094 = vadd.f32 %v466, %v1093
      %1095 = vmatmul.f32.gmra.mxu0 %v692
      %v1096 = vpop.f32.mrf.mxu0
      %v1097 = vadd.f32 %v466, %v1096
      %1098 = vmatmul.f32.gmra.mxu0 %v695
      %v1099 = vpop.f32.mrf.mxu0
      %v1100 = vadd.f32 %v466, %v1099
      %1101 = vmatmul.f32.gmra.mxu0 %v698
      %v1102 = vpop.f32.mrf.mxu0
      %v1103 = vadd.f32 %v466, %v1102
      %1104 = vmatmul.f32.gmra.mxu0 %v701
      %v1105 = vpop.f32.mrf.mxu0
      %v1106 = vadd.f32 %v466, %v1105
      %1107 = vmatmul.f32.gmra.mxu0 %v704
      %v1108 = vpop.f32.mrf.mxu0
      %v1109 = vadd.f32 %v466, %v1108
      %1110 = vmatmul.f32.gmra.mxu0 %v707
      %v1111 = vpop.f32.mrf.mxu0
      %v1112 = vadd.f32 %v466, %v1111
      %1113 = vmatmul.f32.gmra.mxu0 %v710
      %v1114 = vpop.f32.mrf.mxu0
      %v1115 = vadd.f32 %v466, %v1114
      %1116 = vmatmul.f32.gmra.mxu0 %v713
      %v1117 = vpop.f32.mrf.mxu0
      %v1118 = vadd.f32 %v466, %v1117
      %1119 = vmatmul.f32.gmra.mxu0 %v716
      %v1120 = vpop.f32.mrf.mxu0
      %v1121 = vadd.f32 %v466, %v1120
      %1122 = vmatmul.f32.gmra.mxu0 %v719
      %v1123 = vpop.f32.mrf.mxu0
      %v1124 = vadd.f32 %v466, %v1123
      %1125 = vmatmul.f32.gmra.mxu0 %v722
      %v1126 = vpop.f32.mrf.mxu0
      %v1127 = vadd.f32 %v466, %v1126
      %1128 = vmatmul.f32.gmra.mxu0 %v725
      %v1129 = vpop.f32.mrf.mxu0
      %v1130 = vadd.f32 %v466, %v1129
      %1131 = vmatmul.f32.gmra.mxu0 %v728
      %v1132 = vpop.f32.mrf.mxu0
      %v1133 = vadd.f32 %v466, %v1132
      %1134 = vmatmul.f32.gmra.mxu0 %v731
      %v1135 = vpop.f32.mrf.mxu0
      %v1136 = vadd.f32 %v466, %v1135
      %1137 = vmatmul.f32.gmra.mxu0 %v734
      %v1138 = vpop.f32.mrf.mxu0
      %v1139 = vadd.f32 %v466, %v1138
      %1140 = vmatmul.f32.gmra.mxu0 %v737
      %v1141 = vpop.f32.mrf.mxu0
      %v1142 = vadd.f32 %v466, %v1141
      %1143 = vmatmul.f32.gmra.mxu0 %v740
      %v1144 = vpop.f32.mrf.mxu0
      %v1145 = vadd.f32 %v466, %v1144
      %1146 = vmatmul.f32.gmra.mxu0 %v743
      %v1147 = vpop.f32.mrf.mxu0
      %v1148 = vadd.f32 %v466, %v1147
      %1149 = vmatmul.f32.gmra.mxu0 %v746
      %v1150 = vpop.f32.mrf.mxu0
      %v1151 = vadd.f32 %v466, %v1150
      %1152 = vmatmul.f32.gmra.mxu0 %v749
      %v1153 = vpop.f32.mrf.mxu0
      %v1154 = vadd.f32 %v466, %v1153
      %1155 = vmatmul.f32.gmra.mxu0 %v752
      %v1156 = vpop.f32.mrf.mxu0
      %v1157 = vadd.f32 %v466, %v1156
      %1158 = vmatmul.f32.gmra.mxu0 %v755
      %v1159 = vpop.f32.mrf.mxu0
      %v1160 = vadd.f32 %v466, %v1159
      %1161 = vmatmul.f32.gmra.mxu0 %v758
      %v1162 = vpop.f32.mrf.mxu0
      %v1163 = vadd.f32 %v466, %v1162
      %1164 = vmatmul.f32.gmra.mxu0 %v761
      %v1165 = vpop.f32.mrf.mxu0
      %v1166 = vadd.f32 %v466, %v1165
      %1167 = vmatmul.f32.gmra.mxu0 %v764
      %v1168 = vpop.f32.mrf.mxu0
      %v1169 = vadd.f32 %v466, %v1168
      %1170 = vmatmul.f32.gmra.mxu0 %v767
      %v1171 = vpop.f32.mrf.mxu0
      %v1172 = vadd.f32 %v466, %v1171
      %1173 = vmatmul.f32.gmra.mxu0 %v770
      %v1174 = vpop.f32.mrf.mxu0
      %v1175 = vadd.f32 %v466, %v1174
      %1176 = vmatmul.f32.gmra.mxu0 %v773
      %v1177 = vpop.f32.mrf.mxu0
      %v1178 = vadd.f32 %v466, %v1177
      %1179 = vmatmul.f32.gmra.mxu0 %v776
      %v1180 = vpop.f32.mrf.mxu0
      %v1181 = vadd.f32 %v466, %v1180
      %1182 = vmatmul.f32.gmra.mxu0 %v779
      %v1183 = vpop.f32.mrf.mxu0
      %v1184 = vadd.f32 %v466, %v1183
      %1185 = vmatmul.f32.gmra.mxu0 %v782
      %v1186 = vpop.f32.mrf.mxu0
      %v1187 = vadd.f32 %v466, %v1186
      %1188 = vmatmul.f32.gmra.mxu0 %v785
      %v1189 = vpop.f32.mrf.mxu0
      %v1190 = vadd.f32 %v466, %v1189
      %1191 = vmatmul.f32.gmra.mxu0 %v788
      %v1192 = vpop.f32.mrf.mxu0
      %v1193 = vadd.f32 %v466, %v1192
      %1194 = vmatmul.f32.gmra.mxu0 %v791
      %v1195 = vpop.f32.mrf.mxu0
      %v1196 = vadd.f32 %v466, %v1195
      %1197 = vmatmul.f32.gmra.mxu0 %v794
      %v1198 = vpop.f32.mrf.mxu0
      %v1199 = vadd.f32 %v466, %v1198
      %1200 = vmatmul.f32.gmra.mxu0 %v797
      %v1201 = vpop.f32.mrf.mxu0
      %v1202 = vadd.f32 %v466, %v1201
      %1203 = vmatmul.f32.gmra.mxu0 %v800
      %v1204 = vpop.f32.mrf.mxu0
      %v1205 = vadd.f32 %v466, %v1204
      %1206 = vmatmul.f32.gmra.mxu0 %v803
      %v1207 = vpop.f32.mrf.mxu0
      %v1208 = vadd.f32 %v466, %v1207
      %1209 = vmatmul.f32.gmra.mxu0 %v806
      %v1210 = vpop.f32.mrf.mxu0
      %v1211 = vadd.f32 %v466, %v1210
      %1212 = vmatmul.f32.gmra.mxu0 %v809
      %v1213 = vpop.f32.mrf.mxu0
      %v1214 = vadd.f32 %v466, %v1213
      %1215 = vmatmul.f32.gmra.mxu0 %v812
      %v1216 = vpop.f32.mrf.mxu0
      %v1217 = vadd.f32 %v466, %v1216
      %1218 = vmatmul.f32.gmra.mxu0 %v815
      %v1219 = vpop.f32.mrf.mxu0
      %v1220 = vadd.f32 %v466, %v1219
      %1221 = vmatmul.f32.gmra.mxu0 %v818
      %v1222 = vpop.f32.mrf.mxu0
      %v1223 = vadd.f32 %v466, %v1222
      %1224 = vmatmul.f32.gmra.mxu0 %v821
      %v1225 = vpop.f32.mrf.mxu0
      %v1226 = vadd.f32 %v466, %v1225
      %1227 = vmatmul.f32.gmra.mxu0 %v824
      %v1228 = vpop.f32.mrf.mxu0
      %v1229 = vadd.f32 %v466, %v1228
      %1230 = vmatmul.f32.gmra.mxu0 %v827
      %v1231 = vpop.f32.mrf.mxu0
      %v1232 = vadd.f32 %v466, %v1231
      %1233 = vmatmul.f32.gmra.mxu0 %v830
      %v1234 = vpop.f32.mrf.mxu0
      %v1235 = vadd.f32 %v466, %v1234
      %1236 = vmatmul.f32.gmra.mxu0 %v833
      %v1237 = vpop.f32.mrf.mxu0
      %v1238 = vadd.f32 %v466, %v1237
      %1239 = vmatmul.f32.gmra.mxu0 %v836
      %v1240 = vpop.f32.mrf.mxu0
      %v1241 = vadd.f32 %v466, %v1240
      %1242 = vmatmul.f32.gmra.mxu0 %v839
      %v1243 = vpop.f32.mrf.mxu0
      %v1244 = vadd.f32 %v466, %v1243
      %1245 = vmatmul.f32.gmra.mxu0 %v842
      %v1246 = vpop.f32.mrf.mxu0
      %v1247 = vadd.f32 %v466, %v1246
      %1248 = vmatmul.f32.gmra.mxu0 %v845
      %v1249 = vpop.f32.mrf.mxu0
      %v1250 = vadd.f32 %v466, %v1249
      %1251 = vmatmul.f32.gmra.mxu0 %v848
      %v1252 = vpop.f32.mrf.mxu0
      %v1253 = vadd.f32 %v466, %v1252
      %1254 = vmatmul.f32.gmra.mxu0 %v851
      %v1255 = vpop.f32.mrf.mxu0
      %v1256 = vadd.f32 %v466, %v1255
      %1257 = vdwg.mxu0
      %v1258 = vmax.f32 %v875, 0.0
      %v1259 = vmax.f32 %v878, 0.0
      %v1260 = vmax.f32 %v881, 0.0
      %v1261 = vmax.f32 %v884, 0.0
      %v1262 = vmax.f32 %v887, 0.0
      %v1263 = vmax.f32 %v890, 0.0
      %v1264 = vmax.f32 %v893, 0.0
      %v1265 = vmax.f32 %v896, 0.0
      %v1266 = vmax.f32 %v899, 0.0
      %v1267 = vmax.f32 %v902, 0.0
      %v1268 = vmax.f32 %v905, 0.0
      %v1269 = vmax.f32 %v908, 0.0
      %v1270 = vmax.f32 %v911, 0.0
      %v1271 = vmax.f32 %v914, 0.0
      %v1272 = vmax.f32 %v917, 0.0
      %v1273 = vmax.f32 %v920, 0.0
      %v1274 = vmax.f32 %v923, 0.0
      %v1275 = vmax.f32 %v926, 0.0
      %v1276 = vmax.f32 %v929, 0.0
      %v1277 = vmax.f32 %v932, 0.0
      %v1278 = vmax.f32 %v935, 0.0
      %v1279 = vmax.f32 %v938, 0.0
      %v1280 = vmax.f32 %v941, 0.0
      %v1281 = vmax.f32 %v944, 0.0
      %v1282 = vmax.f32 %v947, 0.0
      %v1283 = vmax.f32 %v950, 0.0
      %v1284 = vmax.f32 %v953, 0.0
      %v1285 = vmax.f32 %v956, 0.0
      %v1286 = vmax.f32 %v959, 0.0
      %v1287 = vmax.f32 %v962, 0.0
      %v1288 = vmax.f32 %v965, 0.0
      %v1289 = vmax.f32 %v968, 0.0
      %v1290 = vmax.f32 %v971, 0.0
      %v1291 = vmax.f32 %v974, 0.0
      %v1292 = vmax.f32 %v977, 0.0
      %v1293 = vmax.f32 %v980, 0.0
      %v1294 = vmax.f32 %v983, 0.0
      %v1295 = vmax.f32 %v986, 0.0
      %v1296 = vmax.f32 %v989, 0.0
      %v1297 = vmax.f32 %v992, 0.0
      %v1298 = vmax.f32 %v995, 0.0
      %v1299 = vmax.f32 %v998, 0.0
      %v1300 = vmax.f32 %v1001, 0.0
      %v1301 = vmax.f32 %v1004, 0.0
      %v1302 = vmax.f32 %v1007, 0.0
      %v1303 = vmax.f32 %v1010, 0.0
      %v1304 = vmax.f32 %v1013, 0.0
      %v1305 = vmax.f32 %v1016, 0.0
      %v1306 = vmax.f32 %v1019, 0.0
      %v1307 = vmax.f32 %v1022, 0.0
      %v1308 = vmax.f32 %v1025, 0.0
      %v1309 = vmax.f32 %v1028, 0.0
      %v1310 = vmax.f32 %v1031, 0.0
      %v1311 = vmax.f32 %v1034, 0.0
      %v1312 = vmax.f32 %v1037, 0.0
      %v1313 = vmax.f32 %v1040, 0.0
      %v1314 = vmax.f32 %v1043, 0.0
      %v1315 = vmax.f32 %v1046, 0.0
      %v1316 = vmax.f32 %v1049, 0.0
      %v1317 = vmax.f32 %v1052, 0.0
      %v1318 = vmax.f32 %v1055, 0.0
      %v1319 = vmax.f32 %v1058, 0.0
      %v1320 = vmax.f32 %v1061, 0.0
      %v1321 = vmax.f32 %v1064, 0.0
      %v1322 = vmax.f32 %v1067, 0.0
      %v1323 = vmax.f32 %v1070, 0.0
      %v1324 = vmax.f32 %v1073, 0.0
      %v1325 = vmax.f32 %v1076, 0.0
      %v1326 = vmax.f32 %v1079, 0.0
      %v1327 = vmax.f32 %v1082, 0.0
      %v1328 = vmax.f32 %v1085, 0.0
      %v1329 = vmax.f32 %v1088, 0.0
      %v1330 = vmax.f32 %v1091, 0.0
      %v1331 = vmax.f32 %v1094, 0.0
      %v1332 = vmax.f32 %v1097, 0.0
      %v1333 = vmax.f32 %v1100, 0.0
      %v1334 = vmax.f32 %v1103, 0.0
      %v1335 = vmax.f32 %v1106, 0.0
      %v1336 = vmax.f32 %v1109, 0.0
      %v1337 = vmax.f32 %v1112, 0.0
      %v1338 = vmax.f32 %v1115, 0.0
      %v1339 = vmax.f32 %v1118, 0.0
      %v1340 = vmax.f32 %v1121, 0.0
      %v1341 = vmax.f32 %v1124, 0.0
      %v1342 = vmax.f32 %v1127, 0.0
      %v1343 = vmax.f32 %v1130, 0.0
      %v1344 = vmax.f32 %v1133, 0.0
      %v1345 = vmax.f32 %v1136, 0.0
      %v1346 = vmax.f32 %v1139, 0.0
      %v1347 = vmax.f32 %v1142, 0.0
      %v1348 = vmax.f32 %v1145, 0.0
      %v1349 = vmax.f32 %v1148, 0.0
      %v1350 = vmax.f32 %v1151, 0.0
      %v1351 = vmax.f32 %v1154, 0.0
      %v1352 = vmax.f32 %v1157, 0.0
      %v1353 = vmax.f32 %v1160, 0.0
      %v1354 = vmax.f32 %v1163, 0.0
      %v1355 = vmax.f32 %v1166, 0.0
      %v1356 = vmax.f32 %v1169, 0.0
      %v1357 = vmax.f32 %v1172, 0.0
      %v1358 = vmax.f32 %v1175, 0.0
      %v1359 = vmax.f32 %v1178, 0.0
      %v1360 = vmax.f32 %v1181, 0.0
      %v1361 = vmax.f32 %v1184, 0.0
      %v1362 = vmax.f32 %v1187, 0.0
      %v1363 = vmax.f32 %v1190, 0.0
      %v1364 = vmax.f32 %v1193, 0.0
      %v1365 = vmax.f32 %v1196, 0.0
      %v1366 = vmax.f32 %v1199, 0.0
      %v1367 = vmax.f32 %v1202, 0.0
      %v1368 = vmax.f32 %v1205, 0.0
      %v1369 = vmax.f32 %v1208, 0.0
      %v1370 = vmax.f32 %v1211, 0.0
      %v1371 = vmax.f32 %v1214, 0.0
      %v1372 = vmax.f32 %v1217, 0.0
      %v1373 = vmax.f32 %v1220, 0.0
      %v1374 = vmax.f32 %v1223, 0.0
      %v1375 = vmax.f32 %v1226, 0.0
      %v1376 = vmax.f32 %v1229, 0.0
      %v1377 = vmax.f32 %v1232, 0.0
      %v1378 = vmax.f32 %v1235, 0.0
      %v1379 = vmax.f32 %v1238, 0.0
      %v1380 = vmax.f32 %v1241, 0.0
      %v1381 = vmax.f32 %v1244, 0.0
      %v1382 = vmax.f32 %v1247, 0.0
      %v1383 = vmax.f32 %v1250, 0.0
      %v1384 = vmax.f32 %v1253, 0.0
      %v1385 = vmax.f32 %v1256, 0.0
      %v1386 = vmax.f32 %v1258, %v1290
      %v1387 = vmax.f32 %v1259, %v1291
      %v1388 = vmax.f32 %v1260, %v1292
      %v1389 = vmax.f32 %v1261, %v1293
      %v1390 = vmax.f32 %v1262, %v1294
      %v1391 = vmax.f32 %v1263, %v1295
      %v1392 = vmax.f32 %v1264, %v1296
      %v1393 = vmax.f32 %v1265, %v1297
      %v1394 = vmax.f32 %v1266, %v1298
      %v1395 = vmax.f32 %v1267, %v1299
      %v1396 = vmax.f32 %v1268, %v1300
      %v1397 = vmax.f32 %v1269, %v1301
      %v1398 = vmax.f32 %v1270, %v1302
      %v1399 = vmax.f32 %v1271, %v1303
      %v1400 = vmax.f32 %v1272, %v1304
      %v1401 = vmax.f32 %v1273, %v1305
      %v1402 = vmax.f32 %v1274, %v1306
      %v1403 = vmax.f32 %v1275, %v1307
      %v1404 = vmax.f32 %v1276, %v1308
      %v1405 = vmax.f32 %v1277, %v1309
      %v1406 = vmax.f32 %v1278, %v1310
      %v1407 = vmax.f32 %v1279, %v1311
      %v1408 = vmax.f32 %v1280, %v1312
      %v1409 = vmax.f32 %v1281, %v1313
      %v1410 = vmax.f32 %v1282, %v1314
      %v1411 = vmax.f32 %v1283, %v1315
      %v1412 = vmax.f32 %v1284, %v1316
      %v1413 = vmax.f32 %v1285, %v1317
      %v1414 = vmax.f32 %v1286, %v1318
      %v1415 = vmax.f32 %v1287, %v1319
      %v1416 = vmax.f32 %v1288, %v1320
      %v1417 = vmax.f32 %v1289, %v1321
      %v1418 = vmax.f32 %v1322, %v1354
      %v1419 = vmax.f32 %v1323, %v1355
      %v1420 = vmax.f32 %v1324, %v1356
      %v1421 = vmax.f32 %v1325, %v1357
      %v1422 = vmax.f32 %v1326, %v1358
      %v1423 = vmax.f32 %v1327, %v1359
      %v1424 = vmax.f32 %v1328, %v1360
      %v1425 = vmax.f32 %v1329, %v1361
      %v1426 = vmax.f32 %v1330, %v1362
      %v1427 = vmax.f32 %v1331, %v1363
      %v1428 = vmax.f32 %v1332, %v1364
      %v1429 = vmax.f32 %v1333, %v1365
      %v1430 = vmax.f32 %v1334, %v1366
      %v1431 = vmax.f32 %v1335, %v1367
      %v1432 = vmax.f32 %v1336, %v1368
      %v1433 = vmax.f32 %v1337, %v1369
      %v1434 = vmax.f32 %v1338, %v1370
      %v1435 = vmax.f32 %v1339, %v1371
      %v1436 = vmax.f32 %v1340, %v1372
      %v1437 = vmax.f32 %v1341, %v1373
      %v1438 = vmax.f32 %v1342, %v1374
      %v1439 = vmax.f32 %v1343, %v1375
      %v1440 = vmax.f32 %v1344, %v1376
      %v1441 = vmax.f32 %v1345, %v1377
      %v1442 = vmax.f32 %v1346, %v1378
      %v1443 = vmax.f32 %v1347, %v1379
      %v1444 = vmax.f32 %v1348, %v1380
      %v1445 = vmax.f32 %v1349, %v1381
      %v1446 = vmax.f32 %v1350, %v1382
      %v1447 = vmax.f32 %v1351, %v1383
      %v1448 = vmax.f32 %v1352, %v1384
      %v1449 = vmax.f32 %v1353, %v1385
      %v1450 = vmax.f32 %v1386, %v1418
      %v1451 = vmax.f32 %v1387, %v1419
      %v1452 = vmax.f32 %v1388, %v1420
      %v1453 = vmax.f32 %v1389, %v1421
      %v1454 = vmax.f32 %v1390, %v1422
      %v1455 = vmax.f32 %v1391, %v1423
      %v1456 = vmax.f32 %v1392, %v1424
      %v1457 = vmax.f32 %v1393, %v1425
      %v1458 = vmax.f32 %v1394, %v1426
      %v1459 = vmax.f32 %v1395, %v1427
      %v1460 = vmax.f32 %v1396, %v1428
      %v1461 = vmax.f32 %v1397, %v1429
      %v1462 = vmax.f32 %v1398, %v1430
      %v1463 = vmax.f32 %v1399, %v1431
      %v1464 = vmax.f32 %v1400, %v1432
      %v1465 = vmax.f32 %v1401, %v1433
      %v1466 = vmax.f32 %v1402, %v1434
      %v1467 = vmax.f32 %v1403, %v1435
      %v1468 = vmax.f32 %v1404, %v1436
      %v1469 = vmax.f32 %v1405, %v1437
      %v1470 = vmax.f32 %v1406, %v1438
      %v1471 = vmax.f32 %v1407, %v1439
      %v1472 = vmax.f32 %v1408, %v1440
      %v1473 = vmax.f32 %v1409, %v1441
      %v1474 = vmax.f32 %v1410, %v1442
      %v1475 = vmax.f32 %v1411, %v1443
      %v1476 = vmax.f32 %v1412, %v1444
      %v1477 = vmax.f32 %v1413, %v1445
      %v1478 = vmax.f32 %v1414, %v1446
      %v1479 = vmax.f32 %v1415, %v1447
      %v1480 = vmax.f32 %v1416, %v1448
      %v1481 = vmax.f32 %v1417, %v1449
      %vm1482 = vcmask 261120
      %1483 = vst.msk [vmem:[#allocation2] sm:$0xff] %vm1482, 0.0
      %1484 = vst.msk [vmem:[#allocation2 + $0x8] sm:$0xff] %vm1482, 0.0
      %1485 = vst.msk [vmem:[#allocation2 + $0x10] sm:$0xff] %vm1482, 0.0
      %1486 = vst.msk [vmem:[#allocation2 + $0x258] sm:$0xff] %vm1482, 0.0
      %1487 = vst.msk [vmem:[#allocation2 + $0x18] sm:$0xff] %vm1482, %v1450
      %1488 = vst.msk [vmem:[#allocation2 + $0x20] sm:$0xff] %vm1482, 0.0
      %1489 = vst.msk [vmem:[#allocation2 + $0x28] sm:$0xff] %vm1482, %v1451
      %1490 = vst.msk [vmem:[#allocation2 + $0x30] sm:$0xff] %vm1482, 0.0
      %1491 = vst.msk [vmem:[#allocation2 + $0x38] sm:$0xff] %vm1482, %v1452
      %1492 = vst.msk [vmem:[#allocation2 + $0x40] sm:$0xff] %vm1482, 0.0
      %1493 = vst.msk [vmem:[#allocation2 + $0x48] sm:$0xff] %vm1482, %v1453
      %1494 = vst.msk [vmem:[#allocation2 + $0x50] sm:$0xff] %vm1482, 0.0
      %1495 = vst.msk [vmem:[#allocation2 + $0x58] sm:$0xff] %vm1482, %v1454
      %1496 = vst.msk [vmem:[#allocation2 + $0x60] sm:$0xff] %vm1482, 0.0
      %1497 = vst.msk [vmem:[#allocation2 + $0x68] sm:$0xff] %vm1482, %v1455
      %1498 = vst.msk [vmem:[#allocation2 + $0x70] sm:$0xff] %vm1482, 0.0
      %1499 = vst.msk [vmem:[#allocation2 + $0x78] sm:$0xff] %vm1482, %v1456
      %1500 = vst.msk [vmem:[#allocation2 + $0x80] sm:$0xff] %vm1482, 0.0
      %1501 = vst.msk [vmem:[#allocation2 + $0x88] sm:$0xff] %vm1482, %v1457
      %1502 = vst.msk [vmem:[#allocation2 + $0x90] sm:$0xff] %vm1482, 0.0
      %1503 = vst.msk [vmem:[#allocation2 + $0x98] sm:$0xff] %vm1482, 0.0
      %1504 = vst.msk [vmem:[#allocation2 + $0xa0] sm:$0xff] %vm1482, 0.0
      %1505 = vst.msk [vmem:[#allocation2 + $0xa8] sm:$0xff] %vm1482, %v1458
      %1506 = vst.msk [vmem:[#allocation2 + $0xb0] sm:$0xff] %vm1482, 0.0
      %1507 = vst.msk [vmem:[#allocation2 + $0xb8] sm:$0xff] %vm1482, %v1459
      %1508 = vst.msk [vmem:[#allocation2 + $0xc0] sm:$0xff] %vm1482, 0.0
      %1509 = vst.msk [vmem:[#allocation2 + $0xc8] sm:$0xff] %vm1482, %v1460
      %1510 = vst.msk [vmem:[#allocation2 + $0xd0] sm:$0xff] %vm1482, 0.0
      %1511 = vst.msk [vmem:[#allocation2 + $0xd8] sm:$0xff] %vm1482, %v1461
      %1512 = vst.msk [vmem:[#allocation2 + $0xe0] sm:$0xff] %vm1482, 0.0
      %1513 = vst.msk [vmem:[#allocation2 + $0xe8] sm:$0xff] %vm1482, %v1462
      %1514 = vst.msk [vmem:[#allocation2 + $0xf0] sm:$0xff] %vm1482, 0.0
      %1515 = vst.msk [vmem:[#allocation2 + $0xf8] sm:$0xff] %vm1482, %v1463
      %1516 = vst.msk [vmem:[#allocation2 + $0x100] sm:$0xff] %vm1482, 0.0
      %1517 = vst.msk [vmem:[#allocation2 + $0x108] sm:$0xff] %vm1482, %v1464
      %1518 = vst.msk [vmem:[#allocation2 + $0x110] sm:$0xff] %vm1482, 0.0
      %1519 = vst.msk [vmem:[#allocation2 + $0x118] sm:$0xff] %vm1482, %v1465
      %1520 = vst.msk [vmem:[#allocation2 + $0x120] sm:$0xff] %vm1482, 0.0
      %1521 = vst.msk [vmem:[#allocation2 + $0x128] sm:$0xff] %vm1482, 0.0
      %1522 = vst.msk [vmem:[#allocation2 + $0x130] sm:$0xff] %vm1482, 0.0
      %1523 = vst.msk [vmem:[#allocation2 + $0x138] sm:$0xff] %vm1482, %v1466
      %1524 = vst.msk [vmem:[#allocation2 + $0x140] sm:$0xff] %vm1482, 0.0
      %1525 = vst.msk [vmem:[#allocation2 + $0x148] sm:$0xff] %vm1482, %v1467
      %1526 = vst.msk [vmem:[#allocation2 + $0x150] sm:$0xff] %vm1482, 0.0
      %1527 = vst.msk [vmem:[#allocation2 + $0x158] sm:$0xff] %vm1482, %v1468
      %1528 = vst.msk [vmem:[#allocation2 + $0x160] sm:$0xff] %vm1482, 0.0
      %1529 = vst.msk [vmem:[#allocation2 + $0x168] sm:$0xff] %vm1482, %v1469
      %1530 = vst.msk [vmem:[#allocation2 + $0x170] sm:$0xff] %vm1482, 0.0
      %1531 = vst.msk [vmem:[#allocation2 + $0x178] sm:$0xff] %vm1482, %v1470
      %1532 = vst.msk [vmem:[#allocation2 + $0x180] sm:$0xff] %vm1482, 0.0
      %1533 = vst.msk [vmem:[#allocation2 + $0x188] sm:$0xff] %vm1482, %v1471
      %1534 = vst.msk [vmem:[#allocation2 + $0x190] sm:$0xff] %vm1482, 0.0
      %1535 = vst.msk [vmem:[#allocation2 + $0x198] sm:$0xff] %vm1482, %v1472
      %1536 = vst.msk [vmem:[#allocation2 + $0x1a0] sm:$0xff] %vm1482, 0.0
      %1537 = vst.msk [vmem:[#allocation2 + $0x1a8] sm:$0xff] %vm1482, %v1473
      %1538 = vst.msk [vmem:[#allocation2 + $0x1b0] sm:$0xff] %vm1482, 0.0
      %1539 = vst.msk [vmem:[#allocation2 + $0x1b8] sm:$0xff] %vm1482, 0.0
      %1540 = vst.msk [vmem:[#allocation2 + $0x1c0] sm:$0xff] %vm1482, 0.0
      %1541 = vst.msk [vmem:[#allocation2 + $0x1c8] sm:$0xff] %vm1482, %v1474
      %1542 = vst.msk [vmem:[#allocation2 + $0x1d0] sm:$0xff] %vm1482, 0.0
      %1543 = vst.msk [vmem:[#allocation2 + $0x1d8] sm:$0xff] %vm1482, %v1475
      %1544 = vst.msk [vmem:[#allocation2 + $0x1e0] sm:$0xff] %vm1482, 0.0
      %1545 = vst.msk [vmem:[#allocation2 + $0x1e8] sm:$0xff] %vm1482, %v1476
      %1546 = vst.msk [vmem:[#allocation2 + $0x1f0] sm:$0xff] %vm1482, 0.0
      %1547 = vst.msk [vmem:[#allocation2 + $0x1f8] sm:$0xff] %vm1482, %v1477
      %1548 = vst.msk [vmem:[#allocation2 + $0x200] sm:$0xff] %vm1482, 0.0
      %1549 = vst.msk [vmem:[#allocation2 + $0x208] sm:$0xff] %vm1482, %v1478
      %1550 = vst.msk [vmem:[#allocation2 + $0x210] sm:$0xff] %vm1482, 0.0
      %1551 = vst.msk [vmem:[#allocation2 + $0x218] sm:$0xff] %vm1482, %v1479
      %1552 = vst.msk [vmem:[#allocation2 + $0x220] sm:$0xff] %vm1482, 0.0
      %1553 = vst.msk [vmem:[#allocation2 + $0x228] sm:$0xff] %vm1482, %v1480
      %1554 = vst.msk [vmem:[#allocation2 + $0x230] sm:$0xff] %vm1482, 0.0
      %1555 = vst.msk [vmem:[#allocation2 + $0x238] sm:$0xff] %vm1482, %v1481
      %1556 = vst.msk [vmem:[#allocation2 + $0x240] sm:$0xff] %vm1482, 0.0
      %1557 = vst.msk [vmem:[#allocation2 + $0x248] sm:$0xff] %vm1482, 0.0
      %1558 = vst.msk [vmem:[#allocation2 + $0x250] sm:$0xff] %vm1482, 0.0
      %v1559 = vld [vmem:[#allocation2 + $0x7] sm:$0xff]
      %v1560 = vld [vmem:[#allocation2 + $0xf] sm:$0xff]
      %v1561 = vld [vmem:[#allocation2 + $0x17] sm:$0xff]
      %v1562 = vld [vmem:[#allocation2 + $0x1f] sm:$0xff]
      %v1563 = vld [vmem:[#allocation2 + $0x27] sm:$0xff]
      %v1564 = vld [vmem:[#allocation2 + $0x2f] sm:$0xff]
      %v1565 = vld [vmem:[#allocation2 + $0x37] sm:$0xff]
      %v1566 = vld [vmem:[#allocation2 + $0x3f] sm:$0xff]
      %v1567 = vld [vmem:[#allocation2 + $0x47] sm:$0xff]
      %v1568 = vld [vmem:[#allocation2 + $0x4f] sm:$0xff]
      %v1569 = vld [vmem:[#allocation2 + $0x57] sm:$0xff]
      %v1570 = vld [vmem:[#allocation2 + $0x5f] sm:$0xff]
      %v1571 = vld [vmem:[#allocation2 + $0x67] sm:$0xff]
      %v1572 = vld [vmem:[#allocation2 + $0x6f] sm:$0xff]
      %v1573 = vld [vmem:[#allocation2 + $0x77] sm:$0xff]
      %v1574 = vld [vmem:[#allocation2 + $0x7f] sm:$0xff]
      %v1575 = vld [vmem:[#allocation2 + $0x87] sm:$0xff]
      %v1576 = vld [vmem:[#allocation2 + $0x8f] sm:$0xff]
      %v1577 = vld [vmem:[#allocation2 + $0x97] sm:$0xff]
      %v1578 = vld [vmem:[#allocation2 + $0x9f] sm:$0xff]
      %v1579 = vld [vmem:[#allocation2 + $0xa7] sm:$0xff]
      %v1580 = vld [vmem:[#allocation2 + $0xaf] sm:$0xff]
      %v1581 = vld [vmem:[#allocation2 + $0xb7] sm:$0xff]
      %v1582 = vld [vmem:[#allocation2 + $0xbf] sm:$0xff]
      %v1583 = vld [vmem:[#allocation2 + $0xc7] sm:$0xff]
      %v1584 = vld [vmem:[#allocation2 + $0xcf] sm:$0xff]
      %v1585 = vld [vmem:[#allocation2 + $0xd7] sm:$0xff]
      %v1586 = vld [vmem:[#allocation2 + $0xdf] sm:$0xff]
      %v1587 = vld [vmem:[#allocation2 + $0xe7] sm:$0xff]
      %v1588 = vld [vmem:[#allocation2 + $0xef] sm:$0xff]
      %v1589 = vld [vmem:[#allocation2 + $0xf7] sm:$0xff]
      %v1590 = vld [vmem:[#allocation2 + $0xff] sm:$0xff]
      %v1591 = vld [vmem:[#allocation2 + $0x107] sm:$0xff]
      %v1592 = vld [vmem:[#allocation2 + $0x10f] sm:$0xff]
      %v1593 = vld [vmem:[#allocation2 + $0x117] sm:$0xff]
      %v1594 = vld [vmem:[#allocation2 + $0x11f] sm:$0xff]
      %v1595 = vld [vmem:[#allocation2 + $0x127] sm:$0xff]
      %v1596 = vld [vmem:[#allocation2 + $0x12f] sm:$0xff]
      %v1597 = vld [vmem:[#allocation2 + $0x137] sm:$0xff]
      %v1598 = vld [vmem:[#allocation2 + $0x13f] sm:$0xff]
      %v1599 = vld [vmem:[#allocation2 + $0x147] sm:$0xff]
      %v1600 = vld [vmem:[#allocation2 + $0x14f] sm:$0xff]
      %v1601 = vld [vmem:[#allocation2 + $0x157] sm:$0xff]
      %v1602 = vld [vmem:[#allocation2 + $0x15f] sm:$0xff]
      %v1603 = vld [vmem:[#allocation2 + $0x167] sm:$0xff]
      %v1604 = vld [vmem:[#allocation2 + $0x16f] sm:$0xff]
      %v1605 = vld [vmem:[#allocation2 + $0x177] sm:$0xff]
      %v1606 = vld [vmem:[#allocation2 + $0x17f] sm:$0xff]
      %v1607 = vld [vmem:[#allocation2 + $0x187] sm:$0xff]
      %v1608 = vld [vmem:[#allocation2 + $0x18f] sm:$0xff]
      %v1609 = vld [vmem:[#allocation2 + $0x197] sm:$0xff]
      %v1610 = vld [vmem:[#allocation2 + $0x19f] sm:$0xff]
      %v1611 = vld [vmem:[#allocation2 + $0x1a7] sm:$0xff]
      %v1612 = vld [vmem:[#allocation2 + $0x1af] sm:$0xff]
      %v1613 = vld [vmem:[#allocation2 + $0x1b7] sm:$0xff]
      %v1614 = vld [vmem:[#allocation2 + $0x1bf] sm:$0xff]
      %v1615 = vld [vmem:[#allocation2 + $0x1c7] sm:$0xff]
      %v1616 = vld [vmem:[#allocation2 + $0x1cf] sm:$0xff]
      %v1617 = vld [vmem:[#allocation2 + $0x1d7] sm:$0xff]
      %v1618 = vld [vmem:[#allocation2 + $0x1df] sm:$0xff]
      %v1619 = vld [vmem:[#allocation2 + $0x1e7] sm:$0xff]
      %v1620 = vld [vmem:[#allocation2 + $0x1ef] sm:$0xff]
      %v1621 = vld [vmem:[#allocation2 + $0x1f7] sm:$0xff]
      %v1622 = vld [vmem:[#allocation2 + $0x1ff] sm:$0xff]
      %v1623 = vld [vmem:[#allocation2 + $0x207] sm:$0xff]
      %v1624 = vld [vmem:[#allocation2 + $0x20f] sm:$0xff]
      %v1625 = vld [vmem:[#allocation2 + $0x217] sm:$0xff]
      %v1626 = vld [vmem:[#allocation2 + $0x21f] sm:$0xff]
      %v1627 = vld [vmem:[#allocation2 + $0x227] sm:$0xff]
      %v1628 = vld [vmem:[#allocation2 + $0x22f] sm:$0xff]
      %v1629 = vld [vmem:[%s3] sm:$0xff]
      %v1630 = vld [vmem:[%s3 + $0x8] sm:$0xff]
      %v1631 = vld [vmem:[%s3 + $0x10] sm:$0xff]
      %v1632 = vld [vmem:[%s3 + $0x18] sm:$0xff]
      %v1633 = vld [vmem:[#allocation2 + $0x8] sm:$0xff]
      %v1634 = vld [vmem:[#allocation2 + $0x10] sm:$0xff]
      %v1635 = vld [vmem:[#allocation2 + $0x18] sm:$0xff]
      %v1636 = vld [vmem:[#allocation2 + $0x20] sm:$0xff]
      %v1637 = vld [vmem:[#allocation2 + $0x28] sm:$0xff]
      %v1638 = vld [vmem:[#allocation2 + $0x30] sm:$0xff]
      %v1639 = vld [vmem:[#allocation2 + $0x38] sm:$0xff]
      %v1640 = vld [vmem:[#allocation2 + $0x40] sm:$0xff]
      %v1641 = vld [vmem:[#allocation2 + $0x48] sm:$0xff]
      %v1642 = vld [vmem:[#allocation2 + $0x50] sm:$0xff]
      %v1643 = vld [vmem:[#allocation2 + $0x58] sm:$0xff]
      %v1644 = vld [vmem:[#allocation2 + $0x60] sm:$0xff]
      %v1645 = vld [vmem:[#allocation2 + $0x68] sm:$0xff]
      %v1646 = vld [vmem:[#allocation2 + $0x70] sm:$0xff]
      %v1647 = vld [vmem:[#allocation2 + $0x78] sm:$0xff]
      %v1648 = vld [vmem:[#allocation2 + $0x80] sm:$0xff]
      %v1649 = vld [vmem:[#allocation2 + $0x88] sm:$0xff]
      %v1650 = vld [vmem:[#allocation2 + $0x90] sm:$0xff]
      %v1651 = vld [vmem:[#allocation2 + $0x98] sm:$0xff]
      %v1652 = vld [vmem:[#allocation2 + $0xa0] sm:$0xff]
      %v1653 = vld [vmem:[#allocation2 + $0xa8] sm:$0xff]
      %v1654 = vld [vmem:[#allocation2 + $0xb0] sm:$0xff]
      %v1655 = vld [vmem:[#allocation2 + $0xb8] sm:$0xff]
      %v1656 = vld [vmem:[#allocation2 + $0xc0] sm:$0xff]
      %v1657 = vld [vmem:[#allocation2 + $0xc8] sm:$0xff]
      %v1658 = vld [vmem:[#allocation2 + $0xd0] sm:$0xff]
      %v1659 = vld [vmem:[#allocation2 + $0xd8] sm:$0xff]
      %v1660 = vld [vmem:[#allocation2 + $0xe0] sm:$0xff]
      %v1661 = vld [vmem:[#allocation2 + $0xe8] sm:$0xff]
      %v1662 = vld [vmem:[#allocation2 + $0xf0] sm:$0xff]
      %v1663 = vld [vmem:[#allocation2 + $0xf8] sm:$0xff]
      %v1664 = vld [vmem:[#allocation2 + $0x100] sm:$0xff]
      %v1665 = vld [vmem:[#allocation2 + $0x108] sm:$0xff]
      %v1666 = vld [vmem:[#allocation2 + $0x110] sm:$0xff]
      %v1667 = vld [vmem:[#allocation2 + $0x118] sm:$0xff]
      %v1668 = vld [vmem:[#allocation2 + $0x120] sm:$0xff]
      %v1669 = vld [vmem:[#allocation2 + $0x128] sm:$0xff]
      %v1670 = vld [vmem:[#allocation2 + $0x130] sm:$0xff]
      %v1671 = vld [vmem:[#allocation2 + $0x138] sm:$0xff]
      %v1672 = vld [vmem:[#allocation2 + $0x140] sm:$0xff]
      %v1673 = vld [vmem:[#allocation2 + $0x148] sm:$0xff]
      %v1674 = vld [vmem:[#allocation2 + $0x150] sm:$0xff]
      %v1675 = vld [vmem:[#allocation2 + $0x158] sm:$0xff]
      %v1676 = vld [vmem:[#allocation2 + $0x160] sm:$0xff]
      %v1677 = vld [vmem:[#allocation2 + $0x168] sm:$0xff]
      %v1678 = vld [vmem:[#allocation2 + $0x170] sm:$0xff]
      %v1679 = vld [vmem:[#allocation2 + $0x178] sm:$0xff]
      %v1680 = vld [vmem:[#allocation2 + $0x180] sm:$0xff]
      %v1681 = vld [vmem:[#allocation2 + $0x188] sm:$0xff]
      %v1682 = vld [vmem:[#allocation2 + $0x190] sm:$0xff]
      %v1683 = vld [vmem:[#allocation2 + $0x198] sm:$0xff]
      %v1684 = vld [vmem:[#allocation2 + $0x1a0] sm:$0xff]
      %v1685 = vld [vmem:[#allocation2 + $0x1a8] sm:$0xff]
      %v1686 = vld [vmem:[#allocation2 + $0x1b0] sm:$0xff]
      %v1687 = vld [vmem:[#allocation2 + $0x1b8] sm:$0xff]
      %v1688 = vld [vmem:[#allocation2 + $0x1c0] sm:$0xff]
      %v1689 = vld [vmem:[#allocation2 + $0x1c8] sm:$0xff]
      %v1690 = vld [vmem:[#allocation2 + $0x1d0] sm:$0xff]
      %v1691 = vld [vmem:[#allocation2 + $0x1d8] sm:$0xff]
      %v1692 = vld [vmem:[#allocation2 + $0x1e0] sm:$0xff]
      %v1693 = vld [vmem:[#allocation2 + $0x1e8] sm:$0xff]
      %v1694 = vld [vmem:[#allocation2 + $0x1f0] sm:$0xff]
      %v1695 = vld [vmem:[#allocation2 + $0x1f8] sm:$0xff]
      %v1696 = vld [vmem:[#allocation2 + $0x200] sm:$0xff]
      %v1697 = vld [vmem:[#allocation2 + $0x208] sm:$0xff]
      %v1698 = vld [vmem:[#allocation2 + $0x210] sm:$0xff]
      %v1699 = vld [vmem:[#allocation2 + $0x218] sm:$0xff]
      %v1700 = vld [vmem:[#allocation2 + $0x220] sm:$0xff]
      %v1701 = vld [vmem:[#allocation2 + $0x228] sm:$0xff]
      %v1702 = vld [vmem:[#allocation2 + $0x230] sm:$0xff]
      %s1703 = scalar_lea.vmem %s3, 32
      %v1704 = vld [vmem:[%s1703] sm:$0xff]
      %v1705 = vld [vmem:[%s1703 + $0x8] sm:$0xff]
      %v1706 = vld [vmem:[%s1703 + $0x10] sm:$0xff]
      %v1707 = vld [vmem:[%s1703 + $0x18] sm:$0xff]
      %v1709 = vsel %vm1482, %v1633, 0
      %v1712 = vsel %vm1482, %v1634, 0
      %v1715 = vsel %vm1482, %v1635, 0
      %v1718 = vsel %vm1482, %v1636, 0
      %v1721 = vsel %vm1482, %v1637, 0
      %v1724 = vsel %vm1482, %v1638, 0
      %v1727 = vsel %vm1482, %v1639, 0
      %v1730 = vsel %vm1482, %v1640, 0
      %v1733 = vsel %vm1482, %v1641, 0
      %v1736 = vsel %vm1482, %v1642, 0
      %v1739 = vsel %vm1482, %v1643, 0
      %v1742 = vsel %vm1482, %v1644, 0
      %v1745 = vsel %vm1482, %v1645, 0
      %v1748 = vsel %vm1482, %v1646, 0
      %v1751 = vsel %vm1482, %v1647, 0
      %v1754 = vsel %vm1482, %v1648, 0
      %v1757 = vsel %vm1482, %v1649, 0
      %v1760 = vsel %vm1482, %v1650, 0
      %v1763 = vsel %vm1482, %v1651, 0
      %v1766 = vsel %vm1482, %v1652, 0
      %v1769 = vsel %vm1482, %v1653, 0
      %v1772 = vsel %vm1482, %v1654, 0
      %v1775 = vsel %vm1482, %v1655, 0
      %v1778 = vsel %vm1482, %v1656, 0
      %v1781 = vsel %vm1482, %v1657, 0
      %v1784 = vsel %vm1482, %v1658, 0
      %v1787 = vsel %vm1482, %v1659, 0
      %v1790 = vsel %vm1482, %v1660, 0
      %v1793 = vsel %vm1482, %v1661, 0
      %v1796 = vsel %vm1482, %v1662, 0
      %v1799 = vsel %vm1482, %v1663, 0
      %v1802 = vsel %vm1482, %v1664, 0
      %v1805 = vsel %vm1482, %v1665, 0
      %v1808 = vsel %vm1482, %v1666, 0
      %v1811 = vsel %vm1482, %v1667, 0
      %v1814 = vsel %vm1482, %v1668, 0
      %v1817 = vsel %vm1482, %v1669, 0
      %v1820 = vsel %vm1482, %v1670, 0
      %v1823 = vsel %vm1482, %v1671, 0
      %v1826 = vsel %vm1482, %v1672, 0
      %v1829 = vsel %vm1482, %v1673, 0
      %v1832 = vsel %vm1482, %v1674, 0
      %v1835 = vsel %vm1482, %v1675, 0
      %v1838 = vsel %vm1482, %v1676, 0
      %v1841 = vsel %vm1482, %v1677, 0
      %v1844 = vsel %vm1482, %v1678, 0
      %v1847 = vsel %vm1482, %v1679, 0
      %v1850 = vsel %vm1482, %v1680, 0
      %v1853 = vsel %vm1482, %v1681, 0
      %v1856 = vsel %vm1482, %v1682, 0
      %v1859 = vsel %vm1482, %v1683, 0
      %v1862 = vsel %vm1482, %v1684, 0
      %v1865 = vsel %vm1482, %v1685, 0
      %v1868 = vsel %vm1482, %v1686, 0
      %v1871 = vsel %vm1482, %v1687, 0
      %v1874 = vsel %vm1482, %v1688, 0
      %v1877 = vsel %vm1482, %v1689, 0
      %v1880 = vsel %vm1482, %v1690, 0
      %v1883 = vsel %vm1482, %v1691, 0
      %v1886 = vsel %vm1482, %v1692, 0
      %v1889 = vsel %vm1482, %v1693, 0
      %v1892 = vsel %vm1482, %v1694, 0
      %v1895 = vsel %vm1482, %v1695, 0
      %v1898 = vsel %vm1482, %v1696, 0
      %v1901 = vsel %vm1482, %v1697, 0
      %v1904 = vsel %vm1482, %v1698, 0
      %v1907 = vsel %vm1482, %v1699, 0
      %v1910 = vsel %vm1482, %v1700, 0
      %v1913 = vsel %vm1482, %v1701, 0
      %v1916 = vsel %vm1482, %v1702, 0
      %1918 = vmatpush.msra.mxu0 0.0
      %1919 = vmatpush.msra.mxu0 0.0
      %1920 = vmatpush.msra.mxu0 0.0
      %1921 = vmatpush.msra.mxu0 0.0
      %1922 = vmatpush.msra.mxu0 0.0
      %1923 = vmatpush.msra.mxu0 0.0
      %1924 = vmatpush.msra.mxu0 0.0
      %1925 = vmatpush.msra.mxu0 0.0
      %1926 = vmatpush.msra.mxu0 0.0
      %1927 = vmatpush.msra.mxu0 0.0
      %1928 = vmatpush.msra.mxu0 0.0
      %1929 = vmatpush.msra.mxu0 0.0
      %1930 = vmatpush.msra.mxu0 %v1707
      %1931 = vmatpush.msra.mxu0 %v1706
      %1932 = vmatpush.msra.mxu0 %v1705
      %1933 = vmatpush.msra.mxu0 %v1704
      %1934 = vmatmul.f32.gmra.mxu0 %v1709
      %v1935 = vpop.f32.mrf.mxu0
      %v1936 = vadd.f32 0.0, %v1935
      %1937 = vmatmul.f32.gmra.mxu0 %v1712
      %v1938 = vpop.f32.mrf.mxu0
      %v1939 = vadd.f32 0.0, %v1938
      %1940 = vmatmul.f32.gmra.mxu0 %v1715
      %v1941 = vpop.f32.mrf.mxu0
      %v1942 = vadd.f32 0.0, %v1941
      %1943 = vmatmul.f32.gmra.mxu0 %v1718
      %v1944 = vpop.f32.mrf.mxu0
      %v1945 = vadd.f32 0.0, %v1944
      %1946 = vmatmul.f32.gmra.mxu0 %v1721
      %v1947 = vpop.f32.mrf.mxu0
      %v1948 = vadd.f32 0.0, %v1947
      %1949 = vmatmul.f32.gmra.mxu0 %v1724
      %v1950 = vpop.f32.mrf.mxu0
      %v1951 = vadd.f32 0.0, %v1950
      %1952 = vmatmul.f32.gmra.mxu0 %v1727
      %v1953 = vpop.f32.mrf.mxu0
      %v1954 = vadd.f32 0.0, %v1953
      %1955 = vmatmul.f32.gmra.mxu0 %v1730
      %v1956 = vpop.f32.mrf.mxu0
      %v1957 = vadd.f32 0.0, %v1956
      %1958 = vmatmul.f32.gmra.mxu0 %v1733
      %v1959 = vpop.f32.mrf.mxu0
      %v1960 = vadd.f32 0.0, %v1959
      %1961 = vmatmul.f32.gmra.mxu0 %v1736
      %v1962 = vpop.f32.mrf.mxu0
      %v1963 = vadd.f32 0.0, %v1962
      %1964 = vmatmul.f32.gmra.mxu0 %v1739
      %v1965 = vpop.f32.mrf.mxu0
      %v1966 = vadd.f32 0.0, %v1965
      %1967 = vmatmul.f32.gmra.mxu0 %v1742
      %v1968 = vpop.f32.mrf.mxu0
      %v1969 = vadd.f32 0.0, %v1968
      %1970 = vmatmul.f32.gmra.mxu0 %v1745
      %v1971 = vpop.f32.mrf.mxu0
      %v1972 = vadd.f32 0.0, %v1971
      %1973 = vmatmul.f32.gmra.mxu0 %v1748
      %v1974 = vpop.f32.mrf.mxu0
      %v1975 = vadd.f32 0.0, %v1974
      %1976 = vmatmul.f32.gmra.mxu0 %v1751
      %v1977 = vpop.f32.mrf.mxu0
      %v1978 = vadd.f32 0.0, %v1977
      %1979 = vmatmul.f32.gmra.mxu0 %v1754
      %v1980 = vpop.f32.mrf.mxu0
      %v1981 = vadd.f32 0.0, %v1980
      %1982 = vmatmul.f32.gmra.mxu0 %v1757
      %v1983 = vpop.f32.mrf.mxu0
      %v1984 = vadd.f32 0.0, %v1983
      %1985 = vmatmul.f32.gmra.mxu0 %v1760
      %v1986 = vpop.f32.mrf.mxu0
      %v1987 = vadd.f32 0.0, %v1986
      %1988 = vmatmul.f32.gmra.mxu0 %v1763
      %v1989 = vpop.f32.mrf.mxu0
      %v1990 = vadd.f32 0.0, %v1989
      %1991 = vmatmul.f32.gmra.mxu0 %v1766
      %v1992 = vpop.f32.mrf.mxu0
      %v1993 = vadd.f32 0.0, %v1992
      %1994 = vmatmul.f32.gmra.mxu0 %v1769
      %v1995 = vpop.f32.mrf.mxu0
      %v1996 = vadd.f32 0.0, %v1995
      %1997 = vmatmul.f32.gmra.mxu0 %v1772
      %v1998 = vpop.f32.mrf.mxu0
      %v1999 = vadd.f32 0.0, %v1998
      %2000 = vmatmul.f32.gmra.mxu0 %v1775
      %v2001 = vpop.f32.mrf.mxu0
      %v2002 = vadd.f32 0.0, %v2001
      %2003 = vmatmul.f32.gmra.mxu0 %v1778
      %v2004 = vpop.f32.mrf.mxu0
      %v2005 = vadd.f32 0.0, %v2004
      %2006 = vmatmul.f32.gmra.mxu0 %v1781
      %v2007 = vpop.f32.mrf.mxu0
      %v2008 = vadd.f32 0.0, %v2007
      %2009 = vmatmul.f32.gmra.mxu0 %v1784
      %v2010 = vpop.f32.mrf.mxu0
      %v2011 = vadd.f32 0.0, %v2010
      %2012 = vmatmul.f32.gmra.mxu0 %v1787
      %v2013 = vpop.f32.mrf.mxu0
      %v2014 = vadd.f32 0.0, %v2013
      %2015 = vmatmul.f32.gmra.mxu0 %v1790
      %v2016 = vpop.f32.mrf.mxu0
      %v2017 = vadd.f32 0.0, %v2016
      %2018 = vmatmul.f32.gmra.mxu0 %v1793
      %v2019 = vpop.f32.mrf.mxu0
      %v2020 = vadd.f32 0.0, %v2019
      %2021 = vmatmul.f32.gmra.mxu0 %v1796
      %v2022 = vpop.f32.mrf.mxu0
      %v2023 = vadd.f32 0.0, %v2022
      %2024 = vmatmul.f32.gmra.mxu0 %v1799
      %v2025 = vpop.f32.mrf.mxu0
      %v2026 = vadd.f32 0.0, %v2025
      %2027 = vmatmul.f32.gmra.mxu0 %v1802
      %v2028 = vpop.f32.mrf.mxu0
      %v2029 = vadd.f32 0.0, %v2028
      %2030 = vmatmul.f32.gmra.mxu0 %v1805
      %v2031 = vpop.f32.mrf.mxu0
      %v2032 = vadd.f32 0.0, %v2031
      %2033 = vmatmul.f32.gmra.mxu0 %v1808
      %v2034 = vpop.f32.mrf.mxu0
      %v2035 = vadd.f32 0.0, %v2034
      %2036 = vmatmul.f32.gmra.mxu0 %v1811
      %v2037 = vpop.f32.mrf.mxu0
      %v2038 = vadd.f32 0.0, %v2037
      %2039 = vmatmul.f32.gmra.mxu0 %v1814
      %v2040 = vpop.f32.mrf.mxu0
      %v2041 = vadd.f32 0.0, %v2040
      %2042 = vmatmul.f32.gmra.mxu0 %v1817
      %v2043 = vpop.f32.mrf.mxu0
      %v2044 = vadd.f32 0.0, %v2043
      %2045 = vmatmul.f32.gmra.mxu0 %v1820
      %v2046 = vpop.f32.mrf.mxu0
      %v2047 = vadd.f32 0.0, %v2046
      %2048 = vmatmul.f32.gmra.mxu0 %v1823
      %v2049 = vpop.f32.mrf.mxu0
      %v2050 = vadd.f32 0.0, %v2049
      %2051 = vmatmul.f32.gmra.mxu0 %v1826
      %v2052 = vpop.f32.mrf.mxu0
      %v2053 = vadd.f32 0.0, %v2052
      %2054 = vmatmul.f32.gmra.mxu0 %v1829
      %v2055 = vpop.f32.mrf.mxu0
      %v2056 = vadd.f32 0.0, %v2055
      %2057 = vmatmul.f32.gmra.mxu0 %v1832
      %v2058 = vpop.f32.mrf.mxu0
      %v2059 = vadd.f32 0.0, %v2058
      %2060 = vmatmul.f32.gmra.mxu0 %v1835
      %v2061 = vpop.f32.mrf.mxu0
      %v2062 = vadd.f32 0.0, %v2061
      %2063 = vmatmul.f32.gmra.mxu0 %v1838
      %v2064 = vpop.f32.mrf.mxu0
      %v2065 = vadd.f32 0.0, %v2064
      %2066 = vmatmul.f32.gmra.mxu0 %v1841
      %v2067 = vpop.f32.mrf.mxu0
      %v2068 = vadd.f32 0.0, %v2067
      %2069 = vmatmul.f32.gmra.mxu0 %v1844
      %v2070 = vpop.f32.mrf.mxu0
      %v2071 = vadd.f32 0.0, %v2070
      %2072 = vmatmul.f32.gmra.mxu0 %v1847
      %v2073 = vpop.f32.mrf.mxu0
      %v2074 = vadd.f32 0.0, %v2073
      %2075 = vmatmul.f32.gmra.mxu0 %v1850
      %v2076 = vpop.f32.mrf.mxu0
      %v2077 = vadd.f32 0.0, %v2076
      %2078 = vmatmul.f32.gmra.mxu0 %v1853
      %v2079 = vpop.f32.mrf.mxu0
      %v2080 = vadd.f32 0.0, %v2079
      %2081 = vmatmul.f32.gmra.mxu0 %v1856
      %v2082 = vpop.f32.mrf.mxu0
      %v2083 = vadd.f32 0.0, %v2082
      %2084 = vmatmul.f32.gmra.mxu0 %v1859
      %v2085 = vpop.f32.mrf.mxu0
      %v2086 = vadd.f32 0.0, %v2085
      %2087 = vmatmul.f32.gmra.mxu0 %v1862
      %v2088 = vpop.f32.mrf.mxu0
      %v2089 = vadd.f32 0.0, %v2088
      %2090 = vmatmul.f32.gmra.mxu0 %v1865
      %v2091 = vpop.f32.mrf.mxu0
      %v2092 = vadd.f32 0.0, %v2091
      %2093 = vmatmul.f32.gmra.mxu0 %v1868
      %v2094 = vpop.f32.mrf.mxu0
      %v2095 = vadd.f32 0.0, %v2094
      %2096 = vmatmul.f32.gmra.mxu0 %v1871
      %v2097 = vpop.f32.mrf.mxu0
      %v2098 = vadd.f32 0.0, %v2097
      %2099 = vmatmul.f32.gmra.mxu0 %v1874
      %v2100 = vpop.f32.mrf.mxu0
      %v2101 = vadd.f32 0.0, %v2100
      %2102 = vmatmul.f32.gmra.mxu0 %v1877
      %v2103 = vpop.f32.mrf.mxu0
      %v2104 = vadd.f32 0.0, %v2103
      %2105 = vmatmul.f32.gmra.mxu0 %v1880
      %v2106 = vpop.f32.mrf.mxu0
      %v2107 = vadd.f32 0.0, %v2106
      %2108 = vmatmul.f32.gmra.mxu0 %v1883
      %v2109 = vpop.f32.mrf.mxu0
      %v2110 = vadd.f32 0.0, %v2109
      %2111 = vmatmul.f32.gmra.mxu0 %v1886
      %v2112 = vpop.f32.mrf.mxu0
      %v2113 = vadd.f32 0.0, %v2112
      %2114 = vmatmul.f32.gmra.mxu0 %v1889
      %v2115 = vpop.f32.mrf.mxu0
      %v2116 = vadd.f32 0.0, %v2115
      %2117 = vmatmul.f32.gmra.mxu0 %v1892
      %v2118 = vpop.f32.mrf.mxu0
      %v2119 = vadd.f32 0.0, %v2118
      %2120 = vmatmul.f32.gmra.mxu0 %v1895
      %v2121 = vpop.f32.mrf.mxu0
      %v2122 = vadd.f32 0.0, %v2121
      %2123 = vmatmul.f32.gmra.mxu0 %v1898
      %v2124 = vpop.f32.mrf.mxu0
      %v2125 = vadd.f32 0.0, %v2124
      %2126 = vmatmul.f32.gmra.mxu0 %v1901
      %v2127 = vpop.f32.mrf.mxu0
      %v2128 = vadd.f32 0.0, %v2127
      %2129 = vmatmul.f32.gmra.mxu0 %v1904
      %v2130 = vpop.f32.mrf.mxu0
      %v2131 = vadd.f32 0.0, %v2130
      %2132 = vmatmul.f32.gmra.mxu0 %v1907
      %v2133 = vpop.f32.mrf.mxu0
      %v2134 = vadd.f32 0.0, %v2133
      %2135 = vmatmul.f32.gmra.mxu0 %v1910
      %v2136 = vpop.f32.mrf.mxu0
      %v2137 = vadd.f32 0.0, %v2136
      %2138 = vmatmul.f32.gmra.mxu0 %v1913
      %v2139 = vpop.f32.mrf.mxu0
      %v2140 = vadd.f32 0.0, %v2139
      %2141 = vmatmul.f32.gmra.mxu0 %v1916
      %v2142 = vpop.f32.mrf.mxu0
      %v2143 = vadd.f32 0.0, %v2142
      %2144 = vdwg.mxu0
      %v2146 = vsel %vm1482, %v1559, 0
      %v2149 = vsel %vm1482, %v1560, 0
      %v2152 = vsel %vm1482, %v1561, 0
      %v2155 = vsel %vm1482, %v1562, 0
      %v2158 = vsel %vm1482, %v1563, 0
      %v2161 = vsel %vm1482, %v1564, 0
      %v2164 = vsel %vm1482, %v1565, 0
      %v2167 = vsel %vm1482, %v1566, 0
      %v2170 = vsel %vm1482, %v1567, 0
      %v2173 = vsel %vm1482, %v1568, 0
      %v2176 = vsel %vm1482, %v1569, 0
      %v2179 = vsel %vm1482, %v1570, 0
      %v2182 = vsel %vm1482, %v1571, 0
      %v2185 = vsel %vm1482, %v1572, 0
      %v2188 = vsel %vm1482, %v1573, 0
      %v2191 = vsel %vm1482, %v1574, 0
      %v2194 = vsel %vm1482, %v1575, 0
      %v2197 = vsel %vm1482, %v1576, 0
      %v2200 = vsel %vm1482, %v1577, 0
      %v2203 = vsel %vm1482, %v1578, 0
      %v2206 = vsel %vm1482, %v1579, 0
      %v2209 = vsel %vm1482, %v1580, 0
      %v2212 = vsel %vm1482, %v1581, 0
      %v2215 = vsel %vm1482, %v1582, 0
      %v2218 = vsel %vm1482, %v1583, 0
      %v2221 = vsel %vm1482, %v1584, 0
      %v2224 = vsel %vm1482, %v1585, 0
      %v2227 = vsel %vm1482, %v1586, 0
      %v2230 = vsel %vm1482, %v1587, 0
      %v2233 = vsel %vm1482, %v1588, 0
      %v2236 = vsel %vm1482, %v1589, 0
      %v2239 = vsel %vm1482, %v1590, 0
      %v2242 = vsel %vm1482, %v1591, 0
      %v2245 = vsel %vm1482, %v1592, 0
      %v2248 = vsel %vm1482, %v1593, 0
      %v2251 = vsel %vm1482, %v1594, 0
      %v2254 = vsel %vm1482, %v1595, 0
      %v2257 = vsel %vm1482, %v1596, 0
      %v2260 = vsel %vm1482, %v1597, 0
      %v2263 = vsel %vm1482, %v1598, 0
      %v2266 = vsel %vm1482, %v1599, 0
      %v2269 = vsel %vm1482, %v1600, 0
      %v2272 = vsel %vm1482, %v1601, 0
      %v2275 = vsel %vm1482, %v1602, 0
      %v2278 = vsel %vm1482, %v1603, 0
      %v2281 = vsel %vm1482, %v1604, 0
      %v2284 = vsel %vm1482, %v1605, 0
      %v2287 = vsel %vm1482, %v1606, 0
      %v2290 = vsel %vm1482, %v1607, 0
      %v2293 = vsel %vm1482, %v1608, 0
      %v2296 = vsel %vm1482, %v1609, 0
      %v2299 = vsel %vm1482, %v1610, 0
      %v2302 = vsel %vm1482, %v1611, 0
      %v2305 = vsel %vm1482, %v1612, 0
      %v2308 = vsel %vm1482, %v1613, 0
      %v2311 = vsel %vm1482, %v1614, 0
      %v2314 = vsel %vm1482, %v1615, 0
      %v2317 = vsel %vm1482, %v1616, 0
      %v2320 = vsel %vm1482, %v1617, 0
      %v2323 = vsel %vm1482, %v1618, 0
      %v2326 = vsel %vm1482, %v1619, 0
      %v2329 = vsel %vm1482, %v1620, 0
      %v2332 = vsel %vm1482, %v1621, 0
      %v2335 = vsel %vm1482, %v1622, 0
      %v2338 = vsel %vm1482, %v1623, 0
      %v2341 = vsel %vm1482, %v1624, 0
      %v2344 = vsel %vm1482, %v1625, 0
      %v2347 = vsel %vm1482, %v1626, 0
      %v2350 = vsel %vm1482, %v1627, 0
      %v2353 = vsel %vm1482, %v1628, 0
      %2355 = vmatpush.msra.mxu0 0.0
      %2356 = vmatpush.msra.mxu0 0.0
      %2357 = vmatpush.msra.mxu0 0.0
      %2358 = vmatpush.msra.mxu0 0.0
      %2359 = vmatpush.msra.mxu0 0.0
      %2360 = vmatpush.msra.mxu0 0.0
      %2361 = vmatpush.msra.mxu0 0.0
      %2362 = vmatpush.msra.mxu0 0.0
      %2363 = vmatpush.msra.mxu0 0.0
      %2364 = vmatpush.msra.mxu0 0.0
      %2365 = vmatpush.msra.mxu0 0.0
      %2366 = vmatpush.msra.mxu0 0.0
      %2367 = vmatpush.msra.mxu0 %v1632
      %2368 = vmatpush.msra.mxu0 %v1631
      %2369 = vmatpush.msra.mxu0 %v1630
      %2370 = vmatpush.msra.mxu0 %v1629
      %2371 = vmatmul.f32.gmra.mxu0 %v2146
      %v2372 = vpop.f32.mrf.mxu0
      %v2373 = vadd.f32 %v1936, %v2372
      %2374 = vmatmul.f32.gmra.mxu0 %v2149
      %v2375 = vpop.f32.mrf.mxu0
      %v2376 = vadd.f32 %v1939, %v2375
      %2377 = vmatmul.f32.gmra.mxu0 %v2152
      %v2378 = vpop.f32.mrf.mxu0
      %v2379 = vadd.f32 %v1942, %v2378
      %2380 = vmatmul.f32.gmra.mxu0 %v2155
      %v2381 = vpop.f32.mrf.mxu0
      %v2382 = vadd.f32 %v1945, %v2381
      %2383 = vmatmul.f32.gmra.mxu0 %v2158
      %v2384 = vpop.f32.mrf.mxu0
      %v2385 = vadd.f32 %v1948, %v2384
      %2386 = vmatmul.f32.gmra.mxu0 %v2161
      %v2387 = vpop.f32.mrf.mxu0
      %v2388 = vadd.f32 %v1951, %v2387
      %2389 = vmatmul.f32.gmra.mxu0 %v2164
      %v2390 = vpop.f32.mrf.mxu0
      %v2391 = vadd.f32 %v1954, %v2390
      %2392 = vmatmul.f32.gmra.mxu0 %v2167
      %v2393 = vpop.f32.mrf.mxu0
      %v2394 = vadd.f32 %v1957, %v2393
      %2395 = vmatmul.f32.gmra.mxu0 %v2170
      %v2396 = vpop.f32.mrf.mxu0
      %v2397 = vadd.f32 %v1960, %v2396
      %2398 = vmatmul.f32.gmra.mxu0 %v2173
      %v2399 = vpop.f32.mrf.mxu0
      %v2400 = vadd.f32 %v1963, %v2399
      %2401 = vmatmul.f32.gmra.mxu0 %v2176
      %v2402 = vpop.f32.mrf.mxu0
      %v2403 = vadd.f32 %v1966, %v2402
      %2404 = vmatmul.f32.gmra.mxu0 %v2179
      %v2405 = vpop.f32.mrf.mxu0
      %v2406 = vadd.f32 %v1969, %v2405
      %2407 = vmatmul.f32.gmra.mxu0 %v2182
      %v2408 = vpop.f32.mrf.mxu0
      %v2409 = vadd.f32 %v1972, %v2408
      %2410 = vmatmul.f32.gmra.mxu0 %v2185
      %v2411 = vpop.f32.mrf.mxu0
      %v2412 = vadd.f32 %v1975, %v2411
      %2413 = vmatmul.f32.gmra.mxu0 %v2188
      %v2414 = vpop.f32.mrf.mxu0
      %v2415 = vadd.f32 %v1978, %v2414
      %2416 = vmatmul.f32.gmra.mxu0 %v2191
      %v2417 = vpop.f32.mrf.mxu0
      %v2418 = vadd.f32 %v1981, %v2417
      %2419 = vmatmul.f32.gmra.mxu0 %v2194
      %v2420 = vpop.f32.mrf.mxu0
      %v2421 = vadd.f32 %v1984, %v2420
      %2422 = vmatmul.f32.gmra.mxu0 %v2197
      %v2423 = vpop.f32.mrf.mxu0
      %v2424 = vadd.f32 %v1987, %v2423
      %2425 = vmatmul.f32.gmra.mxu0 %v2200
      %v2426 = vpop.f32.mrf.mxu0
      %v2427 = vadd.f32 %v1990, %v2426
      %2428 = vmatmul.f32.gmra.mxu0 %v2203
      %v2429 = vpop.f32.mrf.mxu0
      %v2430 = vadd.f32 %v1993, %v2429
      %2431 = vmatmul.f32.gmra.mxu0 %v2206
      %v2432 = vpop.f32.mrf.mxu0
      %v2433 = vadd.f32 %v1996, %v2432
      %2434 = vmatmul.f32.gmra.mxu0 %v2209
      %v2435 = vpop.f32.mrf.mxu0
      %v2436 = vadd.f32 %v1999, %v2435
      %2437 = vmatmul.f32.gmra.mxu0 %v2212
      %v2438 = vpop.f32.mrf.mxu0
      %v2439 = vadd.f32 %v2002, %v2438
      %2440 = vmatmul.f32.gmra.mxu0 %v2215
      %v2441 = vpop.f32.mrf.mxu0
      %v2442 = vadd.f32 %v2005, %v2441
      %2443 = vmatmul.f32.gmra.mxu0 %v2218
      %v2444 = vpop.f32.mrf.mxu0
      %v2445 = vadd.f32 %v2008, %v2444
      %2446 = vmatmul.f32.gmra.mxu0 %v2221
      %v2447 = vpop.f32.mrf.mxu0
      %v2448 = vadd.f32 %v2011, %v2447
      %2449 = vmatmul.f32.gmra.mxu0 %v2224
      %v2450 = vpop.f32.mrf.mxu0
      %v2451 = vadd.f32 %v2014, %v2450
      %2452 = vmatmul.f32.gmra.mxu0 %v2227
      %v2453 = vpop.f32.mrf.mxu0
      %v2454 = vadd.f32 %v2017, %v2453
      %2455 = vmatmul.f32.gmra.mxu0 %v2230
      %v2456 = vpop.f32.mrf.mxu0
      %v2457 = vadd.f32 %v2020, %v2456
      %2458 = vmatmul.f32.gmra.mxu0 %v2233
      %v2459 = vpop.f32.mrf.mxu0
      %v2460 = vadd.f32 %v2023, %v2459
      %2461 = vmatmul.f32.gmra.mxu0 %v2236
      %v2462 = vpop.f32.mrf.mxu0
      %v2463 = vadd.f32 %v2026, %v2462
      %2464 = vmatmul.f32.gmra.mxu0 %v2239
      %v2465 = vpop.f32.mrf.mxu0
      %v2466 = vadd.f32 %v2029, %v2465
      %2467 = vmatmul.f32.gmra.mxu0 %v2242
      %v2468 = vpop.f32.mrf.mxu0
      %v2469 = vadd.f32 %v2032, %v2468
      %2470 = vmatmul.f32.gmra.mxu0 %v2245
      %v2471 = vpop.f32.mrf.mxu0
      %v2472 = vadd.f32 %v2035, %v2471
      %2473 = vmatmul.f32.gmra.mxu0 %v2248
      %v2474 = vpop.f32.mrf.mxu0
      %v2475 = vadd.f32 %v2038, %v2474
      %2476 = vmatmul.f32.gmra.mxu0 %v2251
      %v2477 = vpop.f32.mrf.mxu0
      %v2478 = vadd.f32 %v2041, %v2477
      %2479 = vmatmul.f32.gmra.mxu0 %v2254
      %v2480 = vpop.f32.mrf.mxu0
      %v2481 = vadd.f32 %v2044, %v2480
      %2482 = vmatmul.f32.gmra.mxu0 %v2257
      %v2483 = vpop.f32.mrf.mxu0
      %v2484 = vadd.f32 %v2047, %v2483
      %2485 = vmatmul.f32.gmra.mxu0 %v2260
      %v2486 = vpop.f32.mrf.mxu0
      %v2487 = vadd.f32 %v2050, %v2486
      %2488 = vmatmul.f32.gmra.mxu0 %v2263
      %v2489 = vpop.f32.mrf.mxu0
      %v2490 = vadd.f32 %v2053, %v2489
      %2491 = vmatmul.f32.gmra.mxu0 %v2266
      %v2492 = vpop.f32.mrf.mxu0
      %v2493 = vadd.f32 %v2056, %v2492
      %2494 = vmatmul.f32.gmra.mxu0 %v2269
      %v2495 = vpop.f32.mrf.mxu0
      %v2496 = vadd.f32 %v2059, %v2495
      %2497 = vmatmul.f32.gmra.mxu0 %v2272
      %v2498 = vpop.f32.mrf.mxu0
      %v2499 = vadd.f32 %v2062, %v2498
      %2500 = vmatmul.f32.gmra.mxu0 %v2275
      %v2501 = vpop.f32.mrf.mxu0
      %v2502 = vadd.f32 %v2065, %v2501
      %2503 = vmatmul.f32.gmra.mxu0 %v2278
      %v2504 = vpop.f32.mrf.mxu0
      %v2505 = vadd.f32 %v2068, %v2504
      %2506 = vmatmul.f32.gmra.mxu0 %v2281
      %v2507 = vpop.f32.mrf.mxu0
      %v2508 = vadd.f32 %v2071, %v2507
      %2509 = vmatmul.f32.gmra.mxu0 %v2284
      %v2510 = vpop.f32.mrf.mxu0
      %v2511 = vadd.f32 %v2074, %v2510
      %2512 = vmatmul.f32.gmra.mxu0 %v2287
      %v2513 = vpop.f32.mrf.mxu0
      %v2514 = vadd.f32 %v2077, %v2513
      %2515 = vmatmul.f32.gmra.mxu0 %v2290
      %v2516 = vpop.f32.mrf.mxu0
      %v2517 = vadd.f32 %v2080, %v2516
      %2518 = vmatmul.f32.gmra.mxu0 %v2293
      %v2519 = vpop.f32.mrf.mxu0
      %v2520 = vadd.f32 %v2083, %v2519
      %2521 = vmatmul.f32.gmra.mxu0 %v2296
      %v2522 = vpop.f32.mrf.mxu0
      %v2523 = vadd.f32 %v2086, %v2522
      %2524 = vmatmul.f32.gmra.mxu0 %v2299
      %v2525 = vpop.f32.mrf.mxu0
      %v2526 = vadd.f32 %v2089, %v2525
      %2527 = vmatmul.f32.gmra.mxu0 %v2302
      %v2528 = vpop.f32.mrf.mxu0
      %v2529 = vadd.f32 %v2092, %v2528
      %2530 = vmatmul.f32.gmra.mxu0 %v2305
      %v2531 = vpop.f32.mrf.mxu0
      %v2532 = vadd.f32 %v2095, %v2531
      %2533 = vmatmul.f32.gmra.mxu0 %v2308
      %v2534 = vpop.f32.mrf.mxu0
      %v2535 = vadd.f32 %v2098, %v2534
      %2536 = vmatmul.f32.gmra.mxu0 %v2311
      %v2537 = vpop.f32.mrf.mxu0
      %v2538 = vadd.f32 %v2101, %v2537
      %2539 = vmatmul.f32.gmra.mxu0 %v2314
      %v2540 = vpop.f32.mrf.mxu0
      %v2541 = vadd.f32 %v2104, %v2540
      %2542 = vmatmul.f32.gmra.mxu0 %v2317
      %v2543 = vpop.f32.mrf.mxu0
      %v2544 = vadd.f32 %v2107, %v2543
      %2545 = vmatmul.f32.gmra.mxu0 %v2320
      %v2546 = vpop.f32.mrf.mxu0
      %v2547 = vadd.f32 %v2110, %v2546
      %2548 = vmatmul.f32.gmra.mxu0 %v2323
      %v2549 = vpop.f32.mrf.mxu0
      %v2550 = vadd.f32 %v2113, %v2549
      %2551 = vmatmul.f32.gmra.mxu0 %v2326
      %v2552 = vpop.f32.mrf.mxu0
      %v2553 = vadd.f32 %v2116, %v2552
      %2554 = vmatmul.f32.gmra.mxu0 %v2329
      %v2555 = vpop.f32.mrf.mxu0
      %v2556 = vadd.f32 %v2119, %v2555
      %2557 = vmatmul.f32.gmra.mxu0 %v2332
      %v2558 = vpop.f32.mrf.mxu0
      %v2559 = vadd.f32 %v2122, %v2558
      %2560 = vmatmul.f32.gmra.mxu0 %v2335
      %v2561 = vpop.f32.mrf.mxu0
      %v2562 = vadd.f32 %v2125, %v2561
      %2563 = vmatmul.f32.gmra.mxu0 %v2338
      %v2564 = vpop.f32.mrf.mxu0
      %v2565 = vadd.f32 %v2128, %v2564
      %2566 = vmatmul.f32.gmra.mxu0 %v2341
      %v2567 = vpop.f32.mrf.mxu0
      %v2568 = vadd.f32 %v2131, %v2567
      %2569 = vmatmul.f32.gmra.mxu0 %v2344
      %v2570 = vpop.f32.mrf.mxu0
      %v2571 = vadd.f32 %v2134, %v2570
      %2572 = vmatmul.f32.gmra.mxu0 %v2347
      %v2573 = vpop.f32.mrf.mxu0
      %v2574 = vadd.f32 %v2137, %v2573
      %2575 = vmatmul.f32.gmra.mxu0 %v2350
      %v2576 = vpop.f32.mrf.mxu0
      %v2577 = vadd.f32 %v2140, %v2576
      %2578 = vmatmul.f32.gmra.mxu0 %v2353
      %v2579 = vpop.f32.mrf.mxu0
      %v2580 = vadd.f32 %v2143, %v2579
      %2581 = vdwg.mxu0
      %v2582 = vld [vmem:[#allocation2 + $0x9] sm:$0xff]
      %v2583 = vld [vmem:[#allocation2 + $0x11] sm:$0xff]
      %v2584 = vld [vmem:[#allocation2 + $0x19] sm:$0xff]
      %v2585 = vld [vmem:[#allocation2 + $0x21] sm:$0xff]
      %v2586 = vld [vmem:[#allocation2 + $0x29] sm:$0xff]
      %v2587 = vld [vmem:[#allocation2 + $0x31] sm:$0xff]
      %v2588 = vld [vmem:[#allocation2 + $0x39] sm:$0xff]
      %v2589 = vld [vmem:[#allocation2 + $0x41] sm:$0xff]
      %v2590 = vld [vmem:[#allocation2 + $0x49] sm:$0xff]
      %v2591 = vld [vmem:[#allocation2 + $0x51] sm:$0xff]
      %v2592 = vld [vmem:[#allocation2 + $0x59] sm:$0xff]
      %v2593 = vld [vmem:[#allocation2 + $0x61] sm:$0xff]
      %v2594 = vld [vmem:[#allocation2 + $0x69] sm:$0xff]
      %v2595 = vld [vmem:[#allocation2 + $0x71] sm:$0xff]
      %v2596 = vld [vmem:[#allocation2 + $0x79] sm:$0xff]
      %v2597 = vld [vmem:[#allocation2 + $0x81] sm:$0xff]
      %v2598 = vld [vmem:[#allocation2 + $0x89] sm:$0xff]
      %v2599 = vld [vmem:[#allocation2 + $0x91] sm:$0xff]
      %v2600 = vld [vmem:[#allocation2 + $0x99] sm:$0xff]
      %v2601 = vld [vmem:[#allocation2 + $0xa1] sm:$0xff]
      %v2602 = vld [vmem:[#allocation2 + $0xa9] sm:$0xff]
      %v2603 = vld [vmem:[#allocation2 + $0xb1] sm:$0xff]
      %v2604 = vld [vmem:[#allocation2 + $0xb9] sm:$0xff]
      %v2605 = vld [vmem:[#allocation2 + $0xc1] sm:$0xff]
      %v2606 = vld [vmem:[#allocation2 + $0xc9] sm:$0xff]
      %v2607 = vld [vmem:[#allocation2 + $0xd1] sm:$0xff]
      %v2608 = vld [vmem:[#allocation2 + $0xd9] sm:$0xff]
      %v2609 = vld [vmem:[#allocation2 + $0xe1] sm:$0xff]
      %v2610 = vld [vmem:[#allocation2 + $0xe9] sm:$0xff]
      %v2611 = vld [vmem:[#allocation2 + $0xf1] sm:$0xff]
      %v2612 = vld [vmem:[#allocation2 + $0xf9] sm:$0xff]
      %v2613 = vld [vmem:[#allocation2 + $0x101] sm:$0xff]
      %v2614 = vld [vmem:[#allocation2 + $0x109] sm:$0xff]
      %v2615 = vld [vmem:[#allocation2 + $0x111] sm:$0xff]
      %v2616 = vld [vmem:[#allocation2 + $0x119] sm:$0xff]
      %v2617 = vld [vmem:[#allocation2 + $0x121] sm:$0xff]
      %v2618 = vld [vmem:[#allocation2 + $0x129] sm:$0xff]
      %v2619 = vld [vmem:[#allocation2 + $0x131] sm:$0xff]
      %v2620 = vld [vmem:[#allocation2 + $0x139] sm:$0xff]
      %v2621 = vld [vmem:[#allocation2 + $0x141] sm:$0xff]
      %v2622 = vld [vmem:[#allocation2 + $0x149] sm:$0xff]
      %v2623 = vld [vmem:[#allocation2 + $0x151] sm:$0xff]
      %v2624 = vld [vmem:[#allocation2 + $0x159] sm:$0xff]
      %v2625 = vld [vmem:[#allocation2 + $0x161] sm:$0xff]
      %v2626 = vld [vmem:[#allocation2 + $0x169] sm:$0xff]
      %v2627 = vld [vmem:[#allocation2 + $0x171] sm:$0xff]
      %v2628 = vld [vmem:[#allocation2 + $0x179] sm:$0xff]
      %v2629 = vld [vmem:[#allocation2 + $0x181] sm:$0xff]
      %v2630 = vld [vmem:[#allocation2 + $0x189] sm:$0xff]
      %v2631 = vld [vmem:[#allocation2 + $0x191] sm:$0xff]
      %v2632 = vld [vmem:[#allocation2 + $0x199] sm:$0xff]
      %v2633 = vld [vmem:[#allocation2 + $0x1a1] sm:$0xff]
      %v2634 = vld [vmem:[#allocation2 + $0x1a9] sm:$0xff]
      %v2635 = vld [vmem:[#allocation2 + $0x1b1] sm:$0xff]
      %v2636 = vld [vmem:[#allocation2 + $0x1b9] sm:$0xff]
      %v2637 = vld [vmem:[#allocation2 + $0x1c1] sm:$0xff]
      %v2638 = vld [vmem:[#allocation2 + $0x1c9] sm:$0xff]
      %v2639 = vld [vmem:[#allocation2 + $0x1d1] sm:$0xff]
      %v2640 = vld [vmem:[#allocation2 + $0x1d9] sm:$0xff]
      %v2641 = vld [vmem:[#allocation2 + $0x1e1] sm:$0xff]
      %v2642 = vld [vmem:[#allocation2 + $0x1e9] sm:$0xff]
      %v2643 = vld [vmem:[#allocation2 + $0x1f1] sm:$0xff]
      %v2644 = vld [vmem:[#allocation2 + $0x1f9] sm:$0xff]
      %v2645 = vld [vmem:[#allocation2 + $0x201] sm:$0xff]
      %v2646 = vld [vmem:[#allocation2 + $0x209] sm:$0xff]
      %v2647 = vld [vmem:[#allocation2 + $0x211] sm:$0xff]
      %v2648 = vld [vmem:[#allocation2 + $0x219] sm:$0xff]
      %v2649 = vld [vmem:[#allocation2 + $0x221] sm:$0xff]
      %v2650 = vld [vmem:[#allocation2 + $0x229] sm:$0xff]
      %v2651 = vld [vmem:[#allocation2 + $0x231] sm:$0xff]
      %s2652 = scalar_lea.vmem %s3, 64
      %v2653 = vld [vmem:[%s2652] sm:$0xff]
      %v2654 = vld [vmem:[%s2652 + $0x8] sm:$0xff]
      %v2655 = vld [vmem:[%s2652 + $0x10] sm:$0xff]
      %v2656 = vld [vmem:[%s2652 + $0x18] sm:$0xff]
      %v2658 = vsel %vm1482, %v2582, 0
      %v2661 = vsel %vm1482, %v2583, 0
      %v2664 = vsel %vm1482, %v2584, 0
      %v2667 = vsel %vm1482, %v2585, 0
      %v2670 = vsel %vm1482, %v2586, 0
      %v2673 = vsel %vm1482, %v2587, 0
      %v2676 = vsel %vm1482, %v2588, 0
      %v2679 = vsel %vm1482, %v2589, 0
      %v2682 = vsel %vm1482, %v2590, 0
      %v2685 = vsel %vm1482, %v2591, 0
      %v2688 = vsel %vm1482, %v2592, 0
      %v2691 = vsel %vm1482, %v2593, 0
      %v2694 = vsel %vm1482, %v2594, 0
      %v2697 = vsel %vm1482, %v2595, 0
      %v2700 = vsel %vm1482, %v2596, 0
      %v2703 = vsel %vm1482, %v2597, 0
      %v2706 = vsel %vm1482, %v2598, 0
      %v2709 = vsel %vm1482, %v2599, 0
      %v2712 = vsel %vm1482, %v2600, 0
      %v2715 = vsel %vm1482, %v2601, 0
      %v2718 = vsel %vm1482, %v2602, 0
      %v2721 = vsel %vm1482, %v2603, 0
      %v2724 = vsel %vm1482, %v2604, 0
      %v2727 = vsel %vm1482, %v2605, 0
      %v2730 = vsel %vm1482, %v2606, 0
      %v2733 = vsel %vm1482, %v2607, 0
      %v2736 = vsel %vm1482, %v2608, 0
      %v2739 = vsel %vm1482, %v2609, 0
      %v2742 = vsel %vm1482, %v2610, 0
      %v2745 = vsel %vm1482, %v2611, 0
      %v2748 = vsel %vm1482, %v2612, 0
      %v2751 = vsel %vm1482, %v2613, 0
      %v2754 = vsel %vm1482, %v2614, 0
      %v2757 = vsel %vm1482, %v2615, 0
      %v2760 = vsel %vm1482, %v2616, 0
      %v2763 = vsel %vm1482, %v2617, 0
      %v2766 = vsel %vm1482, %v2618, 0
      %v2769 = vsel %vm1482, %v2619, 0
      %v2772 = vsel %vm1482, %v2620, 0
      %v2775 = vsel %vm1482, %v2621, 0
      %v2778 = vsel %vm1482, %v2622, 0
      %v2781 = vsel %vm1482, %v2623, 0
      %v2784 = vsel %vm1482, %v2624, 0
      %v2787 = vsel %vm1482, %v2625, 0
      %v2790 = vsel %vm1482, %v2626, 0
      %v2793 = vsel %vm1482, %v2627, 0
      %v2796 = vsel %vm1482, %v2628, 0
      %v2799 = vsel %vm1482, %v2629, 0
      %v2802 = vsel %vm1482, %v2630, 0
      %v2805 = vsel %vm1482, %v2631, 0
      %v2808 = vsel %vm1482, %v2632, 0
      %v2811 = vsel %vm1482, %v2633, 0
      %v2814 = vsel %vm1482, %v2634, 0
      %v2817 = vsel %vm1482, %v2635, 0
      %v2820 = vsel %vm1482, %v2636, 0
      %v2823 = vsel %vm1482, %v2637, 0
      %v2826 = vsel %vm1482, %v2638, 0
      %v2829 = vsel %vm1482, %v2639, 0
      %v2832 = vsel %vm1482, %v2640, 0
      %v2835 = vsel %vm1482, %v2641, 0
      %v2838 = vsel %vm1482, %v2642, 0
      %v2841 = vsel %vm1482, %v2643, 0
      %v2844 = vsel %vm1482, %v2644, 0
      %v2847 = vsel %vm1482, %v2645, 0
      %v2850 = vsel %vm1482, %v2646, 0
      %v2853 = vsel %vm1482, %v2647, 0
      %v2856 = vsel %vm1482, %v2648, 0
      %v2859 = vsel %vm1482, %v2649, 0
      %v2862 = vsel %vm1482, %v2650, 0
      %v2865 = vsel %vm1482, %v2651, 0
      %2867 = vmatpush.msra.mxu0 0.0
      %2868 = vmatpush.msra.mxu0 0.0
      %2869 = vmatpush.msra.mxu0 0.0
      %2870 = vmatpush.msra.mxu0 0.0
      %2871 = vmatpush.msra.mxu0 0.0
      %2872 = vmatpush.msra.mxu0 0.0
      %2873 = vmatpush.msra.mxu0 0.0
      %2874 = vmatpush.msra.mxu0 0.0
      %2875 = vmatpush.msra.mxu0 0.0
      %2876 = vmatpush.msra.mxu0 0.0
      %2877 = vmatpush.msra.mxu0 0.0
      %2878 = vmatpush.msra.mxu0 0.0
      %2879 = vmatpush.msra.mxu0 %v2656
      %2880 = vmatpush.msra.mxu0 %v2655
      %2881 = vmatpush.msra.mxu0 %v2654
      %2882 = vmatpush.msra.mxu0 %v2653
      %2883 = vmatmul.f32.gmra.mxu0 %v2658
      %v2884 = vpop.f32.mrf.mxu0
      %v2885 = vadd.f32 0.0, %v2884
      %2886 = vmatmul.f32.gmra.mxu0 %v2661
      %v2887 = vpop.f32.mrf.mxu0
      %v2888 = vadd.f32 0.0, %v2887
      %2889 = vmatmul.f32.gmra.mxu0 %v2664
      %v2890 = vpop.f32.mrf.mxu0
      %v2891 = vadd.f32 0.0, %v2890
      %2892 = vmatmul.f32.gmra.mxu0 %v2667
      %v2893 = vpop.f32.mrf.mxu0
      %v2894 = vadd.f32 0.0, %v2893
      %2895 = vmatmul.f32.gmra.mxu0 %v2670
      %v2896 = vpop.f32.mrf.mxu0
      %v2897 = vadd.f32 0.0, %v2896
      %2898 = vmatmul.f32.gmra.mxu0 %v2673
      %v2899 = vpop.f32.mrf.mxu0
      %v2900 = vadd.f32 0.0, %v2899
      %2901 = vmatmul.f32.gmra.mxu0 %v2676
      %v2902 = vpop.f32.mrf.mxu0
      %v2903 = vadd.f32 0.0, %v2902
      %2904 = vmatmul.f32.gmra.mxu0 %v2679
      %v2905 = vpop.f32.mrf.mxu0
      %v2906 = vadd.f32 0.0, %v2905
      %2907 = vmatmul.f32.gmra.mxu0 %v2682
      %v2908 = vpop.f32.mrf.mxu0
      %v2909 = vadd.f32 0.0, %v2908
      %2910 = vmatmul.f32.gmra.mxu0 %v2685
      %v2911 = vpop.f32.mrf.mxu0
      %v2912 = vadd.f32 0.0, %v2911
      %2913 = vmatmul.f32.gmra.mxu0 %v2688
      %v2914 = vpop.f32.mrf.mxu0
      %v2915 = vadd.f32 0.0, %v2914
      %2916 = vmatmul.f32.gmra.mxu0 %v2691
      %v2917 = vpop.f32.mrf.mxu0
      %v2918 = vadd.f32 0.0, %v2917
      %2919 = vmatmul.f32.gmra.mxu0 %v2694
      %v2920 = vpop.f32.mrf.mxu0
      %v2921 = vadd.f32 0.0, %v2920
      %2922 = vmatmul.f32.gmra.mxu0 %v2697
      %v2923 = vpop.f32.mrf.mxu0
      %v2924 = vadd.f32 0.0, %v2923
      %2925 = vmatmul.f32.gmra.mxu0 %v2700
      %v2926 = vpop.f32.mrf.mxu0
      %v2927 = vadd.f32 0.0, %v2926
      %2928 = vmatmul.f32.gmra.mxu0 %v2703
      %v2929 = vpop.f32.mrf.mxu0
      %v2930 = vadd.f32 0.0, %v2929
      %2931 = vmatmul.f32.gmra.mxu0 %v2706
      %v2932 = vpop.f32.mrf.mxu0
      %v2933 = vadd.f32 0.0, %v2932
      %2934 = vmatmul.f32.gmra.mxu0 %v2709
      %v2935 = vpop.f32.mrf.mxu0
      %v2936 = vadd.f32 0.0, %v2935
      %2937 = vmatmul.f32.gmra.mxu0 %v2712
      %v2938 = vpop.f32.mrf.mxu0
      %v2939 = vadd.f32 0.0, %v2938
      %2940 = vmatmul.f32.gmra.mxu0 %v2715
      %v2941 = vpop.f32.mrf.mxu0
      %v2942 = vadd.f32 0.0, %v2941
      %2943 = vmatmul.f32.gmra.mxu0 %v2718
      %v2944 = vpop.f32.mrf.mxu0
      %v2945 = vadd.f32 0.0, %v2944
      %2946 = vmatmul.f32.gmra.mxu0 %v2721
      %v2947 = vpop.f32.mrf.mxu0
      %v2948 = vadd.f32 0.0, %v2947
      %2949 = vmatmul.f32.gmra.mxu0 %v2724
      %v2950 = vpop.f32.mrf.mxu0
      %v2951 = vadd.f32 0.0, %v2950
      %2952 = vmatmul.f32.gmra.mxu0 %v2727
      %v2953 = vpop.f32.mrf.mxu0
      %v2954 = vadd.f32 0.0, %v2953
      %2955 = vmatmul.f32.gmra.mxu0 %v2730
      %v2956 = vpop.f32.mrf.mxu0
      %v2957 = vadd.f32 0.0, %v2956
      %2958 = vmatmul.f32.gmra.mxu0 %v2733
      %v2959 = vpop.f32.mrf.mxu0
      %v2960 = vadd.f32 0.0, %v2959
      %2961 = vmatmul.f32.gmra.mxu0 %v2736
      %v2962 = vpop.f32.mrf.mxu0
      %v2963 = vadd.f32 0.0, %v2962
      %2964 = vmatmul.f32.gmra.mxu0 %v2739
      %v2965 = vpop.f32.mrf.mxu0
      %v2966 = vadd.f32 0.0, %v2965
      %2967 = vmatmul.f32.gmra.mxu0 %v2742
      %v2968 = vpop.f32.mrf.mxu0
      %v2969 = vadd.f32 0.0, %v2968
      %2970 = vmatmul.f32.gmra.mxu0 %v2745
      %v2971 = vpop.f32.mrf.mxu0
      %v2972 = vadd.f32 0.0, %v2971
      %2973 = vmatmul.f32.gmra.mxu0 %v2748
      %v2974 = vpop.f32.mrf.mxu0
      %v2975 = vadd.f32 0.0, %v2974
      %2976 = vmatmul.f32.gmra.mxu0 %v2751
      %v2977 = vpop.f32.mrf.mxu0
      %v2978 = vadd.f32 0.0, %v2977
      %2979 = vmatmul.f32.gmra.mxu0 %v2754
      %v2980 = vpop.f32.mrf.mxu0
      %v2981 = vadd.f32 0.0, %v2980
      %2982 = vmatmul.f32.gmra.mxu0 %v2757
      %v2983 = vpop.f32.mrf.mxu0
      %v2984 = vadd.f32 0.0, %v2983
      %2985 = vmatmul.f32.gmra.mxu0 %v2760
      %v2986 = vpop.f32.mrf.mxu0
      %v2987 = vadd.f32 0.0, %v2986
      %2988 = vmatmul.f32.gmra.mxu0 %v2763
      %v2989 = vpop.f32.mrf.mxu0
      %v2990 = vadd.f32 0.0, %v2989
      %2991 = vmatmul.f32.gmra.mxu0 %v2766
      %v2992 = vpop.f32.mrf.mxu0
      %v2993 = vadd.f32 0.0, %v2992
      %2994 = vmatmul.f32.gmra.mxu0 %v2769
      %v2995 = vpop.f32.mrf.mxu0
      %v2996 = vadd.f32 0.0, %v2995
      %2997 = vmatmul.f32.gmra.mxu0 %v2772
      %v2998 = vpop.f32.mrf.mxu0
      %v2999 = vadd.f32 0.0, %v2998
      %3000 = vmatmul.f32.gmra.mxu0 %v2775
      %v3001 = vpop.f32.mrf.mxu0
      %v3002 = vadd.f32 0.0, %v3001
      %3003 = vmatmul.f32.gmra.mxu0 %v2778
      %v3004 = vpop.f32.mrf.mxu0
      %v3005 = vadd.f32 0.0, %v3004
      %3006 = vmatmul.f32.gmra.mxu0 %v2781
      %v3007 = vpop.f32.mrf.mxu0
      %v3008 = vadd.f32 0.0, %v3007
      %3009 = vmatmul.f32.gmra.mxu0 %v2784
      %v3010 = vpop.f32.mrf.mxu0
      %v3011 = vadd.f32 0.0, %v3010
      %3012 = vmatmul.f32.gmra.mxu0 %v2787
      %v3013 = vpop.f32.mrf.mxu0
      %v3014 = vadd.f32 0.0, %v3013
      %3015 = vmatmul.f32.gmra.mxu0 %v2790
      %v3016 = vpop.f32.mrf.mxu0
      %v3017 = vadd.f32 0.0, %v3016
      %3018 = vmatmul.f32.gmra.mxu0 %v2793
      %v3019 = vpop.f32.mrf.mxu0
      %v3020 = vadd.f32 0.0, %v3019
      %3021 = vmatmul.f32.gmra.mxu0 %v2796
      %v3022 = vpop.f32.mrf.mxu0
      %v3023 = vadd.f32 0.0, %v3022
      %3024 = vmatmul.f32.gmra.mxu0 %v2799
      %v3025 = vpop.f32.mrf.mxu0
      %v3026 = vadd.f32 0.0, %v3025
      %3027 = vmatmul.f32.gmra.mxu0 %v2802
      %v3028 = vpop.f32.mrf.mxu0
      %v3029 = vadd.f32 0.0, %v3028
      %3030 = vmatmul.f32.gmra.mxu0 %v2805
      %v3031 = vpop.f32.mrf.mxu0
      %v3032 = vadd.f32 0.0, %v3031
      %3033 = vmatmul.f32.gmra.mxu0 %v2808
      %v3034 = vpop.f32.mrf.mxu0
      %v3035 = vadd.f32 0.0, %v3034
      %3036 = vmatmul.f32.gmra.mxu0 %v2811
      %v3037 = vpop.f32.mrf.mxu0
      %v3038 = vadd.f32 0.0, %v3037
      %3039 = vmatmul.f32.gmra.mxu0 %v2814
      %v3040 = vpop.f32.mrf.mxu0
      %v3041 = vadd.f32 0.0, %v3040
      %3042 = vmatmul.f32.gmra.mxu0 %v2817
      %v3043 = vpop.f32.mrf.mxu0
      %v3044 = vadd.f32 0.0, %v3043
      %3045 = vmatmul.f32.gmra.mxu0 %v2820
      %v3046 = vpop.f32.mrf.mxu0
      %v3047 = vadd.f32 0.0, %v3046
      %3048 = vmatmul.f32.gmra.mxu0 %v2823
      %v3049 = vpop.f32.mrf.mxu0
      %v3050 = vadd.f32 0.0, %v3049
      %3051 = vmatmul.f32.gmra.mxu0 %v2826
      %v3052 = vpop.f32.mrf.mxu0
      %v3053 = vadd.f32 0.0, %v3052
      %3054 = vmatmul.f32.gmra.mxu0 %v2829
      %v3055 = vpop.f32.mrf.mxu0
      %v3056 = vadd.f32 0.0, %v3055
      %3057 = vmatmul.f32.gmra.mxu0 %v2832
      %v3058 = vpop.f32.mrf.mxu0
      %v3059 = vadd.f32 0.0, %v3058
      %3060 = vmatmul.f32.gmra.mxu0 %v2835
      %v3061 = vpop.f32.mrf.mxu0
      %v3062 = vadd.f32 0.0, %v3061
      %3063 = vmatmul.f32.gmra.mxu0 %v2838
      %v3064 = vpop.f32.mrf.mxu0
      %v3065 = vadd.f32 0.0, %v3064
      %3066 = vmatmul.f32.gmra.mxu0 %v2841
      %v3067 = vpop.f32.mrf.mxu0
      %v3068 = vadd.f32 0.0, %v3067
      %3069 = vmatmul.f32.gmra.mxu0 %v2844
      %v3070 = vpop.f32.mrf.mxu0
      %v3071 = vadd.f32 0.0, %v3070
      %3072 = vmatmul.f32.gmra.mxu0 %v2847
      %v3073 = vpop.f32.mrf.mxu0
      %v3074 = vadd.f32 0.0, %v3073
      %3075 = vmatmul.f32.gmra.mxu0 %v2850
      %v3076 = vpop.f32.mrf.mxu0
      %v3077 = vadd.f32 0.0, %v3076
      %3078 = vmatmul.f32.gmra.mxu0 %v2853
      %v3079 = vpop.f32.mrf.mxu0
      %v3080 = vadd.f32 0.0, %v3079
      %3081 = vmatmul.f32.gmra.mxu0 %v2856
      %v3082 = vpop.f32.mrf.mxu0
      %v3083 = vadd.f32 0.0, %v3082
      %3084 = vmatmul.f32.gmra.mxu0 %v2859
      %v3085 = vpop.f32.mrf.mxu0
      %v3086 = vadd.f32 0.0, %v3085
      %3087 = vmatmul.f32.gmra.mxu0 %v2862
      %v3088 = vpop.f32.mrf.mxu0
      %v3089 = vadd.f32 0.0, %v3088
      %3090 = vmatmul.f32.gmra.mxu0 %v2865
      %v3091 = vpop.f32.mrf.mxu0
      %v3092 = vadd.f32 0.0, %v3091
      %3093 = vdwg.mxu0
      %v3094 = vadd.f32 %v2373, %v2885
      %v3095 = vadd.f32 %v2376, %v2888
      %v3096 = vadd.f32 %v2379, %v2891
      %v3097 = vadd.f32 %v2382, %v2894
      %v3098 = vadd.f32 %v2385, %v2897
      %v3099 = vadd.f32 %v2388, %v2900
      %v3100 = vadd.f32 %v2391, %v2903
      %v3101 = vadd.f32 %v2394, %v2906
      %v3102 = vadd.f32 %v2397, %v2909
      %v3103 = vadd.f32 %v2400, %v2912
      %v3104 = vadd.f32 %v2403, %v2915
      %v3105 = vadd.f32 %v2406, %v2918
      %v3106 = vadd.f32 %v2409, %v2921
      %v3107 = vadd.f32 %v2412, %v2924
      %v3108 = vadd.f32 %v2415, %v2927
      %v3109 = vadd.f32 %v2418, %v2930
      %v3110 = vadd.f32 %v2421, %v2933
      %v3111 = vadd.f32 %v2424, %v2936
      %v3112 = vadd.f32 %v2427, %v2939
      %v3113 = vadd.f32 %v2430, %v2942
      %v3114 = vadd.f32 %v2433, %v2945
      %v3115 = vadd.f32 %v2436, %v2948
      %v3116 = vadd.f32 %v2439, %v2951
      %v3117 = vadd.f32 %v2442, %v2954
      %v3118 = vadd.f32 %v2445, %v2957
      %v3119 = vadd.f32 %v2448, %v2960
      %v3120 = vadd.f32 %v2451, %v2963
      %v3121 = vadd.f32 %v2454, %v2966
      %v3122 = vadd.f32 %v2457, %v2969
      %v3123 = vadd.f32 %v2460, %v2972
      %v3124 = vadd.f32 %v2463, %v2975
      %v3125 = vadd.f32 %v2466, %v2978
      %v3126 = vadd.f32 %v2469, %v2981
      %v3127 = vadd.f32 %v2472, %v2984
      %v3128 = vadd.f32 %v2475, %v2987
      %v3129 = vadd.f32 %v2478, %v2990
      %v3130 = vadd.f32 %v2481, %v2993
      %v3131 = vadd.f32 %v2484, %v2996
      %v3132 = vadd.f32 %v2487, %v2999
      %v3133 = vadd.f32 %v2490, %v3002
      %v3134 = vadd.f32 %v2493, %v3005
      %v3135 = vadd.f32 %v2496, %v3008
      %v3136 = vadd.f32 %v2499, %v3011
      %v3137 = vadd.f32 %v2502, %v3014
      %v3138 = vadd.f32 %v2505, %v3017
      %v3139 = vadd.f32 %v2508, %v3020
      %v3140 = vadd.f32 %v2511, %v3023
      %v3141 = vadd.f32 %v2514, %v3026
      %v3142 = vadd.f32 %v2517, %v3029
      %v3143 = vadd.f32 %v2520, %v3032
      %v3144 = vadd.f32 %v2523, %v3035
      %v3145 = vadd.f32 %v2526, %v3038
      %v3146 = vadd.f32 %v2529, %v3041
      %v3147 = vadd.f32 %v2532, %v3044
      %v3148 = vadd.f32 %v2535, %v3047
      %v3149 = vadd.f32 %v2538, %v3050
      %v3150 = vadd.f32 %v2541, %v3053
      %v3151 = vadd.f32 %v2544, %v3056
      %v3152 = vadd.f32 %v2547, %v3059
      %v3153 = vadd.f32 %v2550, %v3062
      %v3154 = vadd.f32 %v2553, %v3065
      %v3155 = vadd.f32 %v2556, %v3068
      %v3156 = vadd.f32 %v2559, %v3071
      %v3157 = vadd.f32 %v2562, %v3074
      %v3158 = vadd.f32 %v2565, %v3077
      %v3159 = vadd.f32 %v2568, %v3080
      %v3160 = vadd.f32 %v2571, %v3083
      %v3161 = vadd.f32 %v2574, %v3086
      %v3162 = vadd.f32 %v2577, %v3089
      %v3163 = vadd.f32 %v2580, %v3092
      %v3164 = vld [vmem:[#allocation2 + $0x17] sm:$0xff]
      %v3165 = vld [vmem:[#allocation2 + $0x1f] sm:$0xff]
      %v3166 = vld [vmem:[#allocation2 + $0x27] sm:$0xff]
      %v3167 = vld [vmem:[#allocation2 + $0x2f] sm:$0xff]
      %v3168 = vld [vmem:[#allocation2 + $0x37] sm:$0xff]
      %v3169 = vld [vmem:[#allocation2 + $0x3f] sm:$0xff]
      %v3170 = vld [vmem:[#allocation2 + $0x47] sm:$0xff]
      %v3171 = vld [vmem:[#allocation2 + $0x4f] sm:$0xff]
      %v3172 = vld [vmem:[#allocation2 + $0x57] sm:$0xff]
      %v3173 = vld [vmem:[#allocation2 + $0x5f] sm:$0xff]
      %v3174 = vld [vmem:[#allocation2 + $0x67] sm:$0xff]
      %v3175 = vld [vmem:[#allocation2 + $0x6f] sm:$0xff]
      %v3176 = vld [vmem:[#allocation2 + $0x77] sm:$0xff]
      %v3177 = vld [vmem:[#allocation2 + $0x7f] sm:$0xff]
      %v3178 = vld [vmem:[#allocation2 + $0x87] sm:$0xff]
      %v3179 = vld [vmem:[#allocation2 + $0x8f] sm:$0xff]
      %v3180 = vld [vmem:[#allocation2 + $0x97] sm:$0xff]
      %v3181 = vld [vmem:[#allocation2 + $0x9f] sm:$0xff]
      %v3182 = vld [vmem:[#allocation2 + $0xa7] sm:$0xff]
      %v3183 = vld [vmem:[#allocation2 + $0xaf] sm:$0xff]
      %v3184 = vld [vmem:[#allocation2 + $0xb7] sm:$0xff]
      %v3185 = vld [vmem:[#allocation2 + $0xbf] sm:$0xff]
      %v3186 = vld [vmem:[#allocation2 + $0xc7] sm:$0xff]
      %v3187 = vld [vmem:[#allocation2 + $0xcf] sm:$0xff]
      %v3188 = vld [vmem:[#allocation2 + $0xd7] sm:$0xff]
      %v3189 = vld [vmem:[#allocation2 + $0xdf] sm:$0xff]
      %v3190 = vld [vmem:[#allocation2 + $0xe7] sm:$0xff]
      %v3191 = vld [vmem:[#allocation2 + $0xef] sm:$0xff]
      %v3192 = vld [vmem:[#allocation2 + $0xf7] sm:$0xff]
      %v3193 = vld [vmem:[#allocation2 + $0xff] sm:$0xff]
      %v3194 = vld [vmem:[#allocation2 + $0x107] sm:$0xff]
      %v3195 = vld [vmem:[#allocation2 + $0x10f] sm:$0xff]
      %v3196 = vld [vmem:[#allocation2 + $0x117] sm:$0xff]
      %v3197 = vld [vmem:[#allocation2 + $0x11f] sm:$0xff]
      %v3198 = vld [vmem:[#allocation2 + $0x127] sm:$0xff]
      %v3199 = vld [vmem:[#allocation2 + $0x12f] sm:$0xff]
      %v3200 = vld [vmem:[#allocation2 + $0x137] sm:$0xff]
      %v3201 = vld [vmem:[#allocation2 + $0x13f] sm:$0xff]
      %v3202 = vld [vmem:[#allocation2 + $0x147] sm:$0xff]
      %v3203 = vld [vmem:[#allocation2 + $0x14f] sm:$0xff]
      %v3204 = vld [vmem:[#allocation2 + $0x157] sm:$0xff]
      %v3205 = vld [vmem:[#allocation2 + $0x15f] sm:$0xff]
      %v3206 = vld [vmem:[#allocation2 + $0x167] sm:$0xff]
      %v3207 = vld [vmem:[#allocation2 + $0x16f] sm:$0xff]
      %v3208 = vld [vmem:[#allocation2 + $0x177] sm:$0xff]
      %v3209 = vld [vmem:[#allocation2 + $0x17f] sm:$0xff]
      %v3210 = vld [vmem:[#allocation2 + $0x187] sm:$0xff]
      %v3211 = vld [vmem:[#allocation2 + $0x18f] sm:$0xff]
      %v3212 = vld [vmem:[#allocation2 + $0x197] sm:$0xff]
      %v3213 = vld [vmem:[#allocation2 + $0x19f] sm:$0xff]
      %v3214 = vld [vmem:[#allocation2 + $0x1a7] sm:$0xff]
      %v3215 = vld [vmem:[#allocation2 + $0x1af] sm:$0xff]
      %v3216 = vld [vmem:[#allocation2 + $0x1b7] sm:$0xff]
      %v3217 = vld [vmem:[#allocation2 + $0x1bf] sm:$0xff]
      %v3218 = vld [vmem:[#allocation2 + $0x1c7] sm:$0xff]
      %v3219 = vld [vmem:[#allocation2 + $0x1cf] sm:$0xff]
      %v3220 = vld [vmem:[#allocation2 + $0x1d7] sm:$0xff]
      %v3221 = vld [vmem:[#allocation2 + $0x1df] sm:$0xff]
      %v3222 = vld [vmem:[#allocation2 + $0x1e7] sm:$0xff]
      %v3223 = vld [vmem:[#allocation2 + $0x1ef] sm:$0xff]
      %v3224 = vld [vmem:[#allocation2 + $0x1f7] sm:$0xff]
      %v3225 = vld [vmem:[#allocation2 + $0x1ff] sm:$0xff]
      %v3226 = vld [vmem:[#allocation2 + $0x207] sm:$0xff]
      %v3227 = vld [vmem:[#allocation2 + $0x20f] sm:$0xff]
      %v3228 = vld [vmem:[#allocation2 + $0x217] sm:$0xff]
      %v3229 = vld [vmem:[#allocation2 + $0x21f] sm:$0xff]
      %v3230 = vld [vmem:[#allocation2 + $0x227] sm:$0xff]
      %v3231 = vld [vmem:[#allocation2 + $0x22f] sm:$0xff]
      %v3232 = vld [vmem:[#allocation2 + $0x237] sm:$0xff]
      %v3233 = vld [vmem:[#allocation2 + $0x23f] sm:$0xff]
      %s3234 = scalar_lea.vmem %s3, 96
      %v3235 = vld [vmem:[%s3234] sm:$0xff]
      %v3236 = vld [vmem:[%s3234 + $0x8] sm:$0xff]
      %v3237 = vld [vmem:[%s3234 + $0x10] sm:$0xff]
      %v3238 = vld [vmem:[%s3234 + $0x18] sm:$0xff]
      %v3240 = vsel %vm1482, %v3164, 0
      %v3243 = vsel %vm1482, %v3165, 0
      %v3246 = vsel %vm1482, %v3166, 0
      %v3249 = vsel %vm1482, %v3167, 0
      %v3252 = vsel %vm1482, %v3168, 0
      %v3255 = vsel %vm1482, %v3169, 0
      %v3258 = vsel %vm1482, %v3170, 0
      %v3261 = vsel %vm1482, %v3171, 0
      %v3264 = vsel %vm1482, %v3172, 0
      %v3267 = vsel %vm1482, %v3173, 0
      %v3270 = vsel %vm1482, %v3174, 0
      %v3273 = vsel %vm1482, %v3175, 0
      %v3276 = vsel %vm1482, %v3176, 0
      %v3279 = vsel %vm1482, %v3177, 0
      %v3282 = vsel %vm1482, %v3178, 0
      %v3285 = vsel %vm1482, %v3179, 0
      %v3288 = vsel %vm1482, %v3180, 0
      %v3291 = vsel %vm1482, %v3181, 0
      %v3294 = vsel %vm1482, %v3182, 0
      %v3297 = vsel %vm1482, %v3183, 0
      %v3300 = vsel %vm1482, %v3184, 0
      %v3303 = vsel %vm1482, %v3185, 0
      %v3306 = vsel %vm1482, %v3186, 0
      %v3309 = vsel %vm1482, %v3187, 0
      %v3312 = vsel %vm1482, %v3188, 0
      %v3315 = vsel %vm1482, %v3189, 0
      %v3318 = vsel %vm1482, %v3190, 0
      %v3321 = vsel %vm1482, %v3191, 0
      %v3324 = vsel %vm1482, %v3192, 0
      %v3327 = vsel %vm1482, %v3193, 0
      %v3330 = vsel %vm1482, %v3194, 0
      %v3333 = vsel %vm1482, %v3195, 0
      %v3336 = vsel %vm1482, %v3196, 0
      %v3339 = vsel %vm1482, %v3197, 0
      %v3342 = vsel %vm1482, %v3198, 0
      %v3345 = vsel %vm1482, %v3199, 0
      %v3348 = vsel %vm1482, %v3200, 0
      %v3351 = vsel %vm1482, %v3201, 0
      %v3354 = vsel %vm1482, %v3202, 0
      %v3357 = vsel %vm1482, %v3203, 0
      %v3360 = vsel %vm1482, %v3204, 0
      %v3363 = vsel %vm1482, %v3205, 0
      %v3366 = vsel %vm1482, %v3206, 0
      %v3369 = vsel %vm1482, %v3207, 0
      %v3372 = vsel %vm1482, %v3208, 0
      %v3375 = vsel %vm1482, %v3209, 0
      %v3378 = vsel %vm1482, %v3210, 0
      %v3381 = vsel %vm1482, %v3211, 0
      %v3384 = vsel %vm1482, %v3212, 0
      %v3387 = vsel %vm1482, %v3213, 0
      %v3390 = vsel %vm1482, %v3214, 0
      %v3393 = vsel %vm1482, %v3215, 0
      %v3396 = vsel %vm1482, %v3216, 0
      %v3399 = vsel %vm1482, %v3217, 0
      %v3402 = vsel %vm1482, %v3218, 0
      %v3405 = vsel %vm1482, %v3219, 0
      %v3408 = vsel %vm1482, %v3220, 0
      %v3411 = vsel %vm1482, %v3221, 0
      %v3414 = vsel %vm1482, %v3222, 0
      %v3417 = vsel %vm1482, %v3223, 0
      %v3420 = vsel %vm1482, %v3224, 0
      %v3423 = vsel %vm1482, %v3225, 0
      %v3426 = vsel %vm1482, %v3226, 0
      %v3429 = vsel %vm1482, %v3227, 0
      %v3432 = vsel %vm1482, %v3228, 0
      %v3435 = vsel %vm1482, %v3229, 0
      %v3438 = vsel %vm1482, %v3230, 0
      %v3441 = vsel %vm1482, %v3231, 0
      %v3444 = vsel %vm1482, %v3232, 0
      %v3447 = vsel %vm1482, %v3233, 0
      %3449 = vmatpush.msra.mxu0 0.0
      %3450 = vmatpush.msra.mxu0 0.0
      %3451 = vmatpush.msra.mxu0 0.0
      %3452 = vmatpush.msra.mxu0 0.0
      %3453 = vmatpush.msra.mxu0 0.0
      %3454 = vmatpush.msra.mxu0 0.0
      %3455 = vmatpush.msra.mxu0 0.0
      %3456 = vmatpush.msra.mxu0 0.0
      %3457 = vmatpush.msra.mxu0 0.0
      %3458 = vmatpush.msra.mxu0 0.0
      %3459 = vmatpush.msra.mxu0 0.0
      %3460 = vmatpush.msra.mxu0 0.0
      %3461 = vmatpush.msra.mxu0 %v3238
      %3462 = vmatpush.msra.mxu0 %v3237
      %3463 = vmatpush.msra.mxu0 %v3236
      %3464 = vmatpush.msra.mxu0 %v3235
      %3465 = vmatmul.f32.gmra.mxu0 %v3240
      %v3466 = vpop.f32.mrf.mxu0
      %v3467 = vadd.f32 0.0, %v3466
      %3468 = vmatmul.f32.gmra.mxu0 %v3243
      %v3469 = vpop.f32.mrf.mxu0
      %v3470 = vadd.f32 0.0, %v3469
      %3471 = vmatmul.f32.gmra.mxu0 %v3246
      %v3472 = vpop.f32.mrf.mxu0
      %v3473 = vadd.f32 0.0, %v3472
      %3474 = vmatmul.f32.gmra.mxu0 %v3249
      %v3475 = vpop.f32.mrf.mxu0
      %v3476 = vadd.f32 0.0, %v3475
      %3477 = vmatmul.f32.gmra.mxu0 %v3252
      %v3478 = vpop.f32.mrf.mxu0
      %v3479 = vadd.f32 0.0, %v3478
      %3480 = vmatmul.f32.gmra.mxu0 %v3255
      %v3481 = vpop.f32.mrf.mxu0
      %v3482 = vadd.f32 0.0, %v3481
      %3483 = vmatmul.f32.gmra.mxu0 %v3258
      %v3484 = vpop.f32.mrf.mxu0
      %v3485 = vadd.f32 0.0, %v3484
      %3486 = vmatmul.f32.gmra.mxu0 %v3261
      %v3487 = vpop.f32.mrf.mxu0
      %v3488 = vadd.f32 0.0, %v3487
      %3489 = vmatmul.f32.gmra.mxu0 %v3264
      %v3490 = vpop.f32.mrf.mxu0
      %v3491 = vadd.f32 0.0, %v3490
      %3492 = vmatmul.f32.gmra.mxu0 %v3267
      %v3493 = vpop.f32.mrf.mxu0
      %v3494 = vadd.f32 0.0, %v3493
      %3495 = vmatmul.f32.gmra.mxu0 %v3270
      %v3496 = vpop.f32.mrf.mxu0
      %v3497 = vadd.f32 0.0, %v3496
      %3498 = vmatmul.f32.gmra.mxu0 %v3273
      %v3499 = vpop.f32.mrf.mxu0
      %v3500 = vadd.f32 0.0, %v3499
      %3501 = vmatmul.f32.gmra.mxu0 %v3276
      %v3502 = vpop.f32.mrf.mxu0
      %v3503 = vadd.f32 0.0, %v3502
      %3504 = vmatmul.f32.gmra.mxu0 %v3279
      %v3505 = vpop.f32.mrf.mxu0
      %v3506 = vadd.f32 0.0, %v3505
      %3507 = vmatmul.f32.gmra.mxu0 %v3282
      %v3508 = vpop.f32.mrf.mxu0
      %v3509 = vadd.f32 0.0, %v3508
      %3510 = vmatmul.f32.gmra.mxu0 %v3285
      %v3511 = vpop.f32.mrf.mxu0
      %v3512 = vadd.f32 0.0, %v3511
      %3513 = vmatmul.f32.gmra.mxu0 %v3288
      %v3514 = vpop.f32.mrf.mxu0
      %v3515 = vadd.f32 0.0, %v3514
      %3516 = vmatmul.f32.gmra.mxu0 %v3291
      %v3517 = vpop.f32.mrf.mxu0
      %v3518 = vadd.f32 0.0, %v3517
      %3519 = vmatmul.f32.gmra.mxu0 %v3294
      %v3520 = vpop.f32.mrf.mxu0
      %v3521 = vadd.f32 0.0, %v3520
      %3522 = vmatmul.f32.gmra.mxu0 %v3297
      %v3523 = vpop.f32.mrf.mxu0
      %v3524 = vadd.f32 0.0, %v3523
      %3525 = vmatmul.f32.gmra.mxu0 %v3300
      %v3526 = vpop.f32.mrf.mxu0
      %v3527 = vadd.f32 0.0, %v3526
      %3528 = vmatmul.f32.gmra.mxu0 %v3303
      %v3529 = vpop.f32.mrf.mxu0
      %v3530 = vadd.f32 0.0, %v3529
      %3531 = vmatmul.f32.gmra.mxu0 %v3306
      %v3532 = vpop.f32.mrf.mxu0
      %v3533 = vadd.f32 0.0, %v3532
      %3534 = vmatmul.f32.gmra.mxu0 %v3309
      %v3535 = vpop.f32.mrf.mxu0
      %v3536 = vadd.f32 0.0, %v3535
      %3537 = vmatmul.f32.gmra.mxu0 %v3312
      %v3538 = vpop.f32.mrf.mxu0
      %v3539 = vadd.f32 0.0, %v3538
      %3540 = vmatmul.f32.gmra.mxu0 %v3315
      %v3541 = vpop.f32.mrf.mxu0
      %v3542 = vadd.f32 0.0, %v3541
      %3543 = vmatmul.f32.gmra.mxu0 %v3318
      %v3544 = vpop.f32.mrf.mxu0
      %v3545 = vadd.f32 0.0, %v3544
      %3546 = vmatmul.f32.gmra.mxu0 %v3321
      %v3547 = vpop.f32.mrf.mxu0
      %v3548 = vadd.f32 0.0, %v3547
      %3549 = vmatmul.f32.gmra.mxu0 %v3324
      %v3550 = vpop.f32.mrf.mxu0
      %v3551 = vadd.f32 0.0, %v3550
      %3552 = vmatmul.f32.gmra.mxu0 %v3327
      %v3553 = vpop.f32.mrf.mxu0
      %v3554 = vadd.f32 0.0, %v3553
      %3555 = vmatmul.f32.gmra.mxu0 %v3330
      %v3556 = vpop.f32.mrf.mxu0
      %v3557 = vadd.f32 0.0, %v3556
      %3558 = vmatmul.f32.gmra.mxu0 %v3333
      %v3559 = vpop.f32.mrf.mxu0
      %v3560 = vadd.f32 0.0, %v3559
      %3561 = vmatmul.f32.gmra.mxu0 %v3336
      %v3562 = vpop.f32.mrf.mxu0
      %v3563 = vadd.f32 0.0, %v3562
      %3564 = vmatmul.f32.gmra.mxu0 %v3339
      %v3565 = vpop.f32.mrf.mxu0
      %v3566 = vadd.f32 0.0, %v3565
      %3567 = vmatmul.f32.gmra.mxu0 %v3342
      %v3568 = vpop.f32.mrf.mxu0
      %v3569 = vadd.f32 0.0, %v3568
      %3570 = vmatmul.f32.gmra.mxu0 %v3345
      %v3571 = vpop.f32.mrf.mxu0
      %v3572 = vadd.f32 0.0, %v3571
      %3573 = vmatmul.f32.gmra.mxu0 %v3348
      %v3574 = vpop.f32.mrf.mxu0
      %v3575 = vadd.f32 0.0, %v3574
      %3576 = vmatmul.f32.gmra.mxu0 %v3351
      %v3577 = vpop.f32.mrf.mxu0
      %v3578 = vadd.f32 0.0, %v3577
      %3579 = vmatmul.f32.gmra.mxu0 %v3354
      %v3580 = vpop.f32.mrf.mxu0
      %v3581 = vadd.f32 0.0, %v3580
      %3582 = vmatmul.f32.gmra.mxu0 %v3357
      %v3583 = vpop.f32.mrf.mxu0
      %v3584 = vadd.f32 0.0, %v3583
      %3585 = vmatmul.f32.gmra.mxu0 %v3360
      %v3586 = vpop.f32.mrf.mxu0
      %v3587 = vadd.f32 0.0, %v3586
      %3588 = vmatmul.f32.gmra.mxu0 %v3363
      %v3589 = vpop.f32.mrf.mxu0
      %v3590 = vadd.f32 0.0, %v3589
      %3591 = vmatmul.f32.gmra.mxu0 %v3366
      %v3592 = vpop.f32.mrf.mxu0
      %v3593 = vadd.f32 0.0, %v3592
      %3594 = vmatmul.f32.gmra.mxu0 %v3369
      %v3595 = vpop.f32.mrf.mxu0
      %v3596 = vadd.f32 0.0, %v3595
      %3597 = vmatmul.f32.gmra.mxu0 %v3372
      %v3598 = vpop.f32.mrf.mxu0
      %v3599 = vadd.f32 0.0, %v3598
      %3600 = vmatmul.f32.gmra.mxu0 %v3375
      %v3601 = vpop.f32.mrf.mxu0
      %v3602 = vadd.f32 0.0, %v3601
      %3603 = vmatmul.f32.gmra.mxu0 %v3378
      %v3604 = vpop.f32.mrf.mxu0
      %v3605 = vadd.f32 0.0, %v3604
      %3606 = vmatmul.f32.gmra.mxu0 %v3381
      %v3607 = vpop.f32.mrf.mxu0
      %v3608 = vadd.f32 0.0, %v3607
      %3609 = vmatmul.f32.gmra.mxu0 %v3384
      %v3610 = vpop.f32.mrf.mxu0
      %v3611 = vadd.f32 0.0, %v3610
      %3612 = vmatmul.f32.gmra.mxu0 %v3387
      %v3613 = vpop.f32.mrf.mxu0
      %v3614 = vadd.f32 0.0, %v3613
      %3615 = vmatmul.f32.gmra.mxu0 %v3390
      %v3616 = vpop.f32.mrf.mxu0
      %v3617 = vadd.f32 0.0, %v3616
      %3618 = vmatmul.f32.gmra.mxu0 %v3393
      %v3619 = vpop.f32.mrf.mxu0
      %v3620 = vadd.f32 0.0, %v3619
      %3621 = vmatmul.f32.gmra.mxu0 %v3396
      %v3622 = vpop.f32.mrf.mxu0
      %v3623 = vadd.f32 0.0, %v3622
      %3624 = vmatmul.f32.gmra.mxu0 %v3399
      %v3625 = vpop.f32.mrf.mxu0
      %v3626 = vadd.f32 0.0, %v3625
      %3627 = vmatmul.f32.gmra.mxu0 %v3402
      %v3628 = vpop.f32.mrf.mxu0
      %v3629 = vadd.f32 0.0, %v3628
      %3630 = vmatmul.f32.gmra.mxu0 %v3405
      %v3631 = vpop.f32.mrf.mxu0
      %v3632 = vadd.f32 0.0, %v3631
      %3633 = vmatmul.f32.gmra.mxu0 %v3408
      %v3634 = vpop.f32.mrf.mxu0
      %v3635 = vadd.f32 0.0, %v3634
      %3636 = vmatmul.f32.gmra.mxu0 %v3411
      %v3637 = vpop.f32.mrf.mxu0
      %v3638 = vadd.f32 0.0, %v3637
      %3639 = vmatmul.f32.gmra.mxu0 %v3414
      %v3640 = vpop.f32.mrf.mxu0
      %v3641 = vadd.f32 0.0, %v3640
      %3642 = vmatmul.f32.gmra.mxu0 %v3417
      %v3643 = vpop.f32.mrf.mxu0
      %v3644 = vadd.f32 0.0, %v3643
      %3645 = vmatmul.f32.gmra.mxu0 %v3420
      %v3646 = vpop.f32.mrf.mxu0
      %v3647 = vadd.f32 0.0, %v3646
      %3648 = vmatmul.f32.gmra.mxu0 %v3423
      %v3649 = vpop.f32.mrf.mxu0
      %v3650 = vadd.f32 0.0, %v3649
      %3651 = vmatmul.f32.gmra.mxu0 %v3426
      %v3652 = vpop.f32.mrf.mxu0
      %v3653 = vadd.f32 0.0, %v3652
      %3654 = vmatmul.f32.gmra.mxu0 %v3429
      %v3655 = vpop.f32.mrf.mxu0
      %v3656 = vadd.f32 0.0, %v3655
      %3657 = vmatmul.f32.gmra.mxu0 %v3432
      %v3658 = vpop.f32.mrf.mxu0
      %v3659 = vadd.f32 0.0, %v3658
      %3660 = vmatmul.f32.gmra.mxu0 %v3435
      %v3661 = vpop.f32.mrf.mxu0
      %v3662 = vadd.f32 0.0, %v3661
      %3663 = vmatmul.f32.gmra.mxu0 %v3438
      %v3664 = vpop.f32.mrf.mxu0
      %v3665 = vadd.f32 0.0, %v3664
      %3666 = vmatmul.f32.gmra.mxu0 %v3441
      %v3667 = vpop.f32.mrf.mxu0
      %v3668 = vadd.f32 0.0, %v3667
      %3669 = vmatmul.f32.gmra.mxu0 %v3444
      %v3670 = vpop.f32.mrf.mxu0
      %v3671 = vadd.f32 0.0, %v3670
      %3672 = vmatmul.f32.gmra.mxu0 %v3447
      %v3673 = vpop.f32.mrf.mxu0
      %v3674 = vadd.f32 0.0, %v3673
      %3675 = vdwg.mxu0
      %v3676 = vadd.f32 %v3094, %v3467
      %v3677 = vadd.f32 %v3095, %v3470
      %v3678 = vadd.f32 %v3096, %v3473
      %v3679 = vadd.f32 %v3097, %v3476
      %v3680 = vadd.f32 %v3098, %v3479
      %v3681 = vadd.f32 %v3099, %v3482
      %v3682 = vadd.f32 %v3100, %v3485
      %v3683 = vadd.f32 %v3101, %v3488
      %v3684 = vadd.f32 %v3102, %v3491
      %v3685 = vadd.f32 %v3103, %v3494
      %v3686 = vadd.f32 %v3104, %v3497
      %v3687 = vadd.f32 %v3105, %v3500
      %v3688 = vadd.f32 %v3106, %v3503
      %v3689 = vadd.f32 %v3107, %v3506
      %v3690 = vadd.f32 %v3108, %v3509
      %v3691 = vadd.f32 %v3109, %v3512
      %v3692 = vadd.f32 %v3110, %v3515
      %v3693 = vadd.f32 %v3111, %v3518
      %v3694 = vadd.f32 %v3112, %v3521
      %v3695 = vadd.f32 %v3113, %v3524
      %v3696 = vadd.f32 %v3114, %v3527
      %v3697 = vadd.f32 %v3115, %v3530
      %v3698 = vadd.f32 %v3116, %v3533
      %v3699 = vadd.f32 %v3117, %v3536
      %v3700 = vadd.f32 %v3118, %v3539
      %v3701 = vadd.f32 %v3119, %v3542
      %v3702 = vadd.f32 %v3120, %v3545
      %v3703 = vadd.f32 %v3121, %v3548
      %v3704 = vadd.f32 %v3122, %v3551
      %v3705 = vadd.f32 %v3123, %v3554
      %v3706 = vadd.f32 %v3124, %v3557
      %v3707 = vadd.f32 %v3125, %v3560
      %v3708 = vadd.f32 %v3126, %v3563
      %v3709 = vadd.f32 %v3127, %v3566
      %v3710 = vadd.f32 %v3128, %v3569
      %v3711 = vadd.f32 %v3129, %v3572
      %v3712 = vadd.f32 %v3130, %v3575
      %v3713 = vadd.f32 %v3131, %v3578
      %v3714 = vadd.f32 %v3132, %v3581
      %v3715 = vadd.f32 %v3133, %v3584
      %v3716 = vadd.f32 %v3134, %v3587
      %v3717 = vadd.f32 %v3135, %v3590
      %v3718 = vadd.f32 %v3136, %v3593
      %v3719 = vadd.f32 %v3137, %v3596
      %v3720 = vadd.f32 %v3138, %v3599
      %v3721 = vadd.f32 %v3139, %v3602
      %v3722 = vadd.f32 %v3140, %v3605
      %v3723 = vadd.f32 %v3141, %v3608
      %v3724 = vadd.f32 %v3142, %v3611
      %v3725 = vadd.f32 %v3143, %v3614
      %v3726 = vadd.f32 %v3144, %v3617
      %v3727 = vadd.f32 %v3145, %v3620
      %v3728 = vadd.f32 %v3146, %v3623
      %v3729 = vadd.f32 %v3147, %v3626
      %v3730 = vadd.f32 %v3148, %v3629
      %v3731 = vadd.f32 %v3149, %v3632
      %v3732 = vadd.f32 %v3150, %v3635
      %v3733 = vadd.f32 %v3151, %v3638
      %v3734 = vadd.f32 %v3152, %v3641
      %v3735 = vadd.f32 %v3153, %v3644
      %v3736 = vadd.f32 %v3154, %v3647
      %v3737 = vadd.f32 %v3155, %v3650
      %v3738 = vadd.f32 %v3156, %v3653
      %v3739 = vadd.f32 %v3157, %v3656
      %v3740 = vadd.f32 %v3158, %v3659
      %v3741 = vadd.f32 %v3159, %v3662
      %v3742 = vadd.f32 %v3160, %v3665
      %v3743 = vadd.f32 %v3161, %v3668
      %v3744 = vadd.f32 %v3162, %v3671
      %v3745 = vadd.f32 %v3163, %v3674
      %v3746 = vld [vmem:[#allocation2 + $0x18] sm:$0xff]
      %v3747 = vld [vmem:[#allocation2 + $0x20] sm:$0xff]
      %v3748 = vld [vmem:[#allocation2 + $0x28] sm:$0xff]
      %v3749 = vld [vmem:[#allocation2 + $0x30] sm:$0xff]
      %v3750 = vld [vmem:[#allocation2 + $0x38] sm:$0xff]
      %v3751 = vld [vmem:[#allocation2 + $0x40] sm:$0xff]
      %v3752 = vld [vmem:[#allocation2 + $0x48] sm:$0xff]
      %v3753 = vld [vmem:[#allocation2 + $0x50] sm:$0xff]
      %v3754 = vld [vmem:[#allocation2 + $0x58] sm:$0xff]
      %v3755 = vld [vmem:[#allocation2 + $0x60] sm:$0xff]
      %v3756 = vld [vmem:[#allocation2 + $0x68] sm:$0xff]
      %v3757 = vld [vmem:[#allocation2 + $0x70] sm:$0xff]
      %v3758 = vld [vmem:[#allocation2 + $0x78] sm:$0xff]
      %v3759 = vld [vmem:[#allocation2 + $0x80] sm:$0xff]
      %v3760 = vld [vmem:[#allocation2 + $0x88] sm:$0xff]
      %v3761 = vld [vmem:[#allocation2 + $0x90] sm:$0xff]
      %v3762 = vld [vmem:[#allocation2 + $0x98] sm:$0xff]
      %v3763 = vld [vmem:[#allocation2 + $0xa0] sm:$0xff]
      %v3764 = vld [vmem:[#allocation2 + $0xa8] sm:$0xff]
      %v3765 = vld [vmem:[#allocation2 + $0xb0] sm:$0xff]
      %v3766 = vld [vmem:[#allocation2 + $0xb8] sm:$0xff]
      %v3767 = vld [vmem:[#allocation2 + $0xc0] sm:$0xff]
      %v3768 = vld [vmem:[#allocation2 + $0xc8] sm:$0xff]
      %v3769 = vld [vmem:[#allocation2 + $0xd0] sm:$0xff]
      %v3770 = vld [vmem:[#allocation2 + $0xd8] sm:$0xff]
      %v3771 = vld [vmem:[#allocation2 + $0xe0] sm:$0xff]
      %v3772 = vld [vmem:[#allocation2 + $0xe8] sm:$0xff]
      %v3773 = vld [vmem:[#allocation2 + $0xf0] sm:$0xff]
      %v3774 = vld [vmem:[#allocation2 + $0xf8] sm:$0xff]
      %v3775 = vld [vmem:[#allocation2 + $0x100] sm:$0xff]
      %v3776 = vld [vmem:[#allocation2 + $0x108] sm:$0xff]
      %v3777 = vld [vmem:[#allocation2 + $0x110] sm:$0xff]
      %v3778 = vld [vmem:[#allocation2 + $0x118] sm:$0xff]
      %v3779 = vld [vmem:[#allocation2 + $0x120] sm:$0xff]
      %v3780 = vld [vmem:[#allocation2 + $0x128] sm:$0xff]
      %v3781 = vld [vmem:[#allocation2 + $0x130] sm:$0xff]
      %v3782 = vld [vmem:[#allocation2 + $0x138] sm:$0xff]
      %v3783 = vld [vmem:[#allocation2 + $0x140] sm:$0xff]
      %v3784 = vld [vmem:[#allocation2 + $0x148] sm:$0xff]
      %v3785 = vld [vmem:[#allocation2 + $0x150] sm:$0xff]
      %v3786 = vld [vmem:[#allocation2 + $0x158] sm:$0xff]
      %v3787 = vld [vmem:[#allocation2 + $0x160] sm:$0xff]
      %v3788 = vld [vmem:[#allocation2 + $0x168] sm:$0xff]
      %v3789 = vld [vmem:[#allocation2 + $0x170] sm:$0xff]
      %v3790 = vld [vmem:[#allocation2 + $0x178] sm:$0xff]
      %v3791 = vld [vmem:[#allocation2 + $0x180] sm:$0xff]
      %v3792 = vld [vmem:[#allocation2 + $0x188] sm:$0xff]
      %v3793 = vld [vmem:[#allocation2 + $0x190] sm:$0xff]
      %v3794 = vld [vmem:[#allocation2 + $0x198] sm:$0xff]
      %v3795 = vld [vmem:[#allocation2 + $0x1a0] sm:$0xff]
      %v3796 = vld [vmem:[#allocation2 + $0x1a8] sm:$0xff]
      %v3797 = vld [vmem:[#allocation2 + $0x1b0] sm:$0xff]
      %v3798 = vld [vmem:[#allocation2 + $0x1b8] sm:$0xff]
      %v3799 = vld [vmem:[#allocation2 + $0x1c0] sm:$0xff]
      %v3800 = vld [vmem:[#allocation2 + $0x1c8] sm:$0xff]
      %v3801 = vld [vmem:[#allocation2 + $0x1d0] sm:$0xff]
      %v3802 = vld [vmem:[#allocation2 + $0x1d8] sm:$0xff]
      %v3803 = vld [vmem:[#allocation2 + $0x1e0] sm:$0xff]
      %v3804 = vld [vmem:[#allocation2 + $0x1e8] sm:$0xff]
      %v3805 = vld [vmem:[#allocation2 + $0x1f0] sm:$0xff]
      %v3806 = vld [vmem:[#allocation2 + $0x1f8] sm:$0xff]
      %v3807 = vld [vmem:[#allocation2 + $0x200] sm:$0xff]
      %v3808 = vld [vmem:[#allocation2 + $0x208] sm:$0xff]
      %v3809 = vld [vmem:[#allocation2 + $0x210] sm:$0xff]
      %v3810 = vld [vmem:[#allocation2 + $0x218] sm:$0xff]
      %v3811 = vld [vmem:[#allocation2 + $0x220] sm:$0xff]
      %v3812 = vld [vmem:[#allocation2 + $0x228] sm:$0xff]
      %v3813 = vld [vmem:[#allocation2 + $0x230] sm:$0xff]
      %v3814 = vld [vmem:[#allocation2 + $0x238] sm:$0xff]
      %v3815 = vld [vmem:[#allocation2 + $0x240] sm:$0xff]
      %s3816 = scalar_lea.vmem %s3, 128
      %v3817 = vld [vmem:[%s3816] sm:$0xff]
      %v3818 = vld [vmem:[%s3816 + $0x8] sm:$0xff]
      %v3819 = vld [vmem:[%s3816 + $0x10] sm:$0xff]
      %v3820 = vld [vmem:[%s3816 + $0x18] sm:$0xff]
      %v3822 = vsel %vm1482, %v3746, 0
      %v3825 = vsel %vm1482, %v3747, 0
      %v3828 = vsel %vm1482, %v3748, 0
      %v3831 = vsel %vm1482, %v3749, 0
      %v3834 = vsel %vm1482, %v3750, 0
      %v3837 = vsel %vm1482, %v3751, 0
      %v3840 = vsel %vm1482, %v3752, 0
      %v3843 = vsel %vm1482, %v3753, 0
      %v3846 = vsel %vm1482, %v3754, 0
      %v3849 = vsel %vm1482, %v3755, 0
      %v3852 = vsel %vm1482, %v3756, 0
      %v3855 = vsel %vm1482, %v3757, 0
      %v3858 = vsel %vm1482, %v3758, 0
      %v3861 = vsel %vm1482, %v3759, 0
      %v3864 = vsel %vm1482, %v3760, 0
      %v3867 = vsel %vm1482, %v3761, 0
      %v3870 = vsel %vm1482, %v3762, 0
      %v3873 = vsel %vm1482, %v3763, 0
      %v3876 = vsel %vm1482, %v3764, 0
      %v3879 = vsel %vm1482, %v3765, 0
      %v3882 = vsel %vm1482, %v3766, 0
      %v3885 = vsel %vm1482, %v3767, 0
      %v3888 = vsel %vm1482, %v3768, 0
      %v3891 = vsel %vm1482, %v3769, 0
      %v3894 = vsel %vm1482, %v3770, 0
      %v3897 = vsel %vm1482, %v3771, 0
      %v3900 = vsel %vm1482, %v3772, 0
      %v3903 = vsel %vm1482, %v3773, 0
      %v3906 = vsel %vm1482, %v3774, 0
      %v3909 = vsel %vm1482, %v3775, 0
      %v3912 = vsel %vm1482, %v3776, 0
      %v3915 = vsel %vm1482, %v3777, 0
      %v3918 = vsel %vm1482, %v3778, 0
      %v3921 = vsel %vm1482, %v3779, 0
      %v3924 = vsel %vm1482, %v3780, 0
      %v3927 = vsel %vm1482, %v3781, 0
      %v3930 = vsel %vm1482, %v3782, 0
      %v3933 = vsel %vm1482, %v3783, 0
      %v3936 = vsel %vm1482, %v3784, 0
      %v3939 = vsel %vm1482, %v3785, 0
      %v3942 = vsel %vm1482, %v3786, 0
      %v3945 = vsel %vm1482, %v3787, 0
      %v3948 = vsel %vm1482, %v3788, 0
      %v3951 = vsel %vm1482, %v3789, 0
      %v3954 = vsel %vm1482, %v3790, 0
      %v3957 = vsel %vm1482, %v3791, 0
      %v3960 = vsel %vm1482, %v3792, 0
      %v3963 = vsel %vm1482, %v3793, 0
      %v3966 = vsel %vm1482, %v3794, 0
      %v3969 = vsel %vm1482, %v3795, 0
      %v3972 = vsel %vm1482, %v3796, 0
      %v3975 = vsel %vm1482, %v3797, 0
      %v3978 = vsel %vm1482, %v3798, 0
      %v3981 = vsel %vm1482, %v3799, 0
      %v3984 = vsel %vm1482, %v3800, 0
      %v3987 = vsel %vm1482, %v3801, 0
      %v3990 = vsel %vm1482, %v3802, 0
      %v3993 = vsel %vm1482, %v3803, 0
      %v3996 = vsel %vm1482, %v3804, 0
      %v3999 = vsel %vm1482, %v3805, 0
      %v4002 = vsel %vm1482, %v3806, 0
      %v4005 = vsel %vm1482, %v3807, 0
      %v4008 = vsel %vm1482, %v3808, 0
      %v4011 = vsel %vm1482, %v3809, 0
      %v4014 = vsel %vm1482, %v3810, 0
      %v4017 = vsel %vm1482, %v3811, 0
      %v4020 = vsel %vm1482, %v3812, 0
      %v4023 = vsel %vm1482, %v3813, 0
      %v4026 = vsel %vm1482, %v3814, 0
      %v4029 = vsel %vm1482, %v3815, 0
      %4031 = vmatpush.msra.mxu0 0.0
      %4032 = vmatpush.msra.mxu0 0.0
      %4033 = vmatpush.msra.mxu0 0.0
      %4034 = vmatpush.msra.mxu0 0.0
      %4035 = vmatpush.msra.mxu0 0.0
      %4036 = vmatpush.msra.mxu0 0.0
      %4037 = vmatpush.msra.mxu0 0.0
      %4038 = vmatpush.msra.mxu0 0.0
      %4039 = vmatpush.msra.mxu0 0.0
      %4040 = vmatpush.msra.mxu0 0.0
      %4041 = vmatpush.msra.mxu0 0.0
      %4042 = vmatpush.msra.mxu0 0.0
      %4043 = vmatpush.msra.mxu0 %v3820
      %4044 = vmatpush.msra.mxu0 %v3819
      %4045 = vmatpush.msra.mxu0 %v3818
      %4046 = vmatpush.msra.mxu0 %v3817
      %4047 = vmatmul.f32.gmra.mxu0 %v3822
      %v4048 = vpop.f32.mrf.mxu0
      %v4049 = vadd.f32 0.0, %v4048
      %4050 = vmatmul.f32.gmra.mxu0 %v3825
      %v4051 = vpop.f32.mrf.mxu0
      %v4052 = vadd.f32 0.0, %v4051
      %4053 = vmatmul.f32.gmra.mxu0 %v3828
      %v4054 = vpop.f32.mrf.mxu0
      %v4055 = vadd.f32 0.0, %v4054
      %4056 = vmatmul.f32.gmra.mxu0 %v3831
      %v4057 = vpop.f32.mrf.mxu0
      %v4058 = vadd.f32 0.0, %v4057
      %4059 = vmatmul.f32.gmra.mxu0 %v3834
      %v4060 = vpop.f32.mrf.mxu0
      %v4061 = vadd.f32 0.0, %v4060
      %4062 = vmatmul.f32.gmra.mxu0 %v3837
      %v4063 = vpop.f32.mrf.mxu0
      %v4064 = vadd.f32 0.0, %v4063
      %4065 = vmatmul.f32.gmra.mxu0 %v3840
      %v4066 = vpop.f32.mrf.mxu0
      %v4067 = vadd.f32 0.0, %v4066
      %4068 = vmatmul.f32.gmra.mxu0 %v3843
      %v4069 = vpop.f32.mrf.mxu0
      %v4070 = vadd.f32 0.0, %v4069
      %4071 = vmatmul.f32.gmra.mxu0 %v3846
      %v4072 = vpop.f32.mrf.mxu0
      %v4073 = vadd.f32 0.0, %v4072
      %4074 = vmatmul.f32.gmra.mxu0 %v3849
      %v4075 = vpop.f32.mrf.mxu0
      %v4076 = vadd.f32 0.0, %v4075
      %4077 = vmatmul.f32.gmra.mxu0 %v3852
      %v4078 = vpop.f32.mrf.mxu0
      %v4079 = vadd.f32 0.0, %v4078
      %4080 = vmatmul.f32.gmra.mxu0 %v3855
      %v4081 = vpop.f32.mrf.mxu0
      %v4082 = vadd.f32 0.0, %v4081
      %4083 = vmatmul.f32.gmra.mxu0 %v3858
      %v4084 = vpop.f32.mrf.mxu0
      %v4085 = vadd.f32 0.0, %v4084
      %4086 = vmatmul.f32.gmra.mxu0 %v3861
      %v4087 = vpop.f32.mrf.mxu0
      %v4088 = vadd.f32 0.0, %v4087
      %4089 = vmatmul.f32.gmra.mxu0 %v3864
      %v4090 = vpop.f32.mrf.mxu0
      %v4091 = vadd.f32 0.0, %v4090
      %4092 = vmatmul.f32.gmra.mxu0 %v3867
      %v4093 = vpop.f32.mrf.mxu0
      %v4094 = vadd.f32 0.0, %v4093
      %4095 = vmatmul.f32.gmra.mxu0 %v3870
      %v4096 = vpop.f32.mrf.mxu0
      %v4097 = vadd.f32 0.0, %v4096
      %4098 = vmatmul.f32.gmra.mxu0 %v3873
      %v4099 = vpop.f32.mrf.mxu0
      %v4100 = vadd.f32 0.0, %v4099
      %4101 = vmatmul.f32.gmra.mxu0 %v3876
      %v4102 = vpop.f32.mrf.mxu0
      %v4103 = vadd.f32 0.0, %v4102
      %4104 = vmatmul.f32.gmra.mxu0 %v3879
      %v4105 = vpop.f32.mrf.mxu0
      %v4106 = vadd.f32 0.0, %v4105
      %4107 = vmatmul.f32.gmra.mxu0 %v3882
      %v4108 = vpop.f32.mrf.mxu0
      %v4109 = vadd.f32 0.0, %v4108
      %4110 = vmatmul.f32.gmra.mxu0 %v3885
      %v4111 = vpop.f32.mrf.mxu0
      %v4112 = vadd.f32 0.0, %v4111
      %4113 = vmatmul.f32.gmra.mxu0 %v3888
      %v4114 = vpop.f32.mrf.mxu0
      %v4115 = vadd.f32 0.0, %v4114
      %4116 = vmatmul.f32.gmra.mxu0 %v3891
      %v4117 = vpop.f32.mrf.mxu0
      %v4118 = vadd.f32 0.0, %v4117
      %4119 = vmatmul.f32.gmra.mxu0 %v3894
      %v4120 = vpop.f32.mrf.mxu0
      %v4121 = vadd.f32 0.0, %v4120
      %4122 = vmatmul.f32.gmra.mxu0 %v3897
      %v4123 = vpop.f32.mrf.mxu0
      %v4124 = vadd.f32 0.0, %v4123
      %4125 = vmatmul.f32.gmra.mxu0 %v3900
      %v4126 = vpop.f32.mrf.mxu0
      %v4127 = vadd.f32 0.0, %v4126
      %4128 = vmatmul.f32.gmra.mxu0 %v3903
      %v4129 = vpop.f32.mrf.mxu0
      %v4130 = vadd.f32 0.0, %v4129
      %4131 = vmatmul.f32.gmra.mxu0 %v3906
      %v4132 = vpop.f32.mrf.mxu0
      %v4133 = vadd.f32 0.0, %v4132
      %4134 = vmatmul.f32.gmra.mxu0 %v3909
      %v4135 = vpop.f32.mrf.mxu0
      %v4136 = vadd.f32 0.0, %v4135
      %4137 = vmatmul.f32.gmra.mxu0 %v3912
      %v4138 = vpop.f32.mrf.mxu0
      %v4139 = vadd.f32 0.0, %v4138
      %4140 = vmatmul.f32.gmra.mxu0 %v3915
      %v4141 = vpop.f32.mrf.mxu0
      %v4142 = vadd.f32 0.0, %v4141
      %4143 = vmatmul.f32.gmra.mxu0 %v3918
      %v4144 = vpop.f32.mrf.mxu0
      %v4145 = vadd.f32 0.0, %v4144
      %4146 = vmatmul.f32.gmra.mxu0 %v3921
      %v4147 = vpop.f32.mrf.mxu0
      %v4148 = vadd.f32 0.0, %v4147
      %4149 = vmatmul.f32.gmra.mxu0 %v3924
      %v4150 = vpop.f32.mrf.mxu0
      %v4151 = vadd.f32 0.0, %v4150
      %4152 = vmatmul.f32.gmra.mxu0 %v3927
      %v4153 = vpop.f32.mrf.mxu0
      %v4154 = vadd.f32 0.0, %v4153
      %4155 = vmatmul.f32.gmra.mxu0 %v3930
      %v4156 = vpop.f32.mrf.mxu0
      %v4157 = vadd.f32 0.0, %v4156
      %4158 = vmatmul.f32.gmra.mxu0 %v3933
      %v4159 = vpop.f32.mrf.mxu0
      %v4160 = vadd.f32 0.0, %v4159
      %4161 = vmatmul.f32.gmra.mxu0 %v3936
      %v4162 = vpop.f32.mrf.mxu0
      %v4163 = vadd.f32 0.0, %v4162
      %4164 = vmatmul.f32.gmra.mxu0 %v3939
      %v4165 = vpop.f32.mrf.mxu0
      %v4166 = vadd.f32 0.0, %v4165
      %4167 = vmatmul.f32.gmra.mxu0 %v3942
      %v4168 = vpop.f32.mrf.mxu0
      %v4169 = vadd.f32 0.0, %v4168
      %4170 = vmatmul.f32.gmra.mxu0 %v3945
      %v4171 = vpop.f32.mrf.mxu0
      %v4172 = vadd.f32 0.0, %v4171
      %4173 = vmatmul.f32.gmra.mxu0 %v3948
      %v4174 = vpop.f32.mrf.mxu0
      %v4175 = vadd.f32 0.0, %v4174
      %4176 = vmatmul.f32.gmra.mxu0 %v3951
      %v4177 = vpop.f32.mrf.mxu0
      %v4178 = vadd.f32 0.0, %v4177
      %4179 = vmatmul.f32.gmra.mxu0 %v3954
      %v4180 = vpop.f32.mrf.mxu0
      %v4181 = vadd.f32 0.0, %v4180
      %4182 = vmatmul.f32.gmra.mxu0 %v3957
      %v4183 = vpop.f32.mrf.mxu0
      %v4184 = vadd.f32 0.0, %v4183
      %4185 = vmatmul.f32.gmra.mxu0 %v3960
      %v4186 = vpop.f32.mrf.mxu0
      %v4187 = vadd.f32 0.0, %v4186
      %4188 = vmatmul.f32.gmra.mxu0 %v3963
      %v4189 = vpop.f32.mrf.mxu0
      %v4190 = vadd.f32 0.0, %v4189
      %4191 = vmatmul.f32.gmra.mxu0 %v3966
      %v4192 = vpop.f32.mrf.mxu0
      %v4193 = vadd.f32 0.0, %v4192
      %4194 = vmatmul.f32.gmra.mxu0 %v3969
      %v4195 = vpop.f32.mrf.mxu0
      %v4196 = vadd.f32 0.0, %v4195
      %4197 = vmatmul.f32.gmra.mxu0 %v3972
      %v4198 = vpop.f32.mrf.mxu0
      %v4199 = vadd.f32 0.0, %v4198
      %4200 = vmatmul.f32.gmra.mxu0 %v3975
      %v4201 = vpop.f32.mrf.mxu0
      %v4202 = vadd.f32 0.0, %v4201
      %4203 = vmatmul.f32.gmra.mxu0 %v3978
      %v4204 = vpop.f32.mrf.mxu0
      %v4205 = vadd.f32 0.0, %v4204
      %4206 = vmatmul.f32.gmra.mxu0 %v3981
      %v4207 = vpop.f32.mrf.mxu0
      %v4208 = vadd.f32 0.0, %v4207
      %4209 = vmatmul.f32.gmra.mxu0 %v3984
      %v4210 = vpop.f32.mrf.mxu0
      %v4211 = vadd.f32 0.0, %v4210
      %4212 = vmatmul.f32.gmra.mxu0 %v3987
      %v4213 = vpop.f32.mrf.mxu0
      %v4214 = vadd.f32 0.0, %v4213
      %4215 = vmatmul.f32.gmra.mxu0 %v3990
      %v4216 = vpop.f32.mrf.mxu0
      %v4217 = vadd.f32 0.0, %v4216
      %4218 = vmatmul.f32.gmra.mxu0 %v3993
      %v4219 = vpop.f32.mrf.mxu0
      %v4220 = vadd.f32 0.0, %v4219
      %4221 = vmatmul.f32.gmra.mxu0 %v3996
      %v4222 = vpop.f32.mrf.mxu0
      %v4223 = vadd.f32 0.0, %v4222
      %4224 = vmatmul.f32.gmra.mxu0 %v3999
      %v4225 = vpop.f32.mrf.mxu0
      %v4226 = vadd.f32 0.0, %v4225
      %4227 = vmatmul.f32.gmra.mxu0 %v4002
      %v4228 = vpop.f32.mrf.mxu0
      %v4229 = vadd.f32 0.0, %v4228
      %4230 = vmatmul.f32.gmra.mxu0 %v4005
      %v4231 = vpop.f32.mrf.mxu0
      %v4232 = vadd.f32 0.0, %v4231
      %4233 = vmatmul.f32.gmra.mxu0 %v4008
      %v4234 = vpop.f32.mrf.mxu0
      %v4235 = vadd.f32 0.0, %v4234
      %4236 = vmatmul.f32.gmra.mxu0 %v4011
      %v4237 = vpop.f32.mrf.mxu0
      %v4238 = vadd.f32 0.0, %v4237
      %4239 = vmatmul.f32.gmra.mxu0 %v4014
      %v4240 = vpop.f32.mrf.mxu0
      %v4241 = vadd.f32 0.0, %v4240
      %4242 = vmatmul.f32.gmra.mxu0 %v4017
      %v4243 = vpop.f32.mrf.mxu0
      %v4244 = vadd.f32 0.0, %v4243
      %4245 = vmatmul.f32.gmra.mxu0 %v4020
      %v4246 = vpop.f32.mrf.mxu0
      %v4247 = vadd.f32 0.0, %v4246
      %4248 = vmatmul.f32.gmra.mxu0 %v4023
      %v4249 = vpop.f32.mrf.mxu0
      %v4250 = vadd.f32 0.0, %v4249
      %4251 = vmatmul.f32.gmra.mxu0 %v4026
      %v4252 = vpop.f32.mrf.mxu0
      %v4253 = vadd.f32 0.0, %v4252
      %4254 = vmatmul.f32.gmra.mxu0 %v4029
      %v4255 = vpop.f32.mrf.mxu0
      %v4256 = vadd.f32 0.0, %v4255
      %4257 = vdwg.mxu0
      %v4258 = vadd.f32 %v3676, %v4049
      %v4259 = vadd.f32 %v3677, %v4052
      %v4260 = vadd.f32 %v3678, %v4055
      %v4261 = vadd.f32 %v3679, %v4058
      %v4262 = vadd.f32 %v3680, %v4061
      %v4263 = vadd.f32 %v3681, %v4064
      %v4264 = vadd.f32 %v3682, %v4067
      %v4265 = vadd.f32 %v3683, %v4070
      %v4266 = vadd.f32 %v3684, %v4073
      %v4267 = vadd.f32 %v3685, %v4076
      %v4268 = vadd.f32 %v3686, %v4079
      %v4269 = vadd.f32 %v3687, %v4082
      %v4270 = vadd.f32 %v3688, %v4085
      %v4271 = vadd.f32 %v3689, %v4088
      %v4272 = vadd.f32 %v3690, %v4091
      %v4273 = vadd.f32 %v3691, %v4094
      %v4274 = vadd.f32 %v3692, %v4097
      %v4275 = vadd.f32 %v3693, %v4100
      %v4276 = vadd.f32 %v3694, %v4103
      %v4277 = vadd.f32 %v3695, %v4106
      %v4278 = vadd.f32 %v3696, %v4109
      %v4279 = vadd.f32 %v3697, %v4112
      %v4280 = vadd.f32 %v3698, %v4115
      %v4281 = vadd.f32 %v3699, %v4118
      %v4282 = vadd.f32 %v3700, %v4121
      %v4283 = vadd.f32 %v3701, %v4124
      %v4284 = vadd.f32 %v3702, %v4127
      %v4285 = vadd.f32 %v3703, %v4130
      %v4286 = vadd.f32 %v3704, %v4133
      %v4287 = vadd.f32 %v3705, %v4136
      %v4288 = vadd.f32 %v3706, %v4139
      %v4289 = vadd.f32 %v3707, %v4142
      %v4290 = vadd.f32 %v3708, %v4145
      %v4291 = vadd.f32 %v3709, %v4148
      %v4292 = vadd.f32 %v3710, %v4151
      %v4293 = vadd.f32 %v3711, %v4154
      %v4294 = vadd.f32 %v3712, %v4157
      %v4295 = vadd.f32 %v3713, %v4160
      %v4296 = vadd.f32 %v3714, %v4163
      %v4297 = vadd.f32 %v3715, %v4166
      %v4298 = vadd.f32 %v3716, %v4169
      %v4299 = vadd.f32 %v3717, %v4172
      %v4300 = vadd.f32 %v3718, %v4175
      %v4301 = vadd.f32 %v3719, %v4178
      %v4302 = vadd.f32 %v3720, %v4181
      %v4303 = vadd.f32 %v3721, %v4184
      %v4304 = vadd.f32 %v3722, %v4187
      %v4305 = vadd.f32 %v3723, %v4190
      %v4306 = vadd.f32 %v3724, %v4193
      %v4307 = vadd.f32 %v3725, %v4196
      %v4308 = vadd.f32 %v3726, %v4199
      %v4309 = vadd.f32 %v3727, %v4202
      %v4310 = vadd.f32 %v3728, %v4205
      %v4311 = vadd.f32 %v3729, %v4208
      %v4312 = vadd.f32 %v3730, %v4211
      %v4313 = vadd.f32 %v3731, %v4214
      %v4314 = vadd.f32 %v3732, %v4217
      %v4315 = vadd.f32 %v3733, %v4220
      %v4316 = vadd.f32 %v3734, %v4223
      %v4317 = vadd.f32 %v3735, %v4226
      %v4318 = vadd.f32 %v3736, %v4229
      %v4319 = vadd.f32 %v3737, %v4232
      %v4320 = vadd.f32 %v3738, %v4235
      %v4321 = vadd.f32 %v3739, %v4238
      %v4322 = vadd.f32 %v3740, %v4241
      %v4323 = vadd.f32 %v3741, %v4244
      %v4324 = vadd.f32 %v3742, %v4247
      %v4325 = vadd.f32 %v3743, %v4250
      %v4326 = vadd.f32 %v3744, %v4253
      %v4327 = vadd.f32 %v3745, %v4256
      %v4328 = vld [vmem:[#allocation2 + $0x19] sm:$0xff]
      %v4329 = vld [vmem:[#allocation2 + $0x21] sm:$0xff]
      %v4330 = vld [vmem:[#allocation2 + $0x29] sm:$0xff]
      %v4331 = vld [vmem:[#allocation2 + $0x31] sm:$0xff]
      %v4332 = vld [vmem:[#allocation2 + $0x39] sm:$0xff]
      %v4333 = vld [vmem:[#allocation2 + $0x41] sm:$0xff]
      %v4334 = vld [vmem:[#allocation2 + $0x49] sm:$0xff]
      %v4335 = vld [vmem:[#allocation2 + $0x51] sm:$0xff]
      %v4336 = vld [vmem:[#allocation2 + $0x59] sm:$0xff]
      %v4337 = vld [vmem:[#allocation2 + $0x61] sm:$0xff]
      %v4338 = vld [vmem:[#allocation2 + $0x69] sm:$0xff]
      %v4339 = vld [vmem:[#allocation2 + $0x71] sm:$0xff]
      %v4340 = vld [vmem:[#allocation2 + $0x79] sm:$0xff]
      %v4341 = vld [vmem:[#allocation2 + $0x81] sm:$0xff]
      %v4342 = vld [vmem:[#allocation2 + $0x89] sm:$0xff]
      %v4343 = vld [vmem:[#allocation2 + $0x91] sm:$0xff]
      %v4344 = vld [vmem:[#allocation2 + $0x99] sm:$0xff]
      %v4345 = vld [vmem:[#allocation2 + $0xa1] sm:$0xff]
      %v4346 = vld [vmem:[#allocation2 + $0xa9] sm:$0xff]
      %v4347 = vld [vmem:[#allocation2 + $0xb1] sm:$0xff]
      %v4348 = vld [vmem:[#allocation2 + $0xb9] sm:$0xff]
      %v4349 = vld [vmem:[#allocation2 + $0xc1] sm:$0xff]
      %v4350 = vld [vmem:[#allocation2 + $0xc9] sm:$0xff]
      %v4351 = vld [vmem:[#allocation2 + $0xd1] sm:$0xff]
      %v4352 = vld [vmem:[#allocation2 + $0xd9] sm:$0xff]
      %v4353 = vld [vmem:[#allocation2 + $0xe1] sm:$0xff]
      %v4354 = vld [vmem:[#allocation2 + $0xe9] sm:$0xff]
      %v4355 = vld [vmem:[#allocation2 + $0xf1] sm:$0xff]
      %v4356 = vld [vmem:[#allocation2 + $0xf9] sm:$0xff]
      %v4357 = vld [vmem:[#allocation2 + $0x101] sm:$0xff]
      %v4358 = vld [vmem:[#allocation2 + $0x109] sm:$0xff]
      %v4359 = vld [vmem:[#allocation2 + $0x111] sm:$0xff]
      %v4360 = vld [vmem:[#allocation2 + $0x119] sm:$0xff]
      %v4361 = vld [vmem:[#allocation2 + $0x121] sm:$0xff]
      %v4362 = vld [vmem:[#allocation2 + $0x129] sm:$0xff]
      %v4363 = vld [vmem:[#allocation2 + $0x131] sm:$0xff]
      %v4364 = vld [vmem:[#allocation2 + $0x139] sm:$0xff]
      %v4365 = vld [vmem:[#allocation2 + $0x141] sm:$0xff]
      %v4366 = vld [vmem:[#allocation2 + $0x149] sm:$0xff]
      %v4367 = vld [vmem:[#allocation2 + $0x151] sm:$0xff]
      %v4368 = vld [vmem:[#allocation2 + $0x159] sm:$0xff]
      %v4369 = vld [vmem:[#allocation2 + $0x161] sm:$0xff]
      %v4370 = vld [vmem:[#allocation2 + $0x169] sm:$0xff]
      %v4371 = vld [vmem:[#allocation2 + $0x171] sm:$0xff]
      %v4372 = vld [vmem:[#allocation2 + $0x179] sm:$0xff]
      %v4373 = vld [vmem:[#allocation2 + $0x181] sm:$0xff]
      %v4374 = vld [vmem:[#allocation2 + $0x189] sm:$0xff]
      %v4375 = vld [vmem:[#allocation2 + $0x191] sm:$0xff]
      %v4376 = vld [vmem:[#allocation2 + $0x199] sm:$0xff]
      %v4377 = vld [vmem:[#allocation2 + $0x1a1] sm:$0xff]
      %v4378 = vld [vmem:[#allocation2 + $0x1a9] sm:$0xff]
      %v4379 = vld [vmem:[#allocation2 + $0x1b1] sm:$0xff]
      %v4380 = vld [vmem:[#allocation2 + $0x1b9] sm:$0xff]
      %v4381 = vld [vmem:[#allocation2 + $0x1c1] sm:$0xff]
      %v4382 = vld [vmem:[#allocation2 + $0x1c9] sm:$0xff]
      %v4383 = vld [vmem:[#allocation2 + $0x1d1] sm:$0xff]
      %v4384 = vld [vmem:[#allocation2 + $0x1d9] sm:$0xff]
      %v4385 = vld [vmem:[#allocation2 + $0x1e1] sm:$0xff]
      %v4386 = vld [vmem:[#allocation2 + $0x1e9] sm:$0xff]
      %v4387 = vld [vmem:[#allocation2 + $0x1f1] sm:$0xff]
      %v4388 = vld [vmem:[#allocation2 + $0x1f9] sm:$0xff]
      %v4389 = vld [vmem:[#allocation2 + $0x201] sm:$0xff]
      %v4390 = vld [vmem:[#allocation2 + $0x209] sm:$0xff]
      %v4391 = vld [vmem:[#allocation2 + $0x211] sm:$0xff]
      %v4392 = vld [vmem:[#allocation2 + $0x219] sm:$0xff]
      %v4393 = vld [vmem:[#allocation2 + $0x221] sm:$0xff]
      %v4394 = vld [vmem:[#allocation2 + $0x229] sm:$0xff]
      %v4395 = vld [vmem:[#allocation2 + $0x231] sm:$0xff]
      %v4396 = vld [vmem:[#allocation2 + $0x239] sm:$0xff]
      %v4397 = vld [vmem:[#allocation2 + $0x241] sm:$0xff]
      %s4398 = scalar_lea.vmem %s3, 160
      %v4399 = vld [vmem:[%s4398] sm:$0xff]
      %v4400 = vld [vmem:[%s4398 + $0x8] sm:$0xff]
      %v4401 = vld [vmem:[%s4398 + $0x10] sm:$0xff]
      %v4402 = vld [vmem:[%s4398 + $0x18] sm:$0xff]
      %v4404 = vsel %vm1482, %v4328, 0
      %v4407 = vsel %vm1482, %v4329, 0
      %v4410 = vsel %vm1482, %v4330, 0
      %v4413 = vsel %vm1482, %v4331, 0
      %v4416 = vsel %vm1482, %v4332, 0
      %v4419 = vsel %vm1482, %v4333, 0
      %v4422 = vsel %vm1482, %v4334, 0
      %v4425 = vsel %vm1482, %v4335, 0
      %v4428 = vsel %vm1482, %v4336, 0
      %v4431 = vsel %vm1482, %v4337, 0
      %v4434 = vsel %vm1482, %v4338, 0
      %v4437 = vsel %vm1482, %v4339, 0
      %v4440 = vsel %vm1482, %v4340, 0
      %v4443 = vsel %vm1482, %v4341, 0
      %v4446 = vsel %vm1482, %v4342, 0
      %v4449 = vsel %vm1482, %v4343, 0
      %v4452 = vsel %vm1482, %v4344, 0
      %v4455 = vsel %vm1482, %v4345, 0
      %v4458 = vsel %vm1482, %v4346, 0
      %v4461 = vsel %vm1482, %v4347, 0
      %v4464 = vsel %vm1482, %v4348, 0
      %v4467 = vsel %vm1482, %v4349, 0
      %v4470 = vsel %vm1482, %v4350, 0
      %v4473 = vsel %vm1482, %v4351, 0
      %v4476 = vsel %vm1482, %v4352, 0
      %v4479 = vsel %vm1482, %v4353, 0
      %v4482 = vsel %vm1482, %v4354, 0
      %v4485 = vsel %vm1482, %v4355, 0
      %v4488 = vsel %vm1482, %v4356, 0
      %v4491 = vsel %vm1482, %v4357, 0
      %v4494 = vsel %vm1482, %v4358, 0
      %v4497 = vsel %vm1482, %v4359, 0
      %v4500 = vsel %vm1482, %v4360, 0
      %v4503 = vsel %vm1482, %v4361, 0
      %v4506 = vsel %vm1482, %v4362, 0
      %v4509 = vsel %vm1482, %v4363, 0
      %v4512 = vsel %vm1482, %v4364, 0
      %v4515 = vsel %vm1482, %v4365, 0
      %v4518 = vsel %vm1482, %v4366, 0
      %v4521 = vsel %vm1482, %v4367, 0
      %v4524 = vsel %vm1482, %v4368, 0
      %v4527 = vsel %vm1482, %v4369, 0
      %v4530 = vsel %vm1482, %v4370, 0
      %v4533 = vsel %vm1482, %v4371, 0
      %v4536 = vsel %vm1482, %v4372, 0
      %v4539 = vsel %vm1482, %v4373, 0
      %v4542 = vsel %vm1482, %v4374, 0
      %v4545 = vsel %vm1482, %v4375, 0
      %v4548 = vsel %vm1482, %v4376, 0
      %v4551 = vsel %vm1482, %v4377, 0
      %v4554 = vsel %vm1482, %v4378, 0
      %v4557 = vsel %vm1482, %v4379, 0
      %v4560 = vsel %vm1482, %v4380, 0
      %v4563 = vsel %vm1482, %v4381, 0
      %v4566 = vsel %vm1482, %v4382, 0
      %v4569 = vsel %vm1482, %v4383, 0
      %v4572 = vsel %vm1482, %v4384, 0
      %v4575 = vsel %vm1482, %v4385, 0
      %v4578 = vsel %vm1482, %v4386, 0
      %v4581 = vsel %vm1482, %v4387, 0
      %v4584 = vsel %vm1482, %v4388, 0
      %v4587 = vsel %vm1482, %v4389, 0
      %v4590 = vsel %vm1482, %v4390, 0
      %v4593 = vsel %vm1482, %v4391, 0
      %v4596 = vsel %vm1482, %v4392, 0
      %v4599 = vsel %vm1482, %v4393, 0
      %v4602 = vsel %vm1482, %v4394, 0
      %v4605 = vsel %vm1482, %v4395, 0
      %v4608 = vsel %vm1482, %v4396, 0
      %v4611 = vsel %vm1482, %v4397, 0
      %4613 = vmatpush.msra.mxu0 0.0
      %4614 = vmatpush.msra.mxu0 0.0
      %4615 = vmatpush.msra.mxu0 0.0
      %4616 = vmatpush.msra.mxu0 0.0
      %4617 = vmatpush.msra.mxu0 0.0
      %4618 = vmatpush.msra.mxu0 0.0
      %4619 = vmatpush.msra.mxu0 0.0
      %4620 = vmatpush.msra.mxu0 0.0
      %4621 = vmatpush.msra.mxu0 0.0
      %4622 = vmatpush.msra.mxu0 0.0
      %4623 = vmatpush.msra.mxu0 0.0
      %4624 = vmatpush.msra.mxu0 0.0
      %4625 = vmatpush.msra.mxu0 %v4402
      %4626 = vmatpush.msra.mxu0 %v4401
      %4627 = vmatpush.msra.mxu0 %v4400
      %4628 = vmatpush.msra.mxu0 %v4399
      %4629 = vmatmul.f32.gmra.mxu0 %v4404
      %v4630 = vpop.f32.mrf.mxu0
      %v4631 = vadd.f32 0.0, %v4630
      %4632 = vmatmul.f32.gmra.mxu0 %v4407
      %v4633 = vpop.f32.mrf.mxu0
      %v4634 = vadd.f32 0.0, %v4633
      %4635 = vmatmul.f32.gmra.mxu0 %v4410
      %v4636 = vpop.f32.mrf.mxu0
      %v4637 = vadd.f32 0.0, %v4636
      %4638 = vmatmul.f32.gmra.mxu0 %v4413
      %v4639 = vpop.f32.mrf.mxu0
      %v4640 = vadd.f32 0.0, %v4639
      %4641 = vmatmul.f32.gmra.mxu0 %v4416
      %v4642 = vpop.f32.mrf.mxu0
      %v4643 = vadd.f32 0.0, %v4642
      %4644 = vmatmul.f32.gmra.mxu0 %v4419
      %v4645 = vpop.f32.mrf.mxu0
      %v4646 = vadd.f32 0.0, %v4645
      %4647 = vmatmul.f32.gmra.mxu0 %v4422
      %v4648 = vpop.f32.mrf.mxu0
      %v4649 = vadd.f32 0.0, %v4648
      %4650 = vmatmul.f32.gmra.mxu0 %v4425
      %v4651 = vpop.f32.mrf.mxu0
      %v4652 = vadd.f32 0.0, %v4651
      %4653 = vmatmul.f32.gmra.mxu0 %v4428
      %v4654 = vpop.f32.mrf.mxu0
      %v4655 = vadd.f32 0.0, %v4654
      %4656 = vmatmul.f32.gmra.mxu0 %v4431
      %v4657 = vpop.f32.mrf.mxu0
      %v4658 = vadd.f32 0.0, %v4657
      %4659 = vmatmul.f32.gmra.mxu0 %v4434
      %v4660 = vpop.f32.mrf.mxu0
      %v4661 = vadd.f32 0.0, %v4660
      %4662 = vmatmul.f32.gmra.mxu0 %v4437
      %v4663 = vpop.f32.mrf.mxu0
      %v4664 = vadd.f32 0.0, %v4663
      %4665 = vmatmul.f32.gmra.mxu0 %v4440
      %v4666 = vpop.f32.mrf.mxu0
      %v4667 = vadd.f32 0.0, %v4666
      %4668 = vmatmul.f32.gmra.mxu0 %v4443
      %v4669 = vpop.f32.mrf.mxu0
      %v4670 = vadd.f32 0.0, %v4669
      %4671 = vmatmul.f32.gmra.mxu0 %v4446
      %v4672 = vpop.f32.mrf.mxu0
      %v4673 = vadd.f32 0.0, %v4672
      %4674 = vmatmul.f32.gmra.mxu0 %v4449
      %v4675 = vpop.f32.mrf.mxu0
      %v4676 = vadd.f32 0.0, %v4675
      %4677 = vmatmul.f32.gmra.mxu0 %v4452
      %v4678 = vpop.f32.mrf.mxu0
      %v4679 = vadd.f32 0.0, %v4678
      %4680 = vmatmul.f32.gmra.mxu0 %v4455
      %v4681 = vpop.f32.mrf.mxu0
      %v4682 = vadd.f32 0.0, %v4681
      %4683 = vmatmul.f32.gmra.mxu0 %v4458
      %v4684 = vpop.f32.mrf.mxu0
      %v4685 = vadd.f32 0.0, %v4684
      %4686 = vmatmul.f32.gmra.mxu0 %v4461
      %v4687 = vpop.f32.mrf.mxu0
      %v4688 = vadd.f32 0.0, %v4687
      %4689 = vmatmul.f32.gmra.mxu0 %v4464
      %v4690 = vpop.f32.mrf.mxu0
      %v4691 = vadd.f32 0.0, %v4690
      %4692 = vmatmul.f32.gmra.mxu0 %v4467
      %v4693 = vpop.f32.mrf.mxu0
      %v4694 = vadd.f32 0.0, %v4693
      %4695 = vmatmul.f32.gmra.mxu0 %v4470
      %v4696 = vpop.f32.mrf.mxu0
      %v4697 = vadd.f32 0.0, %v4696
      %4698 = vmatmul.f32.gmra.mxu0 %v4473
      %v4699 = vpop.f32.mrf.mxu0
      %v4700 = vadd.f32 0.0, %v4699
      %4701 = vmatmul.f32.gmra.mxu0 %v4476
      %v4702 = vpop.f32.mrf.mxu0
      %v4703 = vadd.f32 0.0, %v4702
      %4704 = vmatmul.f32.gmra.mxu0 %v4479
      %v4705 = vpop.f32.mrf.mxu0
      %v4706 = vadd.f32 0.0, %v4705
      %4707 = vmatmul.f32.gmra.mxu0 %v4482
      %v4708 = vpop.f32.mrf.mxu0
      %v4709 = vadd.f32 0.0, %v4708
      %4710 = vmatmul.f32.gmra.mxu0 %v4485
      %v4711 = vpop.f32.mrf.mxu0
      %v4712 = vadd.f32 0.0, %v4711
      %4713 = vmatmul.f32.gmra.mxu0 %v4488
      %v4714 = vpop.f32.mrf.mxu0
      %v4715 = vadd.f32 0.0, %v4714
      %4716 = vmatmul.f32.gmra.mxu0 %v4491
      %v4717 = vpop.f32.mrf.mxu0
      %v4718 = vadd.f32 0.0, %v4717
      %4719 = vmatmul.f32.gmra.mxu0 %v4494
      %v4720 = vpop.f32.mrf.mxu0
      %v4721 = vadd.f32 0.0, %v4720
      %4722 = vmatmul.f32.gmra.mxu0 %v4497
      %v4723 = vpop.f32.mrf.mxu0
      %v4724 = vadd.f32 0.0, %v4723
      %4725 = vmatmul.f32.gmra.mxu0 %v4500
      %v4726 = vpop.f32.mrf.mxu0
      %v4727 = vadd.f32 0.0, %v4726
      %4728 = vmatmul.f32.gmra.mxu0 %v4503
      %v4729 = vpop.f32.mrf.mxu0
      %v4730 = vadd.f32 0.0, %v4729
      %4731 = vmatmul.f32.gmra.mxu0 %v4506
      %v4732 = vpop.f32.mrf.mxu0
      %v4733 = vadd.f32 0.0, %v4732
      %4734 = vmatmul.f32.gmra.mxu0 %v4509
      %v4735 = vpop.f32.mrf.mxu0
      %v4736 = vadd.f32 0.0, %v4735
      %4737 = vmatmul.f32.gmra.mxu0 %v4512
      %v4738 = vpop.f32.mrf.mxu0
      %v4739 = vadd.f32 0.0, %v4738
      %4740 = vmatmul.f32.gmra.mxu0 %v4515
      %v4741 = vpop.f32.mrf.mxu0
      %v4742 = vadd.f32 0.0, %v4741
      %4743 = vmatmul.f32.gmra.mxu0 %v4518
      %v4744 = vpop.f32.mrf.mxu0
      %v4745 = vadd.f32 0.0, %v4744
      %4746 = vmatmul.f32.gmra.mxu0 %v4521
      %v4747 = vpop.f32.mrf.mxu0
      %v4748 = vadd.f32 0.0, %v4747
      %4749 = vmatmul.f32.gmra.mxu0 %v4524
      %v4750 = vpop.f32.mrf.mxu0
      %v4751 = vadd.f32 0.0, %v4750
      %4752 = vmatmul.f32.gmra.mxu0 %v4527
      %v4753 = vpop.f32.mrf.mxu0
      %v4754 = vadd.f32 0.0, %v4753
      %4755 = vmatmul.f32.gmra.mxu0 %v4530
      %v4756 = vpop.f32.mrf.mxu0
      %v4757 = vadd.f32 0.0, %v4756
      %4758 = vmatmul.f32.gmra.mxu0 %v4533
      %v4759 = vpop.f32.mrf.mxu0
      %v4760 = vadd.f32 0.0, %v4759
      %4761 = vmatmul.f32.gmra.mxu0 %v4536
      %v4762 = vpop.f32.mrf.mxu0
      %v4763 = vadd.f32 0.0, %v4762
      %4764 = vmatmul.f32.gmra.mxu0 %v4539
      %v4765 = vpop.f32.mrf.mxu0
      %v4766 = vadd.f32 0.0, %v4765
      %4767 = vmatmul.f32.gmra.mxu0 %v4542
      %v4768 = vpop.f32.mrf.mxu0
      %v4769 = vadd.f32 0.0, %v4768
      %4770 = vmatmul.f32.gmra.mxu0 %v4545
      %v4771 = vpop.f32.mrf.mxu0
      %v4772 = vadd.f32 0.0, %v4771
      %4773 = vmatmul.f32.gmra.mxu0 %v4548
      %v4774 = vpop.f32.mrf.mxu0
      %v4775 = vadd.f32 0.0, %v4774
      %4776 = vmatmul.f32.gmra.mxu0 %v4551
      %v4777 = vpop.f32.mrf.mxu0
      %v4778 = vadd.f32 0.0, %v4777
      %4779 = vmatmul.f32.gmra.mxu0 %v4554
      %v4780 = vpop.f32.mrf.mxu0
      %v4781 = vadd.f32 0.0, %v4780
      %4782 = vmatmul.f32.gmra.mxu0 %v4557
      %v4783 = vpop.f32.mrf.mxu0
      %v4784 = vadd.f32 0.0, %v4783
      %4785 = vmatmul.f32.gmra.mxu0 %v4560
      %v4786 = vpop.f32.mrf.mxu0
      %v4787 = vadd.f32 0.0, %v4786
      %4788 = vmatmul.f32.gmra.mxu0 %v4563
      %v4789 = vpop.f32.mrf.mxu0
      %v4790 = vadd.f32 0.0, %v4789
      %4791 = vmatmul.f32.gmra.mxu0 %v4566
      %v4792 = vpop.f32.mrf.mxu0
      %v4793 = vadd.f32 0.0, %v4792
      %4794 = vmatmul.f32.gmra.mxu0 %v4569
      %v4795 = vpop.f32.mrf.mxu0
      %v4796 = vadd.f32 0.0, %v4795
      %4797 = vmatmul.f32.gmra.mxu0 %v4572
      %v4798 = vpop.f32.mrf.mxu0
      %v4799 = vadd.f32 0.0, %v4798
      %4800 = vmatmul.f32.gmra.mxu0 %v4575
      %v4801 = vpop.f32.mrf.mxu0
      %v4802 = vadd.f32 0.0, %v4801
      %4803 = vmatmul.f32.gmra.mxu0 %v4578
      %v4804 = vpop.f32.mrf.mxu0
      %v4805 = vadd.f32 0.0, %v4804
      %4806 = vmatmul.f32.gmra.mxu0 %v4581
      %v4807 = vpop.f32.mrf.mxu0
      %v4808 = vadd.f32 0.0, %v4807
      %4809 = vmatmul.f32.gmra.mxu0 %v4584
      %v4810 = vpop.f32.mrf.mxu0
      %v4811 = vadd.f32 0.0, %v4810
      %4812 = vmatmul.f32.gmra.mxu0 %v4587
      %v4813 = vpop.f32.mrf.mxu0
      %v4814 = vadd.f32 0.0, %v4813
      %4815 = vmatmul.f32.gmra.mxu0 %v4590
      %v4816 = vpop.f32.mrf.mxu0
      %v4817 = vadd.f32 0.0, %v4816
      %4818 = vmatmul.f32.gmra.mxu0 %v4593
      %v4819 = vpop.f32.mrf.mxu0
      %v4820 = vadd.f32 0.0, %v4819
      %4821 = vmatmul.f32.gmra.mxu0 %v4596
      %v4822 = vpop.f32.mrf.mxu0
      %v4823 = vadd.f32 0.0, %v4822
      %4824 = vmatmul.f32.gmra.mxu0 %v4599
      %v4825 = vpop.f32.mrf.mxu0
      %v4826 = vadd.f32 0.0, %v4825
      %4827 = vmatmul.f32.gmra.mxu0 %v4602
      %v4828 = vpop.f32.mrf.mxu0
      %v4829 = vadd.f32 0.0, %v4828
      %4830 = vmatmul.f32.gmra.mxu0 %v4605
      %v4831 = vpop.f32.mrf.mxu0
      %v4832 = vadd.f32 0.0, %v4831
      %4833 = vmatmul.f32.gmra.mxu0 %v4608
      %v4834 = vpop.f32.mrf.mxu0
      %v4835 = vadd.f32 0.0, %v4834
      %4836 = vmatmul.f32.gmra.mxu0 %v4611
      %v4837 = vpop.f32.mrf.mxu0
      %v4838 = vadd.f32 0.0, %v4837
      %4839 = vdwg.mxu0
      %v4840 = vadd.f32 %v4258, %v4631
      %v4841 = vadd.f32 %v4259, %v4634
      %v4842 = vadd.f32 %v4260, %v4637
      %v4843 = vadd.f32 %v4261, %v4640
      %v4844 = vadd.f32 %v4262, %v4643
      %v4845 = vadd.f32 %v4263, %v4646
      %v4846 = vadd.f32 %v4264, %v4649
      %v4847 = vadd.f32 %v4265, %v4652
      %v4848 = vadd.f32 %v4266, %v4655
      %v4849 = vadd.f32 %v4267, %v4658
      %v4850 = vadd.f32 %v4268, %v4661
      %v4851 = vadd.f32 %v4269, %v4664
      %v4852 = vadd.f32 %v4270, %v4667
      %v4853 = vadd.f32 %v4271, %v4670
      %v4854 = vadd.f32 %v4272, %v4673
      %v4855 = vadd.f32 %v4273, %v4676
      %v4856 = vadd.f32 %v4274, %v4679
      %v4857 = vadd.f32 %v4275, %v4682
      %v4858 = vadd.f32 %v4276, %v4685
      %v4859 = vadd.f32 %v4277, %v4688
      %v4860 = vadd.f32 %v4278, %v4691
      %v4861 = vadd.f32 %v4279, %v4694
      %v4862 = vadd.f32 %v4280, %v4697
      %v4863 = vadd.f32 %v4281, %v4700
      %v4864 = vadd.f32 %v4282, %v4703
      %v4865 = vadd.f32 %v4283, %v4706
      %v4866 = vadd.f32 %v4284, %v4709
      %v4867 = vadd.f32 %v4285, %v4712
      %v4868 = vadd.f32 %v4286, %v4715
      %v4869 = vadd.f32 %v4287, %v4718
      %v4870 = vadd.f32 %v4288, %v4721
      %v4871 = vadd.f32 %v4289, %v4724
      %v4872 = vadd.f32 %v4290, %v4727
      %v4873 = vadd.f32 %v4291, %v4730
      %v4874 = vadd.f32 %v4292, %v4733
      %v4875 = vadd.f32 %v4293, %v4736
      %v4876 = vadd.f32 %v4294, %v4739
      %v4877 = vadd.f32 %v4295, %v4742
      %v4878 = vadd.f32 %v4296, %v4745
      %v4879 = vadd.f32 %v4297, %v4748
      %v4880 = vadd.f32 %v4298, %v4751
      %v4881 = vadd.f32 %v4299, %v4754
      %v4882 = vadd.f32 %v4300, %v4757
      %v4883 = vadd.f32 %v4301, %v4760
      %v4884 = vadd.f32 %v4302, %v4763
      %v4885 = vadd.f32 %v4303, %v4766
      %v4886 = vadd.f32 %v4304, %v4769
      %v4887 = vadd.f32 %v4305, %v4772
      %v4888 = vadd.f32 %v4306, %v4775
      %v4889 = vadd.f32 %v4307, %v4778
      %v4890 = vadd.f32 %v4308, %v4781
      %v4891 = vadd.f32 %v4309, %v4784
      %v4892 = vadd.f32 %v4310, %v4787
      %v4893 = vadd.f32 %v4311, %v4790
      %v4894 = vadd.f32 %v4312, %v4793
      %v4895 = vadd.f32 %v4313, %v4796
      %v4896 = vadd.f32 %v4314, %v4799
      %v4897 = vadd.f32 %v4315, %v4802
      %v4898 = vadd.f32 %v4316, %v4805
      %v4899 = vadd.f32 %v4317, %v4808
      %v4900 = vadd.f32 %v4318, %v4811
      %v4901 = vadd.f32 %v4319, %v4814
      %v4902 = vadd.f32 %v4320, %v4817
      %v4903 = vadd.f32 %v4321, %v4820
      %v4904 = vadd.f32 %v4322, %v4823
      %v4905 = vadd.f32 %v4323, %v4826
      %v4906 = vadd.f32 %v4324, %v4829
      %v4907 = vadd.f32 %v4325, %v4832
      %v4908 = vadd.f32 %v4326, %v4835
      %v4909 = vadd.f32 %v4327, %v4838
      %v4910 = vld [vmem:[#allocation2 + $0x27] sm:$0xff]
      %v4911 = vld [vmem:[#allocation2 + $0x2f] sm:$0xff]
      %v4912 = vld [vmem:[#allocation2 + $0x37] sm:$0xff]
      %v4913 = vld [vmem:[#allocation2 + $0x3f] sm:$0xff]
      %v4914 = vld [vmem:[#allocation2 + $0x47] sm:$0xff]
      %v4915 = vld [vmem:[#allocation2 + $0x4f] sm:$0xff]
      %v4916 = vld [vmem:[#allocation2 + $0x57] sm:$0xff]
      %v4917 = vld [vmem:[#allocation2 + $0x5f] sm:$0xff]
      %v4918 = vld [vmem:[#allocation2 + $0x67] sm:$0xff]
      %v4919 = vld [vmem:[#allocation2 + $0x6f] sm:$0xff]
      %v4920 = vld [vmem:[#allocation2 + $0x77] sm:$0xff]
      %v4921 = vld [vmem:[#allocation2 + $0x7f] sm:$0xff]
      %v4922 = vld [vmem:[#allocation2 + $0x87] sm:$0xff]
      %v4923 = vld [vmem:[#allocation2 + $0x8f] sm:$0xff]
      %v4924 = vld [vmem:[#allocation2 + $0x97] sm:$0xff]
      %v4925 = vld [vmem:[#allocation2 + $0x9f] sm:$0xff]
      %v4926 = vld [vmem:[#allocation2 + $0xa7] sm:$0xff]
      %v4927 = vld [vmem:[#allocation2 + $0xaf] sm:$0xff]
      %v4928 = vld [vmem:[#allocation2 + $0xb7] sm:$0xff]
      %v4929 = vld [vmem:[#allocation2 + $0xbf] sm:$0xff]
      %v4930 = vld [vmem:[#allocation2 + $0xc7] sm:$0xff]
      %v4931 = vld [vmem:[#allocation2 + $0xcf] sm:$0xff]
      %v4932 = vld [vmem:[#allocation2 + $0xd7] sm:$0xff]
      %v4933 = vld [vmem:[#allocation2 + $0xdf] sm:$0xff]
      %v4934 = vld [vmem:[#allocation2 + $0xe7] sm:$0xff]
      %v4935 = vld [vmem:[#allocation2 + $0xef] sm:$0xff]
      %v4936 = vld [vmem:[#allocation2 + $0xf7] sm:$0xff]
      %v4937 = vld [vmem:[#allocation2 + $0xff] sm:$0xff]
      %v4938 = vld [vmem:[#allocation2 + $0x107] sm:$0xff]
      %v4939 = vld [vmem:[#allocation2 + $0x10f] sm:$0xff]
      %v4940 = vld [vmem:[#allocation2 + $0x117] sm:$0xff]
      %v4941 = vld [vmem:[#allocation2 + $0x11f] sm:$0xff]
      %v4942 = vld [vmem:[#allocation2 + $0x127] sm:$0xff]
      %v4943 = vld [vmem:[#allocation2 + $0x12f] sm:$0xff]
      %v4944 = vld [vmem:[#allocation2 + $0x137] sm:$0xff]
      %v4945 = vld [vmem:[#allocation2 + $0x13f] sm:$0xff]
      %v4946 = vld [vmem:[#allocation2 + $0x147] sm:$0xff]
      %v4947 = vld [vmem:[#allocation2 + $0x14f] sm:$0xff]
      %v4948 = vld [vmem:[#allocation2 + $0x157] sm:$0xff]
      %v4949 = vld [vmem:[#allocation2 + $0x15f] sm:$0xff]
      %v4950 = vld [vmem:[#allocation2 + $0x167] sm:$0xff]
      %v4951 = vld [vmem:[#allocation2 + $0x16f] sm:$0xff]
      %v4952 = vld [vmem:[#allocation2 + $0x177] sm:$0xff]
      %v4953 = vld [vmem:[#allocation2 + $0x17f] sm:$0xff]
      %v4954 = vld [vmem:[#allocation2 + $0x187] sm:$0xff]
      %v4955 = vld [vmem:[#allocation2 + $0x18f] sm:$0xff]
      %v4956 = vld [vmem:[#allocation2 + $0x197] sm:$0xff]
      %v4957 = vld [vmem:[#allocation2 + $0x19f] sm:$0xff]
      %v4958 = vld [vmem:[#allocation2 + $0x1a7] sm:$0xff]
      %v4959 = vld [vmem:[#allocation2 + $0x1af] sm:$0xff]
      %v4960 = vld [vmem:[#allocation2 + $0x1b7] sm:$0xff]
      %v4961 = vld [vmem:[#allocation2 + $0x1bf] sm:$0xff]
      %v4962 = vld [vmem:[#allocation2 + $0x1c7] sm:$0xff]
      %v4963 = vld [vmem:[#allocation2 + $0x1cf] sm:$0xff]
      %v4964 = vld [vmem:[#allocation2 + $0x1d7] sm:$0xff]
      %v4965 = vld [vmem:[#allocation2 + $0x1df] sm:$0xff]
      %v4966 = vld [vmem:[#allocation2 + $0x1e7] sm:$0xff]
      %v4967 = vld [vmem:[#allocation2 + $0x1ef] sm:$0xff]
      %v4968 = vld [vmem:[#allocation2 + $0x1f7] sm:$0xff]
      %v4969 = vld [vmem:[#allocation2 + $0x1ff] sm:$0xff]
      %v4970 = vld [vmem:[#allocation2 + $0x207] sm:$0xff]
      %v4971 = vld [vmem:[#allocation2 + $0x20f] sm:$0xff]
      %v4972 = vld [vmem:[#allocation2 + $0x217] sm:$0xff]
      %v4973 = vld [vmem:[#allocation2 + $0x21f] sm:$0xff]
      %v4974 = vld [vmem:[#allocation2 + $0x227] sm:$0xff]
      %v4975 = vld [vmem:[#allocation2 + $0x22f] sm:$0xff]
      %v4976 = vld [vmem:[#allocation2 + $0x237] sm:$0xff]
      %v4977 = vld [vmem:[#allocation2 + $0x23f] sm:$0xff]
      %v4978 = vld [vmem:[#allocation2 + $0x247] sm:$0xff]
      %v4979 = vld [vmem:[#allocation2 + $0x24f] sm:$0xff]
      %s4980 = scalar_lea.vmem %s3, 192
      %v4981 = vld [vmem:[%s4980] sm:$0xff]
      %v4982 = vld [vmem:[%s4980 + $0x8] sm:$0xff]
      %v4983 = vld [vmem:[%s4980 + $0x10] sm:$0xff]
      %v4984 = vld [vmem:[%s4980 + $0x18] sm:$0xff]
      %v4986 = vsel %vm1482, %v4910, 0
      %v4989 = vsel %vm1482, %v4911, 0
      %v4992 = vsel %vm1482, %v4912, 0
      %v4995 = vsel %vm1482, %v4913, 0
      %v4998 = vsel %vm1482, %v4914, 0
      %v5001 = vsel %vm1482, %v4915, 0
      %v5004 = vsel %vm1482, %v4916, 0
      %v5007 = vsel %vm1482, %v4917, 0
      %v5010 = vsel %vm1482, %v4918, 0
      %v5013 = vsel %vm1482, %v4919, 0
      %v5016 = vsel %vm1482, %v4920, 0
      %v5019 = vsel %vm1482, %v4921, 0
      %v5022 = vsel %vm1482, %v4922, 0
      %v5025 = vsel %vm1482, %v4923, 0
      %v5028 = vsel %vm1482, %v4924, 0
      %v5031 = vsel %vm1482, %v4925, 0
      %v5034 = vsel %vm1482, %v4926, 0
      %v5037 = vsel %vm1482, %v4927, 0
      %v5040 = vsel %vm1482, %v4928, 0
      %v5043 = vsel %vm1482, %v4929, 0
      %v5046 = vsel %vm1482, %v4930, 0
      %v5049 = vsel %vm1482, %v4931, 0
      %v5052 = vsel %vm1482, %v4932, 0
      %v5055 = vsel %vm1482, %v4933, 0
      %v5058 = vsel %vm1482, %v4934, 0
      %v5061 = vsel %vm1482, %v4935, 0
      %v5064 = vsel %vm1482, %v4936, 0
      %v5067 = vsel %vm1482, %v4937, 0
      %v5070 = vsel %vm1482, %v4938, 0
      %v5073 = vsel %vm1482, %v4939, 0
      %v5076 = vsel %vm1482, %v4940, 0
      %v5079 = vsel %vm1482, %v4941, 0
      %v5082 = vsel %vm1482, %v4942, 0
      %v5085 = vsel %vm1482, %v4943, 0
      %v5088 = vsel %vm1482, %v4944, 0
      %v5091 = vsel %vm1482, %v4945, 0
      %v5094 = vsel %vm1482, %v4946, 0
      %v5097 = vsel %vm1482, %v4947, 0
      %v5100 = vsel %vm1482, %v4948, 0
      %v5103 = vsel %vm1482, %v4949, 0
      %v5106 = vsel %vm1482, %v4950, 0
      %v5109 = vsel %vm1482, %v4951, 0
      %v5112 = vsel %vm1482, %v4952, 0
      %v5115 = vsel %vm1482, %v4953, 0
      %v5118 = vsel %vm1482, %v4954, 0
      %v5121 = vsel %vm1482, %v4955, 0
      %v5124 = vsel %vm1482, %v4956, 0
      %v5127 = vsel %vm1482, %v4957, 0
      %v5130 = vsel %vm1482, %v4958, 0
      %v5133 = vsel %vm1482, %v4959, 0
      %v5136 = vsel %vm1482, %v4960, 0
      %v5139 = vsel %vm1482, %v4961, 0
      %v5142 = vsel %vm1482, %v4962, 0
      %v5145 = vsel %vm1482, %v4963, 0
      %v5148 = vsel %vm1482, %v4964, 0
      %v5151 = vsel %vm1482, %v4965, 0
      %v5154 = vsel %vm1482, %v4966, 0
      %v5157 = vsel %vm1482, %v4967, 0
      %v5160 = vsel %vm1482, %v4968, 0
      %v5163 = vsel %vm1482, %v4969, 0
      %v5166 = vsel %vm1482, %v4970, 0
      %v5169 = vsel %vm1482, %v4971, 0
      %v5172 = vsel %vm1482, %v4972, 0
      %v5175 = vsel %vm1482, %v4973, 0
      %v5178 = vsel %vm1482, %v4974, 0
      %v5181 = vsel %vm1482, %v4975, 0
      %v5184 = vsel %vm1482, %v4976, 0
      %v5187 = vsel %vm1482, %v4977, 0
      %v5190 = vsel %vm1482, %v4978, 0
      %v5193 = vsel %vm1482, %v4979, 0
      %5195 = vmatpush.msra.mxu0 0.0
      %5196 = vmatpush.msra.mxu0 0.0
      %5197 = vmatpush.msra.mxu0 0.0
      %5198 = vmatpush.msra.mxu0 0.0
      %5199 = vmatpush.msra.mxu0 0.0
      %5200 = vmatpush.msra.mxu0 0.0
      %5201 = vmatpush.msra.mxu0 0.0
      %5202 = vmatpush.msra.mxu0 0.0
      %5203 = vmatpush.msra.mxu0 0.0
      %5204 = vmatpush.msra.mxu0 0.0
      %5205 = vmatpush.msra.mxu0 0.0
      %5206 = vmatpush.msra.mxu0 0.0
      %5207 = vmatpush.msra.mxu0 %v4984
      %5208 = vmatpush.msra.mxu0 %v4983
      %5209 = vmatpush.msra.mxu0 %v4982
      %5210 = vmatpush.msra.mxu0 %v4981
      %5211 = vmatmul.f32.gmra.mxu0 %v4986
      %v5212 = vpop.f32.mrf.mxu0
      %v5213 = vadd.f32 0.0, %v5212
      %5214 = vmatmul.f32.gmra.mxu0 %v4989
      %v5215 = vpop.f32.mrf.mxu0
      %v5216 = vadd.f32 0.0, %v5215
      %5217 = vmatmul.f32.gmra.mxu0 %v4992
      %v5218 = vpop.f32.mrf.mxu0
      %v5219 = vadd.f32 0.0, %v5218
      %5220 = vmatmul.f32.gmra.mxu0 %v4995
      %v5221 = vpop.f32.mrf.mxu0
      %v5222 = vadd.f32 0.0, %v5221
      %5223 = vmatmul.f32.gmra.mxu0 %v4998
      %v5224 = vpop.f32.mrf.mxu0
      %v5225 = vadd.f32 0.0, %v5224
      %5226 = vmatmul.f32.gmra.mxu0 %v5001
      %v5227 = vpop.f32.mrf.mxu0
      %v5228 = vadd.f32 0.0, %v5227
      %5229 = vmatmul.f32.gmra.mxu0 %v5004
      %v5230 = vpop.f32.mrf.mxu0
      %v5231 = vadd.f32 0.0, %v5230
      %5232 = vmatmul.f32.gmra.mxu0 %v5007
      %v5233 = vpop.f32.mrf.mxu0
      %v5234 = vadd.f32 0.0, %v5233
      %5235 = vmatmul.f32.gmra.mxu0 %v5010
      %v5236 = vpop.f32.mrf.mxu0
      %v5237 = vadd.f32 0.0, %v5236
      %5238 = vmatmul.f32.gmra.mxu0 %v5013
      %v5239 = vpop.f32.mrf.mxu0
      %v5240 = vadd.f32 0.0, %v5239
      %5241 = vmatmul.f32.gmra.mxu0 %v5016
      %v5242 = vpop.f32.mrf.mxu0
      %v5243 = vadd.f32 0.0, %v5242
      %5244 = vmatmul.f32.gmra.mxu0 %v5019
      %v5245 = vpop.f32.mrf.mxu0
      %v5246 = vadd.f32 0.0, %v5245
      %5247 = vmatmul.f32.gmra.mxu0 %v5022
      %v5248 = vpop.f32.mrf.mxu0
      %v5249 = vadd.f32 0.0, %v5248
      %5250 = vmatmul.f32.gmra.mxu0 %v5025
      %v5251 = vpop.f32.mrf.mxu0
      %v5252 = vadd.f32 0.0, %v5251
      %5253 = vmatmul.f32.gmra.mxu0 %v5028
      %v5254 = vpop.f32.mrf.mxu0
      %v5255 = vadd.f32 0.0, %v5254
      %5256 = vmatmul.f32.gmra.mxu0 %v5031
      %v5257 = vpop.f32.mrf.mxu0
      %v5258 = vadd.f32 0.0, %v5257
      %5259 = vmatmul.f32.gmra.mxu0 %v5034
      %v5260 = vpop.f32.mrf.mxu0
      %v5261 = vadd.f32 0.0, %v5260
      %5262 = vmatmul.f32.gmra.mxu0 %v5037
      %v5263 = vpop.f32.mrf.mxu0
      %v5264 = vadd.f32 0.0, %v5263
      %5265 = vmatmul.f32.gmra.mxu0 %v5040
      %v5266 = vpop.f32.mrf.mxu0
      %v5267 = vadd.f32 0.0, %v5266
      %5268 = vmatmul.f32.gmra.mxu0 %v5043
      %v5269 = vpop.f32.mrf.mxu0
      %v5270 = vadd.f32 0.0, %v5269
      %5271 = vmatmul.f32.gmra.mxu0 %v5046
      %v5272 = vpop.f32.mrf.mxu0
      %v5273 = vadd.f32 0.0, %v5272
      %5274 = vmatmul.f32.gmra.mxu0 %v5049
      %v5275 = vpop.f32.mrf.mxu0
      %v5276 = vadd.f32 0.0, %v5275
      %5277 = vmatmul.f32.gmra.mxu0 %v5052
      %v5278 = vpop.f32.mrf.mxu0
      %v5279 = vadd.f32 0.0, %v5278
      %5280 = vmatmul.f32.gmra.mxu0 %v5055
      %v5281 = vpop.f32.mrf.mxu0
      %v5282 = vadd.f32 0.0, %v5281
      %5283 = vmatmul.f32.gmra.mxu0 %v5058
      %v5284 = vpop.f32.mrf.mxu0
      %v5285 = vadd.f32 0.0, %v5284
      %5286 = vmatmul.f32.gmra.mxu0 %v5061
      %v5287 = vpop.f32.mrf.mxu0
      %v5288 = vadd.f32 0.0, %v5287
      %5289 = vmatmul.f32.gmra.mxu0 %v5064
      %v5290 = vpop.f32.mrf.mxu0
      %v5291 = vadd.f32 0.0, %v5290
      %5292 = vmatmul.f32.gmra.mxu0 %v5067
      %v5293 = vpop.f32.mrf.mxu0
      %v5294 = vadd.f32 0.0, %v5293
      %5295 = vmatmul.f32.gmra.mxu0 %v5070
      %v5296 = vpop.f32.mrf.mxu0
      %v5297 = vadd.f32 0.0, %v5296
      %5298 = vmatmul.f32.gmra.mxu0 %v5073
      %v5299 = vpop.f32.mrf.mxu0
      %v5300 = vadd.f32 0.0, %v5299
      %5301 = vmatmul.f32.gmra.mxu0 %v5076
      %v5302 = vpop.f32.mrf.mxu0
      %v5303 = vadd.f32 0.0, %v5302
      %5304 = vmatmul.f32.gmra.mxu0 %v5079
      %v5305 = vpop.f32.mrf.mxu0
      %v5306 = vadd.f32 0.0, %v5305
      %5307 = vmatmul.f32.gmra.mxu0 %v5082
      %v5308 = vpop.f32.mrf.mxu0
      %v5309 = vadd.f32 0.0, %v5308
      %5310 = vmatmul.f32.gmra.mxu0 %v5085
      %v5311 = vpop.f32.mrf.mxu0
      %v5312 = vadd.f32 0.0, %v5311
      %5313 = vmatmul.f32.gmra.mxu0 %v5088
      %v5314 = vpop.f32.mrf.mxu0
      %v5315 = vadd.f32 0.0, %v5314
      %5316 = vmatmul.f32.gmra.mxu0 %v5091
      %v5317 = vpop.f32.mrf.mxu0
      %v5318 = vadd.f32 0.0, %v5317
      %5319 = vmatmul.f32.gmra.mxu0 %v5094
      %v5320 = vpop.f32.mrf.mxu0
      %v5321 = vadd.f32 0.0, %v5320
      %5322 = vmatmul.f32.gmra.mxu0 %v5097
      %v5323 = vpop.f32.mrf.mxu0
      %v5324 = vadd.f32 0.0, %v5323
      %5325 = vmatmul.f32.gmra.mxu0 %v5100
      %v5326 = vpop.f32.mrf.mxu0
      %v5327 = vadd.f32 0.0, %v5326
      %5328 = vmatmul.f32.gmra.mxu0 %v5103
      %v5329 = vpop.f32.mrf.mxu0
      %v5330 = vadd.f32 0.0, %v5329
      %5331 = vmatmul.f32.gmra.mxu0 %v5106
      %v5332 = vpop.f32.mrf.mxu0
      %v5333 = vadd.f32 0.0, %v5332
      %5334 = vmatmul.f32.gmra.mxu0 %v5109
      %v5335 = vpop.f32.mrf.mxu0
      %v5336 = vadd.f32 0.0, %v5335
      %5337 = vmatmul.f32.gmra.mxu0 %v5112
      %v5338 = vpop.f32.mrf.mxu0
      %v5339 = vadd.f32 0.0, %v5338
      %5340 = vmatmul.f32.gmra.mxu0 %v5115
      %v5341 = vpop.f32.mrf.mxu0
      %v5342 = vadd.f32 0.0, %v5341
      %5343 = vmatmul.f32.gmra.mxu0 %v5118
      %v5344 = vpop.f32.mrf.mxu0
      %v5345 = vadd.f32 0.0, %v5344
      %5346 = vmatmul.f32.gmra.mxu0 %v5121
      %v5347 = vpop.f32.mrf.mxu0
      %v5348 = vadd.f32 0.0, %v5347
      %5349 = vmatmul.f32.gmra.mxu0 %v5124
      %v5350 = vpop.f32.mrf.mxu0
      %v5351 = vadd.f32 0.0, %v5350
      %5352 = vmatmul.f32.gmra.mxu0 %v5127
      %v5353 = vpop.f32.mrf.mxu0
      %v5354 = vadd.f32 0.0, %v5353
      %5355 = vmatmul.f32.gmra.mxu0 %v5130
      %v5356 = vpop.f32.mrf.mxu0
      %v5357 = vadd.f32 0.0, %v5356
      %5358 = vmatmul.f32.gmra.mxu0 %v5133
      %v5359 = vpop.f32.mrf.mxu0
      %v5360 = vadd.f32 0.0, %v5359
      %5361 = vmatmul.f32.gmra.mxu0 %v5136
      %v5362 = vpop.f32.mrf.mxu0
      %v5363 = vadd.f32 0.0, %v5362
      %5364 = vmatmul.f32.gmra.mxu0 %v5139
      %v5365 = vpop.f32.mrf.mxu0
      %v5366 = vadd.f32 0.0, %v5365
      %5367 = vmatmul.f32.gmra.mxu0 %v5142
      %v5368 = vpop.f32.mrf.mxu0
      %v5369 = vadd.f32 0.0, %v5368
      %5370 = vmatmul.f32.gmra.mxu0 %v5145
      %v5371 = vpop.f32.mrf.mxu0
      %v5372 = vadd.f32 0.0, %v5371
      %5373 = vmatmul.f32.gmra.mxu0 %v5148
      %v5374 = vpop.f32.mrf.mxu0
      %v5375 = vadd.f32 0.0, %v5374
      %5376 = vmatmul.f32.gmra.mxu0 %v5151
      %v5377 = vpop.f32.mrf.mxu0
      %v5378 = vadd.f32 0.0, %v5377
      %5379 = vmatmul.f32.gmra.mxu0 %v5154
      %v5380 = vpop.f32.mrf.mxu0
      %v5381 = vadd.f32 0.0, %v5380
      %5382 = vmatmul.f32.gmra.mxu0 %v5157
      %v5383 = vpop.f32.mrf.mxu0
      %v5384 = vadd.f32 0.0, %v5383
      %5385 = vmatmul.f32.gmra.mxu0 %v5160
      %v5386 = vpop.f32.mrf.mxu0
      %v5387 = vadd.f32 0.0, %v5386
      %5388 = vmatmul.f32.gmra.mxu0 %v5163
      %v5389 = vpop.f32.mrf.mxu0
      %v5390 = vadd.f32 0.0, %v5389
      %5391 = vmatmul.f32.gmra.mxu0 %v5166
      %v5392 = vpop.f32.mrf.mxu0
      %v5393 = vadd.f32 0.0, %v5392
      %5394 = vmatmul.f32.gmra.mxu0 %v5169
      %v5395 = vpop.f32.mrf.mxu0
      %v5396 = vadd.f32 0.0, %v5395
      %5397 = vmatmul.f32.gmra.mxu0 %v5172
      %v5398 = vpop.f32.mrf.mxu0
      %v5399 = vadd.f32 0.0, %v5398
      %5400 = vmatmul.f32.gmra.mxu0 %v5175
      %v5401 = vpop.f32.mrf.mxu0
      %v5402 = vadd.f32 0.0, %v5401
      %5403 = vmatmul.f32.gmra.mxu0 %v5178
      %v5404 = vpop.f32.mrf.mxu0
      %v5405 = vadd.f32 0.0, %v5404
      %5406 = vmatmul.f32.gmra.mxu0 %v5181
      %v5407 = vpop.f32.mrf.mxu0
      %v5408 = vadd.f32 0.0, %v5407
      %5409 = vmatmul.f32.gmra.mxu0 %v5184
      %v5410 = vpop.f32.mrf.mxu0
      %v5411 = vadd.f32 0.0, %v5410
      %5412 = vmatmul.f32.gmra.mxu0 %v5187
      %v5413 = vpop.f32.mrf.mxu0
      %v5414 = vadd.f32 0.0, %v5413
      %5415 = vmatmul.f32.gmra.mxu0 %v5190
      %v5416 = vpop.f32.mrf.mxu0
      %v5417 = vadd.f32 0.0, %v5416
      %5418 = vmatmul.f32.gmra.mxu0 %v5193
      %v5419 = vpop.f32.mrf.mxu0
      %v5420 = vadd.f32 0.0, %v5419
      %5421 = vdwg.mxu0
      %v5422 = vadd.f32 %v4840, %v5213
      %v5423 = vadd.f32 %v4841, %v5216
      %v5424 = vadd.f32 %v4842, %v5219
      %v5425 = vadd.f32 %v4843, %v5222
      %v5426 = vadd.f32 %v4844, %v5225
      %v5427 = vadd.f32 %v4845, %v5228
      %v5428 = vadd.f32 %v4846, %v5231
      %v5429 = vadd.f32 %v4847, %v5234
      %v5430 = vadd.f32 %v4848, %v5237
      %v5431 = vadd.f32 %v4849, %v5240
      %v5432 = vadd.f32 %v4850, %v5243
      %v5433 = vadd.f32 %v4851, %v5246
      %v5434 = vadd.f32 %v4852, %v5249
      %v5435 = vadd.f32 %v4853, %v5252
      %v5436 = vadd.f32 %v4854, %v5255
      %v5437 = vadd.f32 %v4855, %v5258
      %v5438 = vadd.f32 %v4856, %v5261
      %v5439 = vadd.f32 %v4857, %v5264
      %v5440 = vadd.f32 %v4858, %v5267
      %v5441 = vadd.f32 %v4859, %v5270
      %v5442 = vadd.f32 %v4860, %v5273
      %v5443 = vadd.f32 %v4861, %v5276
      %v5444 = vadd.f32 %v4862, %v5279
      %v5445 = vadd.f32 %v4863, %v5282
      %v5446 = vadd.f32 %v4864, %v5285
      %v5447 = vadd.f32 %v4865, %v5288
      %v5448 = vadd.f32 %v4866, %v5291
      %v5449 = vadd.f32 %v4867, %v5294
      %v5450 = vadd.f32 %v4868, %v5297
      %v5451 = vadd.f32 %v4869, %v5300
      %v5452 = vadd.f32 %v4870, %v5303
      %v5453 = vadd.f32 %v4871, %v5306
      %v5454 = vadd.f32 %v4872, %v5309
      %v5455 = vadd.f32 %v4873, %v5312
      %v5456 = vadd.f32 %v4874, %v5315
      %v5457 = vadd.f32 %v4875, %v5318
      %v5458 = vadd.f32 %v4876, %v5321
      %v5459 = vadd.f32 %v4877, %v5324
      %v5460 = vadd.f32 %v4878, %v5327
      %v5461 = vadd.f32 %v4879, %v5330
      %v5462 = vadd.f32 %v4880, %v5333
      %v5463 = vadd.f32 %v4881, %v5336
      %v5464 = vadd.f32 %v4882, %v5339
      %v5465 = vadd.f32 %v4883, %v5342
      %v5466 = vadd.f32 %v4884, %v5345
      %v5467 = vadd.f32 %v4885, %v5348
      %v5468 = vadd.f32 %v4886, %v5351
      %v5469 = vadd.f32 %v4887, %v5354
      %v5470 = vadd.f32 %v4888, %v5357
      %v5471 = vadd.f32 %v4889, %v5360
      %v5472 = vadd.f32 %v4890, %v5363
      %v5473 = vadd.f32 %v4891, %v5366
      %v5474 = vadd.f32 %v4892, %v5369
      %v5475 = vadd.f32 %v4893, %v5372
      %v5476 = vadd.f32 %v4894, %v5375
      %v5477 = vadd.f32 %v4895, %v5378
      %v5478 = vadd.f32 %v4896, %v5381
      %v5479 = vadd.f32 %v4897, %v5384
      %v5480 = vadd.f32 %v4898, %v5387
      %v5481 = vadd.f32 %v4899, %v5390
      %v5482 = vadd.f32 %v4900, %v5393
      %v5483 = vadd.f32 %v4901, %v5396
      %v5484 = vadd.f32 %v4902, %v5399
      %v5485 = vadd.f32 %v4903, %v5402
      %v5486 = vadd.f32 %v4904, %v5405
      %v5487 = vadd.f32 %v4905, %v5408
      %v5488 = vadd.f32 %v4906, %v5411
      %v5489 = vadd.f32 %v4907, %v5414
      %v5490 = vadd.f32 %v4908, %v5417
      %v5491 = vadd.f32 %v4909, %v5420
      %v5492 = vld [vmem:[#allocation2 + $0x28] sm:$0xff]
      %v5493 = vld [vmem:[#allocation2 + $0x30] sm:$0xff]
      %v5494 = vld [vmem:[#allocation2 + $0x38] sm:$0xff]
      %v5495 = vld [vmem:[#allocation2 + $0x40] sm:$0xff]
      %v5496 = vld [vmem:[#allocation2 + $0x48] sm:$0xff]
      %v5497 = vld [vmem:[#allocation2 + $0x50] sm:$0xff]
      %v5498 = vld [vmem:[#allocation2 + $0x58] sm:$0xff]
      %v5499 = vld [vmem:[#allocation2 + $0x60] sm:$0xff]
      %v5500 = vld [vmem:[#allocation2 + $0x68] sm:$0xff]
      %v5501 = vld [vmem:[#allocation2 + $0x70] sm:$0xff]
      %v5502 = vld [vmem:[#allocation2 + $0x78] sm:$0xff]
      %v5503 = vld [vmem:[#allocation2 + $0x80] sm:$0xff]
      %v5504 = vld [vmem:[#allocation2 + $0x88] sm:$0xff]
      %v5505 = vld [vmem:[#allocation2 + $0x90] sm:$0xff]
      %v5506 = vld [vmem:[#allocation2 + $0x98] sm:$0xff]
      %v5507 = vld [vmem:[#allocation2 + $0xa0] sm:$0xff]
      %v5508 = vld [vmem:[#allocation2 + $0xa8] sm:$0xff]
      %v5509 = vld [vmem:[#allocation2 + $0xb0] sm:$0xff]
      %v5510 = vld [vmem:[#allocation2 + $0xb8] sm:$0xff]
      %v5511 = vld [vmem:[#allocation2 + $0xc0] sm:$0xff]
      %v5512 = vld [vmem:[#allocation2 + $0xc8] sm:$0xff]
      %v5513 = vld [vmem:[#allocation2 + $0xd0] sm:$0xff]
      %v5514 = vld [vmem:[#allocation2 + $0xd8] sm:$0xff]
      %v5515 = vld [vmem:[#allocation2 + $0xe0] sm:$0xff]
      %v5516 = vld [vmem:[#allocation2 + $0xe8] sm:$0xff]
      %v5517 = vld [vmem:[#allocation2 + $0xf0] sm:$0xff]
      %v5518 = vld [vmem:[#allocation2 + $0xf8] sm:$0xff]
      %v5519 = vld [vmem:[#allocation2 + $0x100] sm:$0xff]
      %v5520 = vld [vmem:[#allocation2 + $0x108] sm:$0xff]
      %v5521 = vld [vmem:[#allocation2 + $0x110] sm:$0xff]
      %v5522 = vld [vmem:[#allocation2 + $0x118] sm:$0xff]
      %v5523 = vld [vmem:[#allocation2 + $0x120] sm:$0xff]
      %v5524 = vld [vmem:[#allocation2 + $0x128] sm:$0xff]
      %v5525 = vld [vmem:[#allocation2 + $0x130] sm:$0xff]
      %v5526 = vld [vmem:[#allocation2 + $0x138] sm:$0xff]
      %v5527 = vld [vmem:[#allocation2 + $0x140] sm:$0xff]
      %v5528 = vld [vmem:[#allocation2 + $0x148] sm:$0xff]
      %v5529 = vld [vmem:[#allocation2 + $0x150] sm:$0xff]
      %v5530 = vld [vmem:[#allocation2 + $0x158] sm:$0xff]
      %v5531 = vld [vmem:[#allocation2 + $0x160] sm:$0xff]
      %v5532 = vld [vmem:[#allocation2 + $0x168] sm:$0xff]
      %v5533 = vld [vmem:[#allocation2 + $0x170] sm:$0xff]
      %v5534 = vld [vmem:[#allocation2 + $0x178] sm:$0xff]
      %v5535 = vld [vmem:[#allocation2 + $0x180] sm:$0xff]
      %v5536 = vld [vmem:[#allocation2 + $0x188] sm:$0xff]
      %v5537 = vld [vmem:[#allocation2 + $0x190] sm:$0xff]
      %v5538 = vld [vmem:[#allocation2 + $0x198] sm:$0xff]
      %v5539 = vld [vmem:[#allocation2 + $0x1a0] sm:$0xff]
      %v5540 = vld [vmem:[#allocation2 + $0x1a8] sm:$0xff]
      %v5541 = vld [vmem:[#allocation2 + $0x1b0] sm:$0xff]
      %v5542 = vld [vmem:[#allocation2 + $0x1b8] sm:$0xff]
      %v5543 = vld [vmem:[#allocation2 + $0x1c0] sm:$0xff]
      %v5544 = vld [vmem:[#allocation2 + $0x1c8] sm:$0xff]
      %v5545 = vld [vmem:[#allocation2 + $0x1d0] sm:$0xff]
      %v5546 = vld [vmem:[#allocation2 + $0x1d8] sm:$0xff]
      %v5547 = vld [vmem:[#allocation2 + $0x1e0] sm:$0xff]
      %v5548 = vld [vmem:[#allocation2 + $0x1e8] sm:$0xff]
      %v5549 = vld [vmem:[#allocation2 + $0x1f0] sm:$0xff]
      %v5550 = vld [vmem:[#allocation2 + $0x1f8] sm:$0xff]
      %v5551 = vld [vmem:[#allocation2 + $0x200] sm:$0xff]
      %v5552 = vld [vmem:[#allocation2 + $0x208] sm:$0xff]
      %v5553 = vld [vmem:[#allocation2 + $0x210] sm:$0xff]
      %v5554 = vld [vmem:[#allocation2 + $0x218] sm:$0xff]
      %v5555 = vld [vmem:[#allocation2 + $0x220] sm:$0xff]
      %v5556 = vld [vmem:[#allocation2 + $0x228] sm:$0xff]
      %v5557 = vld [vmem:[#allocation2 + $0x230] sm:$0xff]
      %v5558 = vld [vmem:[#allocation2 + $0x238] sm:$0xff]
      %v5559 = vld [vmem:[#allocation2 + $0x240] sm:$0xff]
      %v5560 = vld [vmem:[#allocation2 + $0x248] sm:$0xff]
      %v5561 = vld [vmem:[#allocation2 + $0x250] sm:$0xff]
      %s5562 = scalar_lea.vmem %s3, 224
      %v5563 = vld [vmem:[%s5562] sm:$0xff]
      %v5564 = vld [vmem:[%s5562 + $0x8] sm:$0xff]
      %v5565 = vld [vmem:[%s5562 + $0x10] sm:$0xff]
      %v5566 = vld [vmem:[%s5562 + $0x18] sm:$0xff]
      %v5568 = vsel %vm1482, %v5492, 0
      %v5571 = vsel %vm1482, %v5493, 0
      %v5574 = vsel %vm1482, %v5494, 0
      %v5577 = vsel %vm1482, %v5495, 0
      %v5580 = vsel %vm1482, %v5496, 0
      %v5583 = vsel %vm1482, %v5497, 0
      %v5586 = vsel %vm1482, %v5498, 0
      %v5589 = vsel %vm1482, %v5499, 0
      %v5592 = vsel %vm1482, %v5500, 0
      %v5595 = vsel %vm1482, %v5501, 0
      %v5598 = vsel %vm1482, %v5502, 0
      %v5601 = vsel %vm1482, %v5503, 0
      %v5604 = vsel %vm1482, %v5504, 0
      %v5607 = vsel %vm1482, %v5505, 0
      %v5610 = vsel %vm1482, %v5506, 0
      %v5613 = vsel %vm1482, %v5507, 0
      %v5616 = vsel %vm1482, %v5508, 0
      %v5619 = vsel %vm1482, %v5509, 0
      %v5622 = vsel %vm1482, %v5510, 0
      %v5625 = vsel %vm1482, %v5511, 0
      %v5628 = vsel %vm1482, %v5512, 0
      %v5631 = vsel %vm1482, %v5513, 0
      %v5634 = vsel %vm1482, %v5514, 0
      %v5637 = vsel %vm1482, %v5515, 0
      %v5640 = vsel %vm1482, %v5516, 0
      %v5643 = vsel %vm1482, %v5517, 0
      %v5646 = vsel %vm1482, %v5518, 0
      %v5649 = vsel %vm1482, %v5519, 0
      %v5652 = vsel %vm1482, %v5520, 0
      %v5655 = vsel %vm1482, %v5521, 0
      %v5658 = vsel %vm1482, %v5522, 0
      %v5661 = vsel %vm1482, %v5523, 0
      %v5664 = vsel %vm1482, %v5524, 0
      %v5667 = vsel %vm1482, %v5525, 0
      %v5670 = vsel %vm1482, %v5526, 0
      %v5673 = vsel %vm1482, %v5527, 0
      %v5676 = vsel %vm1482, %v5528, 0
      %v5679 = vsel %vm1482, %v5529, 0
      %v5682 = vsel %vm1482, %v5530, 0
      %v5685 = vsel %vm1482, %v5531, 0
      %v5688 = vsel %vm1482, %v5532, 0
      %v5691 = vsel %vm1482, %v5533, 0
      %v5694 = vsel %vm1482, %v5534, 0
      %v5697 = vsel %vm1482, %v5535, 0
      %v5700 = vsel %vm1482, %v5536, 0
      %v5703 = vsel %vm1482, %v5537, 0
      %v5706 = vsel %vm1482, %v5538, 0
      %v5709 = vsel %vm1482, %v5539, 0
      %v5712 = vsel %vm1482, %v5540, 0
      %v5715 = vsel %vm1482, %v5541, 0
      %v5718 = vsel %vm1482, %v5542, 0
      %v5721 = vsel %vm1482, %v5543, 0
      %v5724 = vsel %vm1482, %v5544, 0
      %v5727 = vsel %vm1482, %v5545, 0
      %v5730 = vsel %vm1482, %v5546, 0
      %v5733 = vsel %vm1482, %v5547, 0
      %v5736 = vsel %vm1482, %v5548, 0
      %v5739 = vsel %vm1482, %v5549, 0
      %v5742 = vsel %vm1482, %v5550, 0
      %v5745 = vsel %vm1482, %v5551, 0
      %v5748 = vsel %vm1482, %v5552, 0
      %v5751 = vsel %vm1482, %v5553, 0
      %v5754 = vsel %vm1482, %v5554, 0
      %v5757 = vsel %vm1482, %v5555, 0
      %v5760 = vsel %vm1482, %v5556, 0
      %v5763 = vsel %vm1482, %v5557, 0
      %v5766 = vsel %vm1482, %v5558, 0
      %v5769 = vsel %vm1482, %v5559, 0
      %v5772 = vsel %vm1482, %v5560, 0
      %v5775 = vsel %vm1482, %v5561, 0
      %5777 = vmatpush.msra.mxu0 0.0
      %5778 = vmatpush.msra.mxu0 0.0
      %5779 = vmatpush.msra.mxu0 0.0
      %5780 = vmatpush.msra.mxu0 0.0
      %5781 = vmatpush.msra.mxu0 0.0
      %5782 = vmatpush.msra.mxu0 0.0
      %5783 = vmatpush.msra.mxu0 0.0
      %5784 = vmatpush.msra.mxu0 0.0
      %5785 = vmatpush.msra.mxu0 0.0
      %5786 = vmatpush.msra.mxu0 0.0
      %5787 = vmatpush.msra.mxu0 0.0
      %5788 = vmatpush.msra.mxu0 0.0
      %5789 = vmatpush.msra.mxu0 %v5566
      %5790 = vmatpush.msra.mxu0 %v5565
      %5791 = vmatpush.msra.mxu0 %v5564
      %5792 = vmatpush.msra.mxu0 %v5563
      %5793 = vmatmul.f32.gmra.mxu0 %v5568
      %v5794 = vpop.f32.mrf.mxu0
      %v5795 = vadd.f32 0.0, %v5794
      %5796 = vmatmul.f32.gmra.mxu0 %v5571
      %v5797 = vpop.f32.mrf.mxu0
      %v5798 = vadd.f32 0.0, %v5797
      %5799 = vmatmul.f32.gmra.mxu0 %v5574
      %v5800 = vpop.f32.mrf.mxu0
      %v5801 = vadd.f32 0.0, %v5800
      %5802 = vmatmul.f32.gmra.mxu0 %v5577
      %v5803 = vpop.f32.mrf.mxu0
      %v5804 = vadd.f32 0.0, %v5803
      %5805 = vmatmul.f32.gmra.mxu0 %v5580
      %v5806 = vpop.f32.mrf.mxu0
      %v5807 = vadd.f32 0.0, %v5806
      %5808 = vmatmul.f32.gmra.mxu0 %v5583
      %v5809 = vpop.f32.mrf.mxu0
      %v5810 = vadd.f32 0.0, %v5809
      %5811 = vmatmul.f32.gmra.mxu0 %v5586
      %v5812 = vpop.f32.mrf.mxu0
      %v5813 = vadd.f32 0.0, %v5812
      %5814 = vmatmul.f32.gmra.mxu0 %v5589
      %v5815 = vpop.f32.mrf.mxu0
      %v5816 = vadd.f32 0.0, %v5815
      %5817 = vmatmul.f32.gmra.mxu0 %v5592
      %v5818 = vpop.f32.mrf.mxu0
      %v5819 = vadd.f32 0.0, %v5818
      %5820 = vmatmul.f32.gmra.mxu0 %v5595
      %v5821 = vpop.f32.mrf.mxu0
      %v5822 = vadd.f32 0.0, %v5821
      %5823 = vmatmul.f32.gmra.mxu0 %v5598
      %v5824 = vpop.f32.mrf.mxu0
      %v5825 = vadd.f32 0.0, %v5824
      %5826 = vmatmul.f32.gmra.mxu0 %v5601
      %v5827 = vpop.f32.mrf.mxu0
      %v5828 = vadd.f32 0.0, %v5827
      %5829 = vmatmul.f32.gmra.mxu0 %v5604
      %v5830 = vpop.f32.mrf.mxu0
      %v5831 = vadd.f32 0.0, %v5830
      %5832 = vmatmul.f32.gmra.mxu0 %v5607
      %v5833 = vpop.f32.mrf.mxu0
      %v5834 = vadd.f32 0.0, %v5833
      %5835 = vmatmul.f32.gmra.mxu0 %v5610
      %v5836 = vpop.f32.mrf.mxu0
      %v5837 = vadd.f32 0.0, %v5836
      %5838 = vmatmul.f32.gmra.mxu0 %v5613
      %v5839 = vpop.f32.mrf.mxu0
      %v5840 = vadd.f32 0.0, %v5839
      %5841 = vmatmul.f32.gmra.mxu0 %v5616
      %v5842 = vpop.f32.mrf.mxu0
      %v5843 = vadd.f32 0.0, %v5842
      %5844 = vmatmul.f32.gmra.mxu0 %v5619
      %v5845 = vpop.f32.mrf.mxu0
      %v5846 = vadd.f32 0.0, %v5845
      %5847 = vmatmul.f32.gmra.mxu0 %v5622
      %v5848 = vpop.f32.mrf.mxu0
      %v5849 = vadd.f32 0.0, %v5848
      %5850 = vmatmul.f32.gmra.mxu0 %v5625
      %v5851 = vpop.f32.mrf.mxu0
      %v5852 = vadd.f32 0.0, %v5851
      %5853 = vmatmul.f32.gmra.mxu0 %v5628
      %v5854 = vpop.f32.mrf.mxu0
      %v5855 = vadd.f32 0.0, %v5854
      %5856 = vmatmul.f32.gmra.mxu0 %v5631
      %v5857 = vpop.f32.mrf.mxu0
      %v5858 = vadd.f32 0.0, %v5857
      %5859 = vmatmul.f32.gmra.mxu0 %v5634
      %v5860 = vpop.f32.mrf.mxu0
      %v5861 = vadd.f32 0.0, %v5860
      %5862 = vmatmul.f32.gmra.mxu0 %v5637
      %v5863 = vpop.f32.mrf.mxu0
      %v5864 = vadd.f32 0.0, %v5863
      %5865 = vmatmul.f32.gmra.mxu0 %v5640
      %v5866 = vpop.f32.mrf.mxu0
      %v5867 = vadd.f32 0.0, %v5866
      %5868 = vmatmul.f32.gmra.mxu0 %v5643
      %v5869 = vpop.f32.mrf.mxu0
      %v5870 = vadd.f32 0.0, %v5869
      %5871 = vmatmul.f32.gmra.mxu0 %v5646
      %v5872 = vpop.f32.mrf.mxu0
      %v5873 = vadd.f32 0.0, %v5872
      %5874 = vmatmul.f32.gmra.mxu0 %v5649
      %v5875 = vpop.f32.mrf.mxu0
      %v5876 = vadd.f32 0.0, %v5875
      %5877 = vmatmul.f32.gmra.mxu0 %v5652
      %v5878 = vpop.f32.mrf.mxu0
      %v5879 = vadd.f32 0.0, %v5878
      %5880 = vmatmul.f32.gmra.mxu0 %v5655
      %v5881 = vpop.f32.mrf.mxu0
      %v5882 = vadd.f32 0.0, %v5881
      %5883 = vmatmul.f32.gmra.mxu0 %v5658
      %v5884 = vpop.f32.mrf.mxu0
      %v5885 = vadd.f32 0.0, %v5884
      %5886 = vmatmul.f32.gmra.mxu0 %v5661
      %v5887 = vpop.f32.mrf.mxu0
      %v5888 = vadd.f32 0.0, %v5887
      %5889 = vmatmul.f32.gmra.mxu0 %v5664
      %v5890 = vpop.f32.mrf.mxu0
      %v5891 = vadd.f32 0.0, %v5890
      %5892 = vmatmul.f32.gmra.mxu0 %v5667
      %v5893 = vpop.f32.mrf.mxu0
      %v5894 = vadd.f32 0.0, %v5893
      %5895 = vmatmul.f32.gmra.mxu0 %v5670
      %v5896 = vpop.f32.mrf.mxu0
      %v5897 = vadd.f32 0.0, %v5896
      %5898 = vmatmul.f32.gmra.mxu0 %v5673
      %v5899 = vpop.f32.mrf.mxu0
      %v5900 = vadd.f32 0.0, %v5899
      %5901 = vmatmul.f32.gmra.mxu0 %v5676
      %v5902 = vpop.f32.mrf.mxu0
      %v5903 = vadd.f32 0.0, %v5902
      %5904 = vmatmul.f32.gmra.mxu0 %v5679
      %v5905 = vpop.f32.mrf.mxu0
      %v5906 = vadd.f32 0.0, %v5905
      %5907 = vmatmul.f32.gmra.mxu0 %v5682
      %v5908 = vpop.f32.mrf.mxu0
      %v5909 = vadd.f32 0.0, %v5908
      %5910 = vmatmul.f32.gmra.mxu0 %v5685
      %v5911 = vpop.f32.mrf.mxu0
      %v5912 = vadd.f32 0.0, %v5911
      %5913 = vmatmul.f32.gmra.mxu0 %v5688
      %v5914 = vpop.f32.mrf.mxu0
      %v5915 = vadd.f32 0.0, %v5914
      %5916 = vmatmul.f32.gmra.mxu0 %v5691
      %v5917 = vpop.f32.mrf.mxu0
      %v5918 = vadd.f32 0.0, %v5917
      %5919 = vmatmul.f32.gmra.mxu0 %v5694
      %v5920 = vpop.f32.mrf.mxu0
      %v5921 = vadd.f32 0.0, %v5920
      %5922 = vmatmul.f32.gmra.mxu0 %v5697
      %v5923 = vpop.f32.mrf.mxu0
      %v5924 = vadd.f32 0.0, %v5923
      %5925 = vmatmul.f32.gmra.mxu0 %v5700
      %v5926 = vpop.f32.mrf.mxu0
      %v5927 = vadd.f32 0.0, %v5926
      %5928 = vmatmul.f32.gmra.mxu0 %v5703
      %v5929 = vpop.f32.mrf.mxu0
      %v5930 = vadd.f32 0.0, %v5929
      %5931 = vmatmul.f32.gmra.mxu0 %v5706
      %v5932 = vpop.f32.mrf.mxu0
      %v5933 = vadd.f32 0.0, %v5932
      %5934 = vmatmul.f32.gmra.mxu0 %v5709
      %v5935 = vpop.f32.mrf.mxu0
      %v5936 = vadd.f32 0.0, %v5935
      %5937 = vmatmul.f32.gmra.mxu0 %v5712
      %v5938 = vpop.f32.mrf.mxu0
      %v5939 = vadd.f32 0.0, %v5938
      %5940 = vmatmul.f32.gmra.mxu0 %v5715
      %v5941 = vpop.f32.mrf.mxu0
      %v5942 = vadd.f32 0.0, %v5941
      %5943 = vmatmul.f32.gmra.mxu0 %v5718
      %v5944 = vpop.f32.mrf.mxu0
      %v5945 = vadd.f32 0.0, %v5944
      %5946 = vmatmul.f32.gmra.mxu0 %v5721
      %v5947 = vpop.f32.mrf.mxu0
      %v5948 = vadd.f32 0.0, %v5947
      %5949 = vmatmul.f32.gmra.mxu0 %v5724
      %v5950 = vpop.f32.mrf.mxu0
      %v5951 = vadd.f32 0.0, %v5950
      %5952 = vmatmul.f32.gmra.mxu0 %v5727
      %v5953 = vpop.f32.mrf.mxu0
      %v5954 = vadd.f32 0.0, %v5953
      %5955 = vmatmul.f32.gmra.mxu0 %v5730
      %v5956 = vpop.f32.mrf.mxu0
      %v5957 = vadd.f32 0.0, %v5956
      %5958 = vmatmul.f32.gmra.mxu0 %v5733
      %v5959 = vpop.f32.mrf.mxu0
      %v5960 = vadd.f32 0.0, %v5959
      %5961 = vmatmul.f32.gmra.mxu0 %v5736
      %v5962 = vpop.f32.mrf.mxu0
      %v5963 = vadd.f32 0.0, %v5962
      %5964 = vmatmul.f32.gmra.mxu0 %v5739
      %v5965 = vpop.f32.mrf.mxu0
      %v5966 = vadd.f32 0.0, %v5965
      %5967 = vmatmul.f32.gmra.mxu0 %v5742
      %v5968 = vpop.f32.mrf.mxu0
      %v5969 = vadd.f32 0.0, %v5968
      %5970 = vmatmul.f32.gmra.mxu0 %v5745
      %v5971 = vpop.f32.mrf.mxu0
      %v5972 = vadd.f32 0.0, %v5971
      %5973 = vmatmul.f32.gmra.mxu0 %v5748
      %v5974 = vpop.f32.mrf.mxu0
      %v5975 = vadd.f32 0.0, %v5974
      %5976 = vmatmul.f32.gmra.mxu0 %v5751
      %v5977 = vpop.f32.mrf.mxu0
      %v5978 = vadd.f32 0.0, %v5977
      %5979 = vmatmul.f32.gmra.mxu0 %v5754
      %v5980 = vpop.f32.mrf.mxu0
      %v5981 = vadd.f32 0.0, %v5980
      %5982 = vmatmul.f32.gmra.mxu0 %v5757
      %v5983 = vpop.f32.mrf.mxu0
      %v5984 = vadd.f32 0.0, %v5983
      %5985 = vmatmul.f32.gmra.mxu0 %v5760
      %v5986 = vpop.f32.mrf.mxu0
      %v5987 = vadd.f32 0.0, %v5986
      %5988 = vmatmul.f32.gmra.mxu0 %v5763
      %v5989 = vpop.f32.mrf.mxu0
      %v5990 = vadd.f32 0.0, %v5989
      %5991 = vmatmul.f32.gmra.mxu0 %v5766
      %v5992 = vpop.f32.mrf.mxu0
      %v5993 = vadd.f32 0.0, %v5992
      %5994 = vmatmul.f32.gmra.mxu0 %v5769
      %v5995 = vpop.f32.mrf.mxu0
      %v5996 = vadd.f32 0.0, %v5995
      %5997 = vmatmul.f32.gmra.mxu0 %v5772
      %v5998 = vpop.f32.mrf.mxu0
      %v5999 = vadd.f32 0.0, %v5998
      %6000 = vmatmul.f32.gmra.mxu0 %v5775
      %v6001 = vpop.f32.mrf.mxu0
      %v6002 = vadd.f32 0.0, %v6001
      %6003 = vdwg.mxu0
      %v6004 = vadd.f32 %v5422, %v5795
      %v6005 = vadd.f32 %v5423, %v5798
      %v6006 = vadd.f32 %v5424, %v5801
      %v6007 = vadd.f32 %v5425, %v5804
      %v6008 = vadd.f32 %v5426, %v5807
      %v6009 = vadd.f32 %v5427, %v5810
      %v6010 = vadd.f32 %v5428, %v5813
      %v6011 = vadd.f32 %v5429, %v5816
      %v6012 = vadd.f32 %v5430, %v5819
      %v6013 = vadd.f32 %v5431, %v5822
      %v6014 = vadd.f32 %v5432, %v5825
      %v6015 = vadd.f32 %v5433, %v5828
      %v6016 = vadd.f32 %v5434, %v5831
      %v6017 = vadd.f32 %v5435, %v5834
      %v6018 = vadd.f32 %v5436, %v5837
      %v6019 = vadd.f32 %v5437, %v5840
      %v6020 = vadd.f32 %v5438, %v5843
      %v6021 = vadd.f32 %v5439, %v5846
      %v6022 = vadd.f32 %v5440, %v5849
      %v6023 = vadd.f32 %v5441, %v5852
      %v6024 = vadd.f32 %v5442, %v5855
      %v6025 = vadd.f32 %v5443, %v5858
      %v6026 = vadd.f32 %v5444, %v5861
      %v6027 = vadd.f32 %v5445, %v5864
      %v6028 = vadd.f32 %v5446, %v5867
      %v6029 = vadd.f32 %v5447, %v5870
      %v6030 = vadd.f32 %v5448, %v5873
      %v6031 = vadd.f32 %v5449, %v5876
      %v6032 = vadd.f32 %v5450, %v5879
      %v6033 = vadd.f32 %v5451, %v5882
      %v6034 = vadd.f32 %v5452, %v5885
      %v6035 = vadd.f32 %v5453, %v5888
      %v6036 = vadd.f32 %v5454, %v5891
      %v6037 = vadd.f32 %v5455, %v5894
      %v6038 = vadd.f32 %v5456, %v5897
      %v6039 = vadd.f32 %v5457, %v5900
      %v6040 = vadd.f32 %v5458, %v5903
      %v6041 = vadd.f32 %v5459, %v5906
      %v6042 = vadd.f32 %v5460, %v5909
      %v6043 = vadd.f32 %v5461, %v5912
      %v6044 = vadd.f32 %v5462, %v5915
      %v6045 = vadd.f32 %v5463, %v5918
      %v6046 = vadd.f32 %v5464, %v5921
      %v6047 = vadd.f32 %v5465, %v5924
      %v6048 = vadd.f32 %v5466, %v5927
      %v6049 = vadd.f32 %v5467, %v5930
      %v6050 = vadd.f32 %v5468, %v5933
      %v6051 = vadd.f32 %v5469, %v5936
      %v6052 = vadd.f32 %v5470, %v5939
      %v6053 = vadd.f32 %v5471, %v5942
      %v6054 = vadd.f32 %v5472, %v5945
      %v6055 = vadd.f32 %v5473, %v5948
      %v6056 = vadd.f32 %v5474, %v5951
      %v6057 = vadd.f32 %v5475, %v5954
      %v6058 = vadd.f32 %v5476, %v5957
      %v6059 = vadd.f32 %v5477, %v5960
      %v6060 = vadd.f32 %v5478, %v5963
      %v6061 = vadd.f32 %v5479, %v5966
      %v6062 = vadd.f32 %v5480, %v5969
      %v6063 = vadd.f32 %v5481, %v5972
      %v6064 = vadd.f32 %v5482, %v5975
      %v6065 = vadd.f32 %v5483, %v5978
      %v6066 = vadd.f32 %v5484, %v5981
      %v6067 = vadd.f32 %v5485, %v5984
      %v6068 = vadd.f32 %v5486, %v5987
      %v6069 = vadd.f32 %v5487, %v5990
      %v6070 = vadd.f32 %v5488, %v5993
      %v6071 = vadd.f32 %v5489, %v5996
      %v6072 = vadd.f32 %v5490, %v5999
      %v6073 = vadd.f32 %v5491, %v6002
      %v6074 = vld [vmem:[#allocation2 + $0x29] sm:$0xff]
      %v6075 = vld [vmem:[#allocation2 + $0x31] sm:$0xff]
      %v6076 = vld [vmem:[#allocation2 + $0x39] sm:$0xff]
      %v6077 = vld [vmem:[#allocation2 + $0x41] sm:$0xff]
      %v6078 = vld [vmem:[#allocation2 + $0x49] sm:$0xff]
      %v6079 = vld [vmem:[#allocation2 + $0x51] sm:$0xff]
      %v6080 = vld [vmem:[#allocation2 + $0x59] sm:$0xff]
      %v6081 = vld [vmem:[#allocation2 + $0x61] sm:$0xff]
      %v6082 = vld [vmem:[#allocation2 + $0x69] sm:$0xff]
      %v6083 = vld [vmem:[#allocation2 + $0x71] sm:$0xff]
      %v6084 = vld [vmem:[#allocation2 + $0x79] sm:$0xff]
      %v6085 = vld [vmem:[#allocation2 + $0x81] sm:$0xff]
      %v6086 = vld [vmem:[#allocation2 + $0x89] sm:$0xff]
      %v6087 = vld [vmem:[#allocation2 + $0x91] sm:$0xff]
      %v6088 = vld [vmem:[#allocation2 + $0x99] sm:$0xff]
      %v6089 = vld [vmem:[#allocation2 + $0xa1] sm:$0xff]
      %v6090 = vld [vmem:[#allocation2 + $0xa9] sm:$0xff]
      %v6091 = vld [vmem:[#allocation2 + $0xb1] sm:$0xff]
      %v6092 = vld [vmem:[#allocation2 + $0xb9] sm:$0xff]
      %v6093 = vld [vmem:[#allocation2 + $0xc1] sm:$0xff]
      %v6094 = vld [vmem:[#allocation2 + $0xc9] sm:$0xff]
      %v6095 = vld [vmem:[#allocation2 + $0xd1] sm:$0xff]
      %v6096 = vld [vmem:[#allocation2 + $0xd9] sm:$0xff]
      %v6097 = vld [vmem:[#allocation2 + $0xe1] sm:$0xff]
      %v6098 = vld [vmem:[#allocation2 + $0xe9] sm:$0xff]
      %v6099 = vld [vmem:[#allocation2 + $0xf1] sm:$0xff]
      %v6100 = vld [vmem:[#allocation2 + $0xf9] sm:$0xff]
      %v6101 = vld [vmem:[#allocation2 + $0x101] sm:$0xff]
      %v6102 = vld [vmem:[#allocation2 + $0x109] sm:$0xff]
      %v6103 = vld [vmem:[#allocation2 + $0x111] sm:$0xff]
      %v6104 = vld [vmem:[#allocation2 + $0x119] sm:$0xff]
      %v6105 = vld [vmem:[#allocation2 + $0x121] sm:$0xff]
      %v6106 = vld [vmem:[#allocation2 + $0x129] sm:$0xff]
      %v6107 = vld [vmem:[#allocation2 + $0x131] sm:$0xff]
      %v6108 = vld [vmem:[#allocation2 + $0x139] sm:$0xff]
      %v6109 = vld [vmem:[#allocation2 + $0x141] sm:$0xff]
      %v6110 = vld [vmem:[#allocation2 + $0x149] sm:$0xff]
      %v6111 = vld [vmem:[#allocation2 + $0x151] sm:$0xff]
      %v6112 = vld [vmem:[#allocation2 + $0x159] sm:$0xff]
      %v6113 = vld [vmem:[#allocation2 + $0x161] sm:$0xff]
      %v6114 = vld [vmem:[#allocation2 + $0x169] sm:$0xff]
      %v6115 = vld [vmem:[#allocation2 + $0x171] sm:$0xff]
      %v6116 = vld [vmem:[#allocation2 + $0x179] sm:$0xff]
      %v6117 = vld [vmem:[#allocation2 + $0x181] sm:$0xff]
      %v6118 = vld [vmem:[#allocation2 + $0x189] sm:$0xff]
      %v6119 = vld [vmem:[#allocation2 + $0x191] sm:$0xff]
      %v6120 = vld [vmem:[#allocation2 + $0x199] sm:$0xff]
      %v6121 = vld [vmem:[#allocation2 + $0x1a1] sm:$0xff]
      %v6122 = vld [vmem:[#allocation2 + $0x1a9] sm:$0xff]
      %v6123 = vld [vmem:[#allocation2 + $0x1b1] sm:$0xff]
      %v6124 = vld [vmem:[#allocation2 + $0x1b9] sm:$0xff]
      %v6125 = vld [vmem:[#allocation2 + $0x1c1] sm:$0xff]
      %v6126 = vld [vmem:[#allocation2 + $0x1c9] sm:$0xff]
      %v6127 = vld [vmem:[#allocation2 + $0x1d1] sm:$0xff]
      %v6128 = vld [vmem:[#allocation2 + $0x1d9] sm:$0xff]
      %v6129 = vld [vmem:[#allocation2 + $0x1e1] sm:$0xff]
      %v6130 = vld [vmem:[#allocation2 + $0x1e9] sm:$0xff]
      %v6131 = vld [vmem:[#allocation2 + $0x1f1] sm:$0xff]
      %v6132 = vld [vmem:[#allocation2 + $0x1f9] sm:$0xff]
      %v6133 = vld [vmem:[#allocation2 + $0x201] sm:$0xff]
      %v6134 = vld [vmem:[#allocation2 + $0x209] sm:$0xff]
      %v6135 = vld [vmem:[#allocation2 + $0x211] sm:$0xff]
      %v6136 = vld [vmem:[#allocation2 + $0x219] sm:$0xff]
      %v6137 = vld [vmem:[#allocation2 + $0x221] sm:$0xff]
      %v6138 = vld [vmem:[#allocation2 + $0x229] sm:$0xff]
      %v6139 = vld [vmem:[#allocation2 + $0x231] sm:$0xff]
      %v6140 = vld [vmem:[#allocation2 + $0x239] sm:$0xff]
      %v6141 = vld [vmem:[#allocation2 + $0x241] sm:$0xff]
      %v6142 = vld [vmem:[#allocation2 + $0x249] sm:$0xff]
      %v6143 = vld [vmem:[#allocation2 + $0x251] sm:$0xff]
      %s6144 = scalar_lea.vmem %s3, 256
      %v6145 = vld [vmem:[%s6144] sm:$0xff]
      %v6146 = vld [vmem:[%s6144 + $0x8] sm:$0xff]
      %v6147 = vld [vmem:[%s6144 + $0x10] sm:$0xff]
      %v6148 = vld [vmem:[%s6144 + $0x18] sm:$0xff]
      %v6150 = vsel %vm1482, %v6074, 0
      %v6153 = vsel %vm1482, %v6075, 0
      %v6156 = vsel %vm1482, %v6076, 0
      %v6159 = vsel %vm1482, %v6077, 0
      %v6162 = vsel %vm1482, %v6078, 0
      %v6165 = vsel %vm1482, %v6079, 0
      %v6168 = vsel %vm1482, %v6080, 0
      %v6171 = vsel %vm1482, %v6081, 0
      %v6174 = vsel %vm1482, %v6082, 0
      %v6177 = vsel %vm1482, %v6083, 0
      %v6180 = vsel %vm1482, %v6084, 0
      %v6183 = vsel %vm1482, %v6085, 0
      %v6186 = vsel %vm1482, %v6086, 0
      %v6189 = vsel %vm1482, %v6087, 0
      %v6192 = vsel %vm1482, %v6088, 0
      %v6195 = vsel %vm1482, %v6089, 0
      %v6198 = vsel %vm1482, %v6090, 0
      %v6201 = vsel %vm1482, %v6091, 0
      %v6204 = vsel %vm1482, %v6092, 0
      %v6207 = vsel %vm1482, %v6093, 0
      %v6210 = vsel %vm1482, %v6094, 0
      %v6213 = vsel %vm1482, %v6095, 0
      %v6216 = vsel %vm1482, %v6096, 0
      %v6219 = vsel %vm1482, %v6097, 0
      %v6222 = vsel %vm1482, %v6098, 0
      %v6225 = vsel %vm1482, %v6099, 0
      %v6228 = vsel %vm1482, %v6100, 0
      %v6231 = vsel %vm1482, %v6101, 0
      %v6234 = vsel %vm1482, %v6102, 0
      %v6237 = vsel %vm1482, %v6103, 0
      %v6240 = vsel %vm1482, %v6104, 0
      %v6243 = vsel %vm1482, %v6105, 0
      %v6246 = vsel %vm1482, %v6106, 0
      %v6249 = vsel %vm1482, %v6107, 0
      %v6252 = vsel %vm1482, %v6108, 0
      %v6255 = vsel %vm1482, %v6109, 0
      %v6258 = vsel %vm1482, %v6110, 0
      %v6261 = vsel %vm1482, %v6111, 0
      %v6264 = vsel %vm1482, %v6112, 0
      %v6267 = vsel %vm1482, %v6113, 0
      %v6270 = vsel %vm1482, %v6114, 0
      %v6273 = vsel %vm1482, %v6115, 0
      %v6276 = vsel %vm1482, %v6116, 0
      %v6279 = vsel %vm1482, %v6117, 0
      %v6282 = vsel %vm1482, %v6118, 0
      %v6285 = vsel %vm1482, %v6119, 0
      %v6288 = vsel %vm1482, %v6120, 0
      %v6291 = vsel %vm1482, %v6121, 0
      %v6294 = vsel %vm1482, %v6122, 0
      %v6297 = vsel %vm1482, %v6123, 0
      %v6300 = vsel %vm1482, %v6124, 0
      %v6303 = vsel %vm1482, %v6125, 0
      %v6306 = vsel %vm1482, %v6126, 0
      %v6309 = vsel %vm1482, %v6127, 0
      %v6312 = vsel %vm1482, %v6128, 0
      %v6315 = vsel %vm1482, %v6129, 0
      %v6318 = vsel %vm1482, %v6130, 0
      %v6321 = vsel %vm1482, %v6131, 0
      %v6324 = vsel %vm1482, %v6132, 0
      %v6327 = vsel %vm1482, %v6133, 0
      %v6330 = vsel %vm1482, %v6134, 0
      %v6333 = vsel %vm1482, %v6135, 0
      %v6336 = vsel %vm1482, %v6136, 0
      %v6339 = vsel %vm1482, %v6137, 0
      %v6342 = vsel %vm1482, %v6138, 0
      %v6345 = vsel %vm1482, %v6139, 0
      %v6348 = vsel %vm1482, %v6140, 0
      %v6351 = vsel %vm1482, %v6141, 0
      %v6354 = vsel %vm1482, %v6142, 0
      %v6357 = vsel %vm1482, %v6143, 0
      %6359 = vmatpush.msra.mxu0 0.0
      %6360 = vmatpush.msra.mxu0 0.0
      %6361 = vmatpush.msra.mxu0 0.0
      %6362 = vmatpush.msra.mxu0 0.0
      %6363 = vmatpush.msra.mxu0 0.0
      %6364 = vmatpush.msra.mxu0 0.0
      %6365 = vmatpush.msra.mxu0 0.0
      %6366 = vmatpush.msra.mxu0 0.0
      %6367 = vmatpush.msra.mxu0 0.0
      %6368 = vmatpush.msra.mxu0 0.0
      %6369 = vmatpush.msra.mxu0 0.0
      %6370 = vmatpush.msra.mxu0 0.0
      %6371 = vmatpush.msra.mxu0 %v6148
      %6372 = vmatpush.msra.mxu0 %v6147
      %6373 = vmatpush.msra.mxu0 %v6146
      %6374 = vmatpush.msra.mxu0 %v6145
      %6375 = vmatmul.f32.gmra.mxu0 %v6150
      %v6376 = vpop.f32.mrf.mxu0
      %v6377 = vadd.f32 0.0, %v6376
      %6378 = vmatmul.f32.gmra.mxu0 %v6153
      %v6379 = vpop.f32.mrf.mxu0
      %v6380 = vadd.f32 0.0, %v6379
      %6381 = vmatmul.f32.gmra.mxu0 %v6156
      %v6382 = vpop.f32.mrf.mxu0
      %v6383 = vadd.f32 0.0, %v6382
      %6384 = vmatmul.f32.gmra.mxu0 %v6159
      %v6385 = vpop.f32.mrf.mxu0
      %v6386 = vadd.f32 0.0, %v6385
      %6387 = vmatmul.f32.gmra.mxu0 %v6162
      %v6388 = vpop.f32.mrf.mxu0
      %v6389 = vadd.f32 0.0, %v6388
      %6390 = vmatmul.f32.gmra.mxu0 %v6165
      %v6391 = vpop.f32.mrf.mxu0
      %v6392 = vadd.f32 0.0, %v6391
      %6393 = vmatmul.f32.gmra.mxu0 %v6168
      %v6394 = vpop.f32.mrf.mxu0
      %v6395 = vadd.f32 0.0, %v6394
      %6396 = vmatmul.f32.gmra.mxu0 %v6171
      %v6397 = vpop.f32.mrf.mxu0
      %v6398 = vadd.f32 0.0, %v6397
      %6399 = vmatmul.f32.gmra.mxu0 %v6174
      %v6400 = vpop.f32.mrf.mxu0
      %v6401 = vadd.f32 0.0, %v6400
      %6402 = vmatmul.f32.gmra.mxu0 %v6177
      %v6403 = vpop.f32.mrf.mxu0
      %v6404 = vadd.f32 0.0, %v6403
      %6405 = vmatmul.f32.gmra.mxu0 %v6180
      %v6406 = vpop.f32.mrf.mxu0
      %v6407 = vadd.f32 0.0, %v6406
      %6408 = vmatmul.f32.gmra.mxu0 %v6183
      %v6409 = vpop.f32.mrf.mxu0
      %v6410 = vadd.f32 0.0, %v6409
      %6411 = vmatmul.f32.gmra.mxu0 %v6186
      %v6412 = vpop.f32.mrf.mxu0
      %v6413 = vadd.f32 0.0, %v6412
      %6414 = vmatmul.f32.gmra.mxu0 %v6189
      %v6415 = vpop.f32.mrf.mxu0
      %v6416 = vadd.f32 0.0, %v6415
      %6417 = vmatmul.f32.gmra.mxu0 %v6192
      %v6418 = vpop.f32.mrf.mxu0
      %v6419 = vadd.f32 0.0, %v6418
      %6420 = vmatmul.f32.gmra.mxu0 %v6195
      %v6421 = vpop.f32.mrf.mxu0
      %v6422 = vadd.f32 0.0, %v6421
      %6423 = vmatmul.f32.gmra.mxu0 %v6198
      %v6424 = vpop.f32.mrf.mxu0
      %v6425 = vadd.f32 0.0, %v6424
      %6426 = vmatmul.f32.gmra.mxu0 %v6201
      %v6427 = vpop.f32.mrf.mxu0
      %v6428 = vadd.f32 0.0, %v6427
      %6429 = vmatmul.f32.gmra.mxu0 %v6204
      %v6430 = vpop.f32.mrf.mxu0
      %v6431 = vadd.f32 0.0, %v6430
      %6432 = vmatmul.f32.gmra.mxu0 %v6207
      %v6433 = vpop.f32.mrf.mxu0
      %v6434 = vadd.f32 0.0, %v6433
      %6435 = vmatmul.f32.gmra.mxu0 %v6210
      %v6436 = vpop.f32.mrf.mxu0
      %v6437 = vadd.f32 0.0, %v6436
      %6438 = vmatmul.f32.gmra.mxu0 %v6213
      %v6439 = vpop.f32.mrf.mxu0
      %v6440 = vadd.f32 0.0, %v6439
      %6441 = vmatmul.f32.gmra.mxu0 %v6216
      %v6442 = vpop.f32.mrf.mxu0
      %v6443 = vadd.f32 0.0, %v6442
      %6444 = vmatmul.f32.gmra.mxu0 %v6219
      %v6445 = vpop.f32.mrf.mxu0
      %v6446 = vadd.f32 0.0, %v6445
      %6447 = vmatmul.f32.gmra.mxu0 %v6222
      %v6448 = vpop.f32.mrf.mxu0
      %v6449 = vadd.f32 0.0, %v6448
      %6450 = vmatmul.f32.gmra.mxu0 %v6225
      %v6451 = vpop.f32.mrf.mxu0
      %v6452 = vadd.f32 0.0, %v6451
      %6453 = vmatmul.f32.gmra.mxu0 %v6228
      %v6454 = vpop.f32.mrf.mxu0
      %v6455 = vadd.f32 0.0, %v6454
      %6456 = vmatmul.f32.gmra.mxu0 %v6231
      %v6457 = vpop.f32.mrf.mxu0
      %v6458 = vadd.f32 0.0, %v6457
      %6459 = vmatmul.f32.gmra.mxu0 %v6234
      %v6460 = vpop.f32.mrf.mxu0
      %v6461 = vadd.f32 0.0, %v6460
      %6462 = vmatmul.f32.gmra.mxu0 %v6237
      %v6463 = vpop.f32.mrf.mxu0
      %v6464 = vadd.f32 0.0, %v6463
      %6465 = vmatmul.f32.gmra.mxu0 %v6240
      %v6466 = vpop.f32.mrf.mxu0
      %v6467 = vadd.f32 0.0, %v6466
      %6468 = vmatmul.f32.gmra.mxu0 %v6243
      %v6469 = vpop.f32.mrf.mxu0
      %v6470 = vadd.f32 0.0, %v6469
      %6471 = vmatmul.f32.gmra.mxu0 %v6246
      %v6472 = vpop.f32.mrf.mxu0
      %v6473 = vadd.f32 0.0, %v6472
      %6474 = vmatmul.f32.gmra.mxu0 %v6249
      %v6475 = vpop.f32.mrf.mxu0
      %v6476 = vadd.f32 0.0, %v6475
      %6477 = vmatmul.f32.gmra.mxu0 %v6252
      %v6478 = vpop.f32.mrf.mxu0
      %v6479 = vadd.f32 0.0, %v6478
      %6480 = vmatmul.f32.gmra.mxu0 %v6255
      %v6481 = vpop.f32.mrf.mxu0
      %v6482 = vadd.f32 0.0, %v6481
      %6483 = vmatmul.f32.gmra.mxu0 %v6258
      %v6484 = vpop.f32.mrf.mxu0
      %v6485 = vadd.f32 0.0, %v6484
      %6486 = vmatmul.f32.gmra.mxu0 %v6261
      %v6487 = vpop.f32.mrf.mxu0
      %v6488 = vadd.f32 0.0, %v6487
      %6489 = vmatmul.f32.gmra.mxu0 %v6264
      %v6490 = vpop.f32.mrf.mxu0
      %v6491 = vadd.f32 0.0, %v6490
      %6492 = vmatmul.f32.gmra.mxu0 %v6267
      %v6493 = vpop.f32.mrf.mxu0
      %v6494 = vadd.f32 0.0, %v6493
      %6495 = vmatmul.f32.gmra.mxu0 %v6270
      %v6496 = vpop.f32.mrf.mxu0
      %v6497 = vadd.f32 0.0, %v6496
      %6498 = vmatmul.f32.gmra.mxu0 %v6273
      %v6499 = vpop.f32.mrf.mxu0
      %v6500 = vadd.f32 0.0, %v6499
      %6501 = vmatmul.f32.gmra.mxu0 %v6276
      %v6502 = vpop.f32.mrf.mxu0
      %v6503 = vadd.f32 0.0, %v6502
      %6504 = vmatmul.f32.gmra.mxu0 %v6279
      %v6505 = vpop.f32.mrf.mxu0
      %v6506 = vadd.f32 0.0, %v6505
      %6507 = vmatmul.f32.gmra.mxu0 %v6282
      %v6508 = vpop.f32.mrf.mxu0
      %v6509 = vadd.f32 0.0, %v6508
      %6510 = vmatmul.f32.gmra.mxu0 %v6285
      %v6511 = vpop.f32.mrf.mxu0
      %v6512 = vadd.f32 0.0, %v6511
      %6513 = vmatmul.f32.gmra.mxu0 %v6288
      %v6514 = vpop.f32.mrf.mxu0
      %v6515 = vadd.f32 0.0, %v6514
      %6516 = vmatmul.f32.gmra.mxu0 %v6291
      %v6517 = vpop.f32.mrf.mxu0
      %v6518 = vadd.f32 0.0, %v6517
      %6519 = vmatmul.f32.gmra.mxu0 %v6294
      %v6520 = vpop.f32.mrf.mxu0
      %v6521 = vadd.f32 0.0, %v6520
      %6522 = vmatmul.f32.gmra.mxu0 %v6297
      %v6523 = vpop.f32.mrf.mxu0
      %v6524 = vadd.f32 0.0, %v6523
      %6525 = vmatmul.f32.gmra.mxu0 %v6300
      %v6526 = vpop.f32.mrf.mxu0
      %v6527 = vadd.f32 0.0, %v6526
      %6528 = vmatmul.f32.gmra.mxu0 %v6303
      %v6529 = vpop.f32.mrf.mxu0
      %v6530 = vadd.f32 0.0, %v6529
      %6531 = vmatmul.f32.gmra.mxu0 %v6306
      %v6532 = vpop.f32.mrf.mxu0
      %v6533 = vadd.f32 0.0, %v6532
      %6534 = vmatmul.f32.gmra.mxu0 %v6309
      %v6535 = vpop.f32.mrf.mxu0
      %v6536 = vadd.f32 0.0, %v6535
      %6537 = vmatmul.f32.gmra.mxu0 %v6312
      %v6538 = vpop.f32.mrf.mxu0
      %v6539 = vadd.f32 0.0, %v6538
      %6540 = vmatmul.f32.gmra.mxu0 %v6315
      %v6541 = vpop.f32.mrf.mxu0
      %v6542 = vadd.f32 0.0, %v6541
      %6543 = vmatmul.f32.gmra.mxu0 %v6318
      %v6544 = vpop.f32.mrf.mxu0
      %v6545 = vadd.f32 0.0, %v6544
      %6546 = vmatmul.f32.gmra.mxu0 %v6321
      %v6547 = vpop.f32.mrf.mxu0
      %v6548 = vadd.f32 0.0, %v6547
      %6549 = vmatmul.f32.gmra.mxu0 %v6324
      %v6550 = vpop.f32.mrf.mxu0
      %v6551 = vadd.f32 0.0, %v6550
      %6552 = vmatmul.f32.gmra.mxu0 %v6327
      %v6553 = vpop.f32.mrf.mxu0
      %v6554 = vadd.f32 0.0, %v6553
      %6555 = vmatmul.f32.gmra.mxu0 %v6330
      %v6556 = vpop.f32.mrf.mxu0
      %v6557 = vadd.f32 0.0, %v6556
      %6558 = vmatmul.f32.gmra.mxu0 %v6333
      %v6559 = vpop.f32.mrf.mxu0
      %v6560 = vadd.f32 0.0, %v6559
      %6561 = vmatmul.f32.gmra.mxu0 %v6336
      %v6562 = vpop.f32.mrf.mxu0
      %v6563 = vadd.f32 0.0, %v6562
      %6564 = vmatmul.f32.gmra.mxu0 %v6339
      %v6565 = vpop.f32.mrf.mxu0
      %v6566 = vadd.f32 0.0, %v6565
      %6567 = vmatmul.f32.gmra.mxu0 %v6342
      %v6568 = vpop.f32.mrf.mxu0
      %v6569 = vadd.f32 0.0, %v6568
      %6570 = vmatmul.f32.gmra.mxu0 %v6345
      %v6571 = vpop.f32.mrf.mxu0
      %v6572 = vadd.f32 0.0, %v6571
      %6573 = vmatmul.f32.gmra.mxu0 %v6348
      %v6574 = vpop.f32.mrf.mxu0
      %v6575 = vadd.f32 0.0, %v6574
      %6576 = vmatmul.f32.gmra.mxu0 %v6351
      %v6577 = vpop.f32.mrf.mxu0
      %v6578 = vadd.f32 0.0, %v6577
      %6579 = vmatmul.f32.gmra.mxu0 %v6354
      %v6580 = vpop.f32.mrf.mxu0
      %v6581 = vadd.f32 0.0, %v6580
      %6582 = vmatmul.f32.gmra.mxu0 %v6357
      %v6583 = vpop.f32.mrf.mxu0
      %v6584 = vadd.f32 0.0, %v6583
      %6585 = vdwg.mxu0
      %v6586 = vadd.f32 %v6004, %v6377
      %v6587 = vadd.f32 %v6005, %v6380
      %v6588 = vadd.f32 %v6006, %v6383
      %v6589 = vadd.f32 %v6007, %v6386
      %v6590 = vadd.f32 %v6008, %v6389
      %v6591 = vadd.f32 %v6009, %v6392
      %v6592 = vadd.f32 %v6010, %v6395
      %v6593 = vadd.f32 %v6011, %v6398
      %v6594 = vadd.f32 %v6012, %v6401
      %v6595 = vadd.f32 %v6013, %v6404
      %v6596 = vadd.f32 %v6014, %v6407
      %v6597 = vadd.f32 %v6015, %v6410
      %v6598 = vadd.f32 %v6016, %v6413
      %v6599 = vadd.f32 %v6017, %v6416
      %v6600 = vadd.f32 %v6018, %v6419
      %v6601 = vadd.f32 %v6019, %v6422
      %v6602 = vadd.f32 %v6020, %v6425
      %v6603 = vadd.f32 %v6021, %v6428
      %v6604 = vadd.f32 %v6022, %v6431
      %v6605 = vadd.f32 %v6023, %v6434
      %v6606 = vadd.f32 %v6024, %v6437
      %v6607 = vadd.f32 %v6025, %v6440
      %v6608 = vadd.f32 %v6026, %v6443
      %v6609 = vadd.f32 %v6027, %v6446
      %v6610 = vadd.f32 %v6028, %v6449
      %v6611 = vadd.f32 %v6029, %v6452
      %v6612 = vadd.f32 %v6030, %v6455
      %v6613 = vadd.f32 %v6031, %v6458
      %v6614 = vadd.f32 %v6032, %v6461
      %v6615 = vadd.f32 %v6033, %v6464
      %v6616 = vadd.f32 %v6034, %v6467
      %v6617 = vadd.f32 %v6035, %v6470
      %v6618 = vadd.f32 %v6036, %v6473
      %v6619 = vadd.f32 %v6037, %v6476
      %v6620 = vadd.f32 %v6038, %v6479
      %v6621 = vadd.f32 %v6039, %v6482
      %v6622 = vadd.f32 %v6040, %v6485
      %v6623 = vadd.f32 %v6041, %v6488
      %v6624 = vadd.f32 %v6042, %v6491
      %v6625 = vadd.f32 %v6043, %v6494
      %v6626 = vadd.f32 %v6044, %v6497
      %v6627 = vadd.f32 %v6045, %v6500
      %v6628 = vadd.f32 %v6046, %v6503
      %v6629 = vadd.f32 %v6047, %v6506
      %v6630 = vadd.f32 %v6048, %v6509
      %v6631 = vadd.f32 %v6049, %v6512
      %v6632 = vadd.f32 %v6050, %v6515
      %v6633 = vadd.f32 %v6051, %v6518
      %v6634 = vadd.f32 %v6052, %v6521
      %v6635 = vadd.f32 %v6053, %v6524
      %v6636 = vadd.f32 %v6054, %v6527
      %v6637 = vadd.f32 %v6055, %v6530
      %v6638 = vadd.f32 %v6056, %v6533
      %v6639 = vadd.f32 %v6057, %v6536
      %v6640 = vadd.f32 %v6058, %v6539
      %v6641 = vadd.f32 %v6059, %v6542
      %v6642 = vadd.f32 %v6060, %v6545
      %v6643 = vadd.f32 %v6061, %v6548
      %v6644 = vadd.f32 %v6062, %v6551
      %v6645 = vadd.f32 %v6063, %v6554
      %v6646 = vadd.f32 %v6064, %v6557
      %v6647 = vadd.f32 %v6065, %v6560
      %v6648 = vadd.f32 %v6066, %v6563
      %v6649 = vadd.f32 %v6067, %v6566
      %v6650 = vadd.f32 %v6068, %v6569
      %v6651 = vadd.f32 %v6069, %v6572
      %v6652 = vadd.f32 %v6070, %v6575
      %v6653 = vadd.f32 %v6071, %v6578
      %v6654 = vadd.f32 %v6072, %v6581
      %v6655 = vadd.f32 %v6073, %v6584
      %v6656 = vld [vmem:[%s4] sm:$0x1]
      %v6658 = vperm.slane %v6656, 0
      %v6660 = vadd.f32 %v6586, %v6658
      %v6661 = vadd.f32 %v6587, %v6658
      %v6662 = vadd.f32 %v6588, %v6658
      %v6663 = vadd.f32 %v6589, %v6658
      %v6664 = vadd.f32 %v6590, %v6658
      %v6665 = vadd.f32 %v6591, %v6658
      %v6666 = vadd.f32 %v6592, %v6658
      %v6667 = vadd.f32 %v6593, %v6658
      %v6668 = vadd.f32 %v6594, %v6658
      %v6669 = vadd.f32 %v6595, %v6658
      %v6670 = vadd.f32 %v6596, %v6658
      %v6671 = vadd.f32 %v6597, %v6658
      %v6672 = vadd.f32 %v6598, %v6658
      %v6673 = vadd.f32 %v6599, %v6658
      %v6674 = vadd.f32 %v6600, %v6658
      %v6675 = vadd.f32 %v6601, %v6658
      %v6676 = vadd.f32 %v6602, %v6658
      %v6677 = vadd.f32 %v6603, %v6658
      %v6678 = vadd.f32 %v6604, %v6658
      %v6679 = vadd.f32 %v6605, %v6658
      %v6680 = vadd.f32 %v6606, %v6658
      %v6681 = vadd.f32 %v6607, %v6658
      %v6682 = vadd.f32 %v6608, %v6658
      %v6683 = vadd.f32 %v6609, %v6658
      %v6684 = vadd.f32 %v6610, %v6658
      %v6685 = vadd.f32 %v6611, %v6658
      %v6686 = vadd.f32 %v6612, %v6658
      %v6687 = vadd.f32 %v6613, %v6658
      %v6688 = vadd.f32 %v6614, %v6658
      %v6689 = vadd.f32 %v6615, %v6658
      %v6690 = vadd.f32 %v6616, %v6658
      %v6691 = vadd.f32 %v6617, %v6658
      %v6692 = vadd.f32 %v6618, %v6658
      %v6693 = vadd.f32 %v6619, %v6658
      %v6694 = vadd.f32 %v6620, %v6658
      %v6695 = vadd.f32 %v6621, %v6658
      %v6696 = vadd.f32 %v6622, %v6658
      %v6697 = vadd.f32 %v6623, %v6658
      %v6698 = vadd.f32 %v6624, %v6658
      %v6699 = vadd.f32 %v6625, %v6658
      %v6700 = vadd.f32 %v6626, %v6658
      %v6701 = vadd.f32 %v6627, %v6658
      %v6702 = vadd.f32 %v6628, %v6658
      %v6703 = vadd.f32 %v6629, %v6658
      %v6704 = vadd.f32 %v6630, %v6658
      %v6705 = vadd.f32 %v6631, %v6658
      %v6706 = vadd.f32 %v6632, %v6658
      %v6707 = vadd.f32 %v6633, %v6658
      %v6708 = vadd.f32 %v6634, %v6658
      %v6709 = vadd.f32 %v6635, %v6658
      %v6710 = vadd.f32 %v6636, %v6658
      %v6711 = vadd.f32 %v6637, %v6658
      %v6712 = vadd.f32 %v6638, %v6658
      %v6713 = vadd.f32 %v6639, %v6658
      %v6714 = vadd.f32 %v6640, %v6658
      %v6715 = vadd.f32 %v6641, %v6658
      %v6716 = vadd.f32 %v6642, %v6658
      %v6717 = vadd.f32 %v6643, %v6658
      %v6718 = vadd.f32 %v6644, %v6658
      %v6719 = vadd.f32 %v6645, %v6658
      %v6720 = vadd.f32 %v6646, %v6658
      %v6721 = vadd.f32 %v6647, %v6658
      %v6722 = vadd.f32 %v6648, %v6658
      %v6723 = vadd.f32 %v6649, %v6658
      %v6724 = vadd.f32 %v6650, %v6658
      %v6725 = vadd.f32 %v6651, %v6658
      %v6726 = vadd.f32 %v6652, %v6658
      %v6727 = vadd.f32 %v6653, %v6658
      %v6728 = vadd.f32 %v6654, %v6658
      %v6729 = vadd.f32 %v6655, %v6658
      %v6730 = vmax.f32 %v6660, 0.0
      %v6731 = vmax.f32 %v6661, 0.0
      %v6732 = vmax.f32 %v6662, 0.0
      %v6733 = vmax.f32 %v6663, 0.0
      %v6734 = vmax.f32 %v6664, 0.0
      %v6735 = vmax.f32 %v6665, 0.0
      %v6736 = vmax.f32 %v6666, 0.0
      %v6737 = vmax.f32 %v6667, 0.0
      %v6738 = vmax.f32 %v6668, 0.0
      %v6739 = vmax.f32 %v6669, 0.0
      %v6740 = vmax.f32 %v6670, 0.0
      %v6741 = vmax.f32 %v6671, 0.0
      %v6742 = vmax.f32 %v6672, 0.0
      %v6743 = vmax.f32 %v6673, 0.0
      %v6744 = vmax.f32 %v6674, 0.0
      %v6745 = vmax.f32 %v6675, 0.0
      %v6746 = vmax.f32 %v6676, 0.0
      %v6747 = vmax.f32 %v6677, 0.0
      %v6748 = vmax.f32 %v6678, 0.0
      %v6749 = vmax.f32 %v6679, 0.0
      %v6750 = vmax.f32 %v6680, 0.0
      %v6751 = vmax.f32 %v6681, 0.0
      %v6752 = vmax.f32 %v6682, 0.0
      %v6753 = vmax.f32 %v6683, 0.0
      %v6754 = vmax.f32 %v6684, 0.0
      %v6755 = vmax.f32 %v6685, 0.0
      %v6756 = vmax.f32 %v6686, 0.0
      %v6757 = vmax.f32 %v6687, 0.0
      %v6758 = vmax.f32 %v6688, 0.0
      %v6759 = vmax.f32 %v6689, 0.0
      %v6760 = vmax.f32 %v6690, 0.0
      %v6761 = vmax.f32 %v6691, 0.0
      %v6762 = vmax.f32 %v6692, 0.0
      %v6763 = vmax.f32 %v6693, 0.0
      %v6764 = vmax.f32 %v6694, 0.0
      %v6765 = vmax.f32 %v6695, 0.0
      %v6766 = vmax.f32 %v6696, 0.0
      %v6767 = vmax.f32 %v6697, 0.0
      %v6768 = vmax.f32 %v6698, 0.0
      %v6769 = vmax.f32 %v6699, 0.0
      %v6770 = vmax.f32 %v6700, 0.0
      %v6771 = vmax.f32 %v6701, 0.0
      %v6772 = vmax.f32 %v6702, 0.0
      %v6773 = vmax.f32 %v6703, 0.0
      %v6774 = vmax.f32 %v6704, 0.0
      %v6775 = vmax.f32 %v6705, 0.0
      %v6776 = vmax.f32 %v6706, 0.0
      %v6777 = vmax.f32 %v6707, 0.0
      %v6778 = vmax.f32 %v6708, 0.0
      %v6779 = vmax.f32 %v6709, 0.0
      %v6780 = vmax.f32 %v6710, 0.0
      %v6781 = vmax.f32 %v6711, 0.0
      %v6782 = vmax.f32 %v6712, 0.0
      %v6783 = vmax.f32 %v6713, 0.0
      %v6784 = vmax.f32 %v6714, 0.0
      %v6785 = vmax.f32 %v6715, 0.0
      %v6786 = vmax.f32 %v6716, 0.0
      %v6787 = vmax.f32 %v6717, 0.0
      %v6788 = vmax.f32 %v6718, 0.0
      %v6789 = vmax.f32 %v6719, 0.0
      %v6790 = vmax.f32 %v6720, 0.0
      %v6791 = vmax.f32 %v6721, 0.0
      %v6792 = vmax.f32 %v6722, 0.0
      %v6793 = vmax.f32 %v6723, 0.0
      %v6794 = vmax.f32 %v6724, 0.0
      %v6795 = vmax.f32 %v6725, 0.0
      %v6796 = vmax.f32 %v6726, 0.0
      %v6797 = vmax.f32 %v6727, 0.0
      %v6798 = vmax.f32 %v6728, 0.0
      %v6799 = vmax.f32 %v6729, 0.0
      %vm6800 = vcmask 523264
      %6801 = vst.msk [vmem:[#allocation3] sm:$0xff] %vm6800, %v6730
      %6802 = vst.msk [vmem:[#allocation3 + $0x8] sm:$0xff] %vm6800, %v6731
      %6803 = vst.msk [vmem:[#allocation3 + $0x10] sm:$0xff] %vm6800, %v6732
      %6804 = vst.msk [vmem:[#allocation3 + $0x18] sm:$0xff] %vm6800, %v6733
      %6805 = vst.msk [vmem:[#allocation3 + $0x20] sm:$0xff] %vm6800, %v6734
      %6806 = vst.msk [vmem:[#allocation3 + $0x28] sm:$0xff] %vm6800, %v6735
      %6807 = vst.msk [vmem:[#allocation3 + $0x30] sm:$0xff] %vm6800, %v6736
      %6808 = vst.msk [vmem:[#allocation3 + $0x38] sm:$0xff] %vm6800, %v6737
      %6809 = vst.msk [vmem:[#allocation3 + $0x40] sm:$0xff] %vm6800, %v6738
      %6810 = vst.msk [vmem:[#allocation3 + $0x48] sm:$0xff] %vm6800, %v6739
      %6811 = vst.msk [vmem:[#allocation3 + $0x50] sm:$0xff] %vm6800, %v6740
      %6812 = vst.msk [vmem:[#allocation3 + $0x58] sm:$0xff] %vm6800, %v6741
      %6813 = vst.msk [vmem:[#allocation3 + $0x60] sm:$0xff] %vm6800, %v6742
      %6814 = vst.msk [vmem:[#allocation3 + $0x68] sm:$0xff] %vm6800, %v6743
      %6815 = vst.msk [vmem:[#allocation3 + $0x70] sm:$0xff] %vm6800, %v6744
      %6816 = vst.msk [vmem:[#allocation3 + $0x78] sm:$0xff] %vm6800, %v6745
      %6817 = vst.msk [vmem:[#allocation3 + $0x80] sm:$0xff] %vm6800, %v6746
      %6818 = vst.msk [vmem:[#allocation3 + $0x88] sm:$0xff] %vm6800, %v6747
      %6819 = vst.msk [vmem:[#allocation3 + $0x90] sm:$0xff] %vm6800, %v6748
      %6820 = vst.msk [vmem:[#allocation3 + $0x98] sm:$0xff] %vm6800, %v6749
      %6821 = vst.msk [vmem:[#allocation3 + $0xa0] sm:$0xff] %vm6800, %v6750
      %6822 = vst.msk [vmem:[#allocation3 + $0xa8] sm:$0xff] %vm6800, %v6751
      %6823 = vst.msk [vmem:[#allocation3 + $0xb0] sm:$0xff] %vm6800, %v6752
      %6824 = vst.msk [vmem:[#allocation3 + $0xb8] sm:$0xff] %vm6800, %v6753
      %6825 = vst.msk [vmem:[#allocation3 + $0xc0] sm:$0xff] %vm6800, %v6754
      %6826 = vst.msk [vmem:[#allocation3 + $0xc8] sm:$0xff] %vm6800, %v6755
      %6827 = vst.msk [vmem:[#allocation3 + $0xd0] sm:$0xff] %vm6800, %v6756
      %6828 = vst.msk [vmem:[#allocation3 + $0xd8] sm:$0xff] %vm6800, %v6757
      %6829 = vst.msk [vmem:[#allocation3 + $0xe0] sm:$0xff] %vm6800, %v6758
      %6830 = vst.msk [vmem:[#allocation3 + $0xe8] sm:$0xff] %vm6800, %v6759
      %6831 = vst.msk [vmem:[#allocation3 + $0xf0] sm:$0xff] %vm6800, %v6760
      %6832 = vst.msk [vmem:[#allocation3 + $0xf8] sm:$0xff] %vm6800, %v6761
      %6833 = vst.msk [vmem:[#allocation3 + $0x100] sm:$0xff] %vm6800, %v6762
      %6834 = vst.msk [vmem:[#allocation3 + $0x108] sm:$0xff] %vm6800, %v6763
      %6835 = vst.msk [vmem:[#allocation3 + $0x110] sm:$0xff] %vm6800, %v6764
      %6836 = vst.msk [vmem:[#allocation3 + $0x118] sm:$0xff] %vm6800, %v6765
      %6837 = vst.msk [vmem:[#allocation3 + $0x120] sm:$0xff] %vm6800, %v6766
      %6838 = vst.msk [vmem:[#allocation3 + $0x128] sm:$0xff] %vm6800, %v6767
      %6839 = vst.msk [vmem:[#allocation3 + $0x130] sm:$0xff] %vm6800, %v6768
      %6840 = vst.msk [vmem:[#allocation3 + $0x138] sm:$0xff] %vm6800, %v6769
      %6841 = vst.msk [vmem:[#allocation3 + $0x140] sm:$0xff] %vm6800, %v6770
      %6842 = vst.msk [vmem:[#allocation3 + $0x148] sm:$0xff] %vm6800, %v6771
      %6843 = vst.msk [vmem:[#allocation3 + $0x150] sm:$0xff] %vm6800, %v6772
      %6844 = vst.msk [vmem:[#allocation3 + $0x158] sm:$0xff] %vm6800, %v6773
      %6845 = vst.msk [vmem:[#allocation3 + $0x160] sm:$0xff] %vm6800, %v6774
      %6846 = vst.msk [vmem:[#allocation3 + $0x168] sm:$0xff] %vm6800, %v6775
      %6847 = vst.msk [vmem:[#allocation3 + $0x170] sm:$0xff] %vm6800, %v6776
      %6848 = vst.msk [vmem:[#allocation3 + $0x178] sm:$0xff] %vm6800, %v6777
      %6849 = vst.msk [vmem:[#allocation3 + $0x180] sm:$0xff] %vm6800, %v6778
      %6850 = vst.msk [vmem:[#allocation3 + $0x188] sm:$0xff] %vm6800, %v6779
      %6851 = vst.msk [vmem:[#allocation3 + $0x190] sm:$0xff] %vm6800, %v6780
      %6852 = vst.msk [vmem:[#allocation3 + $0x198] sm:$0xff] %vm6800, %v6781
      %6853 = vst.msk [vmem:[#allocation3 + $0x1a0] sm:$0xff] %vm6800, %v6782
      %6854 = vst.msk [vmem:[#allocation3 + $0x1a8] sm:$0xff] %vm6800, %v6783
      %6855 = vst.msk [vmem:[#allocation3 + $0x1b0] sm:$0xff] %vm6800, %v6784
      %6856 = vst.msk [vmem:[#allocation3 + $0x1b8] sm:$0xff] %vm6800, %v6785
      %6857 = vst.msk [vmem:[#allocation3 + $0x1c0] sm:$0xff] %vm6800, %v6786
      %6858 = vst.msk [vmem:[#allocation3 + $0x1c8] sm:$0xff] %vm6800, %v6787
      %6859 = vst.msk [vmem:[#allocation3 + $0x1d0] sm:$0xff] %vm6800, %v6788
      %6860 = vst.msk [vmem:[#allocation3 + $0x1d8] sm:$0xff] %vm6800, %v6789
      %6861 = vst.msk [vmem:[#allocation3 + $0x1e0] sm:$0xff] %vm6800, %v6790
      %6862 = vst.msk [vmem:[#allocation3 + $0x1e8] sm:$0xff] %vm6800, %v6791
      %6863 = vst.msk [vmem:[#allocation3 + $0x1f0] sm:$0xff] %vm6800, %v6792
      %6864 = vst.msk [vmem:[#allocation3 + $0x1f8] sm:$0xff] %vm6800, %v6793
      %6865 = vst.msk [vmem:[#allocation3 + $0x200] sm:$0xff] %vm6800, %v6794
      %6866 = vst.msk [vmem:[#allocation3 + $0x208] sm:$0xff] %vm6800, %v6795
      %6867 = vst.msk [vmem:[#allocation3 + $0x210] sm:$0xff] %vm6800, %v6796
      %6868 = vst.msk [vmem:[#allocation3 + $0x218] sm:$0xff] %vm6800, %v6797
      %6869 = vst.msk [vmem:[#allocation3 + $0x220] sm:$0xff] %vm6800, %v6798
      %6870 = vst.msk [vmem:[#allocation3 + $0x228] sm:$0xff] %vm6800, %v6799
      %v6871 = vld [vmem:[#allocation3] sm:$0xff]
      %v6872 = vld [vmem:[#allocation3 + $0x20] sm:$0xff]
      %v6873 = vld [vmem:[#allocation3 + $0x40] sm:$0xff]
      %v6874 = vld [vmem:[#allocation3 + $0x60] sm:$0xff]
      %v6875 = vld [vmem:[#allocation3 + $0x90] sm:$0xff]
      %v6876 = vld [vmem:[#allocation3 + $0xb0] sm:$0xff]
      %v6877 = vld [vmem:[#allocation3 + $0xd0] sm:$0xff]
      %v6878 = vld [vmem:[#allocation3 + $0xf0] sm:$0xff]
      %v6879 = vld [vmem:[#allocation3 + $0x120] sm:$0xff]
      %v6880 = vld [vmem:[#allocation3 + $0x140] sm:$0xff]
      %v6881 = vld [vmem:[#allocation3 + $0x160] sm:$0xff]
      %v6882 = vld [vmem:[#allocation3 + $0x180] sm:$0xff]
      %v6883 = vld [vmem:[#allocation3 + $0x1b0] sm:$0xff]
      %v6884 = vld [vmem:[#allocation3 + $0x1d0] sm:$0xff]
      %v6885 = vld [vmem:[#allocation3 + $0x1f0] sm:$0xff]
      %v6886 = vld [vmem:[#allocation3 + $0x210] sm:$0xff]
      %v6887 = vld [vmem:[#allocation3 + $0x1] sm:$0xff]
      %v6888 = vld [vmem:[#allocation3 + $0x21] sm:$0xff]
      %v6889 = vld [vmem:[#allocation3 + $0x41] sm:$0xff]
      %v6890 = vld [vmem:[#allocation3 + $0x61] sm:$0xff]
      %v6891 = vld [vmem:[#allocation3 + $0x91] sm:$0xff]
      %v6892 = vld [vmem:[#allocation3 + $0xb1] sm:$0xff]
      %v6893 = vld [vmem:[#allocation3 + $0xd1] sm:$0xff]
      %v6894 = vld [vmem:[#allocation3 + $0xf1] sm:$0xff]
      %v6895 = vld [vmem:[#allocation3 + $0x121] sm:$0xff]
      %v6896 = vld [vmem:[#allocation3 + $0x141] sm:$0xff]
      %v6897 = vld [vmem:[#allocation3 + $0x161] sm:$0xff]
      %v6898 = vld [vmem:[#allocation3 + $0x181] sm:$0xff]
      %v6899 = vld [vmem:[#allocation3 + $0x1b1] sm:$0xff]
      %v6900 = vld [vmem:[#allocation3 + $0x1d1] sm:$0xff]
      %v6901 = vld [vmem:[#allocation3 + $0x1f1] sm:$0xff]
      %v6902 = vld [vmem:[#allocation3 + $0x211] sm:$0xff]
      %v6903 = vmax.f32 %v6871, %v6887
      %v6904 = vmax.f32 %v6872, %v6888
      %v6905 = vmax.f32 %v6873, %v6889
      %v6906 = vmax.f32 %v6874, %v6890
      %v6907 = vmax.f32 %v6875, %v6891
      %v6908 = vmax.f32 %v6876, %v6892
      %v6909 = vmax.f32 %v6877, %v6893
      %v6910 = vmax.f32 %v6878, %v6894
      %v6911 = vmax.f32 %v6879, %v6895
      %v6912 = vmax.f32 %v6880, %v6896
      %v6913 = vmax.f32 %v6881, %v6897
      %v6914 = vmax.f32 %v6882, %v6898
      %v6915 = vmax.f32 %v6883, %v6899
      %v6916 = vmax.f32 %v6884, %v6900
      %v6917 = vmax.f32 %v6885, %v6901
      %v6918 = vmax.f32 %v6886, %v6902
      %v6919 = vld [vmem:[#allocation3 + $0x10] sm:$0xff]
      %v6920 = vld [vmem:[#allocation3 + $0x30] sm:$0xff]
      %v6921 = vld [vmem:[#allocation3 + $0x50] sm:$0xff]
      %v6922 = vld [vmem:[#allocation3 + $0x70] sm:$0xff]
      %v6923 = vld [vmem:[#allocation3 + $0xa0] sm:$0xff]
      %v6924 = vld [vmem:[#allocation3 + $0xc0] sm:$0xff]
      %v6925 = vld [vmem:[#allocation3 + $0xe0] sm:$0xff]
      %v6926 = vld [vmem:[#allocation3 + $0x100] sm:$0xff]
      %v6927 = vld [vmem:[#allocation3 + $0x130] sm:$0xff]
      %v6928 = vld [vmem:[#allocation3 + $0x150] sm:$0xff]
      %v6929 = vld [vmem:[#allocation3 + $0x170] sm:$0xff]
      %v6930 = vld [vmem:[#allocation3 + $0x190] sm:$0xff]
      %v6931 = vld [vmem:[#allocation3 + $0x1c0] sm:$0xff]
      %v6932 = vld [vmem:[#allocation3 + $0x1e0] sm:$0xff]
      %v6933 = vld [vmem:[#allocation3 + $0x200] sm:$0xff]
      %v6934 = vld [vmem:[#allocation3 + $0x220] sm:$0xff]
      %v6935 = vld [vmem:[#allocation3 + $0x11] sm:$0xff]
      %v6936 = vld [vmem:[#allocation3 + $0x31] sm:$0xff]
      %v6937 = vld [vmem:[#allocation3 + $0x51] sm:$0xff]
      %v6938 = vld [vmem:[#allocation3 + $0x71] sm:$0xff]
      %v6939 = vld [vmem:[#allocation3 + $0xa1] sm:$0xff]
      %v6940 = vld [vmem:[#allocation3 + $0xc1] sm:$0xff]
      %v6941 = vld [vmem:[#allocation3 + $0xe1] sm:$0xff]
      %v6942 = vld [vmem:[#allocation3 + $0x101] sm:$0xff]
      %v6943 = vld [vmem:[#allocation3 + $0x131] sm:$0xff]
      %v6944 = vld [vmem:[#allocation3 + $0x151] sm:$0xff]
      %v6945 = vld [vmem:[#allocation3 + $0x171] sm:$0xff]
      %v6946 = vld [vmem:[#allocation3 + $0x191] sm:$0xff]
      %v6947 = vld [vmem:[#allocation3 + $0x1c1] sm:$0xff]
      %v6948 = vld [vmem:[#allocation3 + $0x1e1] sm:$0xff]
      %v6949 = vld [vmem:[#allocation3 + $0x201] sm:$0xff]
      %v6950 = vld [vmem:[#allocation3 + $0x221] sm:$0xff]
      %v6951 = vmax.f32 %v6919, %v6935
      %v6952 = vmax.f32 %v6920, %v6936
      %v6953 = vmax.f32 %v6921, %v6937
      %v6954 = vmax.f32 %v6922, %v6938
      %v6955 = vmax.f32 %v6923, %v6939
      %v6956 = vmax.f32 %v6924, %v6940
      %v6957 = vmax.f32 %v6925, %v6941
      %v6958 = vmax.f32 %v6926, %v6942
      %v6959 = vmax.f32 %v6927, %v6943
      %v6960 = vmax.f32 %v6928, %v6944
      %v6961 = vmax.f32 %v6929, %v6945
      %v6962 = vmax.f32 %v6930, %v6946
      %v6963 = vmax.f32 %v6931, %v6947
      %v6964 = vmax.f32 %v6932, %v6948
      %v6965 = vmax.f32 %v6933, %v6949
      %v6966 = vmax.f32 %v6934, %v6950
      %v6967 = vmax.f32 %v6903, %v6951
      %v6968 = vmax.f32 %v6904, %v6952
      %v6969 = vmax.f32 %v6905, %v6953
      %v6970 = vmax.f32 %v6906, %v6954
      %v6971 = vmax.f32 %v6907, %v6955
      %v6972 = vmax.f32 %v6908, %v6956
      %v6973 = vmax.f32 %v6909, %v6957
      %v6974 = vmax.f32 %v6910, %v6958
      %v6975 = vmax.f32 %v6911, %v6959
      %v6976 = vmax.f32 %v6912, %v6960
      %v6977 = vmax.f32 %v6913, %v6961
      %v6978 = vmax.f32 %v6914, %v6962
      %v6979 = vmax.f32 %v6915, %v6963
      %v6980 = vmax.f32 %v6916, %v6964
      %v6981 = vmax.f32 %v6917, %v6965
      %v6982 = vmax.f32 %v6918, %v6966
      %6983 = vst.msk [vmem:[#allocation4] sm:$0xff] %vm6800, %v6967
      %6984 = vst.msk [vmem:[#allocation4 + $0x8] sm:$0xff] %vm6800, %v6968
      %6985 = vst.msk [vmem:[#allocation4 + $0x10] sm:$0xff] %vm6800, %v6969
      %6986 = vst.msk [vmem:[#allocation4 + $0x18] sm:$0xff] %vm6800, %v6970
      %6987 = vst.msk [vmem:[#allocation4 + $0x20] sm:$0xff] %vm6800, %v6971
      %6988 = vst.msk [vmem:[#allocation4 + $0x28] sm:$0xff] %vm6800, %v6972
      %6989 = vst.msk [vmem:[#allocation4 + $0x30] sm:$0xff] %vm6800, %v6973
      %6990 = vst.msk [vmem:[#allocation4 + $0x38] sm:$0xff] %vm6800, %v6974
      %6991 = vst.msk [vmem:[#allocation4 + $0x40] sm:$0xff] %vm6800, %v6975
      %6992 = vst.msk [vmem:[#allocation4 + $0x48] sm:$0xff] %vm6800, %v6976
      %6993 = vst.msk [vmem:[#allocation4 + $0x50] sm:$0xff] %vm6800, %v6977
      %6994 = vst.msk [vmem:[#allocation4 + $0x58] sm:$0xff] %vm6800, %v6978
      %6995 = vst.msk [vmem:[#allocation4 + $0x60] sm:$0xff] %vm6800, %v6979
      %6996 = vst.msk [vmem:[#allocation4 + $0x68] sm:$0xff] %vm6800, %v6980
      %6997 = vst.msk [vmem:[#allocation4 + $0x70] sm:$0xff] %vm6800, %v6981
      %6998 = vst.msk [vmem:[#allocation4 + $0x78] sm:$0xff] %vm6800, %v6982
      %v6999 = vld [vmem:[#allocation4] sm:$0xff]
      %v7000 = vld [vmem:[#allocation4 + $0x8] sm:$0xff]
      %v7001 = vld [vmem:[#allocation4 + $0x10] sm:$0xff]
      %v7002 = vld [vmem:[#allocation4 + $0x18] sm:$0xff]
      %v7003 = vld [vmem:[#allocation4 + $0x20] sm:$0xff]
      %v7004 = vld [vmem:[#allocation4 + $0x28] sm:$0xff]
      %v7005 = vld [vmem:[#allocation4 + $0x30] sm:$0xff]
      %v7006 = vld [vmem:[#allocation4 + $0x38] sm:$0xff]
      %v7007 = vld [vmem:[#allocation4 + $0x40] sm:$0xff]
      %v7008 = vld [vmem:[#allocation4 + $0x48] sm:$0xff]
      %v7009 = vld [vmem:[#allocation4 + $0x50] sm:$0xff]
      %v7010 = vld [vmem:[#allocation4 + $0x58] sm:$0xff]
      %v7011 = vld [vmem:[#allocation4 + $0x60] sm:$0xff]
      %v7012 = vld [vmem:[#allocation4 + $0x68] sm:$0xff]
      %v7013 = vld [vmem:[#allocation4 + $0x70] sm:$0xff]
      %v7014 = vld [vmem:[#allocation4 + $0x78] sm:$0xff]
      %v7015 = vld [vmem:[%s5] sm:$0xff]
      %v7016 = vld [vmem:[%s5 + $0x8] sm:$0xff]
      %v7017 = vld [vmem:[%s5 + $0x10] sm:$0xff]
      %v7018 = vld [vmem:[%s5 + $0x18] sm:$0xff]
      %v7019 = vld [vmem:[%s5 + $0x20] sm:$0xff]
      %v7020 = vld [vmem:[%s5 + $0x28] sm:$0xff]
      %v7021 = vld [vmem:[%s5 + $0x30] sm:$0xff]
      %v7022 = vld [vmem:[%s5 + $0x38] sm:$0xff]
      %v7023 = vld [vmem:[%s6] sm:$0x1]
      %v7025 = vperm.slane %v7023, 0
      %v7028 = vsel %vm6800, %v6999, 0
      %v7031 = vsel %vm6800, %v7000, 0
      %v7034 = vsel %vm6800, %v7001, 0
      %v7037 = vsel %vm6800, %v7002, 0
      %v7040 = vsel %vm6800, %v7003, 0
      %v7043 = vsel %vm6800, %v7004, 0
      %v7046 = vsel %vm6800, %v7005, 0
      %v7049 = vsel %vm6800, %v7006, 0
      %v7052 = vsel %vm6800, %v7007, 0
      %v7055 = vsel %vm6800, %v7008, 0
      %v7058 = vsel %vm6800, %v7009, 0
      %v7061 = vsel %vm6800, %v7010, 0
      %v7064 = vsel %vm6800, %v7011, 0
      %v7067 = vsel %vm6800, %v7012, 0
      %v7070 = vsel %vm6800, %v7013, 0
      %v7073 = vsel %vm6800, %v7014, 0
      %7075 = vmatpush.msra.mxu0 0.0
      %7076 = vmatpush.msra.mxu0 0.0
      %7077 = vmatpush.msra.mxu0 0.0
      %7078 = vmatpush.msra.mxu0 0.0
      %7079 = vmatpush.msra.mxu0 0.0
      %7080 = vmatpush.msra.mxu0 0.0
      %7081 = vmatpush.msra.mxu0 0.0
      %7082 = vmatpush.msra.mxu0 0.0
      %7083 = vmatpush.msra.mxu0 %v7022
      %7084 = vmatpush.msra.mxu0 %v7021
      %7085 = vmatpush.msra.mxu0 %v7020
      %7086 = vmatpush.msra.mxu0 %v7019
      %7087 = vmatpush.msra.mxu0 %v7018
      %7088 = vmatpush.msra.mxu0 %v7017
      %7089 = vmatpush.msra.mxu0 %v7016
      %7090 = vmatpush.msra.mxu0 %v7015
      %7091 = vmatmul.f32.gmra.mxu0 %v7028
      %v7092 = vpop.f32.mrf.mxu0
      %v7093 = vadd.f32 %v7025, %v7092
      %7094 = vmatmul.f32.gmra.mxu0 %v7031
      %v7095 = vpop.f32.mrf.mxu0
      %v7096 = vadd.f32 %v7025, %v7095
      %7097 = vmatmul.f32.gmra.mxu0 %v7034
      %v7098 = vpop.f32.mrf.mxu0
      %v7099 = vadd.f32 %v7025, %v7098
      %7100 = vmatmul.f32.gmra.mxu0 %v7037
      %v7101 = vpop.f32.mrf.mxu0
      %v7102 = vadd.f32 %v7025, %v7101
      %7103 = vmatmul.f32.gmra.mxu0 %v7040
      %v7104 = vpop.f32.mrf.mxu0
      %v7105 = vadd.f32 %v7025, %v7104
      %7106 = vmatmul.f32.gmra.mxu0 %v7043
      %v7107 = vpop.f32.mrf.mxu0
      %v7108 = vadd.f32 %v7025, %v7107
      %7109 = vmatmul.f32.gmra.mxu0 %v7046
      %v7110 = vpop.f32.mrf.mxu0
      %v7111 = vadd.f32 %v7025, %v7110
      %7112 = vmatmul.f32.gmra.mxu0 %v7049
      %v7113 = vpop.f32.mrf.mxu0
      %v7114 = vadd.f32 %v7025, %v7113
      %7115 = vmatmul.f32.gmra.mxu0 %v7052
      %v7116 = vpop.f32.mrf.mxu0
      %v7117 = vadd.f32 %v7025, %v7116
      %7118 = vmatmul.f32.gmra.mxu0 %v7055
      %v7119 = vpop.f32.mrf.mxu0
      %v7120 = vadd.f32 %v7025, %v7119
      %7121 = vmatmul.f32.gmra.mxu0 %v7058
      %v7122 = vpop.f32.mrf.mxu0
      %v7123 = vadd.f32 %v7025, %v7122
      %7124 = vmatmul.f32.gmra.mxu0 %v7061
      %v7125 = vpop.f32.mrf.mxu0
      %v7126 = vadd.f32 %v7025, %v7125
      %7127 = vmatmul.f32.gmra.mxu0 %v7064
      %v7128 = vpop.f32.mrf.mxu0
      %v7129 = vadd.f32 %v7025, %v7128
      %7130 = vmatmul.f32.gmra.mxu0 %v7067
      %v7131 = vpop.f32.mrf.mxu0
      %v7132 = vadd.f32 %v7025, %v7131
      %7133 = vmatmul.f32.gmra.mxu0 %v7070
      %v7134 = vpop.f32.mrf.mxu0
      %v7135 = vadd.f32 %v7025, %v7134
      %7136 = vmatmul.f32.gmra.mxu0 %v7073
      %v7137 = vpop.f32.mrf.mxu0
      %v7138 = vadd.f32 %v7025, %v7137
      %7139 = vdwg.mxu0
      %v7140 = vmax.f32 %v7093, 0.0
      %v7141 = vmax.f32 %v7096, 0.0
      %v7142 = vmax.f32 %v7099, 0.0
      %v7143 = vmax.f32 %v7102, 0.0
      %v7144 = vmax.f32 %v7105, 0.0
      %v7145 = vmax.f32 %v7108, 0.0
      %v7146 = vmax.f32 %v7111, 0.0
      %v7147 = vmax.f32 %v7114, 0.0
      %v7148 = vmax.f32 %v7117, 0.0
      %v7149 = vmax.f32 %v7120, 0.0
      %v7150 = vmax.f32 %v7123, 0.0
      %v7151 = vmax.f32 %v7126, 0.0
      %v7152 = vmax.f32 %v7129, 0.0
      %v7153 = vmax.f32 %v7132, 0.0
      %v7154 = vmax.f32 %v7135, 0.0
      %v7155 = vmax.f32 %v7138, 0.0
      %v7156 = vld [vmem:[%s7] sm:$0xff]
      %v7157 = vld [vmem:[%s7 + $0x8] sm:$0xff]
      %v7158 = vld [vmem:[%s7 + $0x10] sm:$0xff]
      %v7159 = vld [vmem:[%s7 + $0x18] sm:$0xff]
      %v7160 = vld [vmem:[%s7 + $0x20] sm:$0xff]
      %v7161 = vld [vmem:[%s7 + $0x28] sm:$0xff]
      %v7162 = vld [vmem:[%s7 + $0x30] sm:$0xff]
      %v7163 = vld [vmem:[%s7 + $0x38] sm:$0xff]
      %v7164 = vld [vmem:[%s7 + $0x40] sm:$0xff]
      %v7165 = vld [vmem:[%s7 + $0x48] sm:$0xff]
      %v7166 = vld [vmem:[%s7 + $0x50] sm:$0xff]
      %v7167 = vld [vmem:[%s7 + $0x58] sm:$0xff]
      %v7168 = vld [vmem:[%s7 + $0x60] sm:$0xff]
      %v7169 = vld [vmem:[%s7 + $0x68] sm:$0xff]
      %v7170 = vld [vmem:[%s7 + $0x70] sm:$0xff]
      %v7171 = vld [vmem:[%s7 + $0x78] sm:$0xff]
      %v7172 = vld [vmem:[%s8] sm:$0x1]
      %v7174 = vperm.slane %v7172, 0
      %7176 = vmatpush.msra.mxu0 %v7171
      %7177 = vmatpush.msra.mxu0 %v7170
      %7178 = vmatpush.msra.mxu0 %v7169
      %7179 = vmatpush.msra.mxu0 %v7168
      %7180 = vmatpush.msra.mxu0 %v7167
      %7181 = vmatpush.msra.mxu0 %v7166
      %7182 = vmatpush.msra.mxu0 %v7165
      %7183 = vmatpush.msra.mxu0 %v7164
      %7184 = vmatpush.msra.mxu0 %v7163
      %7185 = vmatpush.msra.mxu0 %v7162
      %7186 = vmatpush.msra.mxu0 %v7161
      %7187 = vmatpush.msra.mxu0 %v7160
      %7188 = vmatpush.msra.mxu0 %v7159
      %7189 = vmatpush.msra.mxu0 %v7158
      %7190 = vmatpush.msra.mxu0 %v7157
      %7191 = vmatpush.msra.mxu0 %v7156
      %7192 = vmatmul.f32.gmra.mxu0 %v7140
      %v7193 = vpop.f32.mrf.mxu0
      %v7194 = vadd.f32 %v7174, %v7193
      %7195 = vmatmul.f32.gmra.mxu0 %v7141
      %v7196 = vpop.f32.mrf.mxu0
      %v7197 = vadd.f32 %v7174, %v7196
      %7198 = vmatmul.f32.gmra.mxu0 %v7142
      %v7199 = vpop.f32.mrf.mxu0
      %v7200 = vadd.f32 %v7174, %v7199
      %7201 = vmatmul.f32.gmra.mxu0 %v7143
      %v7202 = vpop.f32.mrf.mxu0
      %v7203 = vadd.f32 %v7174, %v7202
      %7204 = vmatmul.f32.gmra.mxu0 %v7144
      %v7205 = vpop.f32.mrf.mxu0
      %v7206 = vadd.f32 %v7174, %v7205
      %7207 = vmatmul.f32.gmra.mxu0 %v7145
      %v7208 = vpop.f32.mrf.mxu0
      %v7209 = vadd.f32 %v7174, %v7208
      %7210 = vmatmul.f32.gmra.mxu0 %v7146
      %v7211 = vpop.f32.mrf.mxu0
      %v7212 = vadd.f32 %v7174, %v7211
      %7213 = vmatmul.f32.gmra.mxu0 %v7147
      %v7214 = vpop.f32.mrf.mxu0
      %v7215 = vadd.f32 %v7174, %v7214
      %7216 = vmatmul.f32.gmra.mxu0 %v7148
      %v7217 = vpop.f32.mrf.mxu0
      %v7218 = vadd.f32 %v7174, %v7217
      %7219 = vmatmul.f32.gmra.mxu0 %v7149
      %v7220 = vpop.f32.mrf.mxu0
      %v7221 = vadd.f32 %v7174, %v7220
      %7222 = vmatmul.f32.gmra.mxu0 %v7150
      %v7223 = vpop.f32.mrf.mxu0
      %v7224 = vadd.f32 %v7174, %v7223
      %7225 = vmatmul.f32.gmra.mxu0 %v7151
      %v7226 = vpop.f32.mrf.mxu0
      %v7227 = vadd.f32 %v7174, %v7226
      %7228 = vmatmul.f32.gmra.mxu0 %v7152
      %v7229 = vpop.f32.mrf.mxu0
      %v7230 = vadd.f32 %v7174, %v7229
      %7231 = vmatmul.f32.gmra.mxu0 %v7153
      %v7232 = vpop.f32.mrf.mxu0
      %v7233 = vadd.f32 %v7174, %v7232
      %7234 = vmatmul.f32.gmra.mxu0 %v7154
      %v7235 = vpop.f32.mrf.mxu0
      %v7236 = vadd.f32 %v7174, %v7235
      %7237 = vmatmul.f32.gmra.mxu0 %v7155
      %v7238 = vpop.f32.mrf.mxu0
      %v7239 = vadd.f32 %v7174, %v7238
      %7240 = vdwg.mxu0
      %v7241 = vsub.f32 0.0, %v7194
      %v7242 = vsub.f32 0.0, %v7197
      %v7243 = vsub.f32 0.0, %v7200
      %v7244 = vsub.f32 0.0, %v7203
      %v7245 = vsub.f32 0.0, %v7206
      %v7246 = vsub.f32 0.0, %v7209
      %v7247 = vsub.f32 0.0, %v7212
      %v7248 = vsub.f32 0.0, %v7215
      %v7249 = vsub.f32 0.0, %v7218
      %v7250 = vsub.f32 0.0, %v7221
      %v7251 = vsub.f32 0.0, %v7224
      %v7252 = vsub.f32 0.0, %v7227
      %v7253 = vsub.f32 0.0, %v7230
      %v7254 = vsub.f32 0.0, %v7233
      %v7255 = vsub.f32 0.0, %v7236
      %v7256 = vsub.f32 0.0, %v7239
      %v7257 = vmul.f32 %v7241, 1.442695
      %v7258 = vpow.pop %v7257
      %v7259 = vmul.f32 %v7242, 1.442695
      %v7260 = vpow.pop %v7259
      %v7261 = vmul.f32 %v7243, 1.442695
      %v7262 = vpow.pop %v7261
      %v7263 = vmul.f32 %v7244, 1.442695
      %v7264 = vpow.pop %v7263
      %v7265 = vmul.f32 %v7245, 1.442695
      %v7266 = vpow.pop %v7265
      %v7267 = vmul.f32 %v7246, 1.442695
      %v7268 = vpow.pop %v7267
      %v7269 = vmul.f32 %v7247, 1.442695
      %v7270 = vpow.pop %v7269
      %v7271 = vmul.f32 %v7248, 1.442695
      %v7272 = vpow.pop %v7271
      %v7273 = vmul.f32 %v7249, 1.442695
      %v7274 = vpow.pop %v7273
      %v7275 = vmul.f32 %v7250, 1.442695
      %v7276 = vpow.pop %v7275
      %v7277 = vmul.f32 %v7251, 1.442695
      %v7278 = vpow.pop %v7277
      %v7279 = vmul.f32 %v7252, 1.442695
      %v7280 = vpow.pop %v7279
      %v7281 = vmul.f32 %v7253, 1.442695
      %v7282 = vpow.pop %v7281
      %v7283 = vmul.f32 %v7254, 1.442695
      %v7284 = vpow.pop %v7283
      %v7285 = vmul.f32 %v7255, 1.442695
      %v7286 = vpow.pop %v7285
      %v7287 = vmul.f32 %v7256, 1.442695
      %v7288 = vpow.pop %v7287
      %v7289 = vadd.f32 %v7258, 1.0
      %v7290 = vadd.f32 %v7260, 1.0
      %v7291 = vadd.f32 %v7262, 1.0
      %v7292 = vadd.f32 %v7264, 1.0
      %v7293 = vadd.f32 %v7266, 1.0
      %v7294 = vadd.f32 %v7268, 1.0
      %v7295 = vadd.f32 %v7270, 1.0
      %v7296 = vadd.f32 %v7272, 1.0
      %v7297 = vadd.f32 %v7274, 1.0
      %v7298 = vadd.f32 %v7276, 1.0
      %v7299 = vadd.f32 %v7278, 1.0
      %v7300 = vadd.f32 %v7280, 1.0
      %v7301 = vadd.f32 %v7282, 1.0
      %v7302 = vadd.f32 %v7284, 1.0
      %v7303 = vadd.f32 %v7286, 1.0
      %v7304 = vadd.f32 %v7288, 1.0
      %v7305 = vrcp.pop %v7289
      %v7306 = vmul.f32 %v7289, %v7305
      %v7307 = vsub.f32 1.0, %v7306
      %v7308 = vmul.f32 %v7305, %v7307
      %v7309 = vadd.f32 %v7305, %v7308
      %vm7310 = vweird.f32 %v7289
      %vm7311 = vweird.f32 %v7305
      %vm7312 = vmor %vm7310, %vm7311
      %v7313 = vsel %vm7312, %v7305, %v7309
      %v7314 = vand.u32 2147483647, %v7289
      %vm7315 = vcmp.eq.f32.partialorder %v7314, 8.507059e+37
      %v7316 = vand.u32 %v7289, 2147483648
      %v7317 = vor.u32 1.1754944e-38, %v7316
      %v7318 = vsel %vm7315, %v7317, %v7313
      %v7319 = vmul.f32 1.0, %v7318
      %v7320 = vrcp.pop %v7290
      %v7321 = vmul.f32 %v7290, %v7320
      %v7322 = vsub.f32 1.0, %v7321
      %v7323 = vmul.f32 %v7320, %v7322
      %v7324 = vadd.f32 %v7320, %v7323
      %vm7325 = vweird.f32 %v7290
      %vm7326 = vweird.f32 %v7320
      %vm7327 = vmor %vm7325, %vm7326
      %v7328 = vsel %vm7327, %v7320, %v7324
      %v7329 = vand.u32 2147483647, %v7290
      %vm7330 = vcmp.eq.f32.partialorder %v7329, 8.507059e+37
      %v7331 = vand.u32 %v7290, 2147483648
      %v7332 = vor.u32 1.1754944e-38, %v7331
      %v7333 = vsel %vm7330, %v7332, %v7328
      %v7334 = vmul.f32 1.0, %v7333
      %v7335 = vrcp.pop %v7291
      %v7336 = vmul.f32 %v7291, %v7335
      %v7337 = vsub.f32 1.0, %v7336
      %v7338 = vmul.f32 %v7335, %v7337
      %v7339 = vadd.f32 %v7335, %v7338
      %vm7340 = vweird.f32 %v7291
      %vm7341 = vweird.f32 %v7335
      %vm7342 = vmor %vm7340, %vm7341
      %v7343 = vsel %vm7342, %v7335, %v7339
      %v7344 = vand.u32 2147483647, %v7291
      %vm7345 = vcmp.eq.f32.partialorder %v7344, 8.507059e+37
      %v7346 = vand.u32 %v7291, 2147483648
      %v7347 = vor.u32 1.1754944e-38, %v7346
      %v7348 = vsel %vm7345, %v7347, %v7343
      %v7349 = vmul.f32 1.0, %v7348
      %v7350 = vrcp.pop %v7292
      %v7351 = vmul.f32 %v7292, %v7350
      %v7352 = vsub.f32 1.0, %v7351
      %v7353 = vmul.f32 %v7350, %v7352
      %v7354 = vadd.f32 %v7350, %v7353
      %vm7355 = vweird.f32 %v7292
      %vm7356 = vweird.f32 %v7350
      %vm7357 = vmor %vm7355, %vm7356
      %v7358 = vsel %vm7357, %v7350, %v7354
      %v7359 = vand.u32 2147483647, %v7292
      %vm7360 = vcmp.eq.f32.partialorder %v7359, 8.507059e+37
      %v7361 = vand.u32 %v7292, 2147483648
      %v7362 = vor.u32 1.1754944e-38, %v7361
      %v7363 = vsel %vm7360, %v7362, %v7358
      %v7364 = vmul.f32 1.0, %v7363
      %v7365 = vrcp.pop %v7293
      %v7366 = vmul.f32 %v7293, %v7365
      %v7367 = vsub.f32 1.0, %v7366
      %v7368 = vmul.f32 %v7365, %v7367
      %v7369 = vadd.f32 %v7365, %v7368
      %vm7370 = vweird.f32 %v7293
      %vm7371 = vweird.f32 %v7365
      %vm7372 = vmor %vm7370, %vm7371
      %v7373 = vsel %vm7372, %v7365, %v7369
      %v7374 = vand.u32 2147483647, %v7293
      %vm7375 = vcmp.eq.f32.partialorder %v7374, 8.507059e+37
      %v7376 = vand.u32 %v7293, 2147483648
      %v7377 = vor.u32 1.1754944e-38, %v7376
      %v7378 = vsel %vm7375, %v7377, %v7373
      %v7379 = vmul.f32 1.0, %v7378
      %v7380 = vrcp.pop %v7294
      %v7381 = vmul.f32 %v7294, %v7380
      %v7382 = vsub.f32 1.0, %v7381
      %v7383 = vmul.f32 %v7380, %v7382
      %v7384 = vadd.f32 %v7380, %v7383
      %vm7385 = vweird.f32 %v7294
      %vm7386 = vweird.f32 %v7380
      %vm7387 = vmor %vm7385, %vm7386
      %v7388 = vsel %vm7387, %v7380, %v7384
      %v7389 = vand.u32 2147483647, %v7294
      %vm7390 = vcmp.eq.f32.partialorder %v7389, 8.507059e+37
      %v7391 = vand.u32 %v7294, 2147483648
      %v7392 = vor.u32 1.1754944e-38, %v7391
      %v7393 = vsel %vm7390, %v7392, %v7388
      %v7394 = vmul.f32 1.0, %v7393
      %v7395 = vrcp.pop %v7295
      %v7396 = vmul.f32 %v7295, %v7395
      %v7397 = vsub.f32 1.0, %v7396
      %v7398 = vmul.f32 %v7395, %v7397
      %v7399 = vadd.f32 %v7395, %v7398
      %vm7400 = vweird.f32 %v7295
      %vm7401 = vweird.f32 %v7395
      %vm7402 = vmor %vm7400, %vm7401
      %v7403 = vsel %vm7402, %v7395, %v7399
      %v7404 = vand.u32 2147483647, %v7295
      %vm7405 = vcmp.eq.f32.partialorder %v7404, 8.507059e+37
      %v7406 = vand.u32 %v7295, 2147483648
      %v7407 = vor.u32 1.1754944e-38, %v7406
      %v7408 = vsel %vm7405, %v7407, %v7403
      %v7409 = vmul.f32 1.0, %v7408
      %v7410 = vrcp.pop %v7296
      %v7411 = vmul.f32 %v7296, %v7410
      %v7412 = vsub.f32 1.0, %v7411
      %v7413 = vmul.f32 %v7410, %v7412
      %v7414 = vadd.f32 %v7410, %v7413
      %vm7415 = vweird.f32 %v7296
      %vm7416 = vweird.f32 %v7410
      %vm7417 = vmor %vm7415, %vm7416
      %v7418 = vsel %vm7417, %v7410, %v7414
      %v7419 = vand.u32 2147483647, %v7296
      %vm7420 = vcmp.eq.f32.partialorder %v7419, 8.507059e+37
      %v7421 = vand.u32 %v7296, 2147483648
      %v7422 = vor.u32 1.1754944e-38, %v7421
      %v7423 = vsel %vm7420, %v7422, %v7418
      %v7424 = vmul.f32 1.0, %v7423
      %v7425 = vrcp.pop %v7297
      %v7426 = vmul.f32 %v7297, %v7425
      %v7427 = vsub.f32 1.0, %v7426
      %v7428 = vmul.f32 %v7425, %v7427
      %v7429 = vadd.f32 %v7425, %v7428
      %vm7430 = vweird.f32 %v7297
      %vm7431 = vweird.f32 %v7425
      %vm7432 = vmor %vm7430, %vm7431
      %v7433 = vsel %vm7432, %v7425, %v7429
      %v7434 = vand.u32 2147483647, %v7297
      %vm7435 = vcmp.eq.f32.partialorder %v7434, 8.507059e+37
      %v7436 = vand.u32 %v7297, 2147483648
      %v7437 = vor.u32 1.1754944e-38, %v7436
      %v7438 = vsel %vm7435, %v7437, %v7433
      %v7439 = vmul.f32 1.0, %v7438
      %v7440 = vrcp.pop %v7298
      %v7441 = vmul.f32 %v7298, %v7440
      %v7442 = vsub.f32 1.0, %v7441
      %v7443 = vmul.f32 %v7440, %v7442
      %v7444 = vadd.f32 %v7440, %v7443
      %vm7445 = vweird.f32 %v7298
      %vm7446 = vweird.f32 %v7440
      %vm7447 = vmor %vm7445, %vm7446
      %v7448 = vsel %vm7447, %v7440, %v7444
      %v7449 = vand.u32 2147483647, %v7298
      %vm7450 = vcmp.eq.f32.partialorder %v7449, 8.507059e+37
      %v7451 = vand.u32 %v7298, 2147483648
      %v7452 = vor.u32 1.1754944e-38, %v7451
      %v7453 = vsel %vm7450, %v7452, %v7448
      %v7454 = vmul.f32 1.0, %v7453
      %v7455 = vrcp.pop %v7299
      %v7456 = vmul.f32 %v7299, %v7455
      %v7457 = vsub.f32 1.0, %v7456
      %v7458 = vmul.f32 %v7455, %v7457
      %v7459 = vadd.f32 %v7455, %v7458
      %vm7460 = vweird.f32 %v7299
      %vm7461 = vweird.f32 %v7455
      %vm7462 = vmor %vm7460, %vm7461
      %v7463 = vsel %vm7462, %v7455, %v7459
      %v7464 = vand.u32 2147483647, %v7299
      %vm7465 = vcmp.eq.f32.partialorder %v7464, 8.507059e+37
      %v7466 = vand.u32 %v7299, 2147483648
      %v7467 = vor.u32 1.1754944e-38, %v7466
      %v7468 = vsel %vm7465, %v7467, %v7463
      %v7469 = vmul.f32 1.0, %v7468
      %v7470 = vrcp.pop %v7300
      %v7471 = vmul.f32 %v7300, %v7470
      %v7472 = vsub.f32 1.0, %v7471
      %v7473 = vmul.f32 %v7470, %v7472
      %v7474 = vadd.f32 %v7470, %v7473
      %vm7475 = vweird.f32 %v7300
      %vm7476 = vweird.f32 %v7470
      %vm7477 = vmor %vm7475, %vm7476
      %v7478 = vsel %vm7477, %v7470, %v7474
      %v7479 = vand.u32 2147483647, %v7300
      %vm7480 = vcmp.eq.f32.partialorder %v7479, 8.507059e+37
      %v7481 = vand.u32 %v7300, 2147483648
      %v7482 = vor.u32 1.1754944e-38, %v7481
      %v7483 = vsel %vm7480, %v7482, %v7478
      %v7484 = vmul.f32 1.0, %v7483
      %v7485 = vrcp.pop %v7301
      %v7486 = vmul.f32 %v7301, %v7485
      %v7487 = vsub.f32 1.0, %v7486
      %v7488 = vmul.f32 %v7485, %v7487
      %v7489 = vadd.f32 %v7485, %v7488
      %vm7490 = vweird.f32 %v7301
      %vm7491 = vweird.f32 %v7485
      %vm7492 = vmor %vm7490, %vm7491
      %v7493 = vsel %vm7492, %v7485, %v7489
      %v7494 = vand.u32 2147483647, %v7301
      %vm7495 = vcmp.eq.f32.partialorder %v7494, 8.507059e+37
      %v7496 = vand.u32 %v7301, 2147483648
      %v7497 = vor.u32 1.1754944e-38, %v7496
      %v7498 = vsel %vm7495, %v7497, %v7493
      %v7499 = vmul.f32 1.0, %v7498
      %v7500 = vrcp.pop %v7302
      %v7501 = vmul.f32 %v7302, %v7500
      %v7502 = vsub.f32 1.0, %v7501
      %v7503 = vmul.f32 %v7500, %v7502
      %v7504 = vadd.f32 %v7500, %v7503
      %vm7505 = vweird.f32 %v7302
      %vm7506 = vweird.f32 %v7500
      %vm7507 = vmor %vm7505, %vm7506
      %v7508 = vsel %vm7507, %v7500, %v7504
      %v7509 = vand.u32 2147483647, %v7302
      %vm7510 = vcmp.eq.f32.partialorder %v7509, 8.507059e+37
      %v7511 = vand.u32 %v7302, 2147483648
      %v7512 = vor.u32 1.1754944e-38, %v7511
      %v7513 = vsel %vm7510, %v7512, %v7508
      %v7514 = vmul.f32 1.0, %v7513
      %v7515 = vrcp.pop %v7303
      %v7516 = vmul.f32 %v7303, %v7515
      %v7517 = vsub.f32 1.0, %v7516
      %v7518 = vmul.f32 %v7515, %v7517
      %v7519 = vadd.f32 %v7515, %v7518
      %vm7520 = vweird.f32 %v7303
      %vm7521 = vweird.f32 %v7515
      %vm7522 = vmor %vm7520, %vm7521
      %v7523 = vsel %vm7522, %v7515, %v7519
      %v7524 = vand.u32 2147483647, %v7303
      %vm7525 = vcmp.eq.f32.partialorder %v7524, 8.507059e+37
      %v7526 = vand.u32 %v7303, 2147483648
      %v7527 = vor.u32 1.1754944e-38, %v7526
      %v7528 = vsel %vm7525, %v7527, %v7523
      %v7529 = vmul.f32 1.0, %v7528
      %v7530 = vrcp.pop %v7304
      %v7531 = vmul.f32 %v7304, %v7530
      %v7532 = vsub.f32 1.0, %v7531
      %v7533 = vmul.f32 %v7530, %v7532
      %v7534 = vadd.f32 %v7530, %v7533
      %vm7535 = vweird.f32 %v7304
      %vm7536 = vweird.f32 %v7530
      %vm7537 = vmor %vm7535, %vm7536
      %v7538 = vsel %vm7537, %v7530, %v7534
      %v7539 = vand.u32 2147483647, %v7304
      %vm7540 = vcmp.eq.f32.partialorder %v7539, 8.507059e+37
      %v7541 = vand.u32 %v7304, 2147483648
      %v7542 = vor.u32 1.1754944e-38, %v7541
      %v7543 = vsel %vm7540, %v7542, %v7538
      %v7544 = vmul.f32 1.0, %v7543
      %vm7545 = vcmask 130048
      %7546 = vst.msk [vmem:[%s332] sm:$0xff] %vm7545, %v7319
      %7547 = vst.msk [vmem:[%s332 + $0x8] sm:$0xff] %vm7545, %v7334
      %7548 = vst.msk [vmem:[%s332 + $0x10] sm:$0xff] %vm7545, %v7349
      %7549 = vst.msk [vmem:[%s332 + $0x18] sm:$0xff] %vm7545, %v7364
      %7550 = vst.msk [vmem:[%s332 + $0x20] sm:$0xff] %vm7545, %v7379
      %7551 = vst.msk [vmem:[%s332 + $0x28] sm:$0xff] %vm7545, %v7394
      %7552 = vst.msk [vmem:[%s332 + $0x30] sm:$0xff] %vm7545, %v7409
      %7553 = vst.msk [vmem:[%s332 + $0x38] sm:$0xff] %vm7545, %v7424
      %7554 = vst.msk [vmem:[%s332 + $0x40] sm:$0xff] %vm7545, %v7439
      %7555 = vst.msk [vmem:[%s332 + $0x48] sm:$0xff] %vm7545, %v7454
      %7556 = vst.msk [vmem:[%s332 + $0x50] sm:$0xff] %vm7545, %v7469
      %7557 = vst.msk [vmem:[%s332 + $0x58] sm:$0xff] %vm7545, %v7484
      %7558 = vst.msk [vmem:[%s332 + $0x60] sm:$0xff] %vm7545, %v7499
      %7559 = vst.msk [vmem:[%s332 + $0x68] sm:$0xff] %vm7545, %v7514
      %7560 = vst.msk [vmem:[%s332 + $0x70] sm:$0xff] %vm7545, %v7529
      %7561 = vst.msk [vmem:[%s332 + $0x78] sm:$0xff] %vm7545, %v7544
      %s7562 = smul.u32 16, %s20
      %p7563 = scmp.lt.s32.totalorder %s7562, 31
      %s7564 = scalar_select %p7563, %s7562, 31
      %s7565 = smul.addr %s7564, 8
      %s7566 = scalar_lea.vmem %s9, %s7565
      // Predicated region
      $region57: #{_lambda_.1} parent=55 // pred_check
        %p7567 = pneg %p232
      $region58: #{_lambda_.1} parent=55 // pred_check_branch
        %7569 = sbr.rel (%p7567) target = $region60
      $region59: #{_lambda_.1} parent=55 // pred_region
        %s7570 = smul.u32 16, %s20
      $region60: #{_lambda_.1} parent=55 // pred_fallthru
        _
    $region56: #{_lambda_.1} parent=5 // pred_fallthru
      _
    %p7571 = scmp.le.s32.totalorder 2, %s15
    // Predicated region
    $region61: #{_lambda_.1} parent=5 // pred_check
      %p7572 = pneg %p7571
    $region62: #{_lambda_.1} parent=5 // pred_check_branch
      %7574 = sbr.rel (%p7572) target = $region64
    $region63: #{_lambda_.1} parent=5 // pred_region
      %s7575 = ssub.s32 %s15, 2
      // Predicated region
      $region65: #{_lambda_.1} parent=63 // pred_check
        %p7576 = pneg %p238
      $region66: #{_lambda_.1} parent=63 // pred_check_branch
        %7578 = sbr.rel (%p7576) target = $region68
      $region67: #{_lambda_.1} parent=63 // pred_region
        %s7579 = smul.u32 16, %s21
        %p7580 = scmp.lt.s32.totalorder %s7579, 31
        %s7581 = scalar_select %p7580, %s7579, 31
        %s7582 = smul.addr %s7581, 8
        %s7583 = scalar_lea.vmem %s9, %s7582
      $region68: #{_lambda_.1} parent=63 // pred_fallthru
        _
    $region64: #{_lambda_.1} parent=5 // pred_fallthru
      _
  $region6: #{_lambda_.1} parent=0 // loop_footer
    %s19 = sadd.s32 1, %s15
  $region7: #{_lambda_.1} parent=0 // loop_footer_branch
    %14 = sbr.rel target = $region3
  $region8: #{_lambda_.1} parent=0 // loop_exit
    _

</llo_original>
